<compile_context>
chip_gen: v7x
topology: tpu7x:2x2x1
jax: 0.10.0
libtpu: 0.0.40
codegen_flags: <defaults>
</compile_context>

<pallas_src>
import functools

import jax
import jax.numpy as jnp
from jax.experimental import pallas as pl
from jax.experimental.pallas import tpu as pltpu


DILATIONS = (6, 12, 18)          # aspp2 / aspp3 / aspp4 (mult = 1)


def _round_up(x, m):
    return ((x + m - 1) // m) * m


# ----------------------------------------------------------------------------
# Fused ASPP kernel
# ----------------------------------------------------------------------------
def _aspp_fused_kernel(H, W, Cin, Ca, pad_lo,
                       x_ref, w1_ref, w3_ref, w5_ref, wc14_ref, wc5_ref,
                       s14_ref, b14_ref, s5_ref, b5_ref, sc_ref, bc_ref,
                       o_ref, xp_ref):
    """One grid step == one image; all five branches stay in VMEM.

    x_ref   : (1, H, W, Cin) bf16   unpadded NHWC image
    w1_ref  : (Cin, Ca) bf16        aspp1 (1x1)
    w3_ref  : (3, 9*Cin, Ca) bf16   aspp2/3/4 (im2col layout, kh-major)
    w5_ref  : (Cin, Ca) bf16        aspp5 (1x1 on pooled features)
    wc14_ref: (4*Ca, Cpad) bf16     conv2 rows for branches 1..4
    wc5_ref : (Ca, Cpad) bf16       conv2 rows for the pooled branch
    s14/b14 : (1, 4*Ca) f32         folded BN of branches 1..4 (concatenated)
    s5/b5   : (1, Ca) f32           folded BN of branch 5
    sc/bc   : (1, Cpad) f32         folded bn2 (zero-padded channels)
    o_ref   : (1, H*W, Cpad) bf16
    xp_ref  : (Hp, Wp, Cin) bf16    VMEM scratch: zero-padded image
    """
    HW = H * W

    # Build the zero-padded image inside VMEM (nothing padded ever hits HBM).
    # Re-zero every step: with a 'parallel' grid axis each core owns its own
    # scratch, so a program_id()==0 init would be unsafe under megacore.
    x_img = x_ref[0]                                        # (H, W, Cin)
    xp_ref[...] = jnp.zeros_like(xp_ref)
    xp_ref[pl.ds(pad_lo, H), pl.ds(pad_lo, W), :] = x_img

    xc = x_img.reshape(HW, Cin)                             # centre tap

    def tap(kh, kw, d):
        if kh == 1 and kw == 1:
            return xc                                       # centre == image
        oh = pad_lo + (kh - 1) * d
        ow = pad_lo + (kw - 1) * d
        return xp_ref[pl.ds(oh, H), pl.ds(ow, W), :].reshape(HW, Cin)

    # ---- branch 1 (aspp1): 1x1 conv ----
    ys = [jnp.dot(xc, w1_ref[...], preferred_element_type=jnp.float32)]

    # ---- branches 2..4: each dilated 3x3 conv as ONE matmul, K = 9*Cin ----
    for bi, d in enumerate(DILATIONS):
        slab = jnp.concatenate(
            [tap(kh, kw, d) for kh in range(3) for kw in range(3)], axis=-1)
        ys.append(jnp.dot(slab, w3_ref[bi],
                          preferred_element_type=jnp.float32))

    # ---- concat + folded BN + ReLU for all four spatial branches at once ----
    cat = jnp.concatenate(ys, axis=-1)                      # (HW, 4*Ca) f32
    cat = jnp.maximum(cat * s14_ref[...] + b14_ref[...], 0.0)

    # ---- conv2 over branches 1..4: single matmul, K = 4*Ca ----
    out = jnp.dot(cat.astype(jnp.bfloat16), wc14_ref[...],
                  preferred_element_type=jnp.float32)       # (HW, Cpad)

    # ---- pooled branch (aspp5): spatially constant -> per-image bias ----
    xm = jnp.mean(xc.astype(jnp.float32), axis=0, keepdims=True)   # (1, Cin)
    y5 = jnp.dot(xm.astype(jnp.bfloat16), w5_ref[...],
                 preferred_element_type=jnp.float32)
    y5 = jnp.maximum(y5 * s5_ref[...] + b5_ref[...], 0.0)
    pool_bias = jnp.dot(y5.astype(jnp.bfloat16), wc5_ref[...],
                        preferred_element_type=jnp.float32)        # (1, Cpad)

    # ---- bn2 + ReLU epilogue, lane-dense bf16 store ----
    out = jnp.maximum((out + pool_bias) * sc_ref[...] + bc_ref[...], 0.0)
    o_ref[0] = out.astype(o_ref.dtype)


def _aspp_fused(x_nhwc, w1, w3, w5, wc14, wc5, s14, b14, s5, b5, sc, bc):
    N, H, W, Cin = x_nhwc.shape
    Ca = w1.shape[1]
    cpad = wc14.shape[1]
    HW = H * W
    dmax = max(DILATIONS)
    # Left/top pad rounded up to the bf16 sublane tile (16) so the one interior
    # store into the padded scratch is tile-aligned; right/bottom pad = dmax.
    pad_lo = _round_up(dmax, 16)
    Hp, Wp = pad_lo + H + dmax, pad_lo + W + dmax

    flops = (2 * N * HW * Cin * Ca * (1 + 9 * len(DILATIONS))    # branches
             + 2 * N * HW * (4 * Ca) * cpad                      # conv2
             + 2 * N * (HW * Cin + Cin * Ca + Ca * cpad))        # pooled path
    bytes_acc = (x_nhwc.size * 2 + w1.size * 2 + w3.size * 2 + w5.size * 2
                 + wc14.size * 2 + wc5.size * 2 + N * HW * cpad * 2)
    cost = pl.CostEstimate(flops=flops, transcendentals=0,
                           bytes_accessed=bytes_acc)

    kernel = functools.partial(_aspp_fused_kernel, H, W, Cin, Ca, pad_lo)
    # TODO(synk): at production size, mark the weight in_specs with
    #             pipeline_mode=pl.Buffered(1) (single-buffered) and add a
    #             row-tile 'parallel' grid axis with a 2*dmax halo.
    return pl.pallas_call(
        kernel,
        out_shape=jax.ShapeDtypeStruct((N, HW, cpad), jnp.bfloat16),
        grid=(N,),
        in_specs=[
            pl.BlockSpec((1, H, W, Cin), lambda n: (n, 0, 0, 0)),
            pl.BlockSpec((Cin, Ca), lambda n: (0, 0)),
            pl.BlockSpec((3, 9 * Cin, Ca), lambda n: (0, 0, 0)),
            pl.BlockSpec((Cin, Ca), lambda n: (0, 0)),
            pl.BlockSpec((4 * Ca, cpad), lambda n: (0, 0)),
            pl.BlockSpec((Ca, cpad), lambda n: (0, 0)),
            pl.BlockSpec((1, 4 * Ca), lambda n: (0, 0)),
            pl.BlockSpec((1, 4 * Ca), lambda n: (0, 0)),
            pl.BlockSpec((1, Ca), lambda n: (0, 0)),
            pl.BlockSpec((1, Ca), lambda n: (0, 0)),
            pl.BlockSpec((1, cpad), lambda n: (0, 0)),
            pl.BlockSpec((1, cpad), lambda n: (0, 0)),
        ],
        out_specs=pl.BlockSpec((1, HW, cpad), lambda n: (n, 0, 0)),
        scratch_shapes=[pltpu.VMEM((Hp, Wp, Cin), jnp.bfloat16)],
        compiler_params=pltpu.CompilerParams(
            dimension_semantics=("parallel",),
            vmem_limit_bytes=32 * 1024 * 1024),
        cost_estimate=cost,
    )(x_nhwc, w1, w3, w5, wc14, wc5, s14, b14, s5, b5, sc, bc)


# ----------------------------------------------------------------------------
# ASPP forward
# ----------------------------------------------------------------------------
@jax.jit
def aspp_forward(x_nchw, p):
    N, Cin, H, W = x_nchw.shape
    Ca = p["w1"].shape[1]
    cpad = _round_up(max(Ca, 128), 128)     # lane-dense output channels

    # Single NHWC bf16 copy of the activations (accumulation stays f32).
    x = jnp.transpose(x_nchw, (0, 2, 3, 1)).astype(jnp.bfloat16)

    bf = lambda a: a.astype(jnp.bfloat16)
    pad_c = ((0, 0), (0, cpad - Ca))
    w1 = bf(p["w1"])
    w3 = bf(jnp.stack([p["w2"], p["w3"], p["w4"]]))       # (3, 9*Cin, Ca)
    w5 = bf(p["w5"])
    wc = p["wc"]                                          # (5*Ca, Ca)
    wc14 = bf(jnp.pad(wc[:4 * Ca], pad_c))                # (4*Ca, Cpad)
    wc5 = bf(jnp.pad(wc[4 * Ca:], pad_c))                 # (Ca, Cpad)
    s14 = jnp.concatenate([p["s1"], p["s2"], p["s3"], p["s4"]], axis=-1)
    b14 = jnp.concatenate([p["b1"], p["b2"], p["b3"], p["b4"]], axis=-1)
    sc = jnp.pad(p["sc"], pad_c)
    bc = jnp.pad(p["bc"], pad_c)

    out = _aspp_fused(x, w1, w3, w5, wc14, wc5, s14, b14,
                      p["s5"], p["b5"], sc, bc)           # (N, HW, Cpad) bf16
    out = out[:, :, :Ca].reshape(N, H, W, Ca)             # no-op if Ca==Cpad
    return jnp.transpose(out, (0, 3, 1, 2))               # NCHW, bf16


# ----------------------------------------------------------------------------
# Deterministic synthetic parameters (BN folded to inference scale/bias)
# ----------------------------------------------------------------------------
def make_params(c_in, c_aspp, eps=0.0003, seed=0):
    key = jax.random.PRNGKey(seed)
    keys = iter(jax.random.split(key, 32))

    def conv_w(k_in):
        return 0.1 * jax.random.normal(next(keys), (k_in, c_aspp), jnp.float32)

    def bn_fold():
        gamma = 1.0 + 0.1 * jax.random.normal(next(keys), (c_aspp,), jnp.float32)
        beta = 0.1 * jax.random.normal(next(keys), (c_aspp,), jnp.float32)
        mean = 0.05 * jax.random.normal(next(keys), (c_aspp,), jnp.float32)
        var = 0.5 + jnp.abs(0.2 * jax.random.normal(next(keys), (c_aspp,), jnp.float32))
        scale = gamma / jnp.sqrt(var + eps)
        bias = beta - mean * scale
        return scale.reshape(1, c_aspp), bias.reshape(1, c_aspp)

    p = {}
    p["w1"] = conv_w(c_in);        p["s1"], p["b1"] = bn_fold()
    p["w2"] = conv_w(9 * c_in);    p["s2"], p["b2"] = bn_fold()
    p["w3"] = conv_w(9 * c_in);    p["s3"], p["b3"] = bn_fold()
    p["w4"] = conv_w(9 * c_in);    p["s4"], p["b4"] = bn_fold()
    p["w5"] = conv_w(c_in);        p["s5"], p["b5"] = bn_fold()
    p["wc"] = conv_w(5 * c_aspp);  p["sc"], p["bc"] = bn_fold()
    return p


# ----------------------------------------------------------------------------
# Pure-JAX reference (same bf16-input / f32-accumulation policy, no Pallas)
# ----------------------------------------------------------------------------
def _im2col_dilated_3x3(x_nhwc, d):
    N, H, W, C = x_nhwc.shape
    xp = jnp.pad(x_nhwc, ((0, 0), (d, d), (d, d), (0, 0)))
    taps = []
    for kh in range(3):
        for kw in range(3):
            taps.append(xp[:, kh * d:kh * d + H, kw * d:kw * d + W, :])
    return jnp.concatenate(taps, axis=-1).reshape(N * H * W, 9 * C)


def _ref_forward(x_nchw, p):
    N, Cin, H, W = x_nchw.shape
    Ca = p["w1"].shape[1]
    M = N * H * W
    x = jnp.transpose(x_nchw, (0, 2, 3, 1)).astype(jnp.bfloat16)
    xf = x.reshape(M, Cin)

    def mm(a, w, s, b):
        y = jnp.dot(a.astype(jnp.bfloat16), w.astype(jnp.bfloat16),
                    preferred_element_type=jnp.float32)
        return jnp.maximum(y * s + b, 0.0)

    b1 = mm(xf, p["w1"], p["s1"], p["b1"])
    b2 = mm(_im2col_dilated_3x3(x, 6), p["w2"], p["s2"], p["b2"])
    b3 = mm(_im2col_dilated_3x3(x, 12), p["w3"], p["s3"], p["b3"])
    b4 = mm(_im2col_dilated_3x3(x, 18), p["w4"], p["s4"], p["b4"])
    pooled = jnp.mean(x.reshape(N, H * W, Cin).astype(jnp.float32), axis=1)
    b5 = mm(pooled, p["w5"], p["s5"], p["b5"])
    b5 = jnp.broadcast_to(b5[:, None, :], (N, H * W, Ca)).reshape(M, Ca)
    cat = jnp.concatenate([b1, b2, b3, b4, b5], axis=-1)
    out = mm(cat, p["wc"], p["sc"], p["bc"])
    return jnp.transpose(out.reshape(N, H, W, Ca), (0, 3, 1, 2))


# ----------------------------------------------------------------------------
# Main
# ----------------------------------------------------------------------------
if __name__ == "__main__":
    N, C_IN, H, W = 2, 4, 16, 16
    C_ASPP = 8

    key = jax.random.PRNGKey(0)
    x = jax.random.normal(key, (N, C_IN, H, W), dtype=jnp.float32)
    params = make_params(C_IN, C_ASPP)

    out = jax.block_until_ready(aspp_forward(x, params))
    assert out.shape == (N, C_ASPP, H, W), out.shape

    ref = jax.block_until_ready(_ref_forward(x, params))
    out_f32 = out.astype(jnp.float32)
    max_err = float(jnp.max(jnp.abs(out_f32 - ref)))
    assert bool(jnp.allclose(out_f32, ref, atol=1e-2, rtol=1e-2)), (
        f"mismatch vs reference (max abs err {max_err})")

    print("KERNEL_OK")
</pallas_src>

<mosaic_0001>
module attributes {stable_mosaic.version = 11 : i64} {
  func.func @_aspp_fused_kernel(%arg0: i32, %arg1: memref<1x16x16x4xbf16, #tpu.memory_space<vmem>>, %arg2: memref<4x8xbf16, #tpu.memory_space<vmem>>, %arg3: memref<3x36x8xbf16, #tpu.memory_space<vmem>>, %arg4: memref<4x8xbf16, #tpu.memory_space<vmem>>, %arg5: memref<32x128xbf16, #tpu.memory_space<vmem>>, %arg6: memref<8x128xbf16, #tpu.memory_space<vmem>>, %arg7: memref<1x32xf32, #tpu.memory_space<vmem>>, %arg8: memref<1x32xf32, #tpu.memory_space<vmem>>, %arg9: memref<1x8xf32, #tpu.memory_space<vmem>>, %arg10: memref<1x8xf32, #tpu.memory_space<vmem>>, %arg11: memref<1x128xf32, #tpu.memory_space<vmem>>, %arg12: memref<1x128xf32, #tpu.memory_space<vmem>>, %arg13: memref<1x256x128xbf16, #tpu.memory_space<vmem>>, %arg14: memref<66x66x4xbf16, #tpu.memory_space<vmem>>) attributes {dimension_semantics = [#tpu.dimension_semantics<parallel>], iteration_bounds = array<i64: 2>, scalar_prefetch = 0 : i64, scratch_operands = 1 : i64, tpu.core_type = #tpu.core_type<tc>, window_params = [{transform_indices = @transform_0, window_bounds = array<i64: 1, 16, 16, 4>}, {pipeline_mode = #tpu.pipeline_mode<synchronous>, transform_indices = @transform_1, window_bounds = array<i64: 4, 8>}, {pipeline_mode = #tpu.pipeline_mode<synchronous>, transform_indices = @transform_2, window_bounds = array<i64: 3, 36, 8>}, {pipeline_mode = #tpu.pipeline_mode<synchronous>, transform_indices = @transform_3, window_bounds = array<i64: 4, 8>}, {pipeline_mode = #tpu.pipeline_mode<synchronous>, transform_indices = @transform_4, window_bounds = array<i64: 32, 128>}, {pipeline_mode = #tpu.pipeline_mode<synchronous>, transform_indices = @transform_5, window_bounds = array<i64: 8, 128>}, {pipeline_mode = #tpu.pipeline_mode<synchronous>, transform_indices = @transform_6, window_bounds = array<i64: 1, 32>}, {pipeline_mode = #tpu.pipeline_mode<synchronous>, transform_indices = @transform_7, window_bounds = array<i64: 1, 32>}, {pipeline_mode = #tpu.pipeline_mode<synchronous>, transform_indices = @transform_8, window_bounds = array<i64: 1, 8>}, {pipeline_mode = #tpu.pipeline_mode<synchronous>, transform_indices = @transform_9, window_bounds = array<i64: 1, 8>}, {pipeline_mode = #tpu.pipeline_mode<synchronous>, transform_indices = @transform_10, window_bounds = array<i64: 1, 128>}, {pipeline_mode = #tpu.pipeline_mode<synchronous>, transform_indices = @transform_11, window_bounds = array<i64: 1, 128>}, {transform_indices = @transform_12, window_bounds = array<i64: 1, 256, 128>}]} {
    %c0 = arith.constant 0 : index
    %c0_0 = arith.constant 0 : index
    %c0_1 = arith.constant 0 : index
    %c0_2 = arith.constant 0 : index
    %0 = vector.load %arg1[%c0, %c0_0, %c0_1, %c0_2] : memref<1x16x16x4xbf16, #tpu.memory_space<vmem>>, vector<1x16x16x4xbf16>
    %1 = vector.shape_cast %0 : vector<1x16x16x4xbf16> to vector<16x16x4xbf16>
    %cst = arith.constant 0.000000e+00 : bf16
    %2 = vector.broadcast %cst : bf16 to vector<66x66x4xbf16>
    %c0_3 = arith.constant 0 : index
    %c0_4 = arith.constant 0 : index
    %c0_5 = arith.constant 0 : index
    %3 = vector.load %arg14[%c0_3, %c0_4, %c0_5] : memref<66x66x4xbf16, #tpu.memory_space<vmem>>, vector<66x66x4xbf16>
    tpu.vector_store %arg14[%c0_3, %c0_4, %c0_5], %2 {strides = array<i32>} : memref<66x66x4xbf16, #tpu.memory_space<vmem>>, vector<66x66x4xbf16>,
    %c32 = arith.constant 32 : index
    %c32_6 = arith.constant 32 : index
    %c0_7 = arith.constant 0 : index
    %4 = vector.load %arg14[%c32, %c32_6, %c0_7] : memref<66x66x4xbf16, #tpu.memory_space<vmem>>, vector<16x16x4xbf16>
    tpu.vector_store %arg14[%c32, %c32_6, %c0_7], %1 {strides = array<i32>} : memref<66x66x4xbf16, #tpu.memory_space<vmem>>, vector<16x16x4xbf16>,
    %5 = vector.shape_cast %1 : vector<16x16x4xbf16> to vector<256x4xbf16>
    %c0_8 = arith.constant 0 : index
    %c0_9 = arith.constant 0 : index
    %6 = vector.load %arg2[%c0_8, %c0_9] : memref<4x8xbf16, #tpu.memory_space<vmem>>, vector<4x8xbf16>
    %cst_10 = arith.constant dense<0.000000e+00> : vector<256x8xf32>
    %7 = tpu.matmul %5, %6, %cst_10 {dimension_numbers = #tpu.dot_dimension_numbers<[1], [0], [0], [1], [0, 0, 1, 1], [], []>} : vector<256x4xbf16>, vector<4x8xbf16>, vector<256x8xf32> -> vector<256x8xf32>
    %c26 = arith.constant 26 : index
    %c26_11 = arith.constant 26 : index
    %c0_12 = arith.constant 0 : index
    %8 = vector.load %arg14[%c26, %c26_11, %c0_12] : memref<66x66x4xbf16, #tpu.memory_space<vmem>>, vector<16x16x4xbf16>
    %9 = vector.shape_cast %8 : vector<16x16x4xbf16> to vector<256x4xbf16>
    %c26_13 = arith.constant 26 : index
    %c32_14 = arith.constant 32 : index
    %c0_15 = arith.constant 0 : index
    %10 = vector.load %arg14[%c26_13, %c32_14, %c0_15] : memref<66x66x4xbf16, #tpu.memory_space<vmem>>, vector<16x16x4xbf16>
    %11 = vector.shape_cast %10 : vector<16x16x4xbf16> to vector<256x4xbf16>
    %c26_16 = arith.constant 26 : index
    %c38 = arith.constant 38 : index
    %c0_17 = arith.constant 0 : index
    %12 = vector.load %arg14[%c26_16, %c38, %c0_17] : memref<66x66x4xbf16, #tpu.memory_space<vmem>>, vector<16x16x4xbf16>
    %13 = vector.shape_cast %12 : vector<16x16x4xbf16> to vector<256x4xbf16>
    %c32_18 = arith.constant 32 : index
    %c26_19 = arith.constant 26 : index
    %c0_20 = arith.constant 0 : index
    %14 = vector.load %arg14[%c32_18, %c26_19, %c0_20] : memref<66x66x4xbf16, #tpu.memory_space<vmem>>, vector<16x16x4xbf16>
    %15 = vector.shape_cast %14 : vector<16x16x4xbf16> to vector<256x4xbf16>
    %c32_21 = arith.constant 32 : index
    %c38_22 = arith.constant 38 : index
    %c0_23 = arith.constant 0 : index
    %16 = vector.load %arg14[%c32_21, %c38_22, %c0_23] : memref<66x66x4xbf16, #tpu.memory_space<vmem>>, vector<16x16x4xbf16>
    %17 = vector.shape_cast %16 : vector<16x16x4xbf16> to vector<256x4xbf16>
    %c38_24 = arith.constant 38 : index
    %c26_25 = arith.constant 26 : index
    %c0_26 = arith.constant 0 : index
    %18 = vector.load %arg14[%c38_24, %c26_25, %c0_26] : memref<66x66x4xbf16, #tpu.memory_space<vmem>>, vector<16x16x4xbf16>
    %19 = vector.shape_cast %18 : vector<16x16x4xbf16> to vector<256x4xbf16>
    %c38_27 = arith.constant 38 : index
    %c32_28 = arith.constant 32 : index
    %c0_29 = arith.constant 0 : index
    %20 = vector.load %arg14[%c38_27, %c32_28, %c0_29] : memref<66x66x4xbf16, #tpu.memory_space<vmem>>, vector<16x16x4xbf16>
    %21 = vector.shape_cast %20 : vector<16x16x4xbf16> to vector<256x4xbf16>
    %c38_30 = arith.constant 38 : index
    %c38_31 = arith.constant 38 : index
    %c0_32 = arith.constant 0 : index
    %22 = vector.load %arg14[%c38_30, %c38_31, %c0_32] : memref<66x66x4xbf16, #tpu.memory_space<vmem>>, vector<16x16x4xbf16>
    %23 = vector.shape_cast %22 : vector<16x16x4xbf16> to vector<256x4xbf16>
    %24 = tpu.concatenate %9, %11, %13, %15, %5, %17, %19, %21, %23 in 1 : vector<256x4xbf16>, vector<256x4xbf16>, vector<256x4xbf16>, vector<256x4xbf16>, vector<256x4xbf16>, vector<256x4xbf16>, vector<256x4xbf16>, vector<256x4xbf16>, vector<256x4xbf16> -> vector<256x36xbf16>
    %c0_33 = arith.constant 0 : index
    %c0_34 = arith.constant 0 : index
    %c0_35 = arith.constant 0 : index
    %25 = vector.load %arg3[%c0_33, %c0_34, %c0_35] : memref<3x36x8xbf16, #tpu.memory_space<vmem>>, vector<1x36x8xbf16>
    %26 = vector.shape_cast %25 : vector<1x36x8xbf16> to vector<36x8xbf16>
    %cst_36 = arith.constant dense<0.000000e+00> : vector<256x8xf32>
    %27 = tpu.matmul %24, %26, %cst_36 {dimension_numbers = #tpu.dot_dimension_numbers<[1], [0], [0], [1], [0, 0, 1, 1], [], []>} : vector<256x36xbf16>, vector<36x8xbf16>, vector<256x8xf32> -> vector<256x8xf32>
    %c20 = arith.constant 20 : index
    %c20_37 = arith.constant 20 : index
    %c0_38 = arith.constant 0 : index
    %28 = vector.load %arg14[%c20, %c20_37, %c0_38] : memref<66x66x4xbf16, #tpu.memory_space<vmem>>, vector<16x16x4xbf16>
    %29 = vector.shape_cast %28 : vector<16x16x4xbf16> to vector<256x4xbf16>
    %c20_39 = arith.constant 20 : index
    %c32_40 = arith.constant 32 : index
    %c0_41 = arith.constant 0 : index
    %30 = vector.load %arg14[%c20_39, %c32_40, %c0_41] : memref<66x66x4xbf16, #tpu.memory_space<vmem>>, vector<16x16x4xbf16>
    %31 = vector.shape_cast %30 : vector<16x16x4xbf16> to vector<256x4xbf16>
    %c20_42 = arith.constant 20 : index
    %c44 = arith.constant 44 : index
    %c0_43 = arith.constant 0 : index
    %32 = vector.load %arg14[%c20_42, %c44, %c0_43] : memref<66x66x4xbf16, #tpu.memory_space<vmem>>, vector<16x16x4xbf16>
    %33 = vector.shape_cast %32 : vector<16x16x4xbf16> to vector<256x4xbf16>
    %c32_44 = arith.constant 32 : index
    %c20_45 = arith.constant 20 : index
    %c0_46 = arith.constant 0 : index
    %34 = vector.load %arg14[%c32_44, %c20_45, %c0_46] : memref<66x66x4xbf16, #tpu.memory_space<vmem>>, vector<16x16x4xbf16>
    %35 = vector.shape_cast %34 : vector<16x16x4xbf16> to vector<256x4xbf16>
    %c32_47 = arith.constant 32 : index
    %c44_48 = arith.constant 44 : index
    %c0_49 = arith.constant 0 : index
    %36 = vector.load %arg14[%c32_47, %c44_48, %c0_49] : memref<66x66x4xbf16, #tpu.memory_space<vmem>>, vector<16x16x4xbf16>
    %37 = vector.shape_cast %36 : vector<16x16x4xbf16> to vector<256x4xbf16>
    %c44_50 = arith.constant 44 : index
    %c20_51 = arith.constant 20 : index
    %c0_52 = arith.constant 0 : index
    %38 = vector.load %arg14[%c44_50, %c20_51, %c0_52] : memref<66x66x4xbf16, #tpu.memory_space<vmem>>, vector<16x16x4xbf16>
    %39 = vector.shape_cast %38 : vector<16x16x4xbf16> to vector<256x4xbf16>
    %c44_53 = arith.constant 44 : index
    %c32_54 = arith.constant 32 : index
    %c0_55 = arith.constant 0 : index
    %40 = vector.load %arg14[%c44_53, %c32_54, %c0_55] : memref<66x66x4xbf16, #tpu.memory_space<vmem>>, vector<16x16x4xbf16>
    %41 = vector.shape_cast %40 : vector<16x16x4xbf16> to vector<256x4xbf16>
    %c44_56 = arith.constant 44 : index
    %c44_57 = arith.constant 44 : index
    %c0_58 = arith.constant 0 : index
    %42 = vector.load %arg14[%c44_56, %c44_57, %c0_58] : memref<66x66x4xbf16, #tpu.memory_space<vmem>>, vector<16x16x4xbf16>
    %43 = vector.shape_cast %42 : vector<16x16x4xbf16> to vector<256x4xbf16>
    %44 = tpu.concatenate %29, %31, %33, %35, %5, %37, %39, %41, %43 in 1 : vector<256x4xbf16>, vector<256x4xbf16>, vector<256x4xbf16>, vector<256x4xbf16>, vector<256x4xbf16>, vector<256x4xbf16>, vector<256x4xbf16>, vector<256x4xbf16>, vector<256x4xbf16> -> vector<256x36xbf16>
    %c1 = arith.constant 1 : index
    %c0_59 = arith.constant 0 : index
    %c0_60 = arith.constant 0 : index
    %45 = vector.load %arg3[%c1, %c0_59, %c0_60] : memref<3x36x8xbf16, #tpu.memory_space<vmem>>, vector<1x36x8xbf16>
    %46 = vector.shape_cast %45 : vector<1x36x8xbf16> to vector<36x8xbf16>
    %cst_61 = arith.constant dense<0.000000e+00> : vector<256x8xf32>
    %47 = tpu.matmul %44, %46, %cst_61 {dimension_numbers = #tpu.dot_dimension_numbers<[1], [0], [0], [1], [0, 0, 1, 1], [], []>} : vector<256x36xbf16>, vector<36x8xbf16>, vector<256x8xf32> -> vector<256x8xf32>
    %c14 = arith.constant 14 : index
    %c14_62 = arith.constant 14 : index
    %c0_63 = arith.constant 0 : index
    %48 = vector.load %arg14[%c14, %c14_62, %c0_63] : memref<66x66x4xbf16, #tpu.memory_space<vmem>>, vector<16x16x4xbf16>
    %49 = vector.shape_cast %48 : vector<16x16x4xbf16> to vector<256x4xbf16>
    %c14_64 = arith.constant 14 : index
    %c32_65 = arith.constant 32 : index
    %c0_66 = arith.constant 0 : index
    %50 = vector.load %arg14[%c14_64, %c32_65, %c0_66] : memref<66x66x4xbf16, #tpu.memory_space<vmem>>, vector<16x16x4xbf16>
    %51 = vector.shape_cast %50 : vector<16x16x4xbf16> to vector<256x4xbf16>
    %c14_67 = arith.constant 14 : index
    %c50 = arith.constant 50 : index
    %c0_68 = arith.constant 0 : index
    %52 = vector.load %arg14[%c14_67, %c50, %c0_68] : memref<66x66x4xbf16, #tpu.memory_space<vmem>>, vector<16x16x4xbf16>
    %53 = vector.shape_cast %52 : vector<16x16x4xbf16> to vector<256x4xbf16>
    %c32_69 = arith.constant 32 : index
    %c14_70 = arith.constant 14 : index
    %c0_71 = arith.constant 0 : index
    %54 = vector.load %arg14[%c32_69, %c14_70, %c0_71] : memref<66x66x4xbf16, #tpu.memory_space<vmem>>, vector<16x16x4xbf16>
    %55 = vector.shape_cast %54 : vector<16x16x4xbf16> to vector<256x4xbf16>
    %c32_72 = arith.constant 32 : index
    %c50_73 = arith.constant 50 : index
    %c0_74 = arith.constant 0 : index
    %56 = vector.load %arg14[%c32_72, %c50_73, %c0_74] : memref<66x66x4xbf16, #tpu.memory_space<vmem>>, vector<16x16x4xbf16>
    %57 = vector.shape_cast %56 : vector<16x16x4xbf16> to vector<256x4xbf16>
    %c50_75 = arith.constant 50 : index
    %c14_76 = arith.constant 14 : index
    %c0_77 = arith.constant 0 : index
    %58 = vector.load %arg14[%c50_75, %c14_76, %c0_77] : memref<66x66x4xbf16, #tpu.memory_space<vmem>>, vector<16x16x4xbf16>
    %59 = vector.shape_cast %58 : vector<16x16x4xbf16> to vector<256x4xbf16>
    %c50_78 = arith.constant 50 : index
    %c32_79 = arith.constant 32 : index
    %c0_80 = arith.constant 0 : index
    %60 = vector.load %arg14[%c50_78, %c32_79, %c0_80] : memref<66x66x4xbf16, #tpu.memory_space<vmem>>, vector<16x16x4xbf16>
    %61 = vector.shape_cast %60 : vector<16x16x4xbf16> to vector<256x4xbf16>
    %c50_81 = arith.constant 50 : index
    %c50_82 = arith.constant 50 : index
    %c0_83 = arith.constant 0 : index
    %62 = vector.load %arg14[%c50_81, %c50_82, %c0_83] : memref<66x66x4xbf16, #tpu.memory_space<vmem>>, vector<16x16x4xbf16>
    %63 = vector.shape_cast %62 : vector<16x16x4xbf16> to vector<256x4xbf16>
    %64 = tpu.concatenate %49, %51, %53, %55, %5, %57, %59, %61, %63 in 1 : vector<256x4xbf16>, vector<256x4xbf16>, vector<256x4xbf16>, vector<256x4xbf16>, vector<256x4xbf16>, vector<256x4xbf16>, vector<256x4xbf16>, vector<256x4xbf16>, vector<256x4xbf16> -> vector<256x36xbf16>
    %c2 = arith.constant 2 : index
    %c0_84 = arith.constant 0 : index
    %c0_85 = arith.constant 0 : index
    %65 = vector.load %arg3[%c2, %c0_84, %c0_85] : memref<3x36x8xbf16, #tpu.memory_space<vmem>>, vector<1x36x8xbf16>
    %66 = vector.shape_cast %65 : vector<1x36x8xbf16> to vector<36x8xbf16>
    %cst_86 = arith.constant dense<0.000000e+00> : vector<256x8xf32>
    %67 = tpu.matmul %64, %66, %cst_86 {dimension_numbers = #tpu.dot_dimension_numbers<[1], [0], [0], [1], [0, 0, 1, 1], [], []>} : vector<256x36xbf16>, vector<36x8xbf16>, vector<256x8xf32> -> vector<256x8xf32>
    %68 = tpu.concatenate %7, %27, %47, %67 in 1 : vector<256x8xf32>, vector<256x8xf32>, vector<256x8xf32>, vector<256x8xf32> -> vector<256x32xf32>
    %c0_87 = arith.constant 0 : index
    %c0_88 = arith.constant 0 : index
    %69 = vector.load %arg7[%c0_87, %c0_88] : memref<1x32xf32, #tpu.memory_space<vmem>>, vector<1x32xf32>
    %70 = vector.broadcast %69 : vector<1x32xf32> to vector<256x32xf32>
    %71 = arith.mulf %68, %70 : vector<256x32xf32>
    %c0_89 = arith.constant 0 : index
    %c0_90 = arith.constant 0 : index
    %72 = vector.load %arg8[%c0_89, %c0_90] : memref<1x32xf32, #tpu.memory_space<vmem>>, vector<1x32xf32>
    %73 = vector.broadcast %72 : vector<1x32xf32> to vector<256x32xf32>
    %74 = arith.addf %71, %73 : vector<256x32xf32>
    %cst_91 = arith.constant 0.000000e+00 : f32
    %75 = vector.broadcast %cst_91 : f32 to vector<256x32xf32>
    %76 = arith.maximumf %74, %75 : vector<256x32xf32>
    %77 = arith.truncf %76 : vector<256x32xf32> to vector<256x32xbf16>
    %c0_92 = arith.constant 0 : index
    %c0_93 = arith.constant 0 : index
    %78 = vector.load %arg5[%c0_92, %c0_93] : memref<32x128xbf16, #tpu.memory_space<vmem>>, vector<32x128xbf16>
    %cst_94 = arith.constant dense<0.000000e+00> : vector<256x128xf32>
    %79 = tpu.matmul %77, %78, %cst_94 {dimension_numbers = #tpu.dot_dimension_numbers<[1], [0], [0], [1], [0, 0, 1, 1], [], []>} : vector<256x32xbf16>, vector<32x128xbf16>, vector<256x128xf32> -> vector<256x128xf32>
    %80 = arith.extf %5 : vector<256x4xbf16> to vector<256x4xf32>
    %cst_95 = arith.constant dense<0.000000e+00> : vector<4xf32>
    %81 = vector.multi_reduction <add>, %80, %cst_95 [0] : vector<256x4xf32> to vector<4xf32>
    %82 = vector.shape_cast %81 : vector<4xf32> to vector<1x4xf32>
    %cst_96 = arith.constant 2.560000e+02 : f32
    %83 = vector.broadcast %cst_96 : f32 to vector<1x4xf32>
    %84 = arith.divf %82, %83 : vector<1x4xf32>
    %85 = arith.truncf %84 : vector<1x4xf32> to vector<1x4xbf16>
    %c0_97 = arith.constant 0 : index
    %c0_98 = arith.constant 0 : index
    %86 = vector.load %arg4[%c0_97, %c0_98] : memref<4x8xbf16, #tpu.memory_space<vmem>>, vector<4x8xbf16>
    %cst_99 = arith.constant dense<0.000000e+00> : vector<1x8xf32>
    %87 = tpu.matmul %85, %86, %cst_99 {dimension_numbers = #tpu.dot_dimension_numbers<[1], [0], [0], [1], [0, 0, 1, 1], [], []>} : vector<1x4xbf16>, vector<4x8xbf16>, vector<1x8xf32> -> vector<1x8xf32>
    %c0_100 = arith.constant 0 : index
    %c0_101 = arith.constant 0 : index
    %88 = vector.load %arg9[%c0_100, %c0_101] : memref<1x8xf32, #tpu.memory_space<vmem>>, vector<1x8xf32>
    %89 = arith.mulf %87, %88 : vector<1x8xf32>
    %c0_102 = arith.constant 0 : index
    %c0_103 = arith.constant 0 : index
    %90 = vector.load %arg10[%c0_102, %c0_103] : memref<1x8xf32, #tpu.memory_space<vmem>>, vector<1x8xf32>
    %91 = arith.addf %89, %90 : vector<1x8xf32>
    %cst_104 = arith.constant 0.000000e+00 : f32
    %92 = vector.broadcast %cst_104 : f32 to vector<1x8xf32>
    %93 = arith.maximumf %91, %92 : vector<1x8xf32>
    %94 = arith.truncf %93 : vector<1x8xf32> to vector<1x8xbf16>
    %c0_105 = arith.constant 0 : index
    %c0_106 = arith.constant 0 : index
    %95 = vector.load %arg6[%c0_105, %c0_106] : memref<8x128xbf16, #tpu.memory_space<vmem>>, vector<8x128xbf16>
    %cst_107 = arith.constant dense<0.000000e+00> : vector<1x128xf32>
    %96 = tpu.matmul %94, %95, %cst_107 {dimension_numbers = #tpu.dot_dimension_numbers<[1], [0], [0], [1], [0, 0, 1, 1], [], []>} : vector<1x8xbf16>, vector<8x128xbf16>, vector<1x128xf32> -> vector<1x128xf32>
    %97 = vector.broadcast %96 : vector<1x128xf32> to vector<256x128xf32>
    %98 = arith.addf %79, %97 : vector<256x128xf32>
    %c0_108 = arith.constant 0 : index
    %c0_109 = arith.constant 0 : index
    %99 = vector.load %arg11[%c0_108, %c0_109] : memref<1x128xf32, #tpu.memory_space<vmem>>, vector<1x128xf32>
    %100 = vector.broadcast %99 : vector<1x128xf32> to vector<256x128xf32>
    %101 = arith.mulf %98, %100 : vector<256x128xf32>
    %c0_110 = arith.constant 0 : index
    %c0_111 = arith.constant 0 : index
    %102 = vector.load %arg12[%c0_110, %c0_111] : memref<1x128xf32, #tpu.memory_space<vmem>>, vector<1x128xf32>
    %103 = vector.broadcast %102 : vector<1x128xf32> to vector<256x128xf32>
    %104 = arith.addf %101, %103 : vector<256x128xf32>
    %cst_112 = arith.constant 0.000000e+00 : f32
    %105 = vector.broadcast %cst_112 : f32 to vector<256x128xf32>
    %106 = arith.maximumf %104, %105 : vector<256x128xf32>
    %107 = arith.truncf %106 : vector<256x128xf32> to vector<256x128xbf16>
    %c0_113 = arith.constant 0 : index
    %c0_114 = arith.constant 0 : index
    %c0_115 = arith.constant 0 : index
    %108 = vector.load %arg13[%c0_113, %c0_114, %c0_115] : memref<1x256x128xbf16, #tpu.memory_space<vmem>>, vector<1x256x128xbf16>
    %109 = vector.shape_cast %108 : vector<1x256x128xbf16> to vector<256x128xbf16>
    %110 = vector.shape_cast %107 : vector<256x128xbf16> to vector<1x256x128xbf16>
    tpu.vector_store %arg13[%c0_113, %c0_114, %c0_115], %110 {strides = array<i32>} : memref<1x256x128xbf16, #tpu.memory_space<vmem>>, vector<1x256x128xbf16>,
    return
  }
  func.func @transform_0(%arg0: i32) -> (i32, i32, i32, i32) {
    %c0_i32 = arith.constant 0 : i32
    %c0_i32_0 = arith.constant 0 : i32
    %c0_i32_1 = arith.constant 0 : i32
    %c0_i32_2 = arith.constant 0 : i32
    return %arg0, %c0_i32, %c0_i32_0, %c0_i32_1 : i32, i32, i32, i32
  }
  func.func @transform_1(%arg0: i32) -> (i32, i32) {
    %c0_i32 = arith.constant 0 : i32
    %c0_i32_0 = arith.constant 0 : i32
    %c0_i32_1 = arith.constant 0 : i32
    return %c0_i32, %c0_i32_0 : i32, i32
  }
  func.func @transform_2(%arg0: i32) -> (i32, i32, i32) {
    %c0_i32 = arith.constant 0 : i32
    %c0_i32_0 = arith.constant 0 : i32
    %c0_i32_1 = arith.constant 0 : i32
    %c0_i32_2 = arith.constant 0 : i32
    return %c0_i32, %c0_i32_0, %c0_i32_1 : i32, i32, i32
  }
  func.func @transform_3(%arg0: i32) -> (i32, i32) {
    %c0_i32 = arith.constant 0 : i32
    %c0_i32_0 = arith.constant 0 : i32
    %c0_i32_1 = arith.constant 0 : i32
    return %c0_i32, %c0_i32_0 : i32, i32
  }
  func.func @transform_4(%arg0: i32) -> (i32, i32) {
    %c0_i32 = arith.constant 0 : i32
    %c0_i32_0 = arith.constant 0 : i32
    %c0_i32_1 = arith.constant 0 : i32
    return %c0_i32, %c0_i32_0 : i32, i32
  }
  func.func @transform_5(%arg0: i32) -> (i32, i32) {
    %c0_i32 = arith.constant 0 : i32
    %c0_i32_0 = arith.constant 0 : i32
    %c0_i32_1 = arith.constant 0 : i32
    return %c0_i32, %c0_i32_0 : i32, i32
  }
  func.func @transform_6(%arg0: i32) -> (i32, i32) {
    %c0_i32 = arith.constant 0 : i32
    %c0_i32_0 = arith.constant 0 : i32
    %c0_i32_1 = arith.constant 0 : i32
    return %c0_i32, %c0_i32_0 : i32, i32
  }
  func.func @transform_7(%arg0: i32) -> (i32, i32) {
    %c0_i32 = arith.constant 0 : i32
    %c0_i32_0 = arith.constant 0 : i32
    %c0_i32_1 = arith.constant 0 : i32
    return %c0_i32, %c0_i32_0 : i32, i32
  }
  func.func @transform_8(%arg0: i32) -> (i32, i32) {
    %c0_i32 = arith.constant 0 : i32
    %c0_i32_0 = arith.constant 0 : i32
    %c0_i32_1 = arith.constant 0 : i32
    return %c0_i32, %c0_i32_0 : i32, i32
  }
  func.func @transform_9(%arg0: i32) -> (i32, i32) {
    %c0_i32 = arith.constant 0 : i32
    %c0_i32_0 = arith.constant 0 : i32
    %c0_i32_1 = arith.constant 0 : i32
    return %c0_i32, %c0_i32_0 : i32, i32
  }
  func.func @transform_10(%arg0: i32) -> (i32, i32) {
    %c0_i32 = arith.constant 0 : i32
    %c0_i32_0 = arith.constant 0 : i32
    %c0_i32_1 = arith.constant 0 : i32
    return %c0_i32, %c0_i32_0 : i32, i32
  }
  func.func @transform_11(%arg0: i32) -> (i32, i32) {
    %c0_i32 = arith.constant 0 : i32
    %c0_i32_0 = arith.constant 0 : i32
    %c0_i32_1 = arith.constant 0 : i32
    return %c0_i32, %c0_i32_0 : i32, i32
  }
  func.func @transform_12(%arg0: i32) -> (i32, i32, i32) {
    %c0_i32 = arith.constant 0 : i32
    %c0_i32_0 = arith.constant 0 : i32
    %c0_i32_1 = arith.constant 0 : i32
    return %arg0, %c0_i32, %c0_i32_0 : i32, i32, i32
  }
}

</mosaic_0001>

<llo_original>
// kernel: aspp_forward.1
$region0: #{aspp_forward.1}
  #allocation0 [shape = 'u32[]', space=smem, size = 0x4, offset = 0x4, fixed_abs, tag = 'smem constant byte address 0x4 - core index']
  #allocation1 [shape = 'u32[144,128]{1,0:T(1,128)}', space=vmem, size = 0x12000, scoped, tag = 'internal scratch']
  #allocation2 [shape = 'bf16[66,66,4]{2,1,0:T(8,128)(2,1)}', space=vmem, size = 0x129000, scoped, tag = 'scratch operand']
  %s0 = inlined_call_operand.vmem [shape: bf16[2,16,16,4], index: 0, kind: input, shape index: {}]
  %s1 = inlined_call_operand.vmem [shape: bf16[4,8], index: 1, kind: input, shape index: {}]
  %s2 = inlined_call_operand.vmem [shape: bf16[3,36,8], index: 2, kind: input, shape index: {}]
  %s3 = inlined_call_operand.vmem [shape: bf16[4,8], index: 3, kind: input, shape index: {}]
  %s4 = inlined_call_operand.vmem [shape: bf16[32,128], index: 4, kind: input, shape index: {}]
  %s5 = inlined_call_operand.vmem [shape: bf16[8,128], index: 5, kind: input, shape index: {}]
  %s6 = inlined_call_operand.vmem [shape: f32[1,32], index: 6, kind: input, shape index: {}]
  %s7 = inlined_call_operand.vmem [shape: f32[1,32], index: 7, kind: input, shape index: {}]
  %s8 = inlined_call_operand.vmem [shape: f32[1,8], index: 8, kind: input, shape index: {}]
  %s9 = inlined_call_operand.vmem [shape: f32[1,8], index: 9, kind: input, shape index: {}]
  %s10 = inlined_call_operand.vmem [shape: f32[1,128], index: 10, kind: input, shape index: {}]
  %s11 = inlined_call_operand.vmem [shape: f32[1,128], index: 11, kind: input, shape index: {}]
  %s12 = inlined_call_operand.vmem [shape: bf16[2,256,128], index: 12, kind: output, shape index: {}]
  %s13 = sld [smem:[#allocation0]]
  $region81: #{aspp_forward.1} parent=0
    _
  %s15 = ssub.s32 1, %s13
  %s16 = scalar_select 0, %s15, %s13
  loop: start=0, step=1, limit=4
  $region2: #{aspp_forward.1} parent=0 // loop_pre_header
    _
  $region3: #{aspp_forward.1} parent=0 // loop_header
    %s18 = sphi 0, %s22
    %p19 = scmp.ge.s32.totalorder %s18, 4
    %s28 = sphi 0, %s30
    %s31 = sphi 0, %s28
    %s32 = sphi 0, %s31
    %s48 = sphi 0, %s32
    %s52 = sphi 0, %s52
    %s54 = sphi 0, %s52
    %s55 = sphi 0, %s54
    %s69 = sphi 0, %s55
    %s73 = sphi 0, %s73
    %s75 = sphi 0, %s73
    %s76 = sphi 0, %s75
    %s90 = sphi 0, %s76
    %s94 = sphi 0, %s94
    %s96 = sphi 0, %s94
    %s97 = sphi 0, %s96
    %s111 = sphi 0, %s97
    %s115 = sphi 0, %s115
    %s117 = sphi 0, %s115
    %s118 = sphi 0, %s117
    %s132 = sphi 0, %s118
    %s136 = sphi 0, %s136
    %s138 = sphi 0, %s136
    %s139 = sphi 0, %s138
    %s153 = sphi 0, %s139
    %s157 = sphi 0, %s157
    %s159 = sphi 0, %s157
    %s160 = sphi 0, %s159
    %s174 = sphi 0, %s160
    %s178 = sphi 0, %s178
    %s180 = sphi 0, %s178
    %s181 = sphi 0, %s180
    %s195 = sphi 0, %s181
    %s199 = sphi 0, %s199
    %s201 = sphi 0, %s199
    %s202 = sphi 0, %s201
    %s216 = sphi 0, %s202
    %s220 = sphi 0, %s220
    %s222 = sphi 0, %s220
    %s223 = sphi 0, %s222
    %s237 = sphi 0, %s223
    %s241 = sphi 0, %s241
    %s243 = sphi 0, %s241
    %s244 = sphi 0, %s243
    %s258 = sphi 0, %s244
    %s262 = sphi 0, %s262
    %s264 = sphi 0, %s262
    %s265 = sphi 0, %s264
    %s279 = sphi 0, %s265
    %s285 = sphi 0, %s287
    %s288 = sphi 0, %s285
    %s289 = sphi 0, %s288
    %s305 = sphi 0, %s289
  $region4: #{aspp_forward.1} parent=0 // loop_header_branch
    %21 = sbr.rel (%p19) target = $region8
  $region5: #{aspp_forward.1} parent=0 // loop_body
    %s23 = ssub.s32 %s18, 1
    %s24 = ssub.s32 %s18, 2
    %s25 = sadd.s32 %s18, 1
    %s26 = ssub.s32 %s18, %s25
    %p27 = scmp.eq.s32.totalorder %s26, 0
    %s29 = sadd.s32 %s28, 1
    %s30 = scalar_select %p27, %s28, %s29
    %p33 = pneg %p27
    %p34 = scmp.eq.s32.totalorder %s18, 1
    %p35 = por %p33, %p34
    %p36 = scmp.ne.s32.totalorder %s28, %s31
    %p37 = scmp.eq.s32.totalorder %s18, 0
    %p38 = por %p36, %p37
    %p39 = scmp.ne.s32.totalorder %s28, %s31
    %p40 = scmp.eq.s32.totalorder %s23, 1
    %p41 = por %p39, %p40
    %p42 = scmp.ne.s32.totalorder %s31, %s32
    %p43 = scmp.eq.s32.totalorder %s23, 0
    %p44 = por %p42, %p43
    %p45 = scmp.ne.s32.totalorder %s31, %s32
    %p46 = scmp.eq.s32.totalorder %s24, 1
    %p47 = por %p45, %p46
    %p49 = scmp.ne.s32.totalorder %s32, %s48
    %p50 = scmp.eq.s32.totalorder %s24, 0
    %p51 = por %p49, %p50
    %s53 = sadd.s32 %s52, 1
    %p56 = scmp.eq.s32.totalorder %s18, 1
    %p57 = scmp.ne.s32.totalorder %s52, %s54
    %p58 = scmp.eq.s32.totalorder %s18, 0
    %p59 = por %p57, %p58
    %p60 = scmp.ne.s32.totalorder %s52, %s54
    %p61 = scmp.eq.s32.totalorder %s23, 1
    %p62 = por %p60, %p61
    %p63 = scmp.ne.s32.totalorder %s54, %s55
    %p64 = scmp.eq.s32.totalorder %s23, 0
    %p65 = por %p63, %p64
    %p66 = scmp.ne.s32.totalorder %s54, %s55
    %p67 = scmp.eq.s32.totalorder %s24, 1
    %p68 = por %p66, %p67
    %p70 = scmp.ne.s32.totalorder %s55, %s69
    %p71 = scmp.eq.s32.totalorder %s24, 0
    %p72 = por %p70, %p71
    %s74 = sadd.s32 %s73, 1
    %p77 = scmp.eq.s32.totalorder %s18, 1
    %p78 = scmp.ne.s32.totalorder %s73, %s75
    %p79 = scmp.eq.s32.totalorder %s18, 0
    %p80 = por %p78, %p79
    %p81 = scmp.ne.s32.totalorder %s73, %s75
    %p82 = scmp.eq.s32.totalorder %s23, 1
    %p83 = por %p81, %p82
    %p84 = scmp.ne.s32.totalorder %s75, %s76
    %p85 = scmp.eq.s32.totalorder %s23, 0
    %p86 = por %p84, %p85
    %p87 = scmp.ne.s32.totalorder %s75, %s76
    %p88 = scmp.eq.s32.totalorder %s24, 1
    %p89 = por %p87, %p88
    %p91 = scmp.ne.s32.totalorder %s76, %s90
    %p92 = scmp.eq.s32.totalorder %s24, 0
    %p93 = por %p91, %p92
    %s95 = sadd.s32 %s94, 1
    %p98 = scmp.eq.s32.totalorder %s18, 1
    %p99 = scmp.ne.s32.totalorder %s94, %s96
    %p100 = scmp.eq.s32.totalorder %s18, 0
    %p101 = por %p99, %p100
    %p102 = scmp.ne.s32.totalorder %s94, %s96
    %p103 = scmp.eq.s32.totalorder %s23, 1
    %p104 = por %p102, %p103
    %p105 = scmp.ne.s32.totalorder %s96, %s97
    %p106 = scmp.eq.s32.totalorder %s23, 0
    %p107 = por %p105, %p106
    %p108 = scmp.ne.s32.totalorder %s96, %s97
    %p109 = scmp.eq.s32.totalorder %s24, 1
    %p110 = por %p108, %p109
    %p112 = scmp.ne.s32.totalorder %s97, %s111
    %p113 = scmp.eq.s32.totalorder %s24, 0
    %p114 = por %p112, %p113
    %s116 = sadd.s32 %s115, 1
    %p119 = scmp.eq.s32.totalorder %s18, 1
    %p120 = scmp.ne.s32.totalorder %s115, %s117
    %p121 = scmp.eq.s32.totalorder %s18, 0
    %p122 = por %p120, %p121
    %p123 = scmp.ne.s32.totalorder %s115, %s117
    %p124 = scmp.eq.s32.totalorder %s23, 1
    %p125 = por %p123, %p124
    %p126 = scmp.ne.s32.totalorder %s117, %s118
    %p127 = scmp.eq.s32.totalorder %s23, 0
    %p128 = por %p126, %p127
    %p129 = scmp.ne.s32.totalorder %s117, %s118
    %p130 = scmp.eq.s32.totalorder %s24, 1
    %p131 = por %p129, %p130
    %p133 = scmp.ne.s32.totalorder %s118, %s132
    %p134 = scmp.eq.s32.totalorder %s24, 0
    %p135 = por %p133, %p134
    %s137 = sadd.s32 %s136, 1
    %p140 = scmp.eq.s32.totalorder %s18, 1
    %p141 = scmp.ne.s32.totalorder %s136, %s138
    %p142 = scmp.eq.s32.totalorder %s18, 0
    %p143 = por %p141, %p142
    %p144 = scmp.ne.s32.totalorder %s136, %s138
    %p145 = scmp.eq.s32.totalorder %s23, 1
    %p146 = por %p144, %p145
    %p147 = scmp.ne.s32.totalorder %s138, %s139
    %p148 = scmp.eq.s32.totalorder %s23, 0
    %p149 = por %p147, %p148
    %p150 = scmp.ne.s32.totalorder %s138, %s139
    %p151 = scmp.eq.s32.totalorder %s24, 1
    %p152 = por %p150, %p151
    %p154 = scmp.ne.s32.totalorder %s139, %s153
    %p155 = scmp.eq.s32.totalorder %s24, 0
    %p156 = por %p154, %p155
    %s158 = sadd.s32 %s157, 1
    %p161 = scmp.eq.s32.totalorder %s18, 1
    %p162 = scmp.ne.s32.totalorder %s157, %s159
    %p163 = scmp.eq.s32.totalorder %s18, 0
    %p164 = por %p162, %p163
    %p165 = scmp.ne.s32.totalorder %s157, %s159
    %p166 = scmp.eq.s32.totalorder %s23, 1
    %p167 = por %p165, %p166
    %p168 = scmp.ne.s32.totalorder %s159, %s160
    %p169 = scmp.eq.s32.totalorder %s23, 0
    %p170 = por %p168, %p169
    %p171 = scmp.ne.s32.totalorder %s159, %s160
    %p172 = scmp.eq.s32.totalorder %s24, 1
    %p173 = por %p171, %p172
    %p175 = scmp.ne.s32.totalorder %s160, %s174
    %p176 = scmp.eq.s32.totalorder %s24, 0
    %p177 = por %p175, %p176
    %s179 = sadd.s32 %s178, 1
    %p182 = scmp.eq.s32.totalorder %s18, 1
    %p183 = scmp.ne.s32.totalorder %s178, %s180
    %p184 = scmp.eq.s32.totalorder %s18, 0
    %p185 = por %p183, %p184
    %p186 = scmp.ne.s32.totalorder %s178, %s180
    %p187 = scmp.eq.s32.totalorder %s23, 1
    %p188 = por %p186, %p187
    %p189 = scmp.ne.s32.totalorder %s180, %s181
    %p190 = scmp.eq.s32.totalorder %s23, 0
    %p191 = por %p189, %p190
    %p192 = scmp.ne.s32.totalorder %s180, %s181
    %p193 = scmp.eq.s32.totalorder %s24, 1
    %p194 = por %p192, %p193
    %p196 = scmp.ne.s32.totalorder %s181, %s195
    %p197 = scmp.eq.s32.totalorder %s24, 0
    %p198 = por %p196, %p197
    %s200 = sadd.s32 %s199, 1
    %p203 = scmp.eq.s32.totalorder %s18, 1
    %p204 = scmp.ne.s32.totalorder %s199, %s201
    %p205 = scmp.eq.s32.totalorder %s18, 0
    %p206 = por %p204, %p205
    %p207 = scmp.ne.s32.totalorder %s199, %s201
    %p208 = scmp.eq.s32.totalorder %s23, 1
    %p209 = por %p207, %p208
    %p210 = scmp.ne.s32.totalorder %s201, %s202
    %p211 = scmp.eq.s32.totalorder %s23, 0
    %p212 = por %p210, %p211
    %p213 = scmp.ne.s32.totalorder %s201, %s202
    %p214 = scmp.eq.s32.totalorder %s24, 1
    %p215 = por %p213, %p214
    %p217 = scmp.ne.s32.totalorder %s202, %s216
    %p218 = scmp.eq.s32.totalorder %s24, 0
    %p219 = por %p217, %p218
    %s221 = sadd.s32 %s220, 1
    %p224 = scmp.eq.s32.totalorder %s18, 1
    %p225 = scmp.ne.s32.totalorder %s220, %s222
    %p226 = scmp.eq.s32.totalorder %s18, 0
    %p227 = por %p225, %p226
    %p228 = scmp.ne.s32.totalorder %s220, %s222
    %p229 = scmp.eq.s32.totalorder %s23, 1
    %p230 = por %p228, %p229
    %p231 = scmp.ne.s32.totalorder %s222, %s223
    %p232 = scmp.eq.s32.totalorder %s23, 0
    %p233 = por %p231, %p232
    %p234 = scmp.ne.s32.totalorder %s222, %s223
    %p235 = scmp.eq.s32.totalorder %s24, 1
    %p236 = por %p234, %p235
    %p238 = scmp.ne.s32.totalorder %s223, %s237
    %p239 = scmp.eq.s32.totalorder %s24, 0
    %p240 = por %p238, %p239
    %s242 = sadd.s32 %s241, 1
    %p245 = scmp.eq.s32.totalorder %s18, 1
    %p246 = scmp.ne.s32.totalorder %s241, %s243
    %p247 = scmp.eq.s32.totalorder %s18, 0
    %p248 = por %p246, %p247
    %p249 = scmp.ne.s32.totalorder %s241, %s243
    %p250 = scmp.eq.s32.totalorder %s23, 1
    %p251 = por %p249, %p250
    %p252 = scmp.ne.s32.totalorder %s243, %s244
    %p253 = scmp.eq.s32.totalorder %s23, 0
    %p254 = por %p252, %p253
    %p255 = scmp.ne.s32.totalorder %s243, %s244
    %p256 = scmp.eq.s32.totalorder %s24, 1
    %p257 = por %p255, %p256
    %p259 = scmp.ne.s32.totalorder %s244, %s258
    %p260 = scmp.eq.s32.totalorder %s24, 0
    %p261 = por %p259, %p260
    %s263 = sadd.s32 %s262, 1
    %p266 = scmp.eq.s32.totalorder %s18, 1
    %p267 = scmp.ne.s32.totalorder %s262, %s264
    %p268 = scmp.eq.s32.totalorder %s18, 0
    %p269 = por %p267, %p268
    %p270 = scmp.ne.s32.totalorder %s262, %s264
    %p271 = scmp.eq.s32.totalorder %s23, 1
    %p272 = por %p270, %p271
    %p273 = scmp.ne.s32.totalorder %s264, %s265
    %p274 = scmp.eq.s32.totalorder %s23, 0
    %p275 = por %p273, %p274
    %p276 = scmp.ne.s32.totalorder %s264, %s265
    %p277 = scmp.eq.s32.totalorder %s24, 1
    %p278 = por %p276, %p277
    %p280 = scmp.ne.s32.totalorder %s265, %s279
    %p281 = scmp.eq.s32.totalorder %s24, 0
    %p282 = por %p280, %p281
    %s283 = ssub.s32 %s18, %s25
    %p284 = scmp.eq.s32.totalorder %s283, 0
    %s286 = sadd.s32 %s285, 1
    %s287 = scalar_select %p284, %s285, %s286
    %p290 = pneg %p284
    %p291 = scmp.eq.s32.totalorder %s18, 1
    %p292 = por %p290, %p291
    %p293 = scmp.ne.s32.totalorder %s285, %s288
    %p294 = scmp.eq.s32.totalorder %s18, 0
    %p295 = por %p293, %p294
    %p296 = scmp.ne.s32.totalorder %s285, %s288
    %p297 = scmp.eq.s32.totalorder %s23, 1
    %p298 = por %p296, %p297
    %p299 = scmp.ne.s32.totalorder %s288, %s289
    %p300 = scmp.eq.s32.totalorder %s23, 0
    %p301 = por %p299, %p300
    %p302 = scmp.ne.s32.totalorder %s288, %s289
    %p303 = scmp.eq.s32.totalorder %s24, 1
    %p304 = por %p302, %p303
    %p306 = scmp.ne.s32.totalorder %s289, %s305
    %p307 = scmp.eq.s32.totalorder %s24, 0
    %p308 = por %p306, %p307
    %p309 = scmp.le.s32.totalorder 1, %s18
    %p310 = scmp.lt.s32.totalorder %s18, 3
    %p311 = pnand %p309, %p310
    %p312 = pneg %p311
    // Predicated region
    $region9: #{aspp_forward.1} parent=5 // pred_check
      _
    $region10: #{aspp_forward.1} parent=5 // pred_check_branch
      %314 = sbr.rel (%p311) target = $region12
    $region11: #{aspp_forward.1} parent=5 // pred_region
      %s315 = ssub.s32 %s18, 1
      // Predicated region
      $region13: #{aspp_forward.1} parent=11 // pred_check
        %p316 = pneg %p65
      $region14: #{aspp_forward.1} parent=11 // pred_check_branch
        %318 = sbr.rel (%p316) target = $region16
      $region15: #{aspp_forward.1} parent=11 // pred_region
        _
      $region16: #{aspp_forward.1} parent=11 // pred_fallthru
        _
      // Predicated region
      $region17: #{aspp_forward.1} parent=11 // pred_check
        %p319 = pneg %p86
      $region18: #{aspp_forward.1} parent=11 // pred_check_branch
        %321 = sbr.rel (%p319) target = $region20
      $region19: #{aspp_forward.1} parent=11 // pred_region
        _
      $region20: #{aspp_forward.1} parent=11 // pred_fallthru
        _
      // Predicated region
      $region21: #{aspp_forward.1} parent=11 // pred_check
        %p322 = pneg %p107
      $region22: #{aspp_forward.1} parent=11 // pred_check_branch
        %324 = sbr.rel (%p322) target = $region24
      $region23: #{aspp_forward.1} parent=11 // pred_region
        _
      $region24: #{aspp_forward.1} parent=11 // pred_fallthru
        _
      // Predicated region
      $region25: #{aspp_forward.1} parent=11 // pred_check
        %p325 = pneg %p128
      $region26: #{aspp_forward.1} parent=11 // pred_check_branch
        %327 = sbr.rel (%p325) target = $region28
      $region27: #{aspp_forward.1} parent=11 // pred_region
        _
      $region28: #{aspp_forward.1} parent=11 // pred_fallthru
        _
      // Predicated region
      $region29: #{aspp_forward.1} parent=11 // pred_check
        %p328 = pneg %p149
      $region30: #{aspp_forward.1} parent=11 // pred_check_branch
        %330 = sbr.rel (%p328) target = $region32
      $region31: #{aspp_forward.1} parent=11 // pred_region
        _
      $region32: #{aspp_forward.1} parent=11 // pred_fallthru
        _
      // Predicated region
      $region33: #{aspp_forward.1} parent=11 // pred_check
        %p331 = pneg %p170
      $region34: #{aspp_forward.1} parent=11 // pred_check_branch
        %333 = sbr.rel (%p331) target = $region36
      $region35: #{aspp_forward.1} parent=11 // pred_region
        _
      $region36: #{aspp_forward.1} parent=11 // pred_fallthru
        _
      // Predicated region
      $region37: #{aspp_forward.1} parent=11 // pred_check
        %p334 = pneg %p191
      $region38: #{aspp_forward.1} parent=11 // pred_check_branch
        %336 = sbr.rel (%p334) target = $region40
      $region39: #{aspp_forward.1} parent=11 // pred_region
        _
      $region40: #{aspp_forward.1} parent=11 // pred_fallthru
        _
      // Predicated region
      $region41: #{aspp_forward.1} parent=11 // pred_check
        %p337 = pneg %p212
      $region42: #{aspp_forward.1} parent=11 // pred_check_branch
        %339 = sbr.rel (%p337) target = $region44
      $region43: #{aspp_forward.1} parent=11 // pred_region
        _
      $region44: #{aspp_forward.1} parent=11 // pred_fallthru
        _
      // Predicated region
      $region45: #{aspp_forward.1} parent=11 // pred_check
        %p340 = pneg %p233
      $region46: #{aspp_forward.1} parent=11 // pred_check_branch
        %342 = sbr.rel (%p340) target = $region48
      $region47: #{aspp_forward.1} parent=11 // pred_region
        _
      $region48: #{aspp_forward.1} parent=11 // pred_fallthru
        _
      // Predicated region
      $region49: #{aspp_forward.1} parent=11 // pred_check
        %p343 = pneg %p254
      $region50: #{aspp_forward.1} parent=11 // pred_check_branch
        %345 = sbr.rel (%p343) target = $region52
      $region51: #{aspp_forward.1} parent=11 // pred_region
        _
      $region52: #{aspp_forward.1} parent=11 // pred_fallthru
        _
      // Predicated region
      $region53: #{aspp_forward.1} parent=11 // pred_check
        %p346 = pneg %p275
      $region54: #{aspp_forward.1} parent=11 // pred_check_branch
        %348 = sbr.rel (%p346) target = $region56
      $region55: #{aspp_forward.1} parent=11 // pred_region
        _
      $region56: #{aspp_forward.1} parent=11 // pred_fallthru
        _
    $region12: #{aspp_forward.1} parent=5 // pred_fallthru
      _
    %p349 = scmp.lt.s32.totalorder %s18, 2
    // Predicated region
    $region57: #{aspp_forward.1} parent=5 // pred_check
      %p350 = pneg %p349
    $region58: #{aspp_forward.1} parent=5 // pred_check_branch
      %352 = sbr.rel (%p350) target = $region60
    $region59: #{aspp_forward.1} parent=5 // pred_region
      // Predicated region
      $region61: #{aspp_forward.1} parent=59 // pred_check
        %p353 = pneg %p38
      $region62: #{aspp_forward.1} parent=59 // pred_check_branch
        %355 = sbr.rel (%p353) target = $region64
      $region63: #{aspp_forward.1} parent=59 // pred_region
        %p356 = scmp.lt.s32.totalorder %s18, 1
        %s357 = scalar_select %p356, %s18, 1
        %s358 = smul.addr %s357, 32
        %s359 = smul.addr %s358, 4
        %s360 = scalar_lea.vmem %s0, %s359
      $region64: #{aspp_forward.1} parent=59 // pred_fallthru
        _
    $region60: #{aspp_forward.1} parent=5 // pred_fallthru
      _
    %p361 = scmp.le.s32.totalorder 1, %s18
    %p362 = scmp.lt.s32.totalorder %s18, 3
    %p363 = pnand %p361, %p362
    %p364 = pneg %p363
    // Predicated region
    $region65: #{aspp_forward.1} parent=5 // pred_check
      _
    $region66: #{aspp_forward.1} parent=5 // pred_check_branch
      %366 = sbr.rel (%p363) target = $region68
    $region67: #{aspp_forward.1} parent=5 // pred_region
      %s367 = ssub.s32 %s18, 1
      %p368 = scmp.lt.s32.totalorder %s23, 1
      %s369 = scalar_select %p368, %s23, 1
      %s370 = smul.addr %s369, 32
      %s371 = smul.addr %s370, 4
      %s372 = scalar_lea.vmem %s0, %s371
      %p373 = pneg %p44
      %p374 = pneg %p41
      %p375 = pneg %p65
      %p376 = pneg %p62
      %p377 = pneg %p86
      %p378 = pneg %p83
      %p379 = pneg %p107
      %p380 = pneg %p104
      %p381 = pneg %p128
      %p382 = pneg %p125
      %p383 = pneg %p149
      %p384 = pneg %p146
      %p385 = pneg %p170
      %p386 = pneg %p167
      %p387 = pneg %p191
      %p388 = pneg %p188
      %p389 = pneg %p212
      %p390 = pneg %p209
      %p391 = pneg %p233
      %p392 = pneg %p230
      %p393 = pneg %p254
      %p394 = pneg %p251
      %p395 = pneg %p275
      %p396 = pneg %p272
      %p397 = pneg %p301
      %p398 = pneg %p298
      %p399 = scmp.lt.s32.totalorder %s23, 1
      %s400 = scalar_select %p399, %s23, 1
      %s401 = smul.addr %s400, 32
      %s402 = smul.addr %s401, 4
      %s403 = scalar_lea.vmem %s12, %s402
      %p404 = scmp.lt.s32.totalorder %s23, 1
      %s405 = scalar_select %p404, %s23, 1
      %s406 = smul.addr %s405, 32
      %s407 = smul.addr %s406, 4
      %s408 = scalar_lea.vmem %s0, %s407
      %p409 = scmp.lt.s32.totalorder %s23, 1
      %s410 = scalar_select %p409, %s23, 1
      %s411 = smul.addr %s410, 32
      %s412 = smul.addr %s411, 4
      %s413 = scalar_lea.vmem %s12, %s412
      %v415 = vld [vmem:[%s408] sm:$0xf]
      %v416 = vld [vmem:[%s408 + $0x4] sm:$0xf]
      %v417 = vld [vmem:[%s408 + $0x8] sm:$0xf]
      %v418 = vld [vmem:[%s408 + $0xc] sm:$0xf]
      %v419 = vld [vmem:[%s408 + $0x10] sm:$0xf]
      %v420 = vld [vmem:[%s408 + $0x14] sm:$0xf]
      %v421 = vld [vmem:[%s408 + $0x18] sm:$0xf]
      %v422 = vld [vmem:[%s408 + $0x1c] sm:$0xf]
      %v423 = vld [vmem:[%s408 + $0x20] sm:$0xf]
      %v424 = vld [vmem:[%s408 + $0x24] sm:$0xf]
      %v425 = vld [vmem:[%s408 + $0x28] sm:$0xf]
      %v426 = vld [vmem:[%s408 + $0x2c] sm:$0xf]
      %v427 = vld [vmem:[%s408 + $0x30] sm:$0xf]
      %v428 = vld [vmem:[%s408 + $0x34] sm:$0xf]
      %v429 = vld [vmem:[%s408 + $0x38] sm:$0xf]
      %v430 = vld [vmem:[%s408 + $0x3c] sm:$0xf]
      %v431 = vld [vmem:[%s408 + $0x40] sm:$0xf]
      %v432 = vld [vmem:[%s408 + $0x44] sm:$0xf]
      %v433 = vld [vmem:[%s408 + $0x48] sm:$0xf]
      %v434 = vld [vmem:[%s408 + $0x4c] sm:$0xf]
      %v435 = vld [vmem:[%s408 + $0x50] sm:$0xf]
      %v436 = vld [vmem:[%s408 + $0x54] sm:$0xf]
      %v437 = vld [vmem:[%s408 + $0x58] sm:$0xf]
      %v438 = vld [vmem:[%s408 + $0x5c] sm:$0xf]
      %v439 = vld [vmem:[%s408 + $0x60] sm:$0xf]
      %v440 = vld [vmem:[%s408 + $0x64] sm:$0xf]
      %v441 = vld [vmem:[%s408 + $0x68] sm:$0xf]
      %v442 = vld [vmem:[%s408 + $0x6c] sm:$0xf]
      %v443 = vld [vmem:[%s408 + $0x70] sm:$0xf]
      %v444 = vld [vmem:[%s408 + $0x74] sm:$0xf]
      %v445 = vld [vmem:[%s408 + $0x78] sm:$0xf]
      %v446 = vld [vmem:[%s408 + $0x7c] sm:$0xf]
      %vm447 = vcmask 27648
      %448 = vst.msk [vmem:[#allocation2] sm:$0xf] %vm447, 0
      %449 = vst.msk [vmem:[#allocation2 + $0x4] sm:$0xf] %vm447, 0
      %450 = vst.msk [vmem:[#allocation2 + $0x8] sm:$0xf] %vm447, 0
      %451 = vst.msk [vmem:[#allocation2 + $0xc] sm:$0xf] %vm447, 0
      %452 = vst.msk [vmem:[#allocation2 + $0x10] sm:$0xf] %vm447, 0
      %453 = vst.msk [vmem:[#allocation2 + $0x14] sm:$0xf] %vm447, 0
      %454 = vst.msk [vmem:[#allocation2 + $0x18] sm:$0xf] %vm447, 0
      %455 = vst.msk [vmem:[#allocation2 + $0x1c] sm:$0xf] %vm447, 0
      %vm456 = vcmask 24576
      %457 = vst.msk [vmem:[#allocation2 + $0x20] sm:$0x1] %vm456, 0
      %458 = vst.msk [vmem:[#allocation2 + $0x24] sm:$0xf] %vm447, 0
      %459 = vst.msk [vmem:[#allocation2 + $0x28] sm:$0xf] %vm447, 0
      %460 = vst.msk [vmem:[#allocation2 + $0x2c] sm:$0xf] %vm447, 0
      %461 = vst.msk [vmem:[#allocation2 + $0x30] sm:$0xf] %vm447, 0
      %462 = vst.msk [vmem:[#allocation2 + $0x34] sm:$0xf] %vm447, 0
      %463 = vst.msk [vmem:[#allocation2 + $0x38] sm:$0xf] %vm447, 0
      %464 = vst.msk [vmem:[#allocation2 + $0x3c] sm:$0xf] %vm447, 0
      %465 = vst.msk [vmem:[#allocation2 + $0x40] sm:$0xf] %vm447, 0
      %466 = vst.msk [vmem:[#allocation2 + $0x44] sm:$0x1] %vm456, 0
      %467 = vst.msk [vmem:[#allocation2 + $0x48] sm:$0xf] %vm447, 0
      %468 = vst.msk [vmem:[#allocation2 + $0x4c] sm:$0xf] %vm447, 0
      %469 = vst.msk [vmem:[#allocation2 + $0x50] sm:$0xf] %vm447, 0
      %470 = vst.msk [vmem:[#allocation2 + $0x54] sm:$0xf] %vm447, 0
      %471 = vst.msk [vmem:[#allocation2 + $0x58] sm:$0xf] %vm447, 0
      %472 = vst.msk [vmem:[#allocation2 + $0x5c] sm:$0xf] %vm447, 0
      %473 = vst.msk [vmem:[#allocation2 + $0x60] sm:$0xf] %vm447, 0
      %474 = vst.msk [vmem:[#allocation2 + $0x64] sm:$0xf] %vm447, 0
      %475 = vst.msk [vmem:[#allocation2 + $0x68] sm:$0x1] %vm456, 0
      %476 = vst.msk [vmem:[#allocation2 + $0x6c] sm:$0xf] %vm447, 0
      %477 = vst.msk [vmem:[#allocation2 + $0x70] sm:$0xf] %vm447, 0
      %478 = vst.msk [vmem:[#allocation2 + $0x74] sm:$0xf] %vm447, 0
      %479 = vst.msk [vmem:[#allocation2 + $0x78] sm:$0xf] %vm447, 0
      %480 = vst.msk [vmem:[#allocation2 + $0x7c] sm:$0xf] %vm447, 0
      %481 = vst.msk [vmem:[#allocation2 + $0x80] sm:$0xf] %vm447, 0
      %482 = vst.msk [vmem:[#allocation2 + $0x84] sm:$0xf] %vm447, 0
      %483 = vst.msk [vmem:[#allocation2 + $0x88] sm:$0xf] %vm447, 0
      %484 = vst.msk [vmem:[#allocation2 + $0x8c] sm:$0x1] %vm456, 0
      %485 = vst.msk [vmem:[#allocation2 + $0x90] sm:$0xf] %vm447, 0
      %486 = vst.msk [vmem:[#allocation2 + $0x94] sm:$0xf] %vm447, 0
      %487 = vst.msk [vmem:[#allocation2 + $0x98] sm:$0xf] %vm447, 0
      %488 = vst.msk [vmem:[#allocation2 + $0x9c] sm:$0xf] %vm447, 0
      %489 = vst.msk [vmem:[#allocation2 + $0xa0] sm:$0xf] %vm447, 0
      %490 = vst.msk [vmem:[#allocation2 + $0xa4] sm:$0xf] %vm447, 0
      %491 = vst.msk [vmem:[#allocation2 + $0xa8] sm:$0xf] %vm447, 0
      %492 = vst.msk [vmem:[#allocation2 + $0xac] sm:$0xf] %vm447, 0
      %493 = vst.msk [vmem:[#allocation2 + $0xb0] sm:$0x1] %vm456, 0
      %494 = vst.msk [vmem:[#allocation2 + $0xb4] sm:$0xf] %vm447, 0
      %495 = vst.msk [vmem:[#allocation2 + $0xb8] sm:$0xf] %vm447, 0
      %496 = vst.msk [vmem:[#allocation2 + $0xbc] sm:$0xf] %vm447, 0
      %497 = vst.msk [vmem:[#allocation2 + $0xc0] sm:$0xf] %vm447, 0
      %498 = vst.msk [vmem:[#allocation2 + $0xc4] sm:$0xf] %vm447, 0
      %499 = vst.msk [vmem:[#allocation2 + $0xc8] sm:$0xf] %vm447, 0
      %500 = vst.msk [vmem:[#allocation2 + $0xcc] sm:$0xf] %vm447, 0
      %501 = vst.msk [vmem:[#allocation2 + $0xd0] sm:$0xf] %vm447, 0
      %502 = vst.msk [vmem:[#allocation2 + $0xd4] sm:$0x1] %vm456, 0
      %503 = vst.msk [vmem:[#allocation2 + $0xd8] sm:$0xf] %vm447, 0
      %504 = vst.msk [vmem:[#allocation2 + $0xdc] sm:$0xf] %vm447, 0
      %505 = vst.msk [vmem:[#allocation2 + $0xe0] sm:$0xf] %vm447, 0
      %506 = vst.msk [vmem:[#allocation2 + $0xe4] sm:$0xf] %vm447, 0
      %507 = vst.msk [vmem:[#allocation2 + $0xe8] sm:$0xf] %vm447, 0
      %508 = vst.msk [vmem:[#allocation2 + $0xec] sm:$0xf] %vm447, 0
      %509 = vst.msk [vmem:[#allocation2 + $0xf0] sm:$0xf] %vm447, 0
      %510 = vst.msk [vmem:[#allocation2 + $0xf4] sm:$0xf] %vm447, 0
      %511 = vst.msk [vmem:[#allocation2 + $0xf8] sm:$0x1] %vm456, 0
      %512 = vst.msk [vmem:[#allocation2 + $0xfc] sm:$0xf] %vm447, 0
      %513 = vst.msk [vmem:[#allocation2 + $0x100] sm:$0xf] %vm447, 0
      %514 = vst.msk [vmem:[#allocation2 + $0x104] sm:$0xf] %vm447, 0
      %515 = vst.msk [vmem:[#allocation2 + $0x108] sm:$0xf] %vm447, 0
      %516 = vst.msk [vmem:[#allocation2 + $0x10c] sm:$0xf] %vm447, 0
      %517 = vst.msk [vmem:[#allocation2 + $0x110] sm:$0xf] %vm447, 0
      %518 = vst.msk [vmem:[#allocation2 + $0x114] sm:$0xf] %vm447, 0
      %519 = vst.msk [vmem:[#allocation2 + $0x118] sm:$0xf] %vm447, 0
      %520 = vst.msk [vmem:[#allocation2 + $0x11c] sm:$0x1] %vm456, 0
      %521 = vst.msk [vmem:[#allocation2 + $0x120] sm:$0xf] %vm447, 0
      %522 = vst.msk [vmem:[#allocation2 + $0x124] sm:$0xf] %vm447, 0
      %523 = vst.msk [vmem:[#allocation2 + $0x128] sm:$0xf] %vm447, 0
      %524 = vst.msk [vmem:[#allocation2 + $0x12c] sm:$0xf] %vm447, 0
      %525 = vst.msk [vmem:[#allocation2 + $0x130] sm:$0xf] %vm447, 0
      %526 = vst.msk [vmem:[#allocation2 + $0x134] sm:$0xf] %vm447, 0
      %527 = vst.msk [vmem:[#allocation2 + $0x138] sm:$0xf] %vm447, 0
      %528 = vst.msk [vmem:[#allocation2 + $0x13c] sm:$0xf] %vm447, 0
      %529 = vst.msk [vmem:[#allocation2 + $0x140] sm:$0x1] %vm456, 0
      %530 = vst.msk [vmem:[#allocation2 + $0x144] sm:$0xf] %vm447, 0
      %531 = vst.msk [vmem:[#allocation2 + $0x148] sm:$0xf] %vm447, 0
      %532 = vst.msk [vmem:[#allocation2 + $0x14c] sm:$0xf] %vm447, 0
      %533 = vst.msk [vmem:[#allocation2 + $0x150] sm:$0xf] %vm447, 0
      %534 = vst.msk [vmem:[#allocation2 + $0x154] sm:$0xf] %vm447, 0
      %535 = vst.msk [vmem:[#allocation2 + $0x158] sm:$0xf] %vm447, 0
      %536 = vst.msk [vmem:[#allocation2 + $0x15c] sm:$0xf] %vm447, 0
      %537 = vst.msk [vmem:[#allocation2 + $0x160] sm:$0xf] %vm447, 0
      %538 = vst.msk [vmem:[#allocation2 + $0x164] sm:$0x1] %vm456, 0
      %539 = vst.msk [vmem:[#allocation2 + $0x168] sm:$0xf] %vm447, 0
      %540 = vst.msk [vmem:[#allocation2 + $0x16c] sm:$0xf] %vm447, 0
      %541 = vst.msk [vmem:[#allocation2 + $0x170] sm:$0xf] %vm447, 0
      %542 = vst.msk [vmem:[#allocation2 + $0x174] sm:$0xf] %vm447, 0
      %543 = vst.msk [vmem:[#allocation2 + $0x178] sm:$0xf] %vm447, 0
      %544 = vst.msk [vmem:[#allocation2 + $0x17c] sm:$0xf] %vm447, 0
      %545 = vst.msk [vmem:[#allocation2 + $0x180] sm:$0xf] %vm447, 0
      %546 = vst.msk [vmem:[#allocation2 + $0x184] sm:$0xf] %vm447, 0
      %547 = vst.msk [vmem:[#allocation2 + $0x188] sm:$0x1] %vm456, 0
      %548 = vst.msk [vmem:[#allocation2 + $0x18c] sm:$0xf] %vm447, 0
      %549 = vst.msk [vmem:[#allocation2 + $0x190] sm:$0xf] %vm447, 0
      %550 = vst.msk [vmem:[#allocation2 + $0x194] sm:$0xf] %vm447, 0
      %551 = vst.msk [vmem:[#allocation2 + $0x198] sm:$0xf] %vm447, 0
      %552 = vst.msk [vmem:[#allocation2 + $0x19c] sm:$0xf] %vm447, 0
      %553 = vst.msk [vmem:[#allocation2 + $0x1a0] sm:$0xf] %vm447, 0
      %554 = vst.msk [vmem:[#allocation2 + $0x1a4] sm:$0xf] %vm447, 0
      %555 = vst.msk [vmem:[#allocation2 + $0x1a8] sm:$0xf] %vm447, 0
      %556 = vst.msk [vmem:[#allocation2 + $0x1ac] sm:$0x1] %vm456, 0
      %557 = vst.msk [vmem:[#allocation2 + $0x1b0] sm:$0xf] %vm447, 0
      %558 = vst.msk [vmem:[#allocation2 + $0x1b4] sm:$0xf] %vm447, 0
      %559 = vst.msk [vmem:[#allocation2 + $0x1b8] sm:$0xf] %vm447, 0
      %560 = vst.msk [vmem:[#allocation2 + $0x1bc] sm:$0xf] %vm447, 0
      %561 = vst.msk [vmem:[#allocation2 + $0x1c0] sm:$0xf] %vm447, 0
      %562 = vst.msk [vmem:[#allocation2 + $0x1c4] sm:$0xf] %vm447, 0
      %563 = vst.msk [vmem:[#allocation2 + $0x1c8] sm:$0xf] %vm447, 0
      %564 = vst.msk [vmem:[#allocation2 + $0x1cc] sm:$0xf] %vm447, 0
      %565 = vst.msk [vmem:[#allocation2 + $0x1d0] sm:$0x1] %vm456, 0
      %566 = vst.msk [vmem:[#allocation2 + $0x1d4] sm:$0xf] %vm447, 0
      %567 = vst.msk [vmem:[#allocation2 + $0x1d8] sm:$0xf] %vm447, 0
      %568 = vst.msk [vmem:[#allocation2 + $0x1dc] sm:$0xf] %vm447, 0
      %569 = vst.msk [vmem:[#allocation2 + $0x1e0] sm:$0xf] %vm447, 0
      %570 = vst.msk [vmem:[#allocation2 + $0x1e4] sm:$0xf] %vm447, 0
      %571 = vst.msk [vmem:[#allocation2 + $0x1e8] sm:$0xf] %vm447, 0
      %572 = vst.msk [vmem:[#allocation2 + $0x1ec] sm:$0xf] %vm447, 0
      %573 = vst.msk [vmem:[#allocation2 + $0x1f0] sm:$0xf] %vm447, 0
      %574 = vst.msk [vmem:[#allocation2 + $0x1f4] sm:$0x1] %vm456, 0
      %575 = vst.msk [vmem:[#allocation2 + $0x1f8] sm:$0xf] %vm447, 0
      %576 = vst.msk [vmem:[#allocation2 + $0x1fc] sm:$0xf] %vm447, 0
      %577 = vst.msk [vmem:[#allocation2 + $0x200] sm:$0xf] %vm447, 0
      %578 = vst.msk [vmem:[#allocation2 + $0x204] sm:$0xf] %vm447, 0
      %579 = vst.msk [vmem:[#allocation2 + $0x208] sm:$0xf] %vm447, 0
      %580 = vst.msk [vmem:[#allocation2 + $0x20c] sm:$0xf] %vm447, 0
      %581 = vst.msk [vmem:[#allocation2 + $0x210] sm:$0xf] %vm447, 0
      %582 = vst.msk [vmem:[#allocation2 + $0x214] sm:$0xf] %vm447, 0
      %583 = vst.msk [vmem:[#allocation2 + $0x218] sm:$0x1] %vm456, 0
      %584 = vst.msk [vmem:[#allocation2 + $0x21c] sm:$0xf] %vm447, 0
      %585 = vst.msk [vmem:[#allocation2 + $0x220] sm:$0xf] %vm447, 0
      %586 = vst.msk [vmem:[#allocation2 + $0x224] sm:$0xf] %vm447, 0
      %587 = vst.msk [vmem:[#allocation2 + $0x228] sm:$0xf] %vm447, 0
      %588 = vst.msk [vmem:[#allocation2 + $0x22c] sm:$0xf] %vm447, 0
      %589 = vst.msk [vmem:[#allocation2 + $0x230] sm:$0xf] %vm447, 0
      %590 = vst.msk [vmem:[#allocation2 + $0x234] sm:$0xf] %vm447, 0
      %591 = vst.msk [vmem:[#allocation2 + $0x238] sm:$0xf] %vm447, 0
      %592 = vst.msk [vmem:[#allocation2 + $0x23c] sm:$0x1] %vm456, 0
      %593 = vst.msk [vmem:[#allocation2 + $0x240] sm:$0xf] %vm447, 0
      %594 = vst.msk [vmem:[#allocation2 + $0x244] sm:$0xf] %vm447, 0
      %595 = vst.msk [vmem:[#allocation2 + $0x248] sm:$0xf] %vm447, 0
      %596 = vst.msk [vmem:[#allocation2 + $0x24c] sm:$0xf] %vm447, 0
      %597 = vst.msk [vmem:[#allocation2 + $0x250] sm:$0xf] %vm447, 0
      %598 = vst.msk [vmem:[#allocation2 + $0x254] sm:$0xf] %vm447, 0
      %599 = vst.msk [vmem:[#allocation2 + $0x258] sm:$0xf] %vm447, 0
      %600 = vst.msk [vmem:[#allocation2 + $0x25c] sm:$0xf] %vm447, 0
      %601 = vst.msk [vmem:[#allocation2 + $0x260] sm:$0x1] %vm456, 0
      %602 = vst.msk [vmem:[#allocation2 + $0x264] sm:$0xf] %vm447, 0
      %603 = vst.msk [vmem:[#allocation2 + $0x268] sm:$0xf] %vm447, 0
      %604 = vst.msk [vmem:[#allocation2 + $0x26c] sm:$0xf] %vm447, 0
      %605 = vst.msk [vmem:[#allocation2 + $0x270] sm:$0xf] %vm447, 0
      %606 = vst.msk [vmem:[#allocation2 + $0x274] sm:$0xf] %vm447, 0
      %607 = vst.msk [vmem:[#allocation2 + $0x278] sm:$0xf] %vm447, 0
      %608 = vst.msk [vmem:[#allocation2 + $0x27c] sm:$0xf] %vm447, 0
      %609 = vst.msk [vmem:[#allocation2 + $0x280] sm:$0xf] %vm447, 0
      %610 = vst.msk [vmem:[#allocation2 + $0x284] sm:$0x1] %vm456, 0
      %611 = vst.msk [vmem:[#allocation2 + $0x288] sm:$0xf] %vm447, 0
      %612 = vst.msk [vmem:[#allocation2 + $0x28c] sm:$0xf] %vm447, 0
      %613 = vst.msk [vmem:[#allocation2 + $0x290] sm:$0xf] %vm447, 0
      %614 = vst.msk [vmem:[#allocation2 + $0x294] sm:$0xf] %vm447, 0
      %615 = vst.msk [vmem:[#allocation2 + $0x298] sm:$0xf] %vm447, 0
      %616 = vst.msk [vmem:[#allocation2 + $0x29c] sm:$0xf] %vm447, 0
      %617 = vst.msk [vmem:[#allocation2 + $0x2a0] sm:$0xf] %vm447, 0
      %618 = vst.msk [vmem:[#allocation2 + $0x2a4] sm:$0xf] %vm447, 0
      %619 = vst.msk [vmem:[#allocation2 + $0x2a8] sm:$0x1] %vm456, 0
      %620 = vst.msk [vmem:[#allocation2 + $0x2ac] sm:$0xf] %vm447, 0
      %621 = vst.msk [vmem:[#allocation2 + $0x2b0] sm:$0xf] %vm447, 0
      %622 = vst.msk [vmem:[#allocation2 + $0x2b4] sm:$0xf] %vm447, 0
      %623 = vst.msk [vmem:[#allocation2 + $0x2b8] sm:$0xf] %vm447, 0
      %624 = vst.msk [vmem:[#allocation2 + $0x2bc] sm:$0xf] %vm447, 0
      %625 = vst.msk [vmem:[#allocation2 + $0x2c0] sm:$0xf] %vm447, 0
      %626 = vst.msk [vmem:[#allocation2 + $0x2c4] sm:$0xf] %vm447, 0
      %627 = vst.msk [vmem:[#allocation2 + $0x2c8] sm:$0xf] %vm447, 0
      %628 = vst.msk [vmem:[#allocation2 + $0x2cc] sm:$0x1] %vm456, 0
      %629 = vst.msk [vmem:[#allocation2 + $0x2d0] sm:$0xf] %vm447, 0
      %630 = vst.msk [vmem:[#allocation2 + $0x2d4] sm:$0xf] %vm447, 0
      %631 = vst.msk [vmem:[#allocation2 + $0x2d8] sm:$0xf] %vm447, 0
      %632 = vst.msk [vmem:[#allocation2 + $0x2dc] sm:$0xf] %vm447, 0
      %633 = vst.msk [vmem:[#allocation2 + $0x2e0] sm:$0xf] %vm447, 0
      %634 = vst.msk [vmem:[#allocation2 + $0x2e4] sm:$0xf] %vm447, 0
      %635 = vst.msk [vmem:[#allocation2 + $0x2e8] sm:$0xf] %vm447, 0
      %636 = vst.msk [vmem:[#allocation2 + $0x2ec] sm:$0xf] %vm447, 0
      %637 = vst.msk [vmem:[#allocation2 + $0x2f0] sm:$0x1] %vm456, 0
      %638 = vst.msk [vmem:[#allocation2 + $0x2f4] sm:$0xf] %vm447, 0
      %639 = vst.msk [vmem:[#allocation2 + $0x2f8] sm:$0xf] %vm447, 0
      %640 = vst.msk [vmem:[#allocation2 + $0x2fc] sm:$0xf] %vm447, 0
      %641 = vst.msk [vmem:[#allocation2 + $0x300] sm:$0xf] %vm447, 0
      %642 = vst.msk [vmem:[#allocation2 + $0x304] sm:$0xf] %vm447, 0
      %643 = vst.msk [vmem:[#allocation2 + $0x308] sm:$0xf] %vm447, 0
      %644 = vst.msk [vmem:[#allocation2 + $0x30c] sm:$0xf] %vm447, 0
      %645 = vst.msk [vmem:[#allocation2 + $0x310] sm:$0xf] %vm447, 0
      %646 = vst.msk [vmem:[#allocation2 + $0x314] sm:$0x1] %vm456, 0
      %647 = vst.msk [vmem:[#allocation2 + $0x318] sm:$0xf] %vm447, 0
      %648 = vst.msk [vmem:[#allocation2 + $0x31c] sm:$0xf] %vm447, 0
      %649 = vst.msk [vmem:[#allocation2 + $0x320] sm:$0xf] %vm447, 0
      %650 = vst.msk [vmem:[#allocation2 + $0x324] sm:$0xf] %vm447, 0
      %651 = vst.msk [vmem:[#allocation2 + $0x328] sm:$0xf] %vm447, 0
      %652 = vst.msk [vmem:[#allocation2 + $0x32c] sm:$0xf] %vm447, 0
      %653 = vst.msk [vmem:[#allocation2 + $0x330] sm:$0xf] %vm447, 0
      %654 = vst.msk [vmem:[#allocation2 + $0x334] sm:$0xf] %vm447, 0
      %655 = vst.msk [vmem:[#allocation2 + $0x338] sm:$0x1] %vm456, 0
      %656 = vst.msk [vmem:[#allocation2 + $0x33c] sm:$0xf] %vm447, 0
      %657 = vst.msk [vmem:[#allocation2 + $0x340] sm:$0xf] %vm447, 0
      %658 = vst.msk [vmem:[#allocation2 + $0x344] sm:$0xf] %vm447, 0
      %659 = vst.msk [vmem:[#allocation2 + $0x348] sm:$0xf] %vm447, 0
      %660 = vst.msk [vmem:[#allocation2 + $0x34c] sm:$0xf] %vm447, 0
      %661 = vst.msk [vmem:[#allocation2 + $0x350] sm:$0xf] %vm447, 0
      %662 = vst.msk [vmem:[#allocation2 + $0x354] sm:$0xf] %vm447, 0
      %663 = vst.msk [vmem:[#allocation2 + $0x358] sm:$0xf] %vm447, 0
      %664 = vst.msk [vmem:[#allocation2 + $0x35c] sm:$0x1] %vm456, 0
      %665 = vst.msk [vmem:[#allocation2 + $0x360] sm:$0xf] %vm447, 0
      %666 = vst.msk [vmem:[#allocation2 + $0x364] sm:$0xf] %vm447, 0
      %667 = vst.msk [vmem:[#allocation2 + $0x368] sm:$0xf] %vm447, 0
      %668 = vst.msk [vmem:[#allocation2 + $0x36c] sm:$0xf] %vm447, 0
      %669 = vst.msk [vmem:[#allocation2 + $0x370] sm:$0xf] %vm447, 0
      %670 = vst.msk [vmem:[#allocation2 + $0x374] sm:$0xf] %vm447, 0
      %671 = vst.msk [vmem:[#allocation2 + $0x378] sm:$0xf] %vm447, 0
      %672 = vst.msk [vmem:[#allocation2 + $0x37c] sm:$0xf] %vm447, 0
      %673 = vst.msk [vmem:[#allocation2 + $0x380] sm:$0x1] %vm456, 0
      %674 = vst.msk [vmem:[#allocation2 + $0x384] sm:$0xf] %vm447, 0
      %675 = vst.msk [vmem:[#allocation2 + $0x388] sm:$0xf] %vm447, 0
      %676 = vst.msk [vmem:[#allocation2 + $0x38c] sm:$0xf] %vm447, 0
      %677 = vst.msk [vmem:[#allocation2 + $0x390] sm:$0xf] %vm447, 0
      %678 = vst.msk [vmem:[#allocation2 + $0x394] sm:$0xf] %vm447, 0
      %679 = vst.msk [vmem:[#allocation2 + $0x398] sm:$0xf] %vm447, 0
      %680 = vst.msk [vmem:[#allocation2 + $0x39c] sm:$0xf] %vm447, 0
      %681 = vst.msk [vmem:[#allocation2 + $0x3a0] sm:$0xf] %vm447, 0
      %682 = vst.msk [vmem:[#allocation2 + $0x3a4] sm:$0x1] %vm456, 0
      %683 = vst.msk [vmem:[#allocation2 + $0x3a8] sm:$0xf] %vm447, 0
      %684 = vst.msk [vmem:[#allocation2 + $0x3ac] sm:$0xf] %vm447, 0
      %685 = vst.msk [vmem:[#allocation2 + $0x3b0] sm:$0xf] %vm447, 0
      %686 = vst.msk [vmem:[#allocation2 + $0x3b4] sm:$0xf] %vm447, 0
      %687 = vst.msk [vmem:[#allocation2 + $0x3b8] sm:$0xf] %vm447, 0
      %688 = vst.msk [vmem:[#allocation2 + $0x3bc] sm:$0xf] %vm447, 0
      %689 = vst.msk [vmem:[#allocation2 + $0x3c0] sm:$0xf] %vm447, 0
      %690 = vst.msk [vmem:[#allocation2 + $0x3c4] sm:$0xf] %vm447, 0
      %691 = vst.msk [vmem:[#allocation2 + $0x3c8] sm:$0x1] %vm456, 0
      %692 = vst.msk [vmem:[#allocation2 + $0x3cc] sm:$0xf] %vm447, 0
      %693 = vst.msk [vmem:[#allocation2 + $0x3d0] sm:$0xf] %vm447, 0
      %694 = vst.msk [vmem:[#allocation2 + $0x3d4] sm:$0xf] %vm447, 0
      %695 = vst.msk [vmem:[#allocation2 + $0x3d8] sm:$0xf] %vm447, 0
      %696 = vst.msk [vmem:[#allocation2 + $0x3dc] sm:$0xf] %vm447, 0
      %697 = vst.msk [vmem:[#allocation2 + $0x3e0] sm:$0xf] %vm447, 0
      %698 = vst.msk [vmem:[#allocation2 + $0x3e4] sm:$0xf] %vm447, 0
      %699 = vst.msk [vmem:[#allocation2 + $0x3e8] sm:$0xf] %vm447, 0
      %700 = vst.msk [vmem:[#allocation2 + $0x3ec] sm:$0x1] %vm456, 0
      %701 = vst.msk [vmem:[#allocation2 + $0x3f0] sm:$0xf] %vm447, 0
      %702 = vst.msk [vmem:[#allocation2 + $0x3f4] sm:$0xf] %vm447, 0
      %703 = vst.msk [vmem:[#allocation2 + $0x3f8] sm:$0xf] %vm447, 0
      %704 = vst.msk [vmem:[#allocation2 + $0x3fc] sm:$0xf] %vm447, 0
      %705 = vst.msk [vmem:[#allocation2 + $0x400] sm:$0xf] %vm447, 0
      %706 = vst.msk [vmem:[#allocation2 + $0x404] sm:$0xf] %vm447, 0
      %707 = vst.msk [vmem:[#allocation2 + $0x408] sm:$0xf] %vm447, 0
      %708 = vst.msk [vmem:[#allocation2 + $0x40c] sm:$0xf] %vm447, 0
      %709 = vst.msk [vmem:[#allocation2 + $0x410] sm:$0x1] %vm456, 0
      %710 = vst.msk [vmem:[#allocation2 + $0x414] sm:$0xf] %vm447, 0
      %711 = vst.msk [vmem:[#allocation2 + $0x418] sm:$0xf] %vm447, 0
      %712 = vst.msk [vmem:[#allocation2 + $0x41c] sm:$0xf] %vm447, 0
      %713 = vst.msk [vmem:[#allocation2 + $0x420] sm:$0xf] %vm447, 0
      %714 = vst.msk [vmem:[#allocation2 + $0x424] sm:$0xf] %vm447, 0
      %715 = vst.msk [vmem:[#allocation2 + $0x428] sm:$0xf] %vm447, 0
      %716 = vst.msk [vmem:[#allocation2 + $0x42c] sm:$0xf] %vm447, 0
      %717 = vst.msk [vmem:[#allocation2 + $0x430] sm:$0xf] %vm447, 0
      %718 = vst.msk [vmem:[#allocation2 + $0x434] sm:$0x1] %vm456, 0
      %719 = vst.msk [vmem:[#allocation2 + $0x438] sm:$0xf] %vm447, 0
      %720 = vst.msk [vmem:[#allocation2 + $0x43c] sm:$0xf] %vm447, 0
      %721 = vst.msk [vmem:[#allocation2 + $0x440] sm:$0xf] %vm447, 0
      %722 = vst.msk [vmem:[#allocation2 + $0x444] sm:$0xf] %vm447, 0
      %723 = vst.msk [vmem:[#allocation2 + $0x448] sm:$0xf] %vm447, 0
      %724 = vst.msk [vmem:[#allocation2 + $0x44c] sm:$0xf] %vm447, 0
      %725 = vst.msk [vmem:[#allocation2 + $0x450] sm:$0xf] %vm447, 0
      %726 = vst.msk [vmem:[#allocation2 + $0x454] sm:$0xf] %vm447, 0
      %727 = vst.msk [vmem:[#allocation2 + $0x458] sm:$0x1] %vm456, 0
      %728 = vst.msk [vmem:[#allocation2 + $0x45c] sm:$0xf] %vm447, 0
      %729 = vst.msk [vmem:[#allocation2 + $0x460] sm:$0xf] %vm447, 0
      %730 = vst.msk [vmem:[#allocation2 + $0x464] sm:$0xf] %vm447, 0
      %731 = vst.msk [vmem:[#allocation2 + $0x468] sm:$0xf] %vm447, 0
      %732 = vst.msk [vmem:[#allocation2 + $0x46c] sm:$0xf] %vm447, 0
      %733 = vst.msk [vmem:[#allocation2 + $0x470] sm:$0xf] %vm447, 0
      %734 = vst.msk [vmem:[#allocation2 + $0x474] sm:$0xf] %vm447, 0
      %735 = vst.msk [vmem:[#allocation2 + $0x478] sm:$0xf] %vm447, 0
      %736 = vst.msk [vmem:[#allocation2 + $0x47c] sm:$0x1] %vm456, 0
      %737 = vst.msk [vmem:[#allocation2 + $0x480] sm:$0xf] %vm447, 0
      %738 = vst.msk [vmem:[#allocation2 + $0x484] sm:$0xf] %vm447, 0
      %739 = vst.msk [vmem:[#allocation2 + $0x488] sm:$0xf] %vm447, 0
      %740 = vst.msk [vmem:[#allocation2 + $0x48c] sm:$0xf] %vm447, 0
      %741 = vst.msk [vmem:[#allocation2 + $0x490] sm:$0xf] %vm447, 0
      %742 = vst.msk [vmem:[#allocation2 + $0x494] sm:$0xf] %vm447, 0
      %743 = vst.msk [vmem:[#allocation2 + $0x498] sm:$0xf] %vm447, 0
      %744 = vst.msk [vmem:[#allocation2 + $0x49c] sm:$0xf] %vm447, 0
      %745 = vst.msk [vmem:[#allocation2 + $0x4a0] sm:$0x1] %vm456, 0
      %746 = vst.msk [vmem:[#allocation2 + $0x4a4] sm:$0xf] %vm447, 0
      %747 = vst.msk [vmem:[#allocation2 + $0x4a8] sm:$0xf] %vm447, 0
      %748 = vst.msk [vmem:[#allocation2 + $0x4ac] sm:$0xf] %vm447, 0
      %749 = vst.msk [vmem:[#allocation2 + $0x4b0] sm:$0xf] %vm447, 0
      %750 = vst.msk [vmem:[#allocation2 + $0x4b4] sm:$0xf] %vm447, 0
      %751 = vst.msk [vmem:[#allocation2 + $0x4b8] sm:$0xf] %vm447, 0
      %752 = vst.msk [vmem:[#allocation2 + $0x4bc] sm:$0xf] %vm447, 0
      %753 = vst.msk [vmem:[#allocation2 + $0x4c0] sm:$0xf] %vm447, 0
      %754 = vst.msk [vmem:[#allocation2 + $0x4c4] sm:$0x1] %vm456, 0
      %755 = vst.msk [vmem:[#allocation2 + $0x4c8] sm:$0xf] %vm447, 0
      %756 = vst.msk [vmem:[#allocation2 + $0x4cc] sm:$0xf] %vm447, 0
      %757 = vst.msk [vmem:[#allocation2 + $0x4d0] sm:$0xf] %vm447, 0
      %758 = vst.msk [vmem:[#allocation2 + $0x4d4] sm:$0xf] %vm447, 0
      %759 = vst.msk [vmem:[#allocation2 + $0x4d8] sm:$0xf] %vm447, 0
      %760 = vst.msk [vmem:[#allocation2 + $0x4dc] sm:$0xf] %vm447, 0
      %761 = vst.msk [vmem:[#allocation2 + $0x4e0] sm:$0xf] %vm447, 0
      %762 = vst.msk [vmem:[#allocation2 + $0x4e4] sm:$0xf] %vm447, 0
      %763 = vst.msk [vmem:[#allocation2 + $0x4e8] sm:$0x1] %vm456, 0
      %764 = vst.msk [vmem:[#allocation2 + $0x4ec] sm:$0xf] %vm447, 0
      %765 = vst.msk [vmem:[#allocation2 + $0x4f0] sm:$0xf] %vm447, 0
      %766 = vst.msk [vmem:[#allocation2 + $0x4f4] sm:$0xf] %vm447, 0
      %767 = vst.msk [vmem:[#allocation2 + $0x4f8] sm:$0xf] %vm447, 0
      %768 = vst.msk [vmem:[#allocation2 + $0x4fc] sm:$0xf] %vm447, 0
      %769 = vst.msk [vmem:[#allocation2 + $0x500] sm:$0xf] %vm447, 0
      %770 = vst.msk [vmem:[#allocation2 + $0x504] sm:$0xf] %vm447, 0
      %771 = vst.msk [vmem:[#allocation2 + $0x508] sm:$0xf] %vm447, 0
      %772 = vst.msk [vmem:[#allocation2 + $0x50c] sm:$0x1] %vm456, 0
      %773 = vst.msk [vmem:[#allocation2 + $0x510] sm:$0xf] %vm447, 0
      %774 = vst.msk [vmem:[#allocation2 + $0x514] sm:$0xf] %vm447, 0
      %775 = vst.msk [vmem:[#allocation2 + $0x518] sm:$0xf] %vm447, 0
      %776 = vst.msk [vmem:[#allocation2 + $0x51c] sm:$0xf] %vm447, 0
      %777 = vst.msk [vmem:[#allocation2 + $0x520] sm:$0xf] %vm447, 0
      %778 = vst.msk [vmem:[#allocation2 + $0x524] sm:$0xf] %vm447, 0
      %779 = vst.msk [vmem:[#allocation2 + $0x528] sm:$0xf] %vm447, 0
      %780 = vst.msk [vmem:[#allocation2 + $0x52c] sm:$0xf] %vm447, 0
      %781 = vst.msk [vmem:[#allocation2 + $0x530] sm:$0x1] %vm456, 0
      %782 = vst.msk [vmem:[#allocation2 + $0x534] sm:$0xf] %vm447, 0
      %783 = vst.msk [vmem:[#allocation2 + $0x538] sm:$0xf] %vm447, 0
      %784 = vst.msk [vmem:[#allocation2 + $0x53c] sm:$0xf] %vm447, 0
      %785 = vst.msk [vmem:[#allocation2 + $0x540] sm:$0xf] %vm447, 0
      %786 = vst.msk [vmem:[#allocation2 + $0x544] sm:$0xf] %vm447, 0
      %787 = vst.msk [vmem:[#allocation2 + $0x548] sm:$0xf] %vm447, 0
      %788 = vst.msk [vmem:[#allocation2 + $0x54c] sm:$0xf] %vm447, 0
      %789 = vst.msk [vmem:[#allocation2 + $0x550] sm:$0xf] %vm447, 0
      %790 = vst.msk [vmem:[#allocation2 + $0x554] sm:$0x1] %vm456, 0
      %791 = vst.msk [vmem:[#allocation2 + $0x558] sm:$0xf] %vm447, 0
      %792 = vst.msk [vmem:[#allocation2 + $0x55c] sm:$0xf] %vm447, 0
      %793 = vst.msk [vmem:[#allocation2 + $0x560] sm:$0xf] %vm447, 0
      %794 = vst.msk [vmem:[#allocation2 + $0x564] sm:$0xf] %vm447, 0
      %795 = vst.msk [vmem:[#allocation2 + $0x568] sm:$0xf] %vm447, 0
      %796 = vst.msk [vmem:[#allocation2 + $0x56c] sm:$0xf] %vm447, 0
      %797 = vst.msk [vmem:[#allocation2 + $0x570] sm:$0xf] %vm447, 0
      %798 = vst.msk [vmem:[#allocation2 + $0x574] sm:$0xf] %vm447, 0
      %799 = vst.msk [vmem:[#allocation2 + $0x578] sm:$0x1] %vm456, 0
      %800 = vst.msk [vmem:[#allocation2 + $0x57c] sm:$0xf] %vm447, 0
      %801 = vst.msk [vmem:[#allocation2 + $0x580] sm:$0xf] %vm447, 0
      %802 = vst.msk [vmem:[#allocation2 + $0x584] sm:$0xf] %vm447, 0
      %803 = vst.msk [vmem:[#allocation2 + $0x588] sm:$0xf] %vm447, 0
      %804 = vst.msk [vmem:[#allocation2 + $0x58c] sm:$0xf] %vm447, 0
      %805 = vst.msk [vmem:[#allocation2 + $0x590] sm:$0xf] %vm447, 0
      %806 = vst.msk [vmem:[#allocation2 + $0x594] sm:$0xf] %vm447, 0
      %807 = vst.msk [vmem:[#allocation2 + $0x598] sm:$0xf] %vm447, 0
      %808 = vst.msk [vmem:[#allocation2 + $0x59c] sm:$0x1] %vm456, 0
      %809 = vst.msk [vmem:[#allocation2 + $0x5a0] sm:$0xf] %vm447, 0
      %810 = vst.msk [vmem:[#allocation2 + $0x5a4] sm:$0xf] %vm447, 0
      %811 = vst.msk [vmem:[#allocation2 + $0x5a8] sm:$0xf] %vm447, 0
      %812 = vst.msk [vmem:[#allocation2 + $0x5ac] sm:$0xf] %vm447, 0
      %813 = vst.msk [vmem:[#allocation2 + $0x5b0] sm:$0xf] %vm447, 0
      %814 = vst.msk [vmem:[#allocation2 + $0x5b4] sm:$0xf] %vm447, 0
      %815 = vst.msk [vmem:[#allocation2 + $0x5b8] sm:$0xf] %vm447, 0
      %816 = vst.msk [vmem:[#allocation2 + $0x5bc] sm:$0xf] %vm447, 0
      %817 = vst.msk [vmem:[#allocation2 + $0x5c0] sm:$0x1] %vm456, 0
      %818 = vst.msk [vmem:[#allocation2 + $0x5c4] sm:$0xf] %vm447, 0
      %819 = vst.msk [vmem:[#allocation2 + $0x5c8] sm:$0xf] %vm447, 0
      %820 = vst.msk [vmem:[#allocation2 + $0x5cc] sm:$0xf] %vm447, 0
      %821 = vst.msk [vmem:[#allocation2 + $0x5d0] sm:$0xf] %vm447, 0
      %822 = vst.msk [vmem:[#allocation2 + $0x5d4] sm:$0xf] %vm447, 0
      %823 = vst.msk [vmem:[#allocation2 + $0x5d8] sm:$0xf] %vm447, 0
      %824 = vst.msk [vmem:[#allocation2 + $0x5dc] sm:$0xf] %vm447, 0
      %825 = vst.msk [vmem:[#allocation2 + $0x5e0] sm:$0xf] %vm447, 0
      %826 = vst.msk [vmem:[#allocation2 + $0x5e4] sm:$0x1] %vm456, 0
      %827 = vst.msk [vmem:[#allocation2 + $0x5e8] sm:$0xf] %vm447, 0
      %828 = vst.msk [vmem:[#allocation2 + $0x5ec] sm:$0xf] %vm447, 0
      %829 = vst.msk [vmem:[#allocation2 + $0x5f0] sm:$0xf] %vm447, 0
      %830 = vst.msk [vmem:[#allocation2 + $0x5f4] sm:$0xf] %vm447, 0
      %831 = vst.msk [vmem:[#allocation2 + $0x5f8] sm:$0xf] %vm447, 0
      %832 = vst.msk [vmem:[#allocation2 + $0x5fc] sm:$0xf] %vm447, 0
      %833 = vst.msk [vmem:[#allocation2 + $0x600] sm:$0xf] %vm447, 0
      %834 = vst.msk [vmem:[#allocation2 + $0x604] sm:$0xf] %vm447, 0
      %835 = vst.msk [vmem:[#allocation2 + $0x608] sm:$0x1] %vm456, 0
      %836 = vst.msk [vmem:[#allocation2 + $0x60c] sm:$0xf] %vm447, 0
      %837 = vst.msk [vmem:[#allocation2 + $0x610] sm:$0xf] %vm447, 0
      %838 = vst.msk [vmem:[#allocation2 + $0x614] sm:$0xf] %vm447, 0
      %839 = vst.msk [vmem:[#allocation2 + $0x618] sm:$0xf] %vm447, 0
      %840 = vst.msk [vmem:[#allocation2 + $0x61c] sm:$0xf] %vm447, 0
      %841 = vst.msk [vmem:[#allocation2 + $0x620] sm:$0xf] %vm447, 0
      %842 = vst.msk [vmem:[#allocation2 + $0x624] sm:$0xf] %vm447, 0
      %843 = vst.msk [vmem:[#allocation2 + $0x628] sm:$0xf] %vm447, 0
      %844 = vst.msk [vmem:[#allocation2 + $0x62c] sm:$0x1] %vm456, 0
      %845 = vst.msk [vmem:[#allocation2 + $0x630] sm:$0xf] %vm447, 0
      %846 = vst.msk [vmem:[#allocation2 + $0x634] sm:$0xf] %vm447, 0
      %847 = vst.msk [vmem:[#allocation2 + $0x638] sm:$0xf] %vm447, 0
      %848 = vst.msk [vmem:[#allocation2 + $0x63c] sm:$0xf] %vm447, 0
      %849 = vst.msk [vmem:[#allocation2 + $0x640] sm:$0xf] %vm447, 0
      %850 = vst.msk [vmem:[#allocation2 + $0x644] sm:$0xf] %vm447, 0
      %851 = vst.msk [vmem:[#allocation2 + $0x648] sm:$0xf] %vm447, 0
      %852 = vst.msk [vmem:[#allocation2 + $0x64c] sm:$0xf] %vm447, 0
      %853 = vst.msk [vmem:[#allocation2 + $0x650] sm:$0x1] %vm456, 0
      %854 = vst.msk [vmem:[#allocation2 + $0x654] sm:$0xf] %vm447, 0
      %855 = vst.msk [vmem:[#allocation2 + $0x658] sm:$0xf] %vm447, 0
      %856 = vst.msk [vmem:[#allocation2 + $0x65c] sm:$0xf] %vm447, 0
      %857 = vst.msk [vmem:[#allocation2 + $0x660] sm:$0xf] %vm447, 0
      %858 = vst.msk [vmem:[#allocation2 + $0x664] sm:$0xf] %vm447, 0
      %859 = vst.msk [vmem:[#allocation2 + $0x668] sm:$0xf] %vm447, 0
      %860 = vst.msk [vmem:[#allocation2 + $0x66c] sm:$0xf] %vm447, 0
      %861 = vst.msk [vmem:[#allocation2 + $0x670] sm:$0xf] %vm447, 0
      %862 = vst.msk [vmem:[#allocation2 + $0x674] sm:$0x1] %vm456, 0
      %863 = vst.msk [vmem:[#allocation2 + $0x678] sm:$0xf] %vm447, 0
      %864 = vst.msk [vmem:[#allocation2 + $0x67c] sm:$0xf] %vm447, 0
      %865 = vst.msk [vmem:[#allocation2 + $0x680] sm:$0xf] %vm447, 0
      %866 = vst.msk [vmem:[#allocation2 + $0x684] sm:$0xf] %vm447, 0
      %867 = vst.msk [vmem:[#allocation2 + $0x688] sm:$0xf] %vm447, 0
      %868 = vst.msk [vmem:[#allocation2 + $0x68c] sm:$0xf] %vm447, 0
      %869 = vst.msk [vmem:[#allocation2 + $0x690] sm:$0xf] %vm447, 0
      %870 = vst.msk [vmem:[#allocation2 + $0x694] sm:$0xf] %vm447, 0
      %871 = vst.msk [vmem:[#allocation2 + $0x698] sm:$0x1] %vm456, 0
      %872 = vst.msk [vmem:[#allocation2 + $0x69c] sm:$0xf] %vm447, 0
      %873 = vst.msk [vmem:[#allocation2 + $0x6a0] sm:$0xf] %vm447, 0
      %874 = vst.msk [vmem:[#allocation2 + $0x6a4] sm:$0xf] %vm447, 0
      %875 = vst.msk [vmem:[#allocation2 + $0x6a8] sm:$0xf] %vm447, 0
      %876 = vst.msk [vmem:[#allocation2 + $0x6ac] sm:$0xf] %vm447, 0
      %877 = vst.msk [vmem:[#allocation2 + $0x6b0] sm:$0xf] %vm447, 0
      %878 = vst.msk [vmem:[#allocation2 + $0x6b4] sm:$0xf] %vm447, 0
      %879 = vst.msk [vmem:[#allocation2 + $0x6b8] sm:$0xf] %vm447, 0
      %880 = vst.msk [vmem:[#allocation2 + $0x6bc] sm:$0x1] %vm456, 0
      %881 = vst.msk [vmem:[#allocation2 + $0x6c0] sm:$0xf] %vm447, 0
      %882 = vst.msk [vmem:[#allocation2 + $0x6c4] sm:$0xf] %vm447, 0
      %883 = vst.msk [vmem:[#allocation2 + $0x6c8] sm:$0xf] %vm447, 0
      %884 = vst.msk [vmem:[#allocation2 + $0x6cc] sm:$0xf] %vm447, 0
      %885 = vst.msk [vmem:[#allocation2 + $0x6d0] sm:$0xf] %vm447, 0
      %886 = vst.msk [vmem:[#allocation2 + $0x6d4] sm:$0xf] %vm447, 0
      %887 = vst.msk [vmem:[#allocation2 + $0x6d8] sm:$0xf] %vm447, 0
      %888 = vst.msk [vmem:[#allocation2 + $0x6dc] sm:$0xf] %vm447, 0
      %889 = vst.msk [vmem:[#allocation2 + $0x6e0] sm:$0x1] %vm456, 0
      %890 = vst.msk [vmem:[#allocation2 + $0x6e4] sm:$0xf] %vm447, 0
      %891 = vst.msk [vmem:[#allocation2 + $0x6e8] sm:$0xf] %vm447, 0
      %892 = vst.msk [vmem:[#allocation2 + $0x6ec] sm:$0xf] %vm447, 0
      %893 = vst.msk [vmem:[#allocation2 + $0x6f0] sm:$0xf] %vm447, 0
      %894 = vst.msk [vmem:[#allocation2 + $0x6f4] sm:$0xf] %vm447, 0
      %895 = vst.msk [vmem:[#allocation2 + $0x6f8] sm:$0xf] %vm447, 0
      %896 = vst.msk [vmem:[#allocation2 + $0x6fc] sm:$0xf] %vm447, 0
      %897 = vst.msk [vmem:[#allocation2 + $0x700] sm:$0xf] %vm447, 0
      %898 = vst.msk [vmem:[#allocation2 + $0x704] sm:$0x1] %vm456, 0
      %899 = vst.msk [vmem:[#allocation2 + $0x708] sm:$0xf] %vm447, 0
      %900 = vst.msk [vmem:[#allocation2 + $0x70c] sm:$0xf] %vm447, 0
      %901 = vst.msk [vmem:[#allocation2 + $0x710] sm:$0xf] %vm447, 0
      %902 = vst.msk [vmem:[#allocation2 + $0x714] sm:$0xf] %vm447, 0
      %903 = vst.msk [vmem:[#allocation2 + $0x718] sm:$0xf] %vm447, 0
      %904 = vst.msk [vmem:[#allocation2 + $0x71c] sm:$0xf] %vm447, 0
      %905 = vst.msk [vmem:[#allocation2 + $0x720] sm:$0xf] %vm447, 0
      %906 = vst.msk [vmem:[#allocation2 + $0x724] sm:$0xf] %vm447, 0
      %907 = vst.msk [vmem:[#allocation2 + $0x728] sm:$0x1] %vm456, 0
      %908 = vst.msk [vmem:[#allocation2 + $0x72c] sm:$0xf] %vm447, 0
      %909 = vst.msk [vmem:[#allocation2 + $0x730] sm:$0xf] %vm447, 0
      %910 = vst.msk [vmem:[#allocation2 + $0x734] sm:$0xf] %vm447, 0
      %911 = vst.msk [vmem:[#allocation2 + $0x738] sm:$0xf] %vm447, 0
      %912 = vst.msk [vmem:[#allocation2 + $0x73c] sm:$0xf] %vm447, 0
      %913 = vst.msk [vmem:[#allocation2 + $0x740] sm:$0xf] %vm447, 0
      %914 = vst.msk [vmem:[#allocation2 + $0x744] sm:$0xf] %vm447, 0
      %915 = vst.msk [vmem:[#allocation2 + $0x748] sm:$0xf] %vm447, 0
      %916 = vst.msk [vmem:[#allocation2 + $0x74c] sm:$0x1] %vm456, 0
      %917 = vst.msk [vmem:[#allocation2 + $0x750] sm:$0xf] %vm447, 0
      %918 = vst.msk [vmem:[#allocation2 + $0x754] sm:$0xf] %vm447, 0
      %919 = vst.msk [vmem:[#allocation2 + $0x758] sm:$0xf] %vm447, 0
      %920 = vst.msk [vmem:[#allocation2 + $0x75c] sm:$0xf] %vm447, 0
      %921 = vst.msk [vmem:[#allocation2 + $0x760] sm:$0xf] %vm447, 0
      %922 = vst.msk [vmem:[#allocation2 + $0x764] sm:$0xf] %vm447, 0
      %923 = vst.msk [vmem:[#allocation2 + $0x768] sm:$0xf] %vm447, 0
      %924 = vst.msk [vmem:[#allocation2 + $0x76c] sm:$0xf] %vm447, 0
      %925 = vst.msk [vmem:[#allocation2 + $0x770] sm:$0x1] %vm456, 0
      %926 = vst.msk [vmem:[#allocation2 + $0x774] sm:$0xf] %vm447, 0
      %927 = vst.msk [vmem:[#allocation2 + $0x778] sm:$0xf] %vm447, 0
      %928 = vst.msk [vmem:[#allocation2 + $0x77c] sm:$0xf] %vm447, 0
      %929 = vst.msk [vmem:[#allocation2 + $0x780] sm:$0xf] %vm447, 0
      %930 = vst.msk [vmem:[#allocation2 + $0x784] sm:$0xf] %vm447, 0
      %931 = vst.msk [vmem:[#allocation2 + $0x788] sm:$0xf] %vm447, 0
      %932 = vst.msk [vmem:[#allocation2 + $0x78c] sm:$0xf] %vm447, 0
      %933 = vst.msk [vmem:[#allocation2 + $0x790] sm:$0xf] %vm447, 0
      %934 = vst.msk [vmem:[#allocation2 + $0x794] sm:$0x1] %vm456, 0
      %935 = vst.msk [vmem:[#allocation2 + $0x798] sm:$0xf] %vm447, 0
      %936 = vst.msk [vmem:[#allocation2 + $0x79c] sm:$0xf] %vm447, 0
      %937 = vst.msk [vmem:[#allocation2 + $0x7a0] sm:$0xf] %vm447, 0
      %938 = vst.msk [vmem:[#allocation2 + $0x7a4] sm:$0xf] %vm447, 0
      %939 = vst.msk [vmem:[#allocation2 + $0x7a8] sm:$0xf] %vm447, 0
      %940 = vst.msk [vmem:[#allocation2 + $0x7ac] sm:$0xf] %vm447, 0
      %941 = vst.msk [vmem:[#allocation2 + $0x7b0] sm:$0xf] %vm447, 0
      %942 = vst.msk [vmem:[#allocation2 + $0x7b4] sm:$0xf] %vm447, 0
      %943 = vst.msk [vmem:[#allocation2 + $0x7b8] sm:$0x1] %vm456, 0
      %944 = vst.msk [vmem:[#allocation2 + $0x7bc] sm:$0xf] %vm447, 0
      %945 = vst.msk [vmem:[#allocation2 + $0x7c0] sm:$0xf] %vm447, 0
      %946 = vst.msk [vmem:[#allocation2 + $0x7c4] sm:$0xf] %vm447, 0
      %947 = vst.msk [vmem:[#allocation2 + $0x7c8] sm:$0xf] %vm447, 0
      %948 = vst.msk [vmem:[#allocation2 + $0x7cc] sm:$0xf] %vm447, 0
      %949 = vst.msk [vmem:[#allocation2 + $0x7d0] sm:$0xf] %vm447, 0
      %950 = vst.msk [vmem:[#allocation2 + $0x7d4] sm:$0xf] %vm447, 0
      %951 = vst.msk [vmem:[#allocation2 + $0x7d8] sm:$0xf] %vm447, 0
      %952 = vst.msk [vmem:[#allocation2 + $0x7dc] sm:$0x1] %vm456, 0
      %953 = vst.msk [vmem:[#allocation2 + $0x7e0] sm:$0xf] %vm447, 0
      %954 = vst.msk [vmem:[#allocation2 + $0x7e4] sm:$0xf] %vm447, 0
      %955 = vst.msk [vmem:[#allocation2 + $0x7e8] sm:$0xf] %vm447, 0
      %956 = vst.msk [vmem:[#allocation2 + $0x7ec] sm:$0xf] %vm447, 0
      %957 = vst.msk [vmem:[#allocation2 + $0x7f0] sm:$0xf] %vm447, 0
      %958 = vst.msk [vmem:[#allocation2 + $0x7f4] sm:$0xf] %vm447, 0
      %959 = vst.msk [vmem:[#allocation2 + $0x7f8] sm:$0xf] %vm447, 0
      %960 = vst.msk [vmem:[#allocation2 + $0x7fc] sm:$0xf] %vm447, 0
      %961 = vst.msk [vmem:[#allocation2 + $0x800] sm:$0x1] %vm456, 0
      %962 = vst.msk [vmem:[#allocation2 + $0x804] sm:$0xf] %vm447, 0
      %963 = vst.msk [vmem:[#allocation2 + $0x808] sm:$0xf] %vm447, 0
      %964 = vst.msk [vmem:[#allocation2 + $0x80c] sm:$0xf] %vm447, 0
      %965 = vst.msk [vmem:[#allocation2 + $0x810] sm:$0xf] %vm447, 0
      %966 = vst.msk [vmem:[#allocation2 + $0x814] sm:$0xf] %vm447, 0
      %967 = vst.msk [vmem:[#allocation2 + $0x818] sm:$0xf] %vm447, 0
      %968 = vst.msk [vmem:[#allocation2 + $0x81c] sm:$0xf] %vm447, 0
      %969 = vst.msk [vmem:[#allocation2 + $0x820] sm:$0xf] %vm447, 0
      %970 = vst.msk [vmem:[#allocation2 + $0x824] sm:$0x1] %vm456, 0
      %971 = vst.msk [vmem:[#allocation2 + $0x828] sm:$0xf] %vm447, 0
      %972 = vst.msk [vmem:[#allocation2 + $0x82c] sm:$0xf] %vm447, 0
      %973 = vst.msk [vmem:[#allocation2 + $0x830] sm:$0xf] %vm447, 0
      %974 = vst.msk [vmem:[#allocation2 + $0x834] sm:$0xf] %vm447, 0
      %975 = vst.msk [vmem:[#allocation2 + $0x838] sm:$0xf] %vm447, 0
      %976 = vst.msk [vmem:[#allocation2 + $0x83c] sm:$0xf] %vm447, 0
      %977 = vst.msk [vmem:[#allocation2 + $0x840] sm:$0xf] %vm447, 0
      %978 = vst.msk [vmem:[#allocation2 + $0x844] sm:$0xf] %vm447, 0
      %979 = vst.msk [vmem:[#allocation2 + $0x848] sm:$0x1] %vm456, 0
      %980 = vst.msk [vmem:[#allocation2 + $0x84c] sm:$0xf] %vm447, 0
      %981 = vst.msk [vmem:[#allocation2 + $0x850] sm:$0xf] %vm447, 0
      %982 = vst.msk [vmem:[#allocation2 + $0x854] sm:$0xf] %vm447, 0
      %983 = vst.msk [vmem:[#allocation2 + $0x858] sm:$0xf] %vm447, 0
      %984 = vst.msk [vmem:[#allocation2 + $0x85c] sm:$0xf] %vm447, 0
      %985 = vst.msk [vmem:[#allocation2 + $0x860] sm:$0xf] %vm447, 0
      %986 = vst.msk [vmem:[#allocation2 + $0x864] sm:$0xf] %vm447, 0
      %987 = vst.msk [vmem:[#allocation2 + $0x868] sm:$0xf] %vm447, 0
      %988 = vst.msk [vmem:[#allocation2 + $0x86c] sm:$0x1] %vm456, 0
      %989 = vst.msk [vmem:[#allocation2 + $0x870] sm:$0xf] %vm447, 0
      %990 = vst.msk [vmem:[#allocation2 + $0x874] sm:$0xf] %vm447, 0
      %991 = vst.msk [vmem:[#allocation2 + $0x878] sm:$0xf] %vm447, 0
      %992 = vst.msk [vmem:[#allocation2 + $0x87c] sm:$0xf] %vm447, 0
      %993 = vst.msk [vmem:[#allocation2 + $0x880] sm:$0xf] %vm447, 0
      %994 = vst.msk [vmem:[#allocation2 + $0x884] sm:$0xf] %vm447, 0
      %995 = vst.msk [vmem:[#allocation2 + $0x888] sm:$0xf] %vm447, 0
      %996 = vst.msk [vmem:[#allocation2 + $0x88c] sm:$0xf] %vm447, 0
      %997 = vst.msk [vmem:[#allocation2 + $0x890] sm:$0x1] %vm456, 0
      %998 = vst.msk [vmem:[#allocation2 + $0x894] sm:$0xf] %vm447, 0
      %999 = vst.msk [vmem:[#allocation2 + $0x898] sm:$0xf] %vm447, 0
      %1000 = vst.msk [vmem:[#allocation2 + $0x89c] sm:$0xf] %vm447, 0
      %1001 = vst.msk [vmem:[#allocation2 + $0x8a0] sm:$0xf] %vm447, 0
      %1002 = vst.msk [vmem:[#allocation2 + $0x8a4] sm:$0xf] %vm447, 0
      %1003 = vst.msk [vmem:[#allocation2 + $0x8a8] sm:$0xf] %vm447, 0
      %1004 = vst.msk [vmem:[#allocation2 + $0x8ac] sm:$0xf] %vm447, 0
      %1005 = vst.msk [vmem:[#allocation2 + $0x8b0] sm:$0xf] %vm447, 0
      %1006 = vst.msk [vmem:[#allocation2 + $0x8b4] sm:$0x1] %vm456, 0
      %1007 = vst.msk [vmem:[#allocation2 + $0x8b8] sm:$0xf] %vm447, 0
      %1008 = vst.msk [vmem:[#allocation2 + $0x8bc] sm:$0xf] %vm447, 0
      %1009 = vst.msk [vmem:[#allocation2 + $0x8c0] sm:$0xf] %vm447, 0
      %1010 = vst.msk [vmem:[#allocation2 + $0x8c4] sm:$0xf] %vm447, 0
      %1011 = vst.msk [vmem:[#allocation2 + $0x8c8] sm:$0xf] %vm447, 0
      %1012 = vst.msk [vmem:[#allocation2 + $0x8cc] sm:$0xf] %vm447, 0
      %1013 = vst.msk [vmem:[#allocation2 + $0x8d0] sm:$0xf] %vm447, 0
      %1014 = vst.msk [vmem:[#allocation2 + $0x8d4] sm:$0xf] %vm447, 0
      %1015 = vst.msk [vmem:[#allocation2 + $0x8d8] sm:$0x1] %vm456, 0
      %1016 = vst.msk [vmem:[#allocation2 + $0x8dc] sm:$0xf] %vm447, 0
      %1017 = vst.msk [vmem:[#allocation2 + $0x8e0] sm:$0xf] %vm447, 0
      %1018 = vst.msk [vmem:[#allocation2 + $0x8e4] sm:$0xf] %vm447, 0
      %1019 = vst.msk [vmem:[#allocation2 + $0x8e8] sm:$0xf] %vm447, 0
      %1020 = vst.msk [vmem:[#allocation2 + $0x8ec] sm:$0xf] %vm447, 0
      %1021 = vst.msk [vmem:[#allocation2 + $0x8f0] sm:$0xf] %vm447, 0
      %1022 = vst.msk [vmem:[#allocation2 + $0x8f4] sm:$0xf] %vm447, 0
      %1023 = vst.msk [vmem:[#allocation2 + $0x8f8] sm:$0xf] %vm447, 0
      %1024 = vst.msk [vmem:[#allocation2 + $0x8fc] sm:$0x1] %vm456, 0
      %1025 = vst.msk [vmem:[#allocation2 + $0x900] sm:$0xf] %vm447, 0
      %1026 = vst.msk [vmem:[#allocation2 + $0x904] sm:$0xf] %vm447, 0
      %1027 = vst.msk [vmem:[#allocation2 + $0x908] sm:$0xf] %vm447, 0
      %1028 = vst.msk [vmem:[#allocation2 + $0x90c] sm:$0xf] %vm447, 0
      %1029 = vst.msk [vmem:[#allocation2 + $0x910] sm:$0xf] %vm447, 0
      %1030 = vst.msk [vmem:[#allocation2 + $0x914] sm:$0xf] %vm447, 0
      %1031 = vst.msk [vmem:[#allocation2 + $0x918] sm:$0xf] %vm447, 0
      %1032 = vst.msk [vmem:[#allocation2 + $0x91c] sm:$0xf] %vm447, 0
      %1033 = vst.msk [vmem:[#allocation2 + $0x920] sm:$0x1] %vm456, 0
      %1034 = vst.msk [vmem:[#allocation2 + $0x924] sm:$0xf] %vm447, 0
      %1035 = vst.msk [vmem:[#allocation2 + $0x928] sm:$0xf] %vm447, 0
      %1036 = vst.msk [vmem:[#allocation2 + $0x92c] sm:$0xf] %vm447, 0
      %1037 = vst.msk [vmem:[#allocation2 + $0x930] sm:$0xf] %vm447, 0
      %1038 = vst.msk [vmem:[#allocation2 + $0x934] sm:$0xf] %vm447, 0
      %1039 = vst.msk [vmem:[#allocation2 + $0x938] sm:$0xf] %vm447, 0
      %1040 = vst.msk [vmem:[#allocation2 + $0x93c] sm:$0xf] %vm447, 0
      %1041 = vst.msk [vmem:[#allocation2 + $0x940] sm:$0xf] %vm447, 0
      %1042 = vst.msk [vmem:[#allocation2 + $0x944] sm:$0x1] %vm456, 0
      %s1043 = scalar_lea.vmem [#allocation2], 1152
      %1044 = vst.msk [vmem:[%s1043 + $0x10] sm:$0xf] %vm447, %v415
      %1045 = vst.msk [vmem:[%s1043 + $0x14] sm:$0xf] %vm447, %v416
      %1046 = vst.msk [vmem:[%s1043 + $0x34] sm:$0xf] %vm447, %v417
      %1047 = vst.msk [vmem:[%s1043 + $0x38] sm:$0xf] %vm447, %v418
      %1048 = vst.msk [vmem:[%s1043 + $0x58] sm:$0xf] %vm447, %v419
      %1049 = vst.msk [vmem:[%s1043 + $0x5c] sm:$0xf] %vm447, %v420
      %1050 = vst.msk [vmem:[%s1043 + $0x7c] sm:$0xf] %vm447, %v421
      %1051 = vst.msk [vmem:[%s1043 + $0x80] sm:$0xf] %vm447, %v422
      %1052 = vst.msk [vmem:[%s1043 + $0xa0] sm:$0xf] %vm447, %v423
      %1053 = vst.msk [vmem:[%s1043 + $0xa4] sm:$0xf] %vm447, %v424
      %1054 = vst.msk [vmem:[%s1043 + $0xc4] sm:$0xf] %vm447, %v425
      %1055 = vst.msk [vmem:[%s1043 + $0xc8] sm:$0xf] %vm447, %v426
      %1056 = vst.msk [vmem:[%s1043 + $0xe8] sm:$0xf] %vm447, %v427
      %1057 = vst.msk [vmem:[%s1043 + $0xec] sm:$0xf] %vm447, %v428
      %1058 = vst.msk [vmem:[%s1043 + $0x10c] sm:$0xf] %vm447, %v429
      %1059 = vst.msk [vmem:[%s1043 + $0x110] sm:$0xf] %vm447, %v430
      %1060 = vst.msk [vmem:[%s1043 + $0x130] sm:$0xf] %vm447, %v431
      %1061 = vst.msk [vmem:[%s1043 + $0x134] sm:$0xf] %vm447, %v432
      %1062 = vst.msk [vmem:[%s1043 + $0x154] sm:$0xf] %vm447, %v433
      %1063 = vst.msk [vmem:[%s1043 + $0x158] sm:$0xf] %vm447, %v434
      %1064 = vst.msk [vmem:[%s1043 + $0x178] sm:$0xf] %vm447, %v435
      %1065 = vst.msk [vmem:[%s1043 + $0x17c] sm:$0xf] %vm447, %v436
      %1066 = vst.msk [vmem:[%s1043 + $0x19c] sm:$0xf] %vm447, %v437
      %1067 = vst.msk [vmem:[%s1043 + $0x1a0] sm:$0xf] %vm447, %v438
      %1068 = vst.msk [vmem:[%s1043 + $0x1c0] sm:$0xf] %vm447, %v439
      %1069 = vst.msk [vmem:[%s1043 + $0x1c4] sm:$0xf] %vm447, %v440
      %1070 = vst.msk [vmem:[%s1043 + $0x1e4] sm:$0xf] %vm447, %v441
      %1071 = vst.msk [vmem:[%s1043 + $0x1e8] sm:$0xf] %vm447, %v442
      %1072 = vst.msk [vmem:[%s1043 + $0x208] sm:$0xf] %vm447, %v443
      %1073 = vst.msk [vmem:[%s1043 + $0x20c] sm:$0xf] %vm447, %v444
      %1074 = vst.msk [vmem:[%s1043 + $0x22c] sm:$0xf] %vm447, %v445
      %1075 = vst.msk [vmem:[%s1043 + $0x230] sm:$0xf] %vm447, %v446
      %v1076 = vld [vmem:[%s1] sm:$0x3]
      %v1109 = vunpack.c.l.b16 %v415
      %v1110 = vunpack.c.l.b16 %v416
      %v1111 = vunpack.c.l.b16 %v417
      %v1112 = vunpack.c.l.b16 %v418
      %v1113 = vunpack.c.l.b16 %v419
      %v1114 = vunpack.c.l.b16 %v420
      %v1115 = vunpack.c.l.b16 %v421
      %v1116 = vunpack.c.l.b16 %v422
      %v1117 = vunpack.c.l.b16 %v423
      %v1118 = vunpack.c.l.b16 %v424
      %v1119 = vunpack.c.l.b16 %v425
      %v1120 = vunpack.c.l.b16 %v426
      %v1121 = vunpack.c.l.b16 %v427
      %v1122 = vunpack.c.l.b16 %v428
      %v1123 = vunpack.c.l.b16 %v429
      %v1124 = vunpack.c.l.b16 %v430
      %v1125 = vunpack.c.l.b16 %v431
      %v1126 = vunpack.c.l.b16 %v432
      %v1127 = vunpack.c.l.b16 %v433
      %v1128 = vunpack.c.l.b16 %v434
      %v1129 = vunpack.c.l.b16 %v435
      %v1130 = vunpack.c.l.b16 %v436
      %v1131 = vunpack.c.l.b16 %v437
      %v1132 = vunpack.c.l.b16 %v438
      %v1133 = vunpack.c.l.b16 %v439
      %v1134 = vunpack.c.l.b16 %v440
      %v1135 = vunpack.c.l.b16 %v441
      %v1136 = vunpack.c.l.b16 %v442
      %v1137 = vunpack.c.l.b16 %v443
      %v1138 = vunpack.c.l.b16 %v444
      %v1139 = vunpack.c.l.b16 %v445
      %v1140 = vunpack.c.l.b16 %v446
      %v1141 = vpack.c.b16 %v1110, %v1109
      %v1142 = vpack.c.b16 %v1112, %v1111
      %v1143 = vpack.c.b16 %v1114, %v1113
      %v1144 = vpack.c.b16 %v1116, %v1115
      %v1145 = vpack.c.b16 %v1118, %v1117
      %v1146 = vpack.c.b16 %v1120, %v1119
      %v1147 = vpack.c.b16 %v1122, %v1121
      %v1148 = vpack.c.b16 %v1124, %v1123
      %v1149 = vpack.c.b16 %v1126, %v1125
      %v1150 = vpack.c.b16 %v1128, %v1127
      %v1151 = vpack.c.b16 %v1130, %v1129
      %v1152 = vpack.c.b16 %v1132, %v1131
      %v1153 = vpack.c.b16 %v1134, %v1133
      %v1154 = vpack.c.b16 %v1136, %v1135
      %v1155 = vpack.c.b16 %v1138, %v1137
      %v1156 = vpack.c.b16 %v1140, %v1139
      %vm1157 = vcmask 31744
      %v1159 = vsel %vm1157, %v1141, 0
      %v1162 = vsel %vm1157, %v1142, 0
      %v1165 = vsel %vm1157, %v1143, 0
      %v1168 = vsel %vm1157, %v1144, 0
      %v1171 = vsel %vm1157, %v1145, 0
      %v1174 = vsel %vm1157, %v1146, 0
      %v1177 = vsel %vm1157, %v1147, 0
      %v1180 = vsel %vm1157, %v1148, 0
      %v1183 = vsel %vm1157, %v1149, 0
      %v1186 = vsel %vm1157, %v1150, 0
      %v1189 = vsel %vm1157, %v1151, 0
      %v1192 = vsel %vm1157, %v1152, 0
      %v1195 = vsel %vm1157, %v1153, 0
      %v1198 = vsel %vm1157, %v1154, 0
      %v1201 = vsel %vm1157, %v1155, 0
      %v1204 = vsel %vm1157, %v1156, 0
      %vm1206 = vcmask 1041408
      %v1208 = vsel %vm1206, %v1076, 0
      %1210 = vmatprep.subr.bf16.mxu0 0
      %1211 = vmatpush1.bf16.msra.mxu0 %v1208
      %1212 = vmatprep.subr.bf16.mxu0 0
      %1213 = vmatpush1.bf16.msra.mxu0 0
      %1214 = vmatprep.subr.bf16.mxu0 0
      %1215 = vmatpush1.bf16.msra.mxu0 0
      %1216 = vmatprep.subr.bf16.mxu0 0
      %1217 = vmatpush1.bf16.msra.mxu0 0
      %1218 = vmatprep.subr.bf16.mxu0 0
      %1219 = vmatpush1.bf16.msra.mxu0 0
      %1220 = vmatprep.subr.bf16.mxu0 0
      %1221 = vmatpush1.bf16.msra.mxu0 0
      %1222 = vmatprep.subr.bf16.mxu0 0
      %1223 = vmatpush1.bf16.msra.mxu0 0
      %1224 = vmatprep.subr.bf16.mxu0 0
      %1225 = vmatpush1.bf16.msra.mxu0 0
      %1226 = vmatprep.subr.bf16.mxu0 0
      %1227 = vmatpush1.bf16.msra.mxu0 0
      %1228 = vmatprep.subr.bf16.mxu0 0
      %1229 = vmatpush1.bf16.msra.mxu0 0
      %1230 = vmatprep.subr.bf16.mxu0 0
      %1231 = vmatpush1.bf16.msra.mxu0 0
      %1232 = vmatprep.subr.bf16.mxu0 0
      %1233 = vmatpush1.bf16.msra.mxu0 0
      %1234 = vmatprep.subr.bf16.mxu0 0
      %1235 = vmatpush1.bf16.msra.mxu0 0
      %1236 = vmatprep.subr.bf16.mxu0 0
      %1237 = vmatpush1.bf16.msra.mxu0 0
      %1238 = vmatprep.subr.bf16.mxu0 0
      %1239 = vmatpush1.bf16.msra.mxu0 0
      %1240 = vmatprep.subr.bf16.mxu0 0
      %1241 = vmatpush1.bf16.msra.mxu0 0
      %1242 = vmatprep.mubr.bf16.mxu0 0
      %1243 = vmatmul.mubr.bf16.gmra.mrb[0].mxu0 %v1159
      %v1244 = vpop.f32.mrb[0].mxu0
      %v1245 = vadd.f32 0.0, %v1244
      %v1246 = vpop.f32.mrb[0].mxu0
      %v1247 = vpop.f32.mrb[0].mxu0
      %v1248 = vadd.f32 0.0, %v1247
      %v1249 = vpop.f32.mrb[0].mxu0
      %1250 = vmatprep.mubr.bf16.mxu0 0
      %1251 = vmatmul.mubr.bf16.gmra.mrb[0].mxu0 %v1162
      %v1252 = vpop.f32.mrb[0].mxu0
      %v1253 = vadd.f32 0.0, %v1252
      %v1254 = vpop.f32.mrb[0].mxu0
      %v1255 = vpop.f32.mrb[0].mxu0
      %v1256 = vadd.f32 0.0, %v1255
      %v1257 = vpop.f32.mrb[0].mxu0
      %1258 = vmatprep.mubr.bf16.mxu0 0
      %1259 = vmatmul.mubr.bf16.gmra.mrb[0].mxu0 %v1165
      %v1260 = vpop.f32.mrb[0].mxu0
      %v1261 = vadd.f32 0.0, %v1260
      %v1262 = vpop.f32.mrb[0].mxu0
      %v1263 = vpop.f32.mrb[0].mxu0
      %v1264 = vadd.f32 0.0, %v1263
      %v1265 = vpop.f32.mrb[0].mxu0
      %1266 = vmatprep.mubr.bf16.mxu0 0
      %1267 = vmatmul.mubr.bf16.gmra.mrb[0].mxu0 %v1168
      %v1268 = vpop.f32.mrb[0].mxu0
      %v1269 = vadd.f32 0.0, %v1268
      %v1270 = vpop.f32.mrb[0].mxu0
      %v1271 = vpop.f32.mrb[0].mxu0
      %v1272 = vadd.f32 0.0, %v1271
      %v1273 = vpop.f32.mrb[0].mxu0
      %1274 = vmatprep.mubr.bf16.mxu0 0
      %1275 = vmatmul.mubr.bf16.gmra.mrb[0].mxu0 %v1171
      %v1276 = vpop.f32.mrb[0].mxu0
      %v1277 = vadd.f32 0.0, %v1276
      %v1278 = vpop.f32.mrb[0].mxu0
      %v1279 = vpop.f32.mrb[0].mxu0
      %v1280 = vadd.f32 0.0, %v1279
      %v1281 = vpop.f32.mrb[0].mxu0
      %1282 = vmatprep.mubr.bf16.mxu0 0
      %1283 = vmatmul.mubr.bf16.gmra.mrb[0].mxu0 %v1174
      %v1284 = vpop.f32.mrb[0].mxu0
      %v1285 = vadd.f32 0.0, %v1284
      %v1286 = vpop.f32.mrb[0].mxu0
      %v1287 = vpop.f32.mrb[0].mxu0
      %v1288 = vadd.f32 0.0, %v1287
      %v1289 = vpop.f32.mrb[0].mxu0
      %1290 = vmatprep.mubr.bf16.mxu0 0
      %1291 = vmatmul.mubr.bf16.gmra.mrb[0].mxu0 %v1177
      %v1292 = vpop.f32.mrb[0].mxu0
      %v1293 = vadd.f32 0.0, %v1292
      %v1294 = vpop.f32.mrb[0].mxu0
      %v1295 = vpop.f32.mrb[0].mxu0
      %v1296 = vadd.f32 0.0, %v1295
      %v1297 = vpop.f32.mrb[0].mxu0
      %1298 = vmatprep.mubr.bf16.mxu0 0
      %1299 = vmatmul.mubr.bf16.gmra.mrb[0].mxu0 %v1180
      %v1300 = vpop.f32.mrb[0].mxu0
      %v1301 = vadd.f32 0.0, %v1300
      %v1302 = vpop.f32.mrb[0].mxu0
      %v1303 = vpop.f32.mrb[0].mxu0
      %v1304 = vadd.f32 0.0, %v1303
      %v1305 = vpop.f32.mrb[0].mxu0
      %1306 = vmatprep.mubr.bf16.mxu0 0
      %1307 = vmatmul.mubr.bf16.gmra.mrb[0].mxu0 %v1183
      %v1308 = vpop.f32.mrb[0].mxu0
      %v1309 = vadd.f32 0.0, %v1308
      %v1310 = vpop.f32.mrb[0].mxu0
      %v1311 = vpop.f32.mrb[0].mxu0
      %v1312 = vadd.f32 0.0, %v1311
      %v1313 = vpop.f32.mrb[0].mxu0
      %1314 = vmatprep.mubr.bf16.mxu0 0
      %1315 = vmatmul.mubr.bf16.gmra.mrb[0].mxu0 %v1186
      %v1316 = vpop.f32.mrb[0].mxu0
      %v1317 = vadd.f32 0.0, %v1316
      %v1318 = vpop.f32.mrb[0].mxu0
      %v1319 = vpop.f32.mrb[0].mxu0
      %v1320 = vadd.f32 0.0, %v1319
      %v1321 = vpop.f32.mrb[0].mxu0
      %1322 = vmatprep.mubr.bf16.mxu0 0
      %1323 = vmatmul.mubr.bf16.gmra.mrb[0].mxu0 %v1189
      %v1324 = vpop.f32.mrb[0].mxu0
      %v1325 = vadd.f32 0.0, %v1324
      %v1326 = vpop.f32.mrb[0].mxu0
      %v1327 = vpop.f32.mrb[0].mxu0
      %v1328 = vadd.f32 0.0, %v1327
      %v1329 = vpop.f32.mrb[0].mxu0
      %1330 = vmatprep.mubr.bf16.mxu0 0
      %1331 = vmatmul.mubr.bf16.gmra.mrb[0].mxu0 %v1192
      %v1332 = vpop.f32.mrb[0].mxu0
      %v1333 = vadd.f32 0.0, %v1332
      %v1334 = vpop.f32.mrb[0].mxu0
      %v1335 = vpop.f32.mrb[0].mxu0
      %v1336 = vadd.f32 0.0, %v1335
      %v1337 = vpop.f32.mrb[0].mxu0
      %1338 = vmatprep.mubr.bf16.mxu0 0
      %1339 = vmatmul.mubr.bf16.gmra.mrb[0].mxu0 %v1195
      %v1340 = vpop.f32.mrb[0].mxu0
      %v1341 = vadd.f32 0.0, %v1340
      %v1342 = vpop.f32.mrb[0].mxu0
      %v1343 = vpop.f32.mrb[0].mxu0
      %v1344 = vadd.f32 0.0, %v1343
      %v1345 = vpop.f32.mrb[0].mxu0
      %1346 = vmatprep.mubr.bf16.mxu0 0
      %1347 = vmatmul.mubr.bf16.gmra.mrb[0].mxu0 %v1198
      %v1348 = vpop.f32.mrb[0].mxu0
      %v1349 = vadd.f32 0.0, %v1348
      %v1350 = vpop.f32.mrb[0].mxu0
      %v1351 = vpop.f32.mrb[0].mxu0
      %v1352 = vadd.f32 0.0, %v1351
      %v1353 = vpop.f32.mrb[0].mxu0
      %1354 = vmatprep.mubr.bf16.mxu0 0
      %1355 = vmatmul.mubr.bf16.gmra.mrb[0].mxu0 %v1201
      %v1356 = vpop.f32.mrb[0].mxu0
      %v1357 = vadd.f32 0.0, %v1356
      %v1358 = vpop.f32.mrb[0].mxu0
      %v1359 = vpop.f32.mrb[0].mxu0
      %v1360 = vadd.f32 0.0, %v1359
      %v1361 = vpop.f32.mrb[0].mxu0
      %1362 = vmatprep.mubr.bf16.mxu0 0
      %1363 = vmatmul.mubr.bf16.gmra.mrb[0].mxu0 %v1204
      %v1364 = vpop.f32.mrb[0].mxu0
      %v1365 = vadd.f32 0.0, %v1364
      %v1366 = vpop.f32.mrb[0].mxu0
      %v1367 = vpop.f32.mrb[0].mxu0
      %v1368 = vadd.f32 0.0, %v1367
      %v1369 = vpop.f32.mrb[0].mxu0
      %1370 = vdwg.mxu0
      %s1371 = scalar_lea.vmem [#allocation2], 936
      %v1372 = vld [vmem:[%s1371 + $0xc] sm:$0xe]
      %v1373 = vld [vmem:[%s1371 + $0x10] sm:$0xf]
      %v1374 = vld [vmem:[%s1371 + $0x14] sm:$0x1]
      %v1375 = vld [vmem:[%s1371 + $0x30] sm:$0xe]
      %v1376 = vld [vmem:[%s1371 + $0x34] sm:$0xf]
      %v1377 = vld [vmem:[%s1371 + $0x38] sm:$0x1]
      %v1378 = vld [vmem:[%s1371 + $0x54] sm:$0xe]
      %v1379 = vld [vmem:[%s1371 + $0x58] sm:$0xf]
      %v1380 = vld [vmem:[%s1371 + $0x5c] sm:$0x1]
      %v1381 = vld [vmem:[%s1371 + $0x78] sm:$0xe]
      %v1382 = vld [vmem:[%s1371 + $0x7c] sm:$0xf]
      %v1383 = vld [vmem:[%s1371 + $0x80] sm:$0x1]
      %v1384 = vld [vmem:[%s1371 + $0x9c] sm:$0xe]
      %v1385 = vld [vmem:[%s1371 + $0xa0] sm:$0xf]
      %v1386 = vld [vmem:[%s1371 + $0xa4] sm:$0x1]
      %v1387 = vld [vmem:[%s1371 + $0xc0] sm:$0xe]
      %v1388 = vld [vmem:[%s1371 + $0xc4] sm:$0xf]
      %v1389 = vld [vmem:[%s1371 + $0xc8] sm:$0x1]
      %v1390 = vld [vmem:[%s1371 + $0xe4] sm:$0xe]
      %v1391 = vld [vmem:[%s1371 + $0xe8] sm:$0xf]
      %v1392 = vld [vmem:[%s1371 + $0xec] sm:$0x1]
      %v1393 = vld [vmem:[%s1371 + $0x108] sm:$0xe]
      %v1394 = vld [vmem:[%s1371 + $0x10c] sm:$0xf]
      %v1395 = vld [vmem:[%s1371 + $0x110] sm:$0x1]
      %v1396 = vld [vmem:[%s1371 + $0x12c] sm:$0xe]
      %v1397 = vld [vmem:[%s1371 + $0x130] sm:$0xf]
      %v1398 = vld [vmem:[%s1371 + $0x134] sm:$0x1]
      %v1399 = vld [vmem:[%s1371 + $0x150] sm:$0xe]
      %v1400 = vld [vmem:[%s1371 + $0x154] sm:$0xf]
      %v1401 = vld [vmem:[%s1371 + $0x158] sm:$0x1]
      %v1402 = vld [vmem:[%s1371 + $0x174] sm:$0xe]
      %v1403 = vld [vmem:[%s1371 + $0x178] sm:$0xf]
      %v1404 = vld [vmem:[%s1371 + $0x17c] sm:$0x1]
      %v1405 = vld [vmem:[%s1371 + $0x198] sm:$0xe]
      %v1406 = vld [vmem:[%s1371 + $0x19c] sm:$0xf]
      %v1407 = vld [vmem:[%s1371 + $0x1a0] sm:$0x1]
      %v1408 = vld [vmem:[%s1371 + $0x1bc] sm:$0xe]
      %v1409 = vld [vmem:[%s1371 + $0x1c0] sm:$0xf]
      %v1410 = vld [vmem:[%s1371 + $0x1c4] sm:$0x1]
      %v1411 = vld [vmem:[%s1371 + $0x1e0] sm:$0xe]
      %v1412 = vld [vmem:[%s1371 + $0x1e4] sm:$0xf]
      %v1413 = vld [vmem:[%s1371 + $0x1e8] sm:$0x1]
      %v1414 = vld [vmem:[%s1371 + $0x204] sm:$0xe]
      %v1415 = vld [vmem:[%s1371 + $0x208] sm:$0xf]
      %v1416 = vld [vmem:[%s1371 + $0x20c] sm:$0x1]
      %v1417 = vld [vmem:[%s1371 + $0x228] sm:$0xe]
      %v1418 = vld [vmem:[%s1371 + $0x22c] sm:$0xf]
      %v1419 = vld [vmem:[%s1371 + $0x230] sm:$0x1]
      %vm1468 = vcmask 1042432
      %vm1469 = vcmask 1046532
      %vm1470 = vmor %vm1468, %vm1469
      %v1471 = vrot.slane %v1372, 5
      %v1472 = vrot.slane %v1471, 4
      %v1473 = vrot.slane %v1373, 5
      %v1474 = vsel %vm1470, %v1472, %v1473
      %v1475 = vrot.slane %v1473, 4
      %v1476 = vrot.slane %v1374, 5
      %v1477 = vsel %vm1470, %v1475, %v1476
      %v1478 = vrot.slane %v1375, 5
      %v1479 = vrot.slane %v1478, 4
      %v1480 = vrot.slane %v1376, 5
      %v1481 = vsel %vm1470, %v1479, %v1480
      %v1482 = vrot.slane %v1480, 4
      %v1483 = vrot.slane %v1377, 5
      %v1484 = vsel %vm1470, %v1482, %v1483
      %v1485 = vrot.slane %v1378, 5
      %v1486 = vrot.slane %v1485, 4
      %v1487 = vrot.slane %v1379, 5
      %v1488 = vsel %vm1470, %v1486, %v1487
      %v1489 = vrot.slane %v1487, 4
      %v1490 = vrot.slane %v1380, 5
      %v1491 = vsel %vm1470, %v1489, %v1490
      %v1492 = vrot.slane %v1381, 5
      %v1493 = vrot.slane %v1492, 4
      %v1494 = vrot.slane %v1382, 5
      %v1495 = vsel %vm1470, %v1493, %v1494
      %v1496 = vrot.slane %v1494, 4
      %v1497 = vrot.slane %v1383, 5
      %v1498 = vsel %vm1470, %v1496, %v1497
      %v1499 = vrot.slane %v1384, 5
      %v1500 = vrot.slane %v1499, 4
      %v1501 = vrot.slane %v1385, 5
      %v1502 = vsel %vm1470, %v1500, %v1501
      %v1503 = vrot.slane %v1501, 4
      %v1504 = vrot.slane %v1386, 5
      %v1505 = vsel %vm1470, %v1503, %v1504
      %v1506 = vrot.slane %v1387, 5
      %v1507 = vrot.slane %v1506, 4
      %v1508 = vrot.slane %v1388, 5
      %v1509 = vsel %vm1470, %v1507, %v1508
      %v1510 = vrot.slane %v1508, 4
      %v1511 = vrot.slane %v1389, 5
      %v1512 = vsel %vm1470, %v1510, %v1511
      %v1513 = vrot.slane %v1390, 5
      %v1514 = vrot.slane %v1513, 4
      %v1515 = vrot.slane %v1391, 5
      %v1516 = vsel %vm1470, %v1514, %v1515
      %v1517 = vrot.slane %v1515, 4
      %v1518 = vrot.slane %v1392, 5
      %v1519 = vsel %vm1470, %v1517, %v1518
      %v1520 = vrot.slane %v1393, 5
      %v1521 = vrot.slane %v1520, 4
      %v1522 = vrot.slane %v1394, 5
      %v1523 = vsel %vm1470, %v1521, %v1522
      %v1524 = vrot.slane %v1522, 4
      %v1525 = vrot.slane %v1395, 5
      %v1526 = vsel %vm1470, %v1524, %v1525
      %v1527 = vrot.slane %v1396, 5
      %v1528 = vrot.slane %v1527, 4
      %v1529 = vrot.slane %v1397, 5
      %v1530 = vsel %vm1470, %v1528, %v1529
      %v1531 = vrot.slane %v1529, 4
      %v1532 = vrot.slane %v1398, 5
      %v1533 = vsel %vm1470, %v1531, %v1532
      %v1534 = vrot.slane %v1399, 5
      %v1535 = vrot.slane %v1534, 4
      %v1536 = vrot.slane %v1400, 5
      %v1537 = vsel %vm1470, %v1535, %v1536
      %v1538 = vrot.slane %v1536, 4
      %v1539 = vrot.slane %v1401, 5
      %v1540 = vsel %vm1470, %v1538, %v1539
      %v1541 = vrot.slane %v1402, 5
      %v1542 = vrot.slane %v1541, 4
      %v1543 = vrot.slane %v1403, 5
      %v1544 = vsel %vm1470, %v1542, %v1543
      %v1545 = vrot.slane %v1543, 4
      %v1546 = vrot.slane %v1404, 5
      %v1547 = vsel %vm1470, %v1545, %v1546
      %v1548 = vrot.slane %v1405, 5
      %v1549 = vrot.slane %v1548, 4
      %v1550 = vrot.slane %v1406, 5
      %v1551 = vsel %vm1470, %v1549, %v1550
      %v1552 = vrot.slane %v1550, 4
      %v1553 = vrot.slane %v1407, 5
      %v1554 = vsel %vm1470, %v1552, %v1553
      %v1555 = vrot.slane %v1408, 5
      %v1556 = vrot.slane %v1555, 4
      %v1557 = vrot.slane %v1409, 5
      %v1558 = vsel %vm1470, %v1556, %v1557
      %v1559 = vrot.slane %v1557, 4
      %v1560 = vrot.slane %v1410, 5
      %v1561 = vsel %vm1470, %v1559, %v1560
      %v1562 = vrot.slane %v1411, 5
      %v1563 = vrot.slane %v1562, 4
      %v1564 = vrot.slane %v1412, 5
      %v1565 = vsel %vm1470, %v1563, %v1564
      %v1566 = vrot.slane %v1564, 4
      %v1567 = vrot.slane %v1413, 5
      %v1568 = vsel %vm1470, %v1566, %v1567
      %v1569 = vrot.slane %v1414, 5
      %v1570 = vrot.slane %v1569, 4
      %v1571 = vrot.slane %v1415, 5
      %v1572 = vsel %vm1470, %v1570, %v1571
      %v1573 = vrot.slane %v1571, 4
      %v1574 = vrot.slane %v1416, 5
      %v1575 = vsel %vm1470, %v1573, %v1574
      %v1576 = vrot.slane %v1417, 5
      %v1577 = vrot.slane %v1576, 4
      %v1578 = vrot.slane %v1418, 5
      %v1579 = vsel %vm1470, %v1577, %v1578
      %v1580 = vrot.slane %v1578, 4
      %v1581 = vrot.slane %v1419, 5
      %v1582 = vsel %vm1470, %v1580, %v1581
      %v1583 = vld [vmem:[%s1371 + $0x14] sm:$0xf]
      %v1584 = vld [vmem:[%s1371 + $0x38] sm:$0xf]
      %v1585 = vld [vmem:[%s1371 + $0x5c] sm:$0xf]
      %v1586 = vld [vmem:[%s1371 + $0x80] sm:$0xf]
      %v1587 = vld [vmem:[%s1371 + $0xa4] sm:$0xf]
      %v1588 = vld [vmem:[%s1371 + $0xc8] sm:$0xf]
      %v1589 = vld [vmem:[%s1371 + $0xec] sm:$0xf]
      %v1590 = vld [vmem:[%s1371 + $0x110] sm:$0xf]
      %v1591 = vld [vmem:[%s1371 + $0x134] sm:$0xf]
      %v1592 = vld [vmem:[%s1371 + $0x158] sm:$0xf]
      %v1593 = vld [vmem:[%s1371 + $0x17c] sm:$0xf]
      %v1594 = vld [vmem:[%s1371 + $0x1a0] sm:$0xf]
      %v1595 = vld [vmem:[%s1371 + $0x1c4] sm:$0xf]
      %v1596 = vld [vmem:[%s1371 + $0x1e8] sm:$0xf]
      %v1597 = vld [vmem:[%s1371 + $0x20c] sm:$0xf]
      %v1598 = vld [vmem:[%s1371 + $0x230] sm:$0xf]
      %v1599 = vld [vmem:[%s1371 + $0x10] sm:$0x8]
      %v1600 = vld [vmem:[%s1371 + $0x18] sm:$0x7]
      %v1601 = vld [vmem:[%s1371 + $0x34] sm:$0x8]
      %v1602 = vld [vmem:[%s1371 + $0x3c] sm:$0x7]
      %v1603 = vld [vmem:[%s1371 + $0x58] sm:$0x8]
      %v1604 = vld [vmem:[%s1371 + $0x60] sm:$0x7]
      %v1605 = vld [vmem:[%s1371 + $0x7c] sm:$0x8]
      %v1606 = vld [vmem:[%s1371 + $0x84] sm:$0x7]
      %v1607 = vld [vmem:[%s1371 + $0xa0] sm:$0x8]
      %v1608 = vld [vmem:[%s1371 + $0xa8] sm:$0x7]
      %v1609 = vld [vmem:[%s1371 + $0xc4] sm:$0x8]
      %v1610 = vld [vmem:[%s1371 + $0xcc] sm:$0x7]
      %v1611 = vld [vmem:[%s1371 + $0xe8] sm:$0x8]
      %v1612 = vld [vmem:[%s1371 + $0xf0] sm:$0x7]
      %v1613 = vld [vmem:[%s1371 + $0x10c] sm:$0x8]
      %v1614 = vld [vmem:[%s1371 + $0x114] sm:$0x7]
      %v1615 = vld [vmem:[%s1371 + $0x130] sm:$0x8]
      %v1616 = vld [vmem:[%s1371 + $0x138] sm:$0x7]
      %v1617 = vld [vmem:[%s1371 + $0x154] sm:$0x8]
      %v1618 = vld [vmem:[%s1371 + $0x15c] sm:$0x7]
      %v1619 = vld [vmem:[%s1371 + $0x178] sm:$0x8]
      %v1620 = vld [vmem:[%s1371 + $0x180] sm:$0x7]
      %v1621 = vld [vmem:[%s1371 + $0x19c] sm:$0x8]
      %v1622 = vld [vmem:[%s1371 + $0x1a4] sm:$0x7]
      %v1623 = vld [vmem:[%s1371 + $0x1c0] sm:$0x8]
      %v1624 = vld [vmem:[%s1371 + $0x1c8] sm:$0x7]
      %v1625 = vld [vmem:[%s1371 + $0x1e4] sm:$0x8]
      %v1626 = vld [vmem:[%s1371 + $0x1ec] sm:$0x7]
      %v1627 = vld [vmem:[%s1371 + $0x208] sm:$0x8]
      %v1628 = vld [vmem:[%s1371 + $0x210] sm:$0x7]
      %v1629 = vld [vmem:[%s1371 + $0x22c] sm:$0x8]
      %v1630 = vld [vmem:[%s1371 + $0x234] sm:$0x7]
      %vm1679 = vcmask 1040384
      %vm1680 = vcmask 1044484
      %vm1681 = vmor %vm1679, %vm1680
      %v1682 = vrot.slane %v1599, 7
      %v1683 = vrot.slane %v1682, 4
      %v1684 = vrot.slane %v1583, 7
      %v1685 = vsel %vm1681, %v1683, %v1684
      %v1686 = vrot.slane %v1684, 4
      %v1687 = vrot.slane %v1600, 7
      %v1688 = vsel %vm1681, %v1686, %v1687
      %v1689 = vrot.slane %v1601, 7
      %v1690 = vrot.slane %v1689, 4
      %v1691 = vrot.slane %v1584, 7
      %v1692 = vsel %vm1681, %v1690, %v1691
      %v1693 = vrot.slane %v1691, 4
      %v1694 = vrot.slane %v1602, 7
      %v1695 = vsel %vm1681, %v1693, %v1694
      %v1696 = vrot.slane %v1603, 7
      %v1697 = vrot.slane %v1696, 4
      %v1698 = vrot.slane %v1585, 7
      %v1699 = vsel %vm1681, %v1697, %v1698
      %v1700 = vrot.slane %v1698, 4
      %v1701 = vrot.slane %v1604, 7
      %v1702 = vsel %vm1681, %v1700, %v1701
      %v1703 = vrot.slane %v1605, 7
      %v1704 = vrot.slane %v1703, 4
      %v1705 = vrot.slane %v1586, 7
      %v1706 = vsel %vm1681, %v1704, %v1705
      %v1707 = vrot.slane %v1705, 4
      %v1708 = vrot.slane %v1606, 7
      %v1709 = vsel %vm1681, %v1707, %v1708
      %v1710 = vrot.slane %v1607, 7
      %v1711 = vrot.slane %v1710, 4
      %v1712 = vrot.slane %v1587, 7
      %v1713 = vsel %vm1681, %v1711, %v1712
      %v1714 = vrot.slane %v1712, 4
      %v1715 = vrot.slane %v1608, 7
      %v1716 = vsel %vm1681, %v1714, %v1715
      %v1717 = vrot.slane %v1609, 7
      %v1718 = vrot.slane %v1717, 4
      %v1719 = vrot.slane %v1588, 7
      %v1720 = vsel %vm1681, %v1718, %v1719
      %v1721 = vrot.slane %v1719, 4
      %v1722 = vrot.slane %v1610, 7
      %v1723 = vsel %vm1681, %v1721, %v1722
      %v1724 = vrot.slane %v1611, 7
      %v1725 = vrot.slane %v1724, 4
      %v1726 = vrot.slane %v1589, 7
      %v1727 = vsel %vm1681, %v1725, %v1726
      %v1728 = vrot.slane %v1726, 4
      %v1729 = vrot.slane %v1612, 7
      %v1730 = vsel %vm1681, %v1728, %v1729
      %v1731 = vrot.slane %v1613, 7
      %v1732 = vrot.slane %v1731, 4
      %v1733 = vrot.slane %v1590, 7
      %v1734 = vsel %vm1681, %v1732, %v1733
      %v1735 = vrot.slane %v1733, 4
      %v1736 = vrot.slane %v1614, 7
      %v1737 = vsel %vm1681, %v1735, %v1736
      %v1738 = vrot.slane %v1615, 7
      %v1739 = vrot.slane %v1738, 4
      %v1740 = vrot.slane %v1591, 7
      %v1741 = vsel %vm1681, %v1739, %v1740
      %v1742 = vrot.slane %v1740, 4
      %v1743 = vrot.slane %v1616, 7
      %v1744 = vsel %vm1681, %v1742, %v1743
      %v1745 = vrot.slane %v1617, 7
      %v1746 = vrot.slane %v1745, 4
      %v1747 = vrot.slane %v1592, 7
      %v1748 = vsel %vm1681, %v1746, %v1747
      %v1749 = vrot.slane %v1747, 4
      %v1750 = vrot.slane %v1618, 7
      %v1751 = vsel %vm1681, %v1749, %v1750
      %v1752 = vrot.slane %v1619, 7
      %v1753 = vrot.slane %v1752, 4
      %v1754 = vrot.slane %v1593, 7
      %v1755 = vsel %vm1681, %v1753, %v1754
      %v1756 = vrot.slane %v1754, 4
      %v1757 = vrot.slane %v1620, 7
      %v1758 = vsel %vm1681, %v1756, %v1757
      %v1759 = vrot.slane %v1621, 7
      %v1760 = vrot.slane %v1759, 4
      %v1761 = vrot.slane %v1594, 7
      %v1762 = vsel %vm1681, %v1760, %v1761
      %v1763 = vrot.slane %v1761, 4
      %v1764 = vrot.slane %v1622, 7
      %v1765 = vsel %vm1681, %v1763, %v1764
      %v1766 = vrot.slane %v1623, 7
      %v1767 = vrot.slane %v1766, 4
      %v1768 = vrot.slane %v1595, 7
      %v1769 = vsel %vm1681, %v1767, %v1768
      %v1770 = vrot.slane %v1768, 4
      %v1771 = vrot.slane %v1624, 7
      %v1772 = vsel %vm1681, %v1770, %v1771
      %v1773 = vrot.slane %v1625, 7
      %v1774 = vrot.slane %v1773, 4
      %v1775 = vrot.slane %v1596, 7
      %v1776 = vsel %vm1681, %v1774, %v1775
      %v1777 = vrot.slane %v1775, 4
      %v1778 = vrot.slane %v1626, 7
      %v1779 = vsel %vm1681, %v1777, %v1778
      %v1780 = vrot.slane %v1627, 7
      %v1781 = vrot.slane %v1780, 4
      %v1782 = vrot.slane %v1597, 7
      %v1783 = vsel %vm1681, %v1781, %v1782
      %v1784 = vrot.slane %v1782, 4
      %v1785 = vrot.slane %v1628, 7
      %v1786 = vsel %vm1681, %v1784, %v1785
      %v1787 = vrot.slane %v1629, 7
      %v1788 = vrot.slane %v1787, 4
      %v1789 = vrot.slane %v1598, 7
      %v1790 = vsel %vm1681, %v1788, %v1789
      %v1791 = vrot.slane %v1789, 4
      %v1792 = vrot.slane %v1630, 7
      %v1793 = vsel %vm1681, %v1791, %v1792
      %v1794 = vld [vmem:[%s1043 + $0xc] sm:$0xe]
      %v1795 = vld [vmem:[%s1043 + $0x10] sm:$0xf]
      %v1796 = vld [vmem:[%s1043 + $0x14] sm:$0x1]
      %v1797 = vld [vmem:[%s1043 + $0x30] sm:$0xe]
      %v1798 = vld [vmem:[%s1043 + $0x34] sm:$0xf]
      %v1799 = vld [vmem:[%s1043 + $0x38] sm:$0x1]
      %v1800 = vld [vmem:[%s1043 + $0x54] sm:$0xe]
      %v1801 = vld [vmem:[%s1043 + $0x58] sm:$0xf]
      %v1802 = vld [vmem:[%s1043 + $0x5c] sm:$0x1]
      %v1803 = vld [vmem:[%s1043 + $0x78] sm:$0xe]
      %v1804 = vld [vmem:[%s1043 + $0x7c] sm:$0xf]
      %v1805 = vld [vmem:[%s1043 + $0x80] sm:$0x1]
      %v1806 = vld [vmem:[%s1043 + $0x9c] sm:$0xe]
      %v1807 = vld [vmem:[%s1043 + $0xa0] sm:$0xf]
      %v1808 = vld [vmem:[%s1043 + $0xa4] sm:$0x1]
      %v1809 = vld [vmem:[%s1043 + $0xc0] sm:$0xe]
      %v1810 = vld [vmem:[%s1043 + $0xc4] sm:$0xf]
      %v1811 = vld [vmem:[%s1043 + $0xc8] sm:$0x1]
      %v1812 = vld [vmem:[%s1043 + $0xe4] sm:$0xe]
      %v1813 = vld [vmem:[%s1043 + $0xe8] sm:$0xf]
      %v1814 = vld [vmem:[%s1043 + $0xec] sm:$0x1]
      %v1815 = vld [vmem:[%s1043 + $0x108] sm:$0xe]
      %v1816 = vld [vmem:[%s1043 + $0x10c] sm:$0xf]
      %v1817 = vld [vmem:[%s1043 + $0x110] sm:$0x1]
      %v1818 = vld [vmem:[%s1043 + $0x12c] sm:$0xe]
      %v1819 = vld [vmem:[%s1043 + $0x130] sm:$0xf]
      %v1820 = vld [vmem:[%s1043 + $0x134] sm:$0x1]
      %v1821 = vld [vmem:[%s1043 + $0x150] sm:$0xe]
      %v1822 = vld [vmem:[%s1043 + $0x154] sm:$0xf]
      %v1823 = vld [vmem:[%s1043 + $0x158] sm:$0x1]
      %v1824 = vld [vmem:[%s1043 + $0x174] sm:$0xe]
      %v1825 = vld [vmem:[%s1043 + $0x178] sm:$0xf]
      %v1826 = vld [vmem:[%s1043 + $0x17c] sm:$0x1]
      %v1827 = vld [vmem:[%s1043 + $0x198] sm:$0xe]
      %v1828 = vld [vmem:[%s1043 + $0x19c] sm:$0xf]
      %v1829 = vld [vmem:[%s1043 + $0x1a0] sm:$0x1]
      %v1830 = vld [vmem:[%s1043 + $0x1bc] sm:$0xe]
      %v1831 = vld [vmem:[%s1043 + $0x1c0] sm:$0xf]
      %v1832 = vld [vmem:[%s1043 + $0x1c4] sm:$0x1]
      %v1833 = vld [vmem:[%s1043 + $0x1e0] sm:$0xe]
      %v1834 = vld [vmem:[%s1043 + $0x1e4] sm:$0xf]
      %v1835 = vld [vmem:[%s1043 + $0x1e8] sm:$0x1]
      %v1836 = vld [vmem:[%s1043 + $0x204] sm:$0xe]
      %v1837 = vld [vmem:[%s1043 + $0x208] sm:$0xf]
      %v1838 = vld [vmem:[%s1043 + $0x20c] sm:$0x1]
      %v1839 = vld [vmem:[%s1043 + $0x228] sm:$0xe]
      %v1840 = vld [vmem:[%s1043 + $0x22c] sm:$0xf]
      %v1841 = vld [vmem:[%s1043 + $0x230] sm:$0x1]
      %v1890 = vrot.slane %v1794, 5
      %v1891 = vrot.slane %v1890, 4
      %v1892 = vrot.slane %v1795, 5
      %v1893 = vsel %vm1470, %v1891, %v1892
      %v1894 = vrot.slane %v1892, 4
      %v1895 = vrot.slane %v1796, 5
      %v1896 = vsel %vm1470, %v1894, %v1895
      %v1897 = vrot.slane %v1797, 5
      %v1898 = vrot.slane %v1897, 4
      %v1899 = vrot.slane %v1798, 5
      %v1900 = vsel %vm1470, %v1898, %v1899
      %v1901 = vrot.slane %v1899, 4
      %v1902 = vrot.slane %v1799, 5
      %v1903 = vsel %vm1470, %v1901, %v1902
      %v1904 = vrot.slane %v1800, 5
      %v1905 = vrot.slane %v1904, 4
      %v1906 = vrot.slane %v1801, 5
      %v1907 = vsel %vm1470, %v1905, %v1906
      %v1908 = vrot.slane %v1906, 4
      %v1909 = vrot.slane %v1802, 5
      %v1910 = vsel %vm1470, %v1908, %v1909
      %v1911 = vrot.slane %v1803, 5
      %v1912 = vrot.slane %v1911, 4
      %v1913 = vrot.slane %v1804, 5
      %v1914 = vsel %vm1470, %v1912, %v1913
      %v1915 = vrot.slane %v1913, 4
      %v1916 = vrot.slane %v1805, 5
      %v1917 = vsel %vm1470, %v1915, %v1916
      %v1918 = vrot.slane %v1806, 5
      %v1919 = vrot.slane %v1918, 4
      %v1920 = vrot.slane %v1807, 5
      %v1921 = vsel %vm1470, %v1919, %v1920
      %v1922 = vrot.slane %v1920, 4
      %v1923 = vrot.slane %v1808, 5
      %v1924 = vsel %vm1470, %v1922, %v1923
      %v1925 = vrot.slane %v1809, 5
      %v1926 = vrot.slane %v1925, 4
      %v1927 = vrot.slane %v1810, 5
      %v1928 = vsel %vm1470, %v1926, %v1927
      %v1929 = vrot.slane %v1927, 4
      %v1930 = vrot.slane %v1811, 5
      %v1931 = vsel %vm1470, %v1929, %v1930
      %v1932 = vrot.slane %v1812, 5
      %v1933 = vrot.slane %v1932, 4
      %v1934 = vrot.slane %v1813, 5
      %v1935 = vsel %vm1470, %v1933, %v1934
      %v1936 = vrot.slane %v1934, 4
      %v1937 = vrot.slane %v1814, 5
      %v1938 = vsel %vm1470, %v1936, %v1937
      %v1939 = vrot.slane %v1815, 5
      %v1940 = vrot.slane %v1939, 4
      %v1941 = vrot.slane %v1816, 5
      %v1942 = vsel %vm1470, %v1940, %v1941
      %v1943 = vrot.slane %v1941, 4
      %v1944 = vrot.slane %v1817, 5
      %v1945 = vsel %vm1470, %v1943, %v1944
      %v1946 = vrot.slane %v1818, 5
      %v1947 = vrot.slane %v1946, 4
      %v1948 = vrot.slane %v1819, 5
      %v1949 = vsel %vm1470, %v1947, %v1948
      %v1950 = vrot.slane %v1948, 4
      %v1951 = vrot.slane %v1820, 5
      %v1952 = vsel %vm1470, %v1950, %v1951
      %v1953 = vrot.slane %v1821, 5
      %v1954 = vrot.slane %v1953, 4
      %v1955 = vrot.slane %v1822, 5
      %v1956 = vsel %vm1470, %v1954, %v1955
      %v1957 = vrot.slane %v1955, 4
      %v1958 = vrot.slane %v1823, 5
      %v1959 = vsel %vm1470, %v1957, %v1958
      %v1960 = vrot.slane %v1824, 5
      %v1961 = vrot.slane %v1960, 4
      %v1962 = vrot.slane %v1825, 5
      %v1963 = vsel %vm1470, %v1961, %v1962
      %v1964 = vrot.slane %v1962, 4
      %v1965 = vrot.slane %v1826, 5
      %v1966 = vsel %vm1470, %v1964, %v1965
      %v1967 = vrot.slane %v1827, 5
      %v1968 = vrot.slane %v1967, 4
      %v1969 = vrot.slane %v1828, 5
      %v1970 = vsel %vm1470, %v1968, %v1969
      %v1971 = vrot.slane %v1969, 4
      %v1972 = vrot.slane %v1829, 5
      %v1973 = vsel %vm1470, %v1971, %v1972
      %v1974 = vrot.slane %v1830, 5
      %v1975 = vrot.slane %v1974, 4
      %v1976 = vrot.slane %v1831, 5
      %v1977 = vsel %vm1470, %v1975, %v1976
      %v1978 = vrot.slane %v1976, 4
      %v1979 = vrot.slane %v1832, 5
      %v1980 = vsel %vm1470, %v1978, %v1979
      %v1981 = vrot.slane %v1833, 5
      %v1982 = vrot.slane %v1981, 4
      %v1983 = vrot.slane %v1834, 5
      %v1984 = vsel %vm1470, %v1982, %v1983
      %v1985 = vrot.slane %v1983, 4
      %v1986 = vrot.slane %v1835, 5
      %v1987 = vsel %vm1470, %v1985, %v1986
      %v1988 = vrot.slane %v1836, 5
      %v1989 = vrot.slane %v1988, 4
      %v1990 = vrot.slane %v1837, 5
      %v1991 = vsel %vm1470, %v1989, %v1990
      %v1992 = vrot.slane %v1990, 4
      %v1993 = vrot.slane %v1838, 5
      %v1994 = vsel %vm1470, %v1992, %v1993
      %v1995 = vrot.slane %v1839, 5
      %v1996 = vrot.slane %v1995, 4
      %v1997 = vrot.slane %v1840, 5
      %v1998 = vsel %vm1470, %v1996, %v1997
      %v1999 = vrot.slane %v1997, 4
      %v2000 = vrot.slane %v1841, 5
      %v2001 = vsel %vm1470, %v1999, %v2000
      %v2002 = vld [vmem:[%s1043 + $0x10] sm:$0x8]
      %v2003 = vld [vmem:[%s1043 + $0x14] sm:$0xf]
      %v2004 = vld [vmem:[%s1043 + $0x18] sm:$0x7]
      %v2005 = vld [vmem:[%s1043 + $0x34] sm:$0x8]
      %v2006 = vld [vmem:[%s1043 + $0x38] sm:$0xf]
      %v2007 = vld [vmem:[%s1043 + $0x3c] sm:$0x7]
      %v2008 = vld [vmem:[%s1043 + $0x58] sm:$0x8]
      %v2009 = vld [vmem:[%s1043 + $0x5c] sm:$0xf]
      %v2010 = vld [vmem:[%s1043 + $0x60] sm:$0x7]
      %v2011 = vld [vmem:[%s1043 + $0x7c] sm:$0x8]
      %v2012 = vld [vmem:[%s1043 + $0x80] sm:$0xf]
      %v2013 = vld [vmem:[%s1043 + $0x84] sm:$0x7]
      %v2014 = vld [vmem:[%s1043 + $0xa0] sm:$0x8]
      %v2015 = vld [vmem:[%s1043 + $0xa4] sm:$0xf]
      %v2016 = vld [vmem:[%s1043 + $0xa8] sm:$0x7]
      %v2017 = vld [vmem:[%s1043 + $0xc4] sm:$0x8]
      %v2018 = vld [vmem:[%s1043 + $0xc8] sm:$0xf]
      %v2019 = vld [vmem:[%s1043 + $0xcc] sm:$0x7]
      %v2020 = vld [vmem:[%s1043 + $0xe8] sm:$0x8]
      %v2021 = vld [vmem:[%s1043 + $0xec] sm:$0xf]
      %v2022 = vld [vmem:[%s1043 + $0xf0] sm:$0x7]
      %v2023 = vld [vmem:[%s1043 + $0x10c] sm:$0x8]
      %v2024 = vld [vmem:[%s1043 + $0x110] sm:$0xf]
      %v2025 = vld [vmem:[%s1043 + $0x114] sm:$0x7]
      %v2026 = vld [vmem:[%s1043 + $0x130] sm:$0x8]
      %v2027 = vld [vmem:[%s1043 + $0x134] sm:$0xf]
      %v2028 = vld [vmem:[%s1043 + $0x138] sm:$0x7]
      %v2029 = vld [vmem:[%s1043 + $0x154] sm:$0x8]
      %v2030 = vld [vmem:[%s1043 + $0x158] sm:$0xf]
      %v2031 = vld [vmem:[%s1043 + $0x15c] sm:$0x7]
      %v2032 = vld [vmem:[%s1043 + $0x178] sm:$0x8]
      %v2033 = vld [vmem:[%s1043 + $0x17c] sm:$0xf]
      %v2034 = vld [vmem:[%s1043 + $0x180] sm:$0x7]
      %v2035 = vld [vmem:[%s1043 + $0x19c] sm:$0x8]
      %v2036 = vld [vmem:[%s1043 + $0x1a0] sm:$0xf]
      %v2037 = vld [vmem:[%s1043 + $0x1a4] sm:$0x7]
      %v2038 = vld [vmem:[%s1043 + $0x1c0] sm:$0x8]
      %v2039 = vld [vmem:[%s1043 + $0x1c4] sm:$0xf]
      %v2040 = vld [vmem:[%s1043 + $0x1c8] sm:$0x7]
      %v2041 = vld [vmem:[%s1043 + $0x1e4] sm:$0x8]
      %v2042 = vld [vmem:[%s1043 + $0x1e8] sm:$0xf]
      %v2043 = vld [vmem:[%s1043 + $0x1ec] sm:$0x7]
      %v2044 = vld [vmem:[%s1043 + $0x208] sm:$0x8]
      %v2045 = vld [vmem:[%s1043 + $0x20c] sm:$0xf]
      %v2046 = vld [vmem:[%s1043 + $0x210] sm:$0x7]
      %v2047 = vld [vmem:[%s1043 + $0x22c] sm:$0x8]
      %v2048 = vld [vmem:[%s1043 + $0x230] sm:$0xf]
      %v2049 = vld [vmem:[%s1043 + $0x234] sm:$0x7]
      %v2098 = vrot.slane %v2002, 7
      %v2099 = vrot.slane %v2098, 4
      %v2100 = vrot.slane %v2003, 7
      %v2101 = vsel %vm1681, %v2099, %v2100
      %v2102 = vrot.slane %v2100, 4
      %v2103 = vrot.slane %v2004, 7
      %v2104 = vsel %vm1681, %v2102, %v2103
      %v2105 = vrot.slane %v2005, 7
      %v2106 = vrot.slane %v2105, 4
      %v2107 = vrot.slane %v2006, 7
      %v2108 = vsel %vm1681, %v2106, %v2107
      %v2109 = vrot.slane %v2107, 4
      %v2110 = vrot.slane %v2007, 7
      %v2111 = vsel %vm1681, %v2109, %v2110
      %v2112 = vrot.slane %v2008, 7
      %v2113 = vrot.slane %v2112, 4
      %v2114 = vrot.slane %v2009, 7
      %v2115 = vsel %vm1681, %v2113, %v2114
      %v2116 = vrot.slane %v2114, 4
      %v2117 = vrot.slane %v2010, 7
      %v2118 = vsel %vm1681, %v2116, %v2117
      %v2119 = vrot.slane %v2011, 7
      %v2120 = vrot.slane %v2119, 4
      %v2121 = vrot.slane %v2012, 7
      %v2122 = vsel %vm1681, %v2120, %v2121
      %v2123 = vrot.slane %v2121, 4
      %v2124 = vrot.slane %v2013, 7
      %v2125 = vsel %vm1681, %v2123, %v2124
      %v2126 = vrot.slane %v2014, 7
      %v2127 = vrot.slane %v2126, 4
      %v2128 = vrot.slane %v2015, 7
      %v2129 = vsel %vm1681, %v2127, %v2128
      %v2130 = vrot.slane %v2128, 4
      %v2131 = vrot.slane %v2016, 7
      %v2132 = vsel %vm1681, %v2130, %v2131
      %v2133 = vrot.slane %v2017, 7
      %v2134 = vrot.slane %v2133, 4
      %v2135 = vrot.slane %v2018, 7
      %v2136 = vsel %vm1681, %v2134, %v2135
      %v2137 = vrot.slane %v2135, 4
      %v2138 = vrot.slane %v2019, 7
      %v2139 = vsel %vm1681, %v2137, %v2138
      %v2140 = vrot.slane %v2020, 7
      %v2141 = vrot.slane %v2140, 4
      %v2142 = vrot.slane %v2021, 7
      %v2143 = vsel %vm1681, %v2141, %v2142
      %v2144 = vrot.slane %v2142, 4
      %v2145 = vrot.slane %v2022, 7
      %v2146 = vsel %vm1681, %v2144, %v2145
      %v2147 = vrot.slane %v2023, 7
      %v2148 = vrot.slane %v2147, 4
      %v2149 = vrot.slane %v2024, 7
      %v2150 = vsel %vm1681, %v2148, %v2149
      %v2151 = vrot.slane %v2149, 4
      %v2152 = vrot.slane %v2025, 7
      %v2153 = vsel %vm1681, %v2151, %v2152
      %v2154 = vrot.slane %v2026, 7
      %v2155 = vrot.slane %v2154, 4
      %v2156 = vrot.slane %v2027, 7
      %v2157 = vsel %vm1681, %v2155, %v2156
      %v2158 = vrot.slane %v2156, 4
      %v2159 = vrot.slane %v2028, 7
      %v2160 = vsel %vm1681, %v2158, %v2159
      %v2161 = vrot.slane %v2029, 7
      %v2162 = vrot.slane %v2161, 4
      %v2163 = vrot.slane %v2030, 7
      %v2164 = vsel %vm1681, %v2162, %v2163
      %v2165 = vrot.slane %v2163, 4
      %v2166 = vrot.slane %v2031, 7
      %v2167 = vsel %vm1681, %v2165, %v2166
      %v2168 = vrot.slane %v2032, 7
      %v2169 = vrot.slane %v2168, 4
      %v2170 = vrot.slane %v2033, 7
      %v2171 = vsel %vm1681, %v2169, %v2170
      %v2172 = vrot.slane %v2170, 4
      %v2173 = vrot.slane %v2034, 7
      %v2174 = vsel %vm1681, %v2172, %v2173
      %v2175 = vrot.slane %v2035, 7
      %v2176 = vrot.slane %v2175, 4
      %v2177 = vrot.slane %v2036, 7
      %v2178 = vsel %vm1681, %v2176, %v2177
      %v2179 = vrot.slane %v2177, 4
      %v2180 = vrot.slane %v2037, 7
      %v2181 = vsel %vm1681, %v2179, %v2180
      %v2182 = vrot.slane %v2038, 7
      %v2183 = vrot.slane %v2182, 4
      %v2184 = vrot.slane %v2039, 7
      %v2185 = vsel %vm1681, %v2183, %v2184
      %v2186 = vrot.slane %v2184, 4
      %v2187 = vrot.slane %v2040, 7
      %v2188 = vsel %vm1681, %v2186, %v2187
      %v2189 = vrot.slane %v2041, 7
      %v2190 = vrot.slane %v2189, 4
      %v2191 = vrot.slane %v2042, 7
      %v2192 = vsel %vm1681, %v2190, %v2191
      %v2193 = vrot.slane %v2191, 4
      %v2194 = vrot.slane %v2043, 7
      %v2195 = vsel %vm1681, %v2193, %v2194
      %v2196 = vrot.slane %v2044, 7
      %v2197 = vrot.slane %v2196, 4
      %v2198 = vrot.slane %v2045, 7
      %v2199 = vsel %vm1681, %v2197, %v2198
      %v2200 = vrot.slane %v2198, 4
      %v2201 = vrot.slane %v2046, 7
      %v2202 = vsel %vm1681, %v2200, %v2201
      %v2203 = vrot.slane %v2047, 7
      %v2204 = vrot.slane %v2203, 4
      %v2205 = vrot.slane %v2048, 7
      %v2206 = vsel %vm1681, %v2204, %v2205
      %v2207 = vrot.slane %v2205, 4
      %v2208 = vrot.slane %v2049, 7
      %v2209 = vsel %vm1681, %v2207, %v2208
      %s2210 = scalar_lea.vmem [#allocation2], 1368
      %v2211 = vld [vmem:[%s2210 + $0xc] sm:$0xe]
      %v2212 = vld [vmem:[%s2210 + $0x10] sm:$0xf]
      %v2213 = vld [vmem:[%s2210 + $0x14] sm:$0x1]
      %v2214 = vld [vmem:[%s2210 + $0x30] sm:$0xe]
      %v2215 = vld [vmem:[%s2210 + $0x34] sm:$0xf]
      %v2216 = vld [vmem:[%s2210 + $0x38] sm:$0x1]
      %v2217 = vld [vmem:[%s2210 + $0x54] sm:$0xe]
      %v2218 = vld [vmem:[%s2210 + $0x58] sm:$0xf]
      %v2219 = vld [vmem:[%s2210 + $0x5c] sm:$0x1]
      %v2220 = vld [vmem:[%s2210 + $0x78] sm:$0xe]
      %v2221 = vld [vmem:[%s2210 + $0x7c] sm:$0xf]
      %v2222 = vld [vmem:[%s2210 + $0x80] sm:$0x1]
      %v2223 = vld [vmem:[%s2210 + $0x9c] sm:$0xe]
      %v2224 = vld [vmem:[%s2210 + $0xa0] sm:$0xf]
      %v2225 = vld [vmem:[%s2210 + $0xa4] sm:$0x1]
      %v2226 = vld [vmem:[%s2210 + $0xc0] sm:$0xe]
      %v2227 = vld [vmem:[%s2210 + $0xc4] sm:$0xf]
      %v2228 = vld [vmem:[%s2210 + $0xc8] sm:$0x1]
      %v2229 = vld [vmem:[%s2210 + $0xe4] sm:$0xe]
      %v2230 = vld [vmem:[%s2210 + $0xe8] sm:$0xf]
      %v2231 = vld [vmem:[%s2210 + $0xec] sm:$0x1]
      %v2232 = vld [vmem:[%s2210 + $0x108] sm:$0xe]
      %v2233 = vld [vmem:[%s2210 + $0x10c] sm:$0xf]
      %v2234 = vld [vmem:[%s2210 + $0x110] sm:$0x1]
      %v2235 = vld [vmem:[%s2210 + $0x12c] sm:$0xe]
      %v2236 = vld [vmem:[%s2210 + $0x130] sm:$0xf]
      %v2237 = vld [vmem:[%s2210 + $0x134] sm:$0x1]
      %v2238 = vld [vmem:[%s2210 + $0x150] sm:$0xe]
      %v2239 = vld [vmem:[%s2210 + $0x154] sm:$0xf]
      %v2240 = vld [vmem:[%s2210 + $0x158] sm:$0x1]
      %v2241 = vld [vmem:[%s2210 + $0x174] sm:$0xe]
      %v2242 = vld [vmem:[%s2210 + $0x178] sm:$0xf]
      %v2243 = vld [vmem:[%s2210 + $0x17c] sm:$0x1]
      %v2244 = vld [vmem:[%s2210 + $0x198] sm:$0xe]
      %v2245 = vld [vmem:[%s2210 + $0x19c] sm:$0xf]
      %v2246 = vld [vmem:[%s2210 + $0x1a0] sm:$0x1]
      %v2247 = vld [vmem:[%s2210 + $0x1bc] sm:$0xe]
      %v2248 = vld [vmem:[%s2210 + $0x1c0] sm:$0xf]
      %v2249 = vld [vmem:[%s2210 + $0x1c4] sm:$0x1]
      %v2250 = vld [vmem:[%s2210 + $0x1e0] sm:$0xe]
      %v2251 = vld [vmem:[%s2210 + $0x1e4] sm:$0xf]
      %v2252 = vld [vmem:[%s2210 + $0x1e8] sm:$0x1]
      %v2253 = vld [vmem:[%s2210 + $0x204] sm:$0xe]
      %v2254 = vld [vmem:[%s2210 + $0x208] sm:$0xf]
      %v2255 = vld [vmem:[%s2210 + $0x20c] sm:$0x1]
      %v2256 = vld [vmem:[%s2210 + $0x228] sm:$0xe]
      %v2257 = vld [vmem:[%s2210 + $0x22c] sm:$0xf]
      %v2258 = vld [vmem:[%s2210 + $0x230] sm:$0x1]
      %v2307 = vrot.slane %v2211, 5
      %v2308 = vrot.slane %v2307, 4
      %v2309 = vrot.slane %v2212, 5
      %v2310 = vsel %vm1470, %v2308, %v2309
      %v2311 = vrot.slane %v2309, 4
      %v2312 = vrot.slane %v2213, 5
      %v2313 = vsel %vm1470, %v2311, %v2312
      %v2314 = vrot.slane %v2214, 5
      %v2315 = vrot.slane %v2314, 4
      %v2316 = vrot.slane %v2215, 5
      %v2317 = vsel %vm1470, %v2315, %v2316
      %v2318 = vrot.slane %v2316, 4
      %v2319 = vrot.slane %v2216, 5
      %v2320 = vsel %vm1470, %v2318, %v2319
      %v2321 = vrot.slane %v2217, 5
      %v2322 = vrot.slane %v2321, 4
      %v2323 = vrot.slane %v2218, 5
      %v2324 = vsel %vm1470, %v2322, %v2323
      %v2325 = vrot.slane %v2323, 4
      %v2326 = vrot.slane %v2219, 5
      %v2327 = vsel %vm1470, %v2325, %v2326
      %v2328 = vrot.slane %v2220, 5
      %v2329 = vrot.slane %v2328, 4
      %v2330 = vrot.slane %v2221, 5
      %v2331 = vsel %vm1470, %v2329, %v2330
      %v2332 = vrot.slane %v2330, 4
      %v2333 = vrot.slane %v2222, 5
      %v2334 = vsel %vm1470, %v2332, %v2333
      %v2335 = vrot.slane %v2223, 5
      %v2336 = vrot.slane %v2335, 4
      %v2337 = vrot.slane %v2224, 5
      %v2338 = vsel %vm1470, %v2336, %v2337
      %v2339 = vrot.slane %v2337, 4
      %v2340 = vrot.slane %v2225, 5
      %v2341 = vsel %vm1470, %v2339, %v2340
      %v2342 = vrot.slane %v2226, 5
      %v2343 = vrot.slane %v2342, 4
      %v2344 = vrot.slane %v2227, 5
      %v2345 = vsel %vm1470, %v2343, %v2344
      %v2346 = vrot.slane %v2344, 4
      %v2347 = vrot.slane %v2228, 5
      %v2348 = vsel %vm1470, %v2346, %v2347
      %v2349 = vrot.slane %v2229, 5
      %v2350 = vrot.slane %v2349, 4
      %v2351 = vrot.slane %v2230, 5
      %v2352 = vsel %vm1470, %v2350, %v2351
      %v2353 = vrot.slane %v2351, 4
      %v2354 = vrot.slane %v2231, 5
      %v2355 = vsel %vm1470, %v2353, %v2354
      %v2356 = vrot.slane %v2232, 5
      %v2357 = vrot.slane %v2356, 4
      %v2358 = vrot.slane %v2233, 5
      %v2359 = vsel %vm1470, %v2357, %v2358
      %v2360 = vrot.slane %v2358, 4
      %v2361 = vrot.slane %v2234, 5
      %v2362 = vsel %vm1470, %v2360, %v2361
      %v2363 = vrot.slane %v2235, 5
      %v2364 = vrot.slane %v2363, 4
      %v2365 = vrot.slane %v2236, 5
      %v2366 = vsel %vm1470, %v2364, %v2365
      %v2367 = vrot.slane %v2365, 4
      %v2368 = vrot.slane %v2237, 5
      %v2369 = vsel %vm1470, %v2367, %v2368
      %v2370 = vrot.slane %v2238, 5
      %v2371 = vrot.slane %v2370, 4
      %v2372 = vrot.slane %v2239, 5
      %v2373 = vsel %vm1470, %v2371, %v2372
      %v2374 = vrot.slane %v2372, 4
      %v2375 = vrot.slane %v2240, 5
      %v2376 = vsel %vm1470, %v2374, %v2375
      %v2377 = vrot.slane %v2241, 5
      %v2378 = vrot.slane %v2377, 4
      %v2379 = vrot.slane %v2242, 5
      %v2380 = vsel %vm1470, %v2378, %v2379
      %v2381 = vrot.slane %v2379, 4
      %v2382 = vrot.slane %v2243, 5
      %v2383 = vsel %vm1470, %v2381, %v2382
      %v2384 = vrot.slane %v2244, 5
      %v2385 = vrot.slane %v2384, 4
      %v2386 = vrot.slane %v2245, 5
      %v2387 = vsel %vm1470, %v2385, %v2386
      %v2388 = vrot.slane %v2386, 4
      %v2389 = vrot.slane %v2246, 5
      %v2390 = vsel %vm1470, %v2388, %v2389
      %v2391 = vrot.slane %v2247, 5
      %v2392 = vrot.slane %v2391, 4
      %v2393 = vrot.slane %v2248, 5
      %v2394 = vsel %vm1470, %v2392, %v2393
      %v2395 = vrot.slane %v2393, 4
      %v2396 = vrot.slane %v2249, 5
      %v2397 = vsel %vm1470, %v2395, %v2396
      %v2398 = vrot.slane %v2250, 5
      %v2399 = vrot.slane %v2398, 4
      %v2400 = vrot.slane %v2251, 5
      %v2401 = vsel %vm1470, %v2399, %v2400
      %v2402 = vrot.slane %v2400, 4
      %v2403 = vrot.slane %v2252, 5
      %v2404 = vsel %vm1470, %v2402, %v2403
      %v2405 = vrot.slane %v2253, 5
      %v2406 = vrot.slane %v2405, 4
      %v2407 = vrot.slane %v2254, 5
      %v2408 = vsel %vm1470, %v2406, %v2407
      %v2409 = vrot.slane %v2407, 4
      %v2410 = vrot.slane %v2255, 5
      %v2411 = vsel %vm1470, %v2409, %v2410
      %v2412 = vrot.slane %v2256, 5
      %v2413 = vrot.slane %v2412, 4
      %v2414 = vrot.slane %v2257, 5
      %v2415 = vsel %vm1470, %v2413, %v2414
      %v2416 = vrot.slane %v2414, 4
      %v2417 = vrot.slane %v2258, 5
      %v2418 = vsel %vm1470, %v2416, %v2417
      %v2419 = vld [vmem:[%s2210 + $0x14] sm:$0xf]
      %v2420 = vld [vmem:[%s2210 + $0x38] sm:$0xf]
      %v2421 = vld [vmem:[%s2210 + $0x5c] sm:$0xf]
      %v2422 = vld [vmem:[%s2210 + $0x80] sm:$0xf]
      %v2423 = vld [vmem:[%s2210 + $0xa4] sm:$0xf]
      %v2424 = vld [vmem:[%s2210 + $0xc8] sm:$0xf]
      %v2425 = vld [vmem:[%s2210 + $0xec] sm:$0xf]
      %v2426 = vld [vmem:[%s2210 + $0x110] sm:$0xf]
      %v2427 = vld [vmem:[%s2210 + $0x134] sm:$0xf]
      %v2428 = vld [vmem:[%s2210 + $0x158] sm:$0xf]
      %v2429 = vld [vmem:[%s2210 + $0x17c] sm:$0xf]
      %v2430 = vld [vmem:[%s2210 + $0x1a0] sm:$0xf]
      %v2431 = vld [vmem:[%s2210 + $0x1c4] sm:$0xf]
      %v2432 = vld [vmem:[%s2210 + $0x1e8] sm:$0xf]
      %v2433 = vld [vmem:[%s2210 + $0x20c] sm:$0xf]
      %v2434 = vld [vmem:[%s2210 + $0x230] sm:$0xf]
      %v2435 = vld [vmem:[%s2210 + $0x10] sm:$0x8]
      %v2436 = vld [vmem:[%s2210 + $0x18] sm:$0x7]
      %v2437 = vld [vmem:[%s2210 + $0x34] sm:$0x8]
      %v2438 = vld [vmem:[%s2210 + $0x3c] sm:$0x7]
      %v2439 = vld [vmem:[%s2210 + $0x58] sm:$0x8]
      %v2440 = vld [vmem:[%s2210 + $0x60] sm:$0x7]
      %v2441 = vld [vmem:[%s2210 + $0x7c] sm:$0x8]
      %v2442 = vld [vmem:[%s2210 + $0x84] sm:$0x7]
      %v2443 = vld [vmem:[%s2210 + $0xa0] sm:$0x8]
      %v2444 = vld [vmem:[%s2210 + $0xa8] sm:$0x7]
      %v2445 = vld [vmem:[%s2210 + $0xc4] sm:$0x8]
      %v2446 = vld [vmem:[%s2210 + $0xcc] sm:$0x7]
      %v2447 = vld [vmem:[%s2210 + $0xe8] sm:$0x8]
      %v2448 = vld [vmem:[%s2210 + $0xf0] sm:$0x7]
      %v2449 = vld [vmem:[%s2210 + $0x10c] sm:$0x8]
      %v2450 = vld [vmem:[%s2210 + $0x114] sm:$0x7]
      %v2451 = vld [vmem:[%s2210 + $0x130] sm:$0x8]
      %v2452 = vld [vmem:[%s2210 + $0x138] sm:$0x7]
      %v2453 = vld [vmem:[%s2210 + $0x154] sm:$0x8]
      %v2454 = vld [vmem:[%s2210 + $0x15c] sm:$0x7]
      %v2455 = vld [vmem:[%s2210 + $0x178] sm:$0x8]
      %v2456 = vld [vmem:[%s2210 + $0x180] sm:$0x7]
      %v2457 = vld [vmem:[%s2210 + $0x19c] sm:$0x8]
      %v2458 = vld [vmem:[%s2210 + $0x1a4] sm:$0x7]
      %v2459 = vld [vmem:[%s2210 + $0x1c0] sm:$0x8]
      %v2460 = vld [vmem:[%s2210 + $0x1c8] sm:$0x7]
      %v2461 = vld [vmem:[%s2210 + $0x1e4] sm:$0x8]
      %v2462 = vld [vmem:[%s2210 + $0x1ec] sm:$0x7]
      %v2463 = vld [vmem:[%s2210 + $0x208] sm:$0x8]
      %v2464 = vld [vmem:[%s2210 + $0x210] sm:$0x7]
      %v2465 = vld [vmem:[%s2210 + $0x22c] sm:$0x8]
      %v2466 = vld [vmem:[%s2210 + $0x234] sm:$0x7]
      %v2515 = vrot.slane %v2435, 7
      %v2516 = vrot.slane %v2515, 4
      %v2517 = vrot.slane %v2419, 7
      %v2518 = vsel %vm1681, %v2516, %v2517
      %v2519 = vrot.slane %v2517, 4
      %v2520 = vrot.slane %v2436, 7
      %v2521 = vsel %vm1681, %v2519, %v2520
      %v2522 = vrot.slane %v2437, 7
      %v2523 = vrot.slane %v2522, 4
      %v2524 = vrot.slane %v2420, 7
      %v2525 = vsel %vm1681, %v2523, %v2524
      %v2526 = vrot.slane %v2524, 4
      %v2527 = vrot.slane %v2438, 7
      %v2528 = vsel %vm1681, %v2526, %v2527
      %v2529 = vrot.slane %v2439, 7
      %v2530 = vrot.slane %v2529, 4
      %v2531 = vrot.slane %v2421, 7
      %v2532 = vsel %vm1681, %v2530, %v2531
      %v2533 = vrot.slane %v2531, 4
      %v2534 = vrot.slane %v2440, 7
      %v2535 = vsel %vm1681, %v2533, %v2534
      %v2536 = vrot.slane %v2441, 7
      %v2537 = vrot.slane %v2536, 4
      %v2538 = vrot.slane %v2422, 7
      %v2539 = vsel %vm1681, %v2537, %v2538
      %v2540 = vrot.slane %v2538, 4
      %v2541 = vrot.slane %v2442, 7
      %v2542 = vsel %vm1681, %v2540, %v2541
      %v2543 = vrot.slane %v2443, 7
      %v2544 = vrot.slane %v2543, 4
      %v2545 = vrot.slane %v2423, 7
      %v2546 = vsel %vm1681, %v2544, %v2545
      %v2547 = vrot.slane %v2545, 4
      %v2548 = vrot.slane %v2444, 7
      %v2549 = vsel %vm1681, %v2547, %v2548
      %v2550 = vrot.slane %v2445, 7
      %v2551 = vrot.slane %v2550, 4
      %v2552 = vrot.slane %v2424, 7
      %v2553 = vsel %vm1681, %v2551, %v2552
      %v2554 = vrot.slane %v2552, 4
      %v2555 = vrot.slane %v2446, 7
      %v2556 = vsel %vm1681, %v2554, %v2555
      %v2557 = vrot.slane %v2447, 7
      %v2558 = vrot.slane %v2557, 4
      %v2559 = vrot.slane %v2425, 7
      %v2560 = vsel %vm1681, %v2558, %v2559
      %v2561 = vrot.slane %v2559, 4
      %v2562 = vrot.slane %v2448, 7
      %v2563 = vsel %vm1681, %v2561, %v2562
      %v2564 = vrot.slane %v2449, 7
      %v2565 = vrot.slane %v2564, 4
      %v2566 = vrot.slane %v2426, 7
      %v2567 = vsel %vm1681, %v2565, %v2566
      %v2568 = vrot.slane %v2566, 4
      %v2569 = vrot.slane %v2450, 7
      %v2570 = vsel %vm1681, %v2568, %v2569
      %v2571 = vrot.slane %v2451, 7
      %v2572 = vrot.slane %v2571, 4
      %v2573 = vrot.slane %v2427, 7
      %v2574 = vsel %vm1681, %v2572, %v2573
      %v2575 = vrot.slane %v2573, 4
      %v2576 = vrot.slane %v2452, 7
      %v2577 = vsel %vm1681, %v2575, %v2576
      %v2578 = vrot.slane %v2453, 7
      %v2579 = vrot.slane %v2578, 4
      %v2580 = vrot.slane %v2428, 7
      %v2581 = vsel %vm1681, %v2579, %v2580
      %v2582 = vrot.slane %v2580, 4
      %v2583 = vrot.slane %v2454, 7
      %v2584 = vsel %vm1681, %v2582, %v2583
      %v2585 = vrot.slane %v2455, 7
      %v2586 = vrot.slane %v2585, 4
      %v2587 = vrot.slane %v2429, 7
      %v2588 = vsel %vm1681, %v2586, %v2587
      %v2589 = vrot.slane %v2587, 4
      %v2590 = vrot.slane %v2456, 7
      %v2591 = vsel %vm1681, %v2589, %v2590
      %v2592 = vrot.slane %v2457, 7
      %v2593 = vrot.slane %v2592, 4
      %v2594 = vrot.slane %v2430, 7
      %v2595 = vsel %vm1681, %v2593, %v2594
      %v2596 = vrot.slane %v2594, 4
      %v2597 = vrot.slane %v2458, 7
      %v2598 = vsel %vm1681, %v2596, %v2597
      %v2599 = vrot.slane %v2459, 7
      %v2600 = vrot.slane %v2599, 4
      %v2601 = vrot.slane %v2431, 7
      %v2602 = vsel %vm1681, %v2600, %v2601
      %v2603 = vrot.slane %v2601, 4
      %v2604 = vrot.slane %v2460, 7
      %v2605 = vsel %vm1681, %v2603, %v2604
      %v2606 = vrot.slane %v2461, 7
      %v2607 = vrot.slane %v2606, 4
      %v2608 = vrot.slane %v2432, 7
      %v2609 = vsel %vm1681, %v2607, %v2608
      %v2610 = vrot.slane %v2608, 4
      %v2611 = vrot.slane %v2462, 7
      %v2612 = vsel %vm1681, %v2610, %v2611
      %v2613 = vrot.slane %v2463, 7
      %v2614 = vrot.slane %v2613, 4
      %v2615 = vrot.slane %v2433, 7
      %v2616 = vsel %vm1681, %v2614, %v2615
      %v2617 = vrot.slane %v2615, 4
      %v2618 = vrot.slane %v2464, 7
      %v2619 = vsel %vm1681, %v2617, %v2618
      %v2620 = vrot.slane %v2465, 7
      %v2621 = vrot.slane %v2620, 4
      %v2622 = vrot.slane %v2434, 7
      %v2623 = vsel %vm1681, %v2621, %v2622
      %v2624 = vrot.slane %v2622, 4
      %v2625 = vrot.slane %v2466, 7
      %v2626 = vsel %vm1681, %v2624, %v2625
      %v2627 = vunpack.c.l.b16 %v1474
      %v2628 = vunpack.c.l.b16 %v1477
      %v2629 = vunpack.c.l.b16 %v1481
      %v2630 = vunpack.c.l.b16 %v1484
      %v2631 = vunpack.c.l.b16 %v1488
      %v2632 = vunpack.c.l.b16 %v1491
      %v2633 = vunpack.c.l.b16 %v1495
      %v2634 = vunpack.c.l.b16 %v1498
      %v2635 = vunpack.c.l.b16 %v1502
      %v2636 = vunpack.c.l.b16 %v1505
      %v2637 = vunpack.c.l.b16 %v1509
      %v2638 = vunpack.c.l.b16 %v1512
      %v2639 = vunpack.c.l.b16 %v1516
      %v2640 = vunpack.c.l.b16 %v1519
      %v2641 = vunpack.c.l.b16 %v1523
      %v2642 = vunpack.c.l.b16 %v1526
      %v2643 = vunpack.c.l.b16 %v1530
      %v2644 = vunpack.c.l.b16 %v1533
      %v2645 = vunpack.c.l.b16 %v1537
      %v2646 = vunpack.c.l.b16 %v1540
      %v2647 = vunpack.c.l.b16 %v1544
      %v2648 = vunpack.c.l.b16 %v1547
      %v2649 = vunpack.c.l.b16 %v1551
      %v2650 = vunpack.c.l.b16 %v1554
      %v2651 = vunpack.c.l.b16 %v1558
      %v2652 = vunpack.c.l.b16 %v1561
      %v2653 = vunpack.c.l.b16 %v1565
      %v2654 = vunpack.c.l.b16 %v1568
      %v2655 = vunpack.c.l.b16 %v1572
      %v2656 = vunpack.c.l.b16 %v1575
      %v2657 = vunpack.c.l.b16 %v1579
      %v2658 = vunpack.c.l.b16 %v1582
      %v2659 = vpack.c.b16 %v2628, %v2627
      %v2660 = vpack.c.b16 %v2630, %v2629
      %v2661 = vpack.c.b16 %v2632, %v2631
      %v2662 = vpack.c.b16 %v2634, %v2633
      %v2663 = vpack.c.b16 %v2636, %v2635
      %v2664 = vpack.c.b16 %v2638, %v2637
      %v2665 = vpack.c.b16 %v2640, %v2639
      %v2666 = vpack.c.b16 %v2642, %v2641
      %v2667 = vpack.c.b16 %v2644, %v2643
      %v2668 = vpack.c.b16 %v2646, %v2645
      %v2669 = vpack.c.b16 %v2648, %v2647
      %v2670 = vpack.c.b16 %v2650, %v2649
      %v2671 = vpack.c.b16 %v2652, %v2651
      %v2672 = vpack.c.b16 %v2654, %v2653
      %v2673 = vpack.c.b16 %v2656, %v2655
      %v2674 = vpack.c.b16 %v2658, %v2657
      %v2675 = vunpack.c.l.b16 %v1373
      %v2676 = vunpack.c.l.b16 %v1583
      %v2677 = vunpack.c.l.b16 %v1376
      %v2678 = vunpack.c.l.b16 %v1584
      %v2679 = vunpack.c.l.b16 %v1379
      %v2680 = vunpack.c.l.b16 %v1585
      %v2681 = vunpack.c.l.b16 %v1382
      %v2682 = vunpack.c.l.b16 %v1586
      %v2683 = vunpack.c.l.b16 %v1385
      %v2684 = vunpack.c.l.b16 %v1587
      %v2685 = vunpack.c.l.b16 %v1388
      %v2686 = vunpack.c.l.b16 %v1588
      %v2687 = vunpack.c.l.b16 %v1391
      %v2688 = vunpack.c.l.b16 %v1589
      %v2689 = vunpack.c.l.b16 %v1394
      %v2690 = vunpack.c.l.b16 %v1590
      %v2691 = vunpack.c.l.b16 %v1397
      %v2692 = vunpack.c.l.b16 %v1591
      %v2693 = vunpack.c.l.b16 %v1400
      %v2694 = vunpack.c.l.b16 %v1592
      %v2695 = vunpack.c.l.b16 %v1403
      %v2696 = vunpack.c.l.b16 %v1593
      %v2697 = vunpack.c.l.b16 %v1406
      %v2698 = vunpack.c.l.b16 %v1594
      %v2699 = vunpack.c.l.b16 %v1409
      %v2700 = vunpack.c.l.b16 %v1595
      %v2701 = vunpack.c.l.b16 %v1412
      %v2702 = vunpack.c.l.b16 %v1596
      %v2703 = vunpack.c.l.b16 %v1415
      %v2704 = vunpack.c.l.b16 %v1597
      %v2705 = vunpack.c.l.b16 %v1418
      %v2706 = vunpack.c.l.b16 %v1598
      %v2707 = vpack.c.b16 %v2676, %v2675
      %v2708 = vpack.c.b16 %v2678, %v2677
      %v2709 = vpack.c.b16 %v2680, %v2679
      %v2710 = vpack.c.b16 %v2682, %v2681
      %v2711 = vpack.c.b16 %v2684, %v2683
      %v2712 = vpack.c.b16 %v2686, %v2685
      %v2713 = vpack.c.b16 %v2688, %v2687
      %v2714 = vpack.c.b16 %v2690, %v2689
      %v2715 = vpack.c.b16 %v2692, %v2691
      %v2716 = vpack.c.b16 %v2694, %v2693
      %v2717 = vpack.c.b16 %v2696, %v2695
      %v2718 = vpack.c.b16 %v2698, %v2697
      %v2719 = vpack.c.b16 %v2700, %v2699
      %v2720 = vpack.c.b16 %v2702, %v2701
      %v2721 = vpack.c.b16 %v2704, %v2703
      %v2722 = vpack.c.b16 %v2706, %v2705
      %2723 = vrot.lane.b32.xlu0 %v2707, 4
      %v2724 = vpop.permute.xlu0 %2723
      %2725 = vrot.lane.b32.xlu0 %v2708, 4
      %v2726 = vpop.permute.xlu0 %2725
      %2727 = vrot.lane.b32.xlu0 %v2709, 4
      %v2728 = vpop.permute.xlu0 %2727
      %2729 = vrot.lane.b32.xlu0 %v2710, 4
      %v2730 = vpop.permute.xlu0 %2729
      %2731 = vrot.lane.b32.xlu0 %v2711, 4
      %v2732 = vpop.permute.xlu0 %2731
      %2733 = vrot.lane.b32.xlu0 %v2712, 4
      %v2734 = vpop.permute.xlu0 %2733
      %2735 = vrot.lane.b32.xlu0 %v2713, 4
      %v2736 = vpop.permute.xlu0 %2735
      %2737 = vrot.lane.b32.xlu0 %v2714, 4
      %v2738 = vpop.permute.xlu0 %2737
      %2739 = vrot.lane.b32.xlu0 %v2715, 4
      %v2740 = vpop.permute.xlu0 %2739
      %2741 = vrot.lane.b32.xlu0 %v2716, 4
      %v2742 = vpop.permute.xlu0 %2741
      %2743 = vrot.lane.b32.xlu0 %v2717, 4
      %v2744 = vpop.permute.xlu0 %2743
      %2745 = vrot.lane.b32.xlu0 %v2718, 4
      %v2746 = vpop.permute.xlu0 %2745
      %2747 = vrot.lane.b32.xlu0 %v2719, 4
      %v2748 = vpop.permute.xlu0 %2747
      %2749 = vrot.lane.b32.xlu0 %v2720, 4
      %v2750 = vpop.permute.xlu0 %2749
      %2751 = vrot.lane.b32.xlu0 %v2721, 4
      %v2752 = vpop.permute.xlu0 %2751
      %2753 = vrot.lane.b32.xlu0 %v2722, 4
      %v2754 = vpop.permute.xlu0 %2753
      %v2755 = vunpack.c.l.b16 %v1685
      %v2756 = vunpack.c.l.b16 %v1688
      %v2757 = vunpack.c.l.b16 %v1692
      %v2758 = vunpack.c.l.b16 %v1695
      %v2759 = vunpack.c.l.b16 %v1699
      %v2760 = vunpack.c.l.b16 %v1702
      %v2761 = vunpack.c.l.b16 %v1706
      %v2762 = vunpack.c.l.b16 %v1709
      %v2763 = vunpack.c.l.b16 %v1713
      %v2764 = vunpack.c.l.b16 %v1716
      %v2765 = vunpack.c.l.b16 %v1720
      %v2766 = vunpack.c.l.b16 %v1723
      %v2767 = vunpack.c.l.b16 %v1727
      %v2768 = vunpack.c.l.b16 %v1730
      %v2769 = vunpack.c.l.b16 %v1734
      %v2770 = vunpack.c.l.b16 %v1737
      %v2771 = vunpack.c.l.b16 %v1741
      %v2772 = vunpack.c.l.b16 %v1744
      %v2773 = vunpack.c.l.b16 %v1748
      %v2774 = vunpack.c.l.b16 %v1751
      %v2775 = vunpack.c.l.b16 %v1755
      %v2776 = vunpack.c.l.b16 %v1758
      %v2777 = vunpack.c.l.b16 %v1762
      %v2778 = vunpack.c.l.b16 %v1765
      %v2779 = vunpack.c.l.b16 %v1769
      %v2780 = vunpack.c.l.b16 %v1772
      %v2781 = vunpack.c.l.b16 %v1776
      %v2782 = vunpack.c.l.b16 %v1779
      %v2783 = vunpack.c.l.b16 %v1783
      %v2784 = vunpack.c.l.b16 %v1786
      %v2785 = vunpack.c.l.b16 %v1790
      %v2786 = vunpack.c.l.b16 %v1793
      %v2787 = vpack.c.b16 %v2756, %v2755
      %v2788 = vpack.c.b16 %v2758, %v2757
      %v2789 = vpack.c.b16 %v2760, %v2759
      %v2790 = vpack.c.b16 %v2762, %v2761
      %v2791 = vpack.c.b16 %v2764, %v2763
      %v2792 = vpack.c.b16 %v2766, %v2765
      %v2793 = vpack.c.b16 %v2768, %v2767
      %v2794 = vpack.c.b16 %v2770, %v2769
      %v2795 = vpack.c.b16 %v2772, %v2771
      %v2796 = vpack.c.b16 %v2774, %v2773
      %v2797 = vpack.c.b16 %v2776, %v2775
      %v2798 = vpack.c.b16 %v2778, %v2777
      %v2799 = vpack.c.b16 %v2780, %v2779
      %v2800 = vpack.c.b16 %v2782, %v2781
      %v2801 = vpack.c.b16 %v2784, %v2783
      %v2802 = vpack.c.b16 %v2786, %v2785
      %2803 = vrot.lane.b32.xlu0 %v2787, 8
      %v2804 = vpop.permute.xlu0 %2803
      %2805 = vrot.lane.b32.xlu0 %v2788, 8
      %v2806 = vpop.permute.xlu0 %2805
      %2807 = vrot.lane.b32.xlu0 %v2789, 8
      %v2808 = vpop.permute.xlu0 %2807
      %2809 = vrot.lane.b32.xlu0 %v2790, 8
      %v2810 = vpop.permute.xlu0 %2809
      %2811 = vrot.lane.b32.xlu0 %v2791, 8
      %v2812 = vpop.permute.xlu0 %2811
      %2813 = vrot.lane.b32.xlu0 %v2792, 8
      %v2814 = vpop.permute.xlu0 %2813
      %2815 = vrot.lane.b32.xlu0 %v2793, 8
      %v2816 = vpop.permute.xlu0 %2815
      %2817 = vrot.lane.b32.xlu0 %v2794, 8
      %v2818 = vpop.permute.xlu0 %2817
      %2819 = vrot.lane.b32.xlu0 %v2795, 8
      %v2820 = vpop.permute.xlu0 %2819
      %2821 = vrot.lane.b32.xlu0 %v2796, 8
      %v2822 = vpop.permute.xlu0 %2821
      %2823 = vrot.lane.b32.xlu0 %v2797, 8
      %v2824 = vpop.permute.xlu0 %2823
      %2825 = vrot.lane.b32.xlu0 %v2798, 8
      %v2826 = vpop.permute.xlu0 %2825
      %2827 = vrot.lane.b32.xlu0 %v2799, 8
      %v2828 = vpop.permute.xlu0 %2827
      %2829 = vrot.lane.b32.xlu0 %v2800, 8
      %v2830 = vpop.permute.xlu0 %2829
      %2831 = vrot.lane.b32.xlu0 %v2801, 8
      %v2832 = vpop.permute.xlu0 %2831
      %2833 = vrot.lane.b32.xlu0 %v2802, 8
      %v2834 = vpop.permute.xlu0 %2833
      %v2835 = vunpack.c.l.b16 %v1893
      %v2836 = vunpack.c.l.b16 %v1896
      %v2837 = vunpack.c.l.b16 %v1900
      %v2838 = vunpack.c.l.b16 %v1903
      %v2839 = vunpack.c.l.b16 %v1907
      %v2840 = vunpack.c.l.b16 %v1910
      %v2841 = vunpack.c.l.b16 %v1914
      %v2842 = vunpack.c.l.b16 %v1917
      %v2843 = vunpack.c.l.b16 %v1921
      %v2844 = vunpack.c.l.b16 %v1924
      %v2845 = vunpack.c.l.b16 %v1928
      %v2846 = vunpack.c.l.b16 %v1931
      %v2847 = vunpack.c.l.b16 %v1935
      %v2848 = vunpack.c.l.b16 %v1938
      %v2849 = vunpack.c.l.b16 %v1942
      %v2850 = vunpack.c.l.b16 %v1945
      %v2851 = vunpack.c.l.b16 %v1949
      %v2852 = vunpack.c.l.b16 %v1952
      %v2853 = vunpack.c.l.b16 %v1956
      %v2854 = vunpack.c.l.b16 %v1959
      %v2855 = vunpack.c.l.b16 %v1963
      %v2856 = vunpack.c.l.b16 %v1966
      %v2857 = vunpack.c.l.b16 %v1970
      %v2858 = vunpack.c.l.b16 %v1973
      %v2859 = vunpack.c.l.b16 %v1977
      %v2860 = vunpack.c.l.b16 %v1980
      %v2861 = vunpack.c.l.b16 %v1984
      %v2862 = vunpack.c.l.b16 %v1987
      %v2863 = vunpack.c.l.b16 %v1991
      %v2864 = vunpack.c.l.b16 %v1994
      %v2865 = vunpack.c.l.b16 %v1998
      %v2866 = vunpack.c.l.b16 %v2001
      %v2867 = vpack.c.b16 %v2836, %v2835
      %v2868 = vpack.c.b16 %v2838, %v2837
      %v2869 = vpack.c.b16 %v2840, %v2839
      %v2870 = vpack.c.b16 %v2842, %v2841
      %v2871 = vpack.c.b16 %v2844, %v2843
      %v2872 = vpack.c.b16 %v2846, %v2845
      %v2873 = vpack.c.b16 %v2848, %v2847
      %v2874 = vpack.c.b16 %v2850, %v2849
      %v2875 = vpack.c.b16 %v2852, %v2851
      %v2876 = vpack.c.b16 %v2854, %v2853
      %v2877 = vpack.c.b16 %v2856, %v2855
      %v2878 = vpack.c.b16 %v2858, %v2857
      %v2879 = vpack.c.b16 %v2860, %v2859
      %v2880 = vpack.c.b16 %v2862, %v2861
      %v2881 = vpack.c.b16 %v2864, %v2863
      %v2882 = vpack.c.b16 %v2866, %v2865
      %2883 = vrot.lane.b32.xlu0 %v2867, 12
      %v2884 = vpop.permute.xlu0 %2883
      %2885 = vrot.lane.b32.xlu0 %v2868, 12
      %v2886 = vpop.permute.xlu0 %2885
      %2887 = vrot.lane.b32.xlu0 %v2869, 12
      %v2888 = vpop.permute.xlu0 %2887
      %2889 = vrot.lane.b32.xlu0 %v2870, 12
      %v2890 = vpop.permute.xlu0 %2889
      %2891 = vrot.lane.b32.xlu0 %v2871, 12
      %v2892 = vpop.permute.xlu0 %2891
      %2893 = vrot.lane.b32.xlu0 %v2872, 12
      %v2894 = vpop.permute.xlu0 %2893
      %2895 = vrot.lane.b32.xlu0 %v2873, 12
      %v2896 = vpop.permute.xlu0 %2895
      %2897 = vrot.lane.b32.xlu0 %v2874, 12
      %v2898 = vpop.permute.xlu0 %2897
      %2899 = vrot.lane.b32.xlu0 %v2875, 12
      %v2900 = vpop.permute.xlu0 %2899
      %2901 = vrot.lane.b32.xlu0 %v2876, 12
      %v2902 = vpop.permute.xlu0 %2901
      %2903 = vrot.lane.b32.xlu0 %v2877, 12
      %v2904 = vpop.permute.xlu0 %2903
      %2905 = vrot.lane.b32.xlu0 %v2878, 12
      %v2906 = vpop.permute.xlu0 %2905
      %2907 = vrot.lane.b32.xlu0 %v2879, 12
      %v2908 = vpop.permute.xlu0 %2907
      %2909 = vrot.lane.b32.xlu0 %v2880, 12
      %v2910 = vpop.permute.xlu0 %2909
      %2911 = vrot.lane.b32.xlu0 %v2881, 12
      %v2912 = vpop.permute.xlu0 %2911
      %2913 = vrot.lane.b32.xlu0 %v2882, 12
      %v2914 = vpop.permute.xlu0 %2913
      %2915 = vrot.lane.b32.xlu0 %v1141, 16
      %v2916 = vpop.permute.xlu0 %2915
      %2917 = vrot.lane.b32.xlu0 %v1142, 16
      %v2918 = vpop.permute.xlu0 %2917
      %2919 = vrot.lane.b32.xlu0 %v1143, 16
      %v2920 = vpop.permute.xlu0 %2919
      %2921 = vrot.lane.b32.xlu0 %v1144, 16
      %v2922 = vpop.permute.xlu0 %2921
      %2923 = vrot.lane.b32.xlu0 %v1145, 16
      %v2924 = vpop.permute.xlu0 %2923
      %2925 = vrot.lane.b32.xlu0 %v1146, 16
      %v2926 = vpop.permute.xlu0 %2925
      %2927 = vrot.lane.b32.xlu0 %v1147, 16
      %v2928 = vpop.permute.xlu0 %2927
      %2929 = vrot.lane.b32.xlu0 %v1148, 16
      %v2930 = vpop.permute.xlu0 %2929
      %2931 = vrot.lane.b32.xlu0 %v1149, 16
      %v2932 = vpop.permute.xlu0 %2931
      %2933 = vrot.lane.b32.xlu0 %v1150, 16
      %v2934 = vpop.permute.xlu0 %2933
      %2935 = vrot.lane.b32.xlu0 %v1151, 16
      %v2936 = vpop.permute.xlu0 %2935
      %2937 = vrot.lane.b32.xlu0 %v1152, 16
      %v2938 = vpop.permute.xlu0 %2937
      %2939 = vrot.lane.b32.xlu0 %v1153, 16
      %v2940 = vpop.permute.xlu0 %2939
      %2941 = vrot.lane.b32.xlu0 %v1154, 16
      %v2942 = vpop.permute.xlu0 %2941
      %2943 = vrot.lane.b32.xlu0 %v1155, 16
      %v2944 = vpop.permute.xlu0 %2943
      %2945 = vrot.lane.b32.xlu0 %v1156, 16
      %v2946 = vpop.permute.xlu0 %2945
      %v2947 = vunpack.c.l.b16 %v2101
      %v2948 = vunpack.c.l.b16 %v2104
      %v2949 = vunpack.c.l.b16 %v2108
      %v2950 = vunpack.c.l.b16 %v2111
      %v2951 = vunpack.c.l.b16 %v2115
      %v2952 = vunpack.c.l.b16 %v2118
      %v2953 = vunpack.c.l.b16 %v2122
      %v2954 = vunpack.c.l.b16 %v2125
      %v2955 = vunpack.c.l.b16 %v2129
      %v2956 = vunpack.c.l.b16 %v2132
      %v2957 = vunpack.c.l.b16 %v2136
      %v2958 = vunpack.c.l.b16 %v2139
      %v2959 = vunpack.c.l.b16 %v2143
      %v2960 = vunpack.c.l.b16 %v2146
      %v2961 = vunpack.c.l.b16 %v2150
      %v2962 = vunpack.c.l.b16 %v2153
      %v2963 = vunpack.c.l.b16 %v2157
      %v2964 = vunpack.c.l.b16 %v2160
      %v2965 = vunpack.c.l.b16 %v2164
      %v2966 = vunpack.c.l.b16 %v2167
      %v2967 = vunpack.c.l.b16 %v2171
      %v2968 = vunpack.c.l.b16 %v2174
      %v2969 = vunpack.c.l.b16 %v2178
      %v2970 = vunpack.c.l.b16 %v2181
      %v2971 = vunpack.c.l.b16 %v2185
      %v2972 = vunpack.c.l.b16 %v2188
      %v2973 = vunpack.c.l.b16 %v2192
      %v2974 = vunpack.c.l.b16 %v2195
      %v2975 = vunpack.c.l.b16 %v2199
      %v2976 = vunpack.c.l.b16 %v2202
      %v2977 = vunpack.c.l.b16 %v2206
      %v2978 = vunpack.c.l.b16 %v2209
      %v2979 = vpack.c.b16 %v2948, %v2947
      %v2980 = vpack.c.b16 %v2950, %v2949
      %v2981 = vpack.c.b16 %v2952, %v2951
      %v2982 = vpack.c.b16 %v2954, %v2953
      %v2983 = vpack.c.b16 %v2956, %v2955
      %v2984 = vpack.c.b16 %v2958, %v2957
      %v2985 = vpack.c.b16 %v2960, %v2959
      %v2986 = vpack.c.b16 %v2962, %v2961
      %v2987 = vpack.c.b16 %v2964, %v2963
      %v2988 = vpack.c.b16 %v2966, %v2965
      %v2989 = vpack.c.b16 %v2968, %v2967
      %v2990 = vpack.c.b16 %v2970, %v2969
      %v2991 = vpack.c.b16 %v2972, %v2971
      %v2992 = vpack.c.b16 %v2974, %v2973
      %v2993 = vpack.c.b16 %v2976, %v2975
      %v2994 = vpack.c.b16 %v2978, %v2977
      %2995 = vrot.lane.b32.xlu0 %v2979, 20
      %v2996 = vpop.permute.xlu0 %2995
      %2997 = vrot.lane.b32.xlu0 %v2980, 20
      %v2998 = vpop.permute.xlu0 %2997
      %2999 = vrot.lane.b32.xlu0 %v2981, 20
      %v3000 = vpop.permute.xlu0 %2999
      %3001 = vrot.lane.b32.xlu0 %v2982, 20
      %v3002 = vpop.permute.xlu0 %3001
      %3003 = vrot.lane.b32.xlu0 %v2983, 20
      %v3004 = vpop.permute.xlu0 %3003
      %3005 = vrot.lane.b32.xlu0 %v2984, 20
      %v3006 = vpop.permute.xlu0 %3005
      %3007 = vrot.lane.b32.xlu0 %v2985, 20
      %v3008 = vpop.permute.xlu0 %3007
      %3009 = vrot.lane.b32.xlu0 %v2986, 20
      %v3010 = vpop.permute.xlu0 %3009
      %3011 = vrot.lane.b32.xlu0 %v2987, 20
      %v3012 = vpop.permute.xlu0 %3011
      %3013 = vrot.lane.b32.xlu0 %v2988, 20
      %v3014 = vpop.permute.xlu0 %3013
      %3015 = vrot.lane.b32.xlu0 %v2989, 20
      %v3016 = vpop.permute.xlu0 %3015
      %3017 = vrot.lane.b32.xlu0 %v2990, 20
      %v3018 = vpop.permute.xlu0 %3017
      %3019 = vrot.lane.b32.xlu0 %v2991, 20
      %v3020 = vpop.permute.xlu0 %3019
      %3021 = vrot.lane.b32.xlu0 %v2992, 20
      %v3022 = vpop.permute.xlu0 %3021
      %3023 = vrot.lane.b32.xlu0 %v2993, 20
      %v3024 = vpop.permute.xlu0 %3023
      %3025 = vrot.lane.b32.xlu0 %v2994, 20
      %v3026 = vpop.permute.xlu0 %3025
      %v3027 = vunpack.c.l.b16 %v2310
      %v3028 = vunpack.c.l.b16 %v2313
      %v3029 = vunpack.c.l.b16 %v2317
      %v3030 = vunpack.c.l.b16 %v2320
      %v3031 = vunpack.c.l.b16 %v2324
      %v3032 = vunpack.c.l.b16 %v2327
      %v3033 = vunpack.c.l.b16 %v2331
      %v3034 = vunpack.c.l.b16 %v2334
      %v3035 = vunpack.c.l.b16 %v2338
      %v3036 = vunpack.c.l.b16 %v2341
      %v3037 = vunpack.c.l.b16 %v2345
      %v3038 = vunpack.c.l.b16 %v2348
      %v3039 = vunpack.c.l.b16 %v2352
      %v3040 = vunpack.c.l.b16 %v2355
      %v3041 = vunpack.c.l.b16 %v2359
      %v3042 = vunpack.c.l.b16 %v2362
      %v3043 = vunpack.c.l.b16 %v2366
      %v3044 = vunpack.c.l.b16 %v2369
      %v3045 = vunpack.c.l.b16 %v2373
      %v3046 = vunpack.c.l.b16 %v2376
      %v3047 = vunpack.c.l.b16 %v2380
      %v3048 = vunpack.c.l.b16 %v2383
      %v3049 = vunpack.c.l.b16 %v2387
      %v3050 = vunpack.c.l.b16 %v2390
      %v3051 = vunpack.c.l.b16 %v2394
      %v3052 = vunpack.c.l.b16 %v2397
      %v3053 = vunpack.c.l.b16 %v2401
      %v3054 = vunpack.c.l.b16 %v2404
      %v3055 = vunpack.c.l.b16 %v2408
      %v3056 = vunpack.c.l.b16 %v2411
      %v3057 = vunpack.c.l.b16 %v2415
      %v3058 = vunpack.c.l.b16 %v2418
      %v3059 = vpack.c.b16 %v3028, %v3027
      %v3060 = vpack.c.b16 %v3030, %v3029
      %v3061 = vpack.c.b16 %v3032, %v3031
      %v3062 = vpack.c.b16 %v3034, %v3033
      %v3063 = vpack.c.b16 %v3036, %v3035
      %v3064 = vpack.c.b16 %v3038, %v3037
      %v3065 = vpack.c.b16 %v3040, %v3039
      %v3066 = vpack.c.b16 %v3042, %v3041
      %v3067 = vpack.c.b16 %v3044, %v3043
      %v3068 = vpack.c.b16 %v3046, %v3045
      %v3069 = vpack.c.b16 %v3048, %v3047
      %v3070 = vpack.c.b16 %v3050, %v3049
      %v3071 = vpack.c.b16 %v3052, %v3051
      %v3072 = vpack.c.b16 %v3054, %v3053
      %v3073 = vpack.c.b16 %v3056, %v3055
      %v3074 = vpack.c.b16 %v3058, %v3057
      %3075 = vrot.lane.b32.xlu0 %v3059, 24
      %v3076 = vpop.permute.xlu0 %3075
      %3077 = vrot.lane.b32.xlu0 %v3060, 24
      %v3078 = vpop.permute.xlu0 %3077
      %3079 = vrot.lane.b32.xlu0 %v3061, 24
      %v3080 = vpop.permute.xlu0 %3079
      %3081 = vrot.lane.b32.xlu0 %v3062, 24
      %v3082 = vpop.permute.xlu0 %3081
      %3083 = vrot.lane.b32.xlu0 %v3063, 24
      %v3084 = vpop.permute.xlu0 %3083
      %3085 = vrot.lane.b32.xlu0 %v3064, 24
      %v3086 = vpop.permute.xlu0 %3085
      %3087 = vrot.lane.b32.xlu0 %v3065, 24
      %v3088 = vpop.permute.xlu0 %3087
      %3089 = vrot.lane.b32.xlu0 %v3066, 24
      %v3090 = vpop.permute.xlu0 %3089
      %3091 = vrot.lane.b32.xlu0 %v3067, 24
      %v3092 = vpop.permute.xlu0 %3091
      %3093 = vrot.lane.b32.xlu0 %v3068, 24
      %v3094 = vpop.permute.xlu0 %3093
      %3095 = vrot.lane.b32.xlu0 %v3069, 24
      %v3096 = vpop.permute.xlu0 %3095
      %3097 = vrot.lane.b32.xlu0 %v3070, 24
      %v3098 = vpop.permute.xlu0 %3097
      %3099 = vrot.lane.b32.xlu0 %v3071, 24
      %v3100 = vpop.permute.xlu0 %3099
      %3101 = vrot.lane.b32.xlu0 %v3072, 24
      %v3102 = vpop.permute.xlu0 %3101
      %3103 = vrot.lane.b32.xlu0 %v3073, 24
      %v3104 = vpop.permute.xlu0 %3103
      %3105 = vrot.lane.b32.xlu0 %v3074, 24
      %v3106 = vpop.permute.xlu0 %3105
      %v3107 = vunpack.c.l.b16 %v2212
      %v3108 = vunpack.c.l.b16 %v2419
      %v3109 = vunpack.c.l.b16 %v2215
      %v3110 = vunpack.c.l.b16 %v2420
      %v3111 = vunpack.c.l.b16 %v2218
      %v3112 = vunpack.c.l.b16 %v2421
      %v3113 = vunpack.c.l.b16 %v2221
      %v3114 = vunpack.c.l.b16 %v2422
      %v3115 = vunpack.c.l.b16 %v2224
      %v3116 = vunpack.c.l.b16 %v2423
      %v3117 = vunpack.c.l.b16 %v2227
      %v3118 = vunpack.c.l.b16 %v2424
      %v3119 = vunpack.c.l.b16 %v2230
      %v3120 = vunpack.c.l.b16 %v2425
      %v3121 = vunpack.c.l.b16 %v2233
      %v3122 = vunpack.c.l.b16 %v2426
      %v3123 = vunpack.c.l.b16 %v2236
      %v3124 = vunpack.c.l.b16 %v2427
      %v3125 = vunpack.c.l.b16 %v2239
      %v3126 = vunpack.c.l.b16 %v2428
      %v3127 = vunpack.c.l.b16 %v2242
      %v3128 = vunpack.c.l.b16 %v2429
      %v3129 = vunpack.c.l.b16 %v2245
      %v3130 = vunpack.c.l.b16 %v2430
      %v3131 = vunpack.c.l.b16 %v2248
      %v3132 = vunpack.c.l.b16 %v2431
      %v3133 = vunpack.c.l.b16 %v2251
      %v3134 = vunpack.c.l.b16 %v2432
      %v3135 = vunpack.c.l.b16 %v2254
      %v3136 = vunpack.c.l.b16 %v2433
      %v3137 = vunpack.c.l.b16 %v2257
      %v3138 = vunpack.c.l.b16 %v2434
      %v3139 = vpack.c.b16 %v3108, %v3107
      %v3140 = vpack.c.b16 %v3110, %v3109
      %v3141 = vpack.c.b16 %v3112, %v3111
      %v3142 = vpack.c.b16 %v3114, %v3113
      %v3143 = vpack.c.b16 %v3116, %v3115
      %v3144 = vpack.c.b16 %v3118, %v3117
      %v3145 = vpack.c.b16 %v3120, %v3119
      %v3146 = vpack.c.b16 %v3122, %v3121
      %v3147 = vpack.c.b16 %v3124, %v3123
      %v3148 = vpack.c.b16 %v3126, %v3125
      %v3149 = vpack.c.b16 %v3128, %v3127
      %v3150 = vpack.c.b16 %v3130, %v3129
      %v3151 = vpack.c.b16 %v3132, %v3131
      %v3152 = vpack.c.b16 %v3134, %v3133
      %v3153 = vpack.c.b16 %v3136, %v3135
      %v3154 = vpack.c.b16 %v3138, %v3137
      %3155 = vrot.lane.b32.xlu0 %v3139, 28
      %v3156 = vpop.permute.xlu0 %3155
      %3157 = vrot.lane.b32.xlu0 %v3140, 28
      %v3158 = vpop.permute.xlu0 %3157
      %3159 = vrot.lane.b32.xlu0 %v3141, 28
      %v3160 = vpop.permute.xlu0 %3159
      %3161 = vrot.lane.b32.xlu0 %v3142, 28
      %v3162 = vpop.permute.xlu0 %3161
      %3163 = vrot.lane.b32.xlu0 %v3143, 28
      %v3164 = vpop.permute.xlu0 %3163
      %3165 = vrot.lane.b32.xlu0 %v3144, 28
      %v3166 = vpop.permute.xlu0 %3165
      %3167 = vrot.lane.b32.xlu0 %v3145, 28
      %v3168 = vpop.permute.xlu0 %3167
      %3169 = vrot.lane.b32.xlu0 %v3146, 28
      %v3170 = vpop.permute.xlu0 %3169
      %3171 = vrot.lane.b32.xlu0 %v3147, 28
      %v3172 = vpop.permute.xlu0 %3171
      %3173 = vrot.lane.b32.xlu0 %v3148, 28
      %v3174 = vpop.permute.xlu0 %3173
      %3175 = vrot.lane.b32.xlu0 %v3149, 28
      %v3176 = vpop.permute.xlu0 %3175
      %3177 = vrot.lane.b32.xlu0 %v3150, 28
      %v3178 = vpop.permute.xlu0 %3177
      %3179 = vrot.lane.b32.xlu0 %v3151, 28
      %v3180 = vpop.permute.xlu0 %3179
      %3181 = vrot.lane.b32.xlu0 %v3152, 28
      %v3182 = vpop.permute.xlu0 %3181
      %3183 = vrot.lane.b32.xlu0 %v3153, 28
      %v3184 = vpop.permute.xlu0 %3183
      %3185 = vrot.lane.b32.xlu0 %v3154, 28
      %v3186 = vpop.permute.xlu0 %3185
      %v3187 = vunpack.c.l.b16 %v2518
      %v3188 = vunpack.c.l.b16 %v2521
      %v3189 = vunpack.c.l.b16 %v2525
      %v3190 = vunpack.c.l.b16 %v2528
      %v3191 = vunpack.c.l.b16 %v2532
      %v3192 = vunpack.c.l.b16 %v2535
      %v3193 = vunpack.c.l.b16 %v2539
      %v3194 = vunpack.c.l.b16 %v2542
      %v3195 = vunpack.c.l.b16 %v2546
      %v3196 = vunpack.c.l.b16 %v2549
      %v3197 = vunpack.c.l.b16 %v2553
      %v3198 = vunpack.c.l.b16 %v2556
      %v3199 = vunpack.c.l.b16 %v2560
      %v3200 = vunpack.c.l.b16 %v2563
      %v3201 = vunpack.c.l.b16 %v2567
      %v3202 = vunpack.c.l.b16 %v2570
      %v3203 = vunpack.c.l.b16 %v2574
      %v3204 = vunpack.c.l.b16 %v2577
      %v3205 = vunpack.c.l.b16 %v2581
      %v3206 = vunpack.c.l.b16 %v2584
      %v3207 = vunpack.c.l.b16 %v2588
      %v3208 = vunpack.c.l.b16 %v2591
      %v3209 = vunpack.c.l.b16 %v2595
      %v3210 = vunpack.c.l.b16 %v2598
      %v3211 = vunpack.c.l.b16 %v2602
      %v3212 = vunpack.c.l.b16 %v2605
      %v3213 = vunpack.c.l.b16 %v2609
      %v3214 = vunpack.c.l.b16 %v2612
      %v3215 = vunpack.c.l.b16 %v2616
      %v3216 = vunpack.c.l.b16 %v2619
      %v3217 = vunpack.c.l.b16 %v2623
      %v3218 = vunpack.c.l.b16 %v2626
      %v3219 = vpack.c.b16 %v3188, %v3187
      %v3220 = vpack.c.b16 %v3190, %v3189
      %v3221 = vpack.c.b16 %v3192, %v3191
      %v3222 = vpack.c.b16 %v3194, %v3193
      %v3223 = vpack.c.b16 %v3196, %v3195
      %v3224 = vpack.c.b16 %v3198, %v3197
      %v3225 = vpack.c.b16 %v3200, %v3199
      %v3226 = vpack.c.b16 %v3202, %v3201
      %v3227 = vpack.c.b16 %v3204, %v3203
      %v3228 = vpack.c.b16 %v3206, %v3205
      %v3229 = vpack.c.b16 %v3208, %v3207
      %v3230 = vpack.c.b16 %v3210, %v3209
      %v3231 = vpack.c.b16 %v3212, %v3211
      %v3232 = vpack.c.b16 %v3214, %v3213
      %v3233 = vpack.c.b16 %v3216, %v3215
      %v3234 = vpack.c.b16 %v3218, %v3217
      %3235 = vrot.lane.b32.xlu0 %v3219, 32
      %v3236 = vpop.permute.xlu0 %3235
      %3237 = vrot.lane.b32.xlu0 %v3220, 32
      %v3238 = vpop.permute.xlu0 %3237
      %3239 = vrot.lane.b32.xlu0 %v3221, 32
      %v3240 = vpop.permute.xlu0 %3239
      %3241 = vrot.lane.b32.xlu0 %v3222, 32
      %v3242 = vpop.permute.xlu0 %3241
      %3243 = vrot.lane.b32.xlu0 %v3223, 32
      %v3244 = vpop.permute.xlu0 %3243
      %3245 = vrot.lane.b32.xlu0 %v3224, 32
      %v3246 = vpop.permute.xlu0 %3245
      %3247 = vrot.lane.b32.xlu0 %v3225, 32
      %v3248 = vpop.permute.xlu0 %3247
      %3249 = vrot.lane.b32.xlu0 %v3226, 32
      %v3250 = vpop.permute.xlu0 %3249
      %3251 = vrot.lane.b32.xlu0 %v3227, 32
      %v3252 = vpop.permute.xlu0 %3251
      %3253 = vrot.lane.b32.xlu0 %v3228, 32
      %v3254 = vpop.permute.xlu0 %3253
      %3255 = vrot.lane.b32.xlu0 %v3229, 32
      %v3256 = vpop.permute.xlu0 %3255
      %3257 = vrot.lane.b32.xlu0 %v3230, 32
      %v3258 = vpop.permute.xlu0 %3257
      %3259 = vrot.lane.b32.xlu0 %v3231, 32
      %v3260 = vpop.permute.xlu0 %3259
      %3261 = vrot.lane.b32.xlu0 %v3232, 32
      %v3262 = vpop.permute.xlu0 %3261
      %3263 = vrot.lane.b32.xlu0 %v3233, 32
      %v3264 = vpop.permute.xlu0 %3263
      %3265 = vrot.lane.b32.xlu0 %v3234, 32
      %v3266 = vpop.permute.xlu0 %3265
      %v3269 = vsel %vm1157, %v2659, %v2724
      %v3272 = vsel %vm1157, %v2660, %v2726
      %v3275 = vsel %vm1157, %v2661, %v2728
      %v3278 = vsel %vm1157, %v2662, %v2730
      %v3281 = vsel %vm1157, %v2663, %v2732
      %v3284 = vsel %vm1157, %v2664, %v2734
      %v3287 = vsel %vm1157, %v2665, %v2736
      %v3290 = vsel %vm1157, %v2666, %v2738
      %v3293 = vsel %vm1157, %v2667, %v2740
      %v3296 = vsel %vm1157, %v2668, %v2742
      %v3299 = vsel %vm1157, %v2669, %v2744
      %v3302 = vsel %vm1157, %v2670, %v2746
      %v3305 = vsel %vm1157, %v2671, %v2748
      %v3308 = vsel %vm1157, %v2672, %v2750
      %v3311 = vsel %vm1157, %v2673, %v2752
      %v3314 = vsel %vm1157, %v2674, %v2754
      %vm3315 = vcmask 64512
      %v3317 = vsel %vm3315, %v3269, %v2804
      %v3319 = vsel %vm3315, %v3272, %v2806
      %v3321 = vsel %vm3315, %v3275, %v2808
      %v3323 = vsel %vm3315, %v3278, %v2810
      %v3325 = vsel %vm3315, %v3281, %v2812
      %v3327 = vsel %vm3315, %v3284, %v2814
      %v3329 = vsel %vm3315, %v3287, %v2816
      %v3331 = vsel %vm3315, %v3290, %v2818
      %v3333 = vsel %vm3315, %v3293, %v2820
      %v3335 = vsel %vm3315, %v3296, %v2822
      %v3337 = vsel %vm3315, %v3299, %v2824
      %v3339 = vsel %vm3315, %v3302, %v2826
      %v3341 = vsel %vm3315, %v3305, %v2828
      %v3343 = vsel %vm3315, %v3308, %v2830
      %v3345 = vsel %vm3315, %v3311, %v2832
      %v3347 = vsel %vm3315, %v3314, %v2834
      %vm3348 = vcmask 97280
      %v3350 = vsel %vm3348, %v3317, %v2884
      %v3352 = vsel %vm3348, %v3319, %v2886
      %v3354 = vsel %vm3348, %v3321, %v2888
      %v3356 = vsel %vm3348, %v3323, %v2890
      %v3358 = vsel %vm3348, %v3325, %v2892
      %v3360 = vsel %vm3348, %v3327, %v2894
      %v3362 = vsel %vm3348, %v3329, %v2896
      %v3364 = vsel %vm3348, %v3331, %v2898
      %v3366 = vsel %vm3348, %v3333, %v2900
      %v3368 = vsel %vm3348, %v3335, %v2902
      %v3370 = vsel %vm3348, %v3337, %v2904
      %v3372 = vsel %vm3348, %v3339, %v2906
      %v3374 = vsel %vm3348, %v3341, %v2908
      %v3376 = vsel %vm3348, %v3343, %v2910
      %v3378 = vsel %vm3348, %v3345, %v2912
      %v3380 = vsel %vm3348, %v3347, %v2914
      %vm3381 = vcmask 130048
      %v3383 = vsel %vm3381, %v3350, %v2916
      %v3385 = vsel %vm3381, %v3352, %v2918
      %v3387 = vsel %vm3381, %v3354, %v2920
      %v3389 = vsel %vm3381, %v3356, %v2922
      %v3391 = vsel %vm3381, %v3358, %v2924
      %v3393 = vsel %vm3381, %v3360, %v2926
      %v3395 = vsel %vm3381, %v3362, %v2928
      %v3397 = vsel %vm3381, %v3364, %v2930
      %v3399 = vsel %vm3381, %v3366, %v2932
      %v3401 = vsel %vm3381, %v3368, %v2934
      %v3403 = vsel %vm3381, %v3370, %v2936
      %v3405 = vsel %vm3381, %v3372, %v2938
      %v3407 = vsel %vm3381, %v3374, %v2940
      %v3409 = vsel %vm3381, %v3376, %v2942
      %v3411 = vsel %vm3381, %v3378, %v2944
      %v3413 = vsel %vm3381, %v3380, %v2946
      %vm3414 = vcmask 162816
      %v3416 = vsel %vm3414, %v3383, %v2996
      %v3418 = vsel %vm3414, %v3385, %v2998
      %v3420 = vsel %vm3414, %v3387, %v3000
      %v3422 = vsel %vm3414, %v3389, %v3002
      %v3424 = vsel %vm3414, %v3391, %v3004
      %v3426 = vsel %vm3414, %v3393, %v3006
      %v3428 = vsel %vm3414, %v3395, %v3008
      %v3430 = vsel %vm3414, %v3397, %v3010
      %v3432 = vsel %vm3414, %v3399, %v3012
      %v3434 = vsel %vm3414, %v3401, %v3014
      %v3436 = vsel %vm3414, %v3403, %v3016
      %v3438 = vsel %vm3414, %v3405, %v3018
      %v3440 = vsel %vm3414, %v3407, %v3020
      %v3442 = vsel %vm3414, %v3409, %v3022
      %v3444 = vsel %vm3414, %v3411, %v3024
      %v3446 = vsel %vm3414, %v3413, %v3026
      %vm3447 = vcmask 195584
      %v3449 = vsel %vm3447, %v3416, %v3076
      %v3451 = vsel %vm3447, %v3418, %v3078
      %v3453 = vsel %vm3447, %v3420, %v3080
      %v3455 = vsel %vm3447, %v3422, %v3082
      %v3457 = vsel %vm3447, %v3424, %v3084
      %v3459 = vsel %vm3447, %v3426, %v3086
      %v3461 = vsel %vm3447, %v3428, %v3088
      %v3463 = vsel %vm3447, %v3430, %v3090
      %v3465 = vsel %vm3447, %v3432, %v3092
      %v3467 = vsel %vm3447, %v3434, %v3094
      %v3469 = vsel %vm3447, %v3436, %v3096
      %v3471 = vsel %vm3447, %v3438, %v3098
      %v3473 = vsel %vm3447, %v3440, %v3100
      %v3475 = vsel %vm3447, %v3442, %v3102
      %v3477 = vsel %vm3447, %v3444, %v3104
      %v3479 = vsel %vm3447, %v3446, %v3106
      %vm3480 = vcmask 228352
      %v3482 = vsel %vm3480, %v3449, %v3156
      %v3484 = vsel %vm3480, %v3451, %v3158
      %v3486 = vsel %vm3480, %v3453, %v3160
      %v3488 = vsel %vm3480, %v3455, %v3162
      %v3490 = vsel %vm3480, %v3457, %v3164
      %v3492 = vsel %vm3480, %v3459, %v3166
      %v3494 = vsel %vm3480, %v3461, %v3168
      %v3496 = vsel %vm3480, %v3463, %v3170
      %v3498 = vsel %vm3480, %v3465, %v3172
      %v3500 = vsel %vm3480, %v3467, %v3174
      %v3502 = vsel %vm3480, %v3469, %v3176
      %v3504 = vsel %vm3480, %v3471, %v3178
      %v3506 = vsel %vm3480, %v3473, %v3180
      %v3508 = vsel %vm3480, %v3475, %v3182
      %v3510 = vsel %vm3480, %v3477, %v3184
      %v3512 = vsel %vm3480, %v3479, %v3186
      %vm3513 = vcmask 261120
      %v3515 = vsel %vm3513, %v3482, %v3236
      %v3517 = vsel %vm3513, %v3484, %v3238
      %v3519 = vsel %vm3513, %v3486, %v3240
      %v3521 = vsel %vm3513, %v3488, %v3242
      %v3523 = vsel %vm3513, %v3490, %v3244
      %v3525 = vsel %vm3513, %v3492, %v3246
      %v3527 = vsel %vm3513, %v3494, %v3248
      %v3529 = vsel %vm3513, %v3496, %v3250
      %v3531 = vsel %vm3513, %v3498, %v3252
      %v3533 = vsel %vm3513, %v3500, %v3254
      %v3535 = vsel %vm3513, %v3502, %v3256
      %v3537 = vsel %vm3513, %v3504, %v3258
      %v3539 = vsel %vm3513, %v3506, %v3260
      %v3541 = vsel %vm3513, %v3508, %v3262
      %v3543 = vsel %vm3513, %v3510, %v3264
      %v3545 = vsel %vm3513, %v3512, %v3266
      %v3546 = vld [vmem:[%s2] sm:$0xf]
      %v3547 = vld [vmem:[%s2 + $0x4] sm:$0xf]
      %v3548 = vld [vmem:[%s2 + $0x8] sm:$0xf]
      %v3549 = vld [vmem:[%s2 + $0xc] sm:$0xf]
      %v3550 = vld [vmem:[%s2 + $0x10] sm:$0x3]
      %v3556 = vunpack.c.l.b16 %v3546
      %v3557 = vunpack.c.l.b16 %v3547
      %v3558 = vunpack.c.l.b16 %v3548
      %v3559 = vunpack.c.l.b16 %v3549
      %v3560 = vunpack.c.l.b16 %v3550
      %v3561 = vpack.c.b16 %v3557, %v3556
      %v3562 = vpack.c.b16 %v3559, %v3558
      %v3563 = vpack.c.b16 %v3560, %v3560
      %vm3566 = vcmask 293888
      %v3567 = vsel %vm3566, %v3515, 0
      %v3569 = vsel %vm3566, %v3517, 0
      %v3571 = vsel %vm3566, %v3519, 0
      %v3573 = vsel %vm3566, %v3521, 0
      %v3575 = vsel %vm3566, %v3523, 0
      %v3577 = vsel %vm3566, %v3525, 0
      %v3579 = vsel %vm3566, %v3527, 0
      %v3581 = vsel %vm3566, %v3529, 0
      %v3583 = vsel %vm3566, %v3531, 0
      %v3585 = vsel %vm3566, %v3533, 0
      %v3587 = vsel %vm3566, %v3535, 0
      %v3589 = vsel %vm3566, %v3537, 0
      %v3591 = vsel %vm3566, %v3539, 0
      %v3593 = vsel %vm3566, %v3541, 0
      %v3595 = vsel %vm3566, %v3543, 0
      %v3597 = vsel %vm3566, %v3545, 0
      %v3600 = vsel %vm1206, %v3563, 0
      %3602 = vmatprep.subr.bf16.mxu0 0
      %3603 = vmatpush1.bf16.msra.mxu0 %v3561
      %3604 = vmatprep.subr.bf16.mxu0 0
      %3605 = vmatpush1.bf16.msra.mxu0 %v3562
      %3606 = vmatprep.subr.bf16.mxu0 0
      %3607 = vmatpush1.bf16.msra.mxu0 %v3600
      %3608 = vmatprep.subr.bf16.mxu0 0
      %3609 = vmatpush1.bf16.msra.mxu0 0
      %3610 = vmatprep.subr.bf16.mxu0 0
      %3611 = vmatpush1.bf16.msra.mxu0 0
      %3612 = vmatprep.subr.bf16.mxu0 0
      %3613 = vmatpush1.bf16.msra.mxu0 0
      %3614 = vmatprep.subr.bf16.mxu0 0
      %3615 = vmatpush1.bf16.msra.mxu0 0
      %3616 = vmatprep.subr.bf16.mxu0 0
      %3617 = vmatpush1.bf16.msra.mxu0 0
      %3618 = vmatprep.subr.bf16.mxu0 0
      %3619 = vmatpush1.bf16.msra.mxu0 0
      %3620 = vmatprep.subr.bf16.mxu0 0
      %3621 = vmatpush1.bf16.msra.mxu0 0
      %3622 = vmatprep.subr.bf16.mxu0 0
      %3623 = vmatpush1.bf16.msra.mxu0 0
      %3624 = vmatprep.subr.bf16.mxu0 0
      %3625 = vmatpush1.bf16.msra.mxu0 0
      %3626 = vmatprep.subr.bf16.mxu0 0
      %3627 = vmatpush1.bf16.msra.mxu0 0
      %3628 = vmatprep.subr.bf16.mxu0 0
      %3629 = vmatpush1.bf16.msra.mxu0 0
      %3630 = vmatprep.subr.bf16.mxu0 0
      %3631 = vmatpush1.bf16.msra.mxu0 0
      %3632 = vmatprep.subr.bf16.mxu0 0
      %3633 = vmatpush1.bf16.msra.mxu0 0
      %3634 = vmatprep.mubr.bf16.mxu0 0
      %3635 = vmatmul.mubr.bf16.gmra.mrb[0].mxu0 %v3567
      %v3636 = vpop.f32.mrb[0].mxu0
      %v3637 = vadd.f32 0.0, %v3636
      %v3638 = vpop.f32.mrb[0].mxu0
      %v3639 = vpop.f32.mrb[0].mxu0
      %v3640 = vadd.f32 0.0, %v3639
      %v3641 = vpop.f32.mrb[0].mxu0
      %3642 = vmatprep.mubr.bf16.mxu0 0
      %3643 = vmatmul.mubr.bf16.gmra.mrb[0].mxu0 %v3569
      %v3644 = vpop.f32.mrb[0].mxu0
      %v3645 = vadd.f32 0.0, %v3644
      %v3646 = vpop.f32.mrb[0].mxu0
      %v3647 = vpop.f32.mrb[0].mxu0
      %v3648 = vadd.f32 0.0, %v3647
      %v3649 = vpop.f32.mrb[0].mxu0
      %3650 = vmatprep.mubr.bf16.mxu0 0
      %3651 = vmatmul.mubr.bf16.gmra.mrb[0].mxu0 %v3571
      %v3652 = vpop.f32.mrb[0].mxu0
      %v3653 = vadd.f32 0.0, %v3652
      %v3654 = vpop.f32.mrb[0].mxu0
      %v3655 = vpop.f32.mrb[0].mxu0
      %v3656 = vadd.f32 0.0, %v3655
      %v3657 = vpop.f32.mrb[0].mxu0
      %3658 = vmatprep.mubr.bf16.mxu0 0
      %3659 = vmatmul.mubr.bf16.gmra.mrb[0].mxu0 %v3573
      %v3660 = vpop.f32.mrb[0].mxu0
      %v3661 = vadd.f32 0.0, %v3660
      %v3662 = vpop.f32.mrb[0].mxu0
      %v3663 = vpop.f32.mrb[0].mxu0
      %v3664 = vadd.f32 0.0, %v3663
      %v3665 = vpop.f32.mrb[0].mxu0
      %3666 = vmatprep.mubr.bf16.mxu0 0
      %3667 = vmatmul.mubr.bf16.gmra.mrb[0].mxu0 %v3575
      %v3668 = vpop.f32.mrb[0].mxu0
      %v3669 = vadd.f32 0.0, %v3668
      %v3670 = vpop.f32.mrb[0].mxu0
      %v3671 = vpop.f32.mrb[0].mxu0
      %v3672 = vadd.f32 0.0, %v3671
      %v3673 = vpop.f32.mrb[0].mxu0
      %3674 = vmatprep.mubr.bf16.mxu0 0
      %3675 = vmatmul.mubr.bf16.gmra.mrb[0].mxu0 %v3577
      %v3676 = vpop.f32.mrb[0].mxu0
      %v3677 = vadd.f32 0.0, %v3676
      %v3678 = vpop.f32.mrb[0].mxu0
      %v3679 = vpop.f32.mrb[0].mxu0
      %v3680 = vadd.f32 0.0, %v3679
      %v3681 = vpop.f32.mrb[0].mxu0
      %3682 = vmatprep.mubr.bf16.mxu0 0
      %3683 = vmatmul.mubr.bf16.gmra.mrb[0].mxu0 %v3579
      %v3684 = vpop.f32.mrb[0].mxu0
      %v3685 = vadd.f32 0.0, %v3684
      %v3686 = vpop.f32.mrb[0].mxu0
      %v3687 = vpop.f32.mrb[0].mxu0
      %v3688 = vadd.f32 0.0, %v3687
      %v3689 = vpop.f32.mrb[0].mxu0
      %3690 = vmatprep.mubr.bf16.mxu0 0
      %3691 = vmatmul.mubr.bf16.gmra.mrb[0].mxu0 %v3581
      %v3692 = vpop.f32.mrb[0].mxu0
      %v3693 = vadd.f32 0.0, %v3692
      %v3694 = vpop.f32.mrb[0].mxu0
      %v3695 = vpop.f32.mrb[0].mxu0
      %v3696 = vadd.f32 0.0, %v3695
      %v3697 = vpop.f32.mrb[0].mxu0
      %3698 = vmatprep.mubr.bf16.mxu0 0
      %3699 = vmatmul.mubr.bf16.gmra.mrb[0].mxu0 %v3583
      %v3700 = vpop.f32.mrb[0].mxu0
      %v3701 = vadd.f32 0.0, %v3700
      %v3702 = vpop.f32.mrb[0].mxu0
      %v3703 = vpop.f32.mrb[0].mxu0
      %v3704 = vadd.f32 0.0, %v3703
      %v3705 = vpop.f32.mrb[0].mxu0
      %3706 = vmatprep.mubr.bf16.mxu0 0
      %3707 = vmatmul.mubr.bf16.gmra.mrb[0].mxu0 %v3585
      %v3708 = vpop.f32.mrb[0].mxu0
      %v3709 = vadd.f32 0.0, %v3708
      %v3710 = vpop.f32.mrb[0].mxu0
      %v3711 = vpop.f32.mrb[0].mxu0
      %v3712 = vadd.f32 0.0, %v3711
      %v3713 = vpop.f32.mrb[0].mxu0
      %3714 = vmatprep.mubr.bf16.mxu0 0
      %3715 = vmatmul.mubr.bf16.gmra.mrb[0].mxu0 %v3587
      %v3716 = vpop.f32.mrb[0].mxu0
      %v3717 = vadd.f32 0.0, %v3716
      %v3718 = vpop.f32.mrb[0].mxu0
      %v3719 = vpop.f32.mrb[0].mxu0
      %v3720 = vadd.f32 0.0, %v3719
      %v3721 = vpop.f32.mrb[0].mxu0
      %3722 = vmatprep.mubr.bf16.mxu0 0
      %3723 = vmatmul.mubr.bf16.gmra.mrb[0].mxu0 %v3589
      %v3724 = vpop.f32.mrb[0].mxu0
      %v3725 = vadd.f32 0.0, %v3724
      %v3726 = vpop.f32.mrb[0].mxu0
      %v3727 = vpop.f32.mrb[0].mxu0
      %v3728 = vadd.f32 0.0, %v3727
      %v3729 = vpop.f32.mrb[0].mxu0
      %3730 = vmatprep.mubr.bf16.mxu0 0
      %3731 = vmatmul.mubr.bf16.gmra.mrb[0].mxu0 %v3591
      %v3732 = vpop.f32.mrb[0].mxu0
      %v3733 = vadd.f32 0.0, %v3732
      %v3734 = vpop.f32.mrb[0].mxu0
      %v3735 = vpop.f32.mrb[0].mxu0
      %v3736 = vadd.f32 0.0, %v3735
      %v3737 = vpop.f32.mrb[0].mxu0
      %3738 = vmatprep.mubr.bf16.mxu0 0
      %3739 = vmatmul.mubr.bf16.gmra.mrb[0].mxu0 %v3593
      %v3740 = vpop.f32.mrb[0].mxu0
      %v3741 = vadd.f32 0.0, %v3740
      %v3742 = vpop.f32.mrb[0].mxu0
      %v3743 = vpop.f32.mrb[0].mxu0
      %v3744 = vadd.f32 0.0, %v3743
      %v3745 = vpop.f32.mrb[0].mxu0
      %3746 = vmatprep.mubr.bf16.mxu0 0
      %3747 = vmatmul.mubr.bf16.gmra.mrb[0].mxu0 %v3595
      %v3748 = vpop.f32.mrb[0].mxu0
      %v3749 = vadd.f32 0.0, %v3748
      %v3750 = vpop.f32.mrb[0].mxu0
      %v3751 = vpop.f32.mrb[0].mxu0
      %v3752 = vadd.f32 0.0, %v3751
      %v3753 = vpop.f32.mrb[0].mxu0
      %3754 = vmatprep.mubr.bf16.mxu0 0
      %3755 = vmatmul.mubr.bf16.gmra.mrb[0].mxu0 %v3597
      %v3756 = vpop.f32.mrb[0].mxu0
      %v3757 = vadd.f32 0.0, %v3756
      %v3758 = vpop.f32.mrb[0].mxu0
      %v3759 = vpop.f32.mrb[0].mxu0
      %v3760 = vadd.f32 0.0, %v3759
      %v3761 = vpop.f32.mrb[0].mxu0
      %3762 = vdwg.mxu0
      %s3763 = scalar_lea.vmem [#allocation2], 720
      %v3764 = vld [vmem:[%s3763 + $0x8] sm:$0xc]
      %v3765 = vld [vmem:[%s3763 + $0xc] sm:$0xf]
      %v3766 = vld [vmem:[%s3763 + $0x10] sm:$0x3]
      %v3767 = vld [vmem:[%s3763 + $0x2c] sm:$0xc]
      %v3768 = vld [vmem:[%s3763 + $0x30] sm:$0xf]
      %v3769 = vld [vmem:[%s3763 + $0x34] sm:$0x3]
      %v3770 = vld [vmem:[%s3763 + $0x50] sm:$0xc]
      %v3771 = vld [vmem:[%s3763 + $0x54] sm:$0xf]
      %v3772 = vld [vmem:[%s3763 + $0x58] sm:$0x3]
      %v3773 = vld [vmem:[%s3763 + $0x74] sm:$0xc]
      %v3774 = vld [vmem:[%s3763 + $0x78] sm:$0xf]
      %v3775 = vld [vmem:[%s3763 + $0x7c] sm:$0x3]
      %v3776 = vld [vmem:[%s3763 + $0x98] sm:$0xc]
      %v3777 = vld [vmem:[%s3763 + $0x9c] sm:$0xf]
      %v3778 = vld [vmem:[%s3763 + $0xa0] sm:$0x3]
      %v3779 = vld [vmem:[%s3763 + $0xbc] sm:$0xc]
      %v3780 = vld [vmem:[%s3763 + $0xc0] sm:$0xf]
      %v3781 = vld [vmem:[%s3763 + $0xc4] sm:$0x3]
      %v3782 = vld [vmem:[%s3763 + $0xe0] sm:$0xc]
      %v3783 = vld [vmem:[%s3763 + $0xe4] sm:$0xf]
      %v3784 = vld [vmem:[%s3763 + $0xe8] sm:$0x3]
      %v3785 = vld [vmem:[%s3763 + $0x104] sm:$0xc]
      %v3786 = vld [vmem:[%s3763 + $0x108] sm:$0xf]
      %v3787 = vld [vmem:[%s3763 + $0x10c] sm:$0x3]
      %v3788 = vld [vmem:[%s3763 + $0x128] sm:$0xc]
      %v3789 = vld [vmem:[%s3763 + $0x12c] sm:$0xf]
      %v3790 = vld [vmem:[%s3763 + $0x130] sm:$0x3]
      %v3791 = vld [vmem:[%s3763 + $0x14c] sm:$0xc]
      %v3792 = vld [vmem:[%s3763 + $0x150] sm:$0xf]
      %v3793 = vld [vmem:[%s3763 + $0x154] sm:$0x3]
      %v3794 = vld [vmem:[%s3763 + $0x170] sm:$0xc]
      %v3795 = vld [vmem:[%s3763 + $0x174] sm:$0xf]
      %v3796 = vld [vmem:[%s3763 + $0x178] sm:$0x3]
      %v3797 = vld [vmem:[%s3763 + $0x194] sm:$0xc]
      %v3798 = vld [vmem:[%s3763 + $0x198] sm:$0xf]
      %v3799 = vld [vmem:[%s3763 + $0x19c] sm:$0x3]
      %v3800 = vld [vmem:[%s3763 + $0x1b8] sm:$0xc]
      %v3801 = vld [vmem:[%s3763 + $0x1bc] sm:$0xf]
      %v3802 = vld [vmem:[%s3763 + $0x1c0] sm:$0x3]
      %v3803 = vld [vmem:[%s3763 + $0x1dc] sm:$0xc]
      %v3804 = vld [vmem:[%s3763 + $0x1e0] sm:$0xf]
      %v3805 = vld [vmem:[%s3763 + $0x1e4] sm:$0x3]
      %v3806 = vld [vmem:[%s3763 + $0x200] sm:$0xc]
      %v3807 = vld [vmem:[%s3763 + $0x204] sm:$0xf]
      %v3808 = vld [vmem:[%s3763 + $0x208] sm:$0x3]
      %v3809 = vld [vmem:[%s3763 + $0x224] sm:$0xc]
      %v3810 = vld [vmem:[%s3763 + $0x228] sm:$0xf]
      %v3811 = vld [vmem:[%s3763 + $0x22c] sm:$0x3]
      %vm3860 = vcmask 1041408
      %vm3861 = vcmask 1045508
      %vm3862 = vmor %vm3860, %vm3861
      %v3863 = vrot.slane %v3764, 6
      %v3864 = vrot.slane %v3863, 4
      %v3865 = vrot.slane %v3765, 6
      %v3866 = vsel %vm3862, %v3864, %v3865
      %v3867 = vrot.slane %v3865, 4
      %v3868 = vrot.slane %v3766, 6
      %v3869 = vsel %vm3862, %v3867, %v3868
      %v3870 = vrot.slane %v3767, 6
      %v3871 = vrot.slane %v3870, 4
      %v3872 = vrot.slane %v3768, 6
      %v3873 = vsel %vm3862, %v3871, %v3872
      %v3874 = vrot.slane %v3872, 4
      %v3875 = vrot.slane %v3769, 6
      %v3876 = vsel %vm3862, %v3874, %v3875
      %v3877 = vrot.slane %v3770, 6
      %v3878 = vrot.slane %v3877, 4
      %v3879 = vrot.slane %v3771, 6
      %v3880 = vsel %vm3862, %v3878, %v3879
      %v3881 = vrot.slane %v3879, 4
      %v3882 = vrot.slane %v3772, 6
      %v3883 = vsel %vm3862, %v3881, %v3882
      %v3884 = vrot.slane %v3773, 6
      %v3885 = vrot.slane %v3884, 4
      %v3886 = vrot.slane %v3774, 6
      %v3887 = vsel %vm3862, %v3885, %v3886
      %v3888 = vrot.slane %v3886, 4
      %v3889 = vrot.slane %v3775, 6
      %v3890 = vsel %vm3862, %v3888, %v3889
      %v3891 = vrot.slane %v3776, 6
      %v3892 = vrot.slane %v3891, 4
      %v3893 = vrot.slane %v3777, 6
      %v3894 = vsel %vm3862, %v3892, %v3893
      %v3895 = vrot.slane %v3893, 4
      %v3896 = vrot.slane %v3778, 6
      %v3897 = vsel %vm3862, %v3895, %v3896
      %v3898 = vrot.slane %v3779, 6
      %v3899 = vrot.slane %v3898, 4
      %v3900 = vrot.slane %v3780, 6
      %v3901 = vsel %vm3862, %v3899, %v3900
      %v3902 = vrot.slane %v3900, 4
      %v3903 = vrot.slane %v3781, 6
      %v3904 = vsel %vm3862, %v3902, %v3903
      %v3905 = vrot.slane %v3782, 6
      %v3906 = vrot.slane %v3905, 4
      %v3907 = vrot.slane %v3783, 6
      %v3908 = vsel %vm3862, %v3906, %v3907
      %v3909 = vrot.slane %v3907, 4
      %v3910 = vrot.slane %v3784, 6
      %v3911 = vsel %vm3862, %v3909, %v3910
      %v3912 = vrot.slane %v3785, 6
      %v3913 = vrot.slane %v3912, 4
      %v3914 = vrot.slane %v3786, 6
      %v3915 = vsel %vm3862, %v3913, %v3914
      %v3916 = vrot.slane %v3914, 4
      %v3917 = vrot.slane %v3787, 6
      %v3918 = vsel %vm3862, %v3916, %v3917
      %v3919 = vrot.slane %v3788, 6
      %v3920 = vrot.slane %v3919, 4
      %v3921 = vrot.slane %v3789, 6
      %v3922 = vsel %vm3862, %v3920, %v3921
      %v3923 = vrot.slane %v3921, 4
      %v3924 = vrot.slane %v3790, 6
      %v3925 = vsel %vm3862, %v3923, %v3924
      %v3926 = vrot.slane %v3791, 6
      %v3927 = vrot.slane %v3926, 4
      %v3928 = vrot.slane %v3792, 6
      %v3929 = vsel %vm3862, %v3927, %v3928
      %v3930 = vrot.slane %v3928, 4
      %v3931 = vrot.slane %v3793, 6
      %v3932 = vsel %vm3862, %v3930, %v3931
      %v3933 = vrot.slane %v3794, 6
      %v3934 = vrot.slane %v3933, 4
      %v3935 = vrot.slane %v3795, 6
      %v3936 = vsel %vm3862, %v3934, %v3935
      %v3937 = vrot.slane %v3935, 4
      %v3938 = vrot.slane %v3796, 6
      %v3939 = vsel %vm3862, %v3937, %v3938
      %v3940 = vrot.slane %v3797, 6
      %v3941 = vrot.slane %v3940, 4
      %v3942 = vrot.slane %v3798, 6
      %v3943 = vsel %vm3862, %v3941, %v3942
      %v3944 = vrot.slane %v3942, 4
      %v3945 = vrot.slane %v3799, 6
      %v3946 = vsel %vm3862, %v3944, %v3945
      %v3947 = vrot.slane %v3800, 6
      %v3948 = vrot.slane %v3947, 4
      %v3949 = vrot.slane %v3801, 6
      %v3950 = vsel %vm3862, %v3948, %v3949
      %v3951 = vrot.slane %v3949, 4
      %v3952 = vrot.slane %v3802, 6
      %v3953 = vsel %vm3862, %v3951, %v3952
      %v3954 = vrot.slane %v3803, 6
      %v3955 = vrot.slane %v3954, 4
      %v3956 = vrot.slane %v3804, 6
      %v3957 = vsel %vm3862, %v3955, %v3956
      %v3958 = vrot.slane %v3956, 4
      %v3959 = vrot.slane %v3805, 6
      %v3960 = vsel %vm3862, %v3958, %v3959
      %v3961 = vrot.slane %v3806, 6
      %v3962 = vrot.slane %v3961, 4
      %v3963 = vrot.slane %v3807, 6
      %v3964 = vsel %vm3862, %v3962, %v3963
      %v3965 = vrot.slane %v3963, 4
      %v3966 = vrot.slane %v3808, 6
      %v3967 = vsel %vm3862, %v3965, %v3966
      %v3968 = vrot.slane %v3809, 6
      %v3969 = vrot.slane %v3968, 4
      %v3970 = vrot.slane %v3810, 6
      %v3971 = vsel %vm3862, %v3969, %v3970
      %v3972 = vrot.slane %v3970, 4
      %v3973 = vrot.slane %v3811, 6
      %v3974 = vsel %vm3862, %v3972, %v3973
      %v3975 = vld [vmem:[%s3763 + $0x10] sm:$0xf]
      %v3976 = vld [vmem:[%s3763 + $0x14] sm:$0xf]
      %v3977 = vld [vmem:[%s3763 + $0x34] sm:$0xf]
      %v3978 = vld [vmem:[%s3763 + $0x38] sm:$0xf]
      %v3979 = vld [vmem:[%s3763 + $0x58] sm:$0xf]
      %v3980 = vld [vmem:[%s3763 + $0x5c] sm:$0xf]
      %v3981 = vld [vmem:[%s3763 + $0x7c] sm:$0xf]
      %v3982 = vld [vmem:[%s3763 + $0x80] sm:$0xf]
      %v3983 = vld [vmem:[%s3763 + $0xa0] sm:$0xf]
      %v3984 = vld [vmem:[%s3763 + $0xa4] sm:$0xf]
      %v3985 = vld [vmem:[%s3763 + $0xc4] sm:$0xf]
      %v3986 = vld [vmem:[%s3763 + $0xc8] sm:$0xf]
      %v3987 = vld [vmem:[%s3763 + $0xe8] sm:$0xf]
      %v3988 = vld [vmem:[%s3763 + $0xec] sm:$0xf]
      %v3989 = vld [vmem:[%s3763 + $0x10c] sm:$0xf]
      %v3990 = vld [vmem:[%s3763 + $0x110] sm:$0xf]
      %v3991 = vld [vmem:[%s3763 + $0x130] sm:$0xf]
      %v3992 = vld [vmem:[%s3763 + $0x134] sm:$0xf]
      %v3993 = vld [vmem:[%s3763 + $0x154] sm:$0xf]
      %v3994 = vld [vmem:[%s3763 + $0x158] sm:$0xf]
      %v3995 = vld [vmem:[%s3763 + $0x178] sm:$0xf]
      %v3996 = vld [vmem:[%s3763 + $0x17c] sm:$0xf]
      %v3997 = vld [vmem:[%s3763 + $0x19c] sm:$0xf]
      %v3998 = vld [vmem:[%s3763 + $0x1a0] sm:$0xf]
      %v3999 = vld [vmem:[%s3763 + $0x1c0] sm:$0xf]
      %v4000 = vld [vmem:[%s3763 + $0x1c4] sm:$0xf]
      %v4001 = vld [vmem:[%s3763 + $0x1e4] sm:$0xf]
      %v4002 = vld [vmem:[%s3763 + $0x1e8] sm:$0xf]
      %v4003 = vld [vmem:[%s3763 + $0x208] sm:$0xf]
      %v4004 = vld [vmem:[%s3763 + $0x20c] sm:$0xf]
      %v4005 = vld [vmem:[%s3763 + $0x22c] sm:$0xf]
      %v4006 = vld [vmem:[%s3763 + $0x230] sm:$0xf]
      %v4007 = vld [vmem:[%s3763 + $0x14] sm:$0xc]
      %v4008 = vld [vmem:[%s3763 + $0x18] sm:$0xf]
      %v4009 = vld [vmem:[%s3763 + $0x1c] sm:$0x3]
      %v4010 = vld [vmem:[%s3763 + $0x38] sm:$0xc]
      %v4011 = vld [vmem:[%s3763 + $0x3c] sm:$0xf]
      %v4012 = vld [vmem:[%s3763 + $0x40] sm:$0x3]
      %v4013 = vld [vmem:[%s3763 + $0x5c] sm:$0xc]
      %v4014 = vld [vmem:[%s3763 + $0x60] sm:$0xf]
      %v4015 = vld [vmem:[%s3763 + $0x64] sm:$0x3]
      %v4016 = vld [vmem:[%s3763 + $0x80] sm:$0xc]
      %v4017 = vld [vmem:[%s3763 + $0x84] sm:$0xf]
      %v4018 = vld [vmem:[%s3763 + $0x88] sm:$0x3]
      %v4019 = vld [vmem:[%s3763 + $0xa4] sm:$0xc]
      %v4020 = vld [vmem:[%s3763 + $0xa8] sm:$0xf]
      %v4021 = vld [vmem:[%s3763 + $0xac] sm:$0x3]
      %v4022 = vld [vmem:[%s3763 + $0xc8] sm:$0xc]
      %v4023 = vld [vmem:[%s3763 + $0xcc] sm:$0xf]
      %v4024 = vld [vmem:[%s3763 + $0xd0] sm:$0x3]
      %v4025 = vld [vmem:[%s3763 + $0xec] sm:$0xc]
      %v4026 = vld [vmem:[%s3763 + $0xf0] sm:$0xf]
      %v4027 = vld [vmem:[%s3763 + $0xf4] sm:$0x3]
      %v4028 = vld [vmem:[%s3763 + $0x110] sm:$0xc]
      %v4029 = vld [vmem:[%s3763 + $0x114] sm:$0xf]
      %v4030 = vld [vmem:[%s3763 + $0x118] sm:$0x3]
      %v4031 = vld [vmem:[%s3763 + $0x134] sm:$0xc]
      %v4032 = vld [vmem:[%s3763 + $0x138] sm:$0xf]
      %v4033 = vld [vmem:[%s3763 + $0x13c] sm:$0x3]
      %v4034 = vld [vmem:[%s3763 + $0x158] sm:$0xc]
      %v4035 = vld [vmem:[%s3763 + $0x15c] sm:$0xf]
      %v4036 = vld [vmem:[%s3763 + $0x160] sm:$0x3]
      %v4037 = vld [vmem:[%s3763 + $0x17c] sm:$0xc]
      %v4038 = vld [vmem:[%s3763 + $0x180] sm:$0xf]
      %v4039 = vld [vmem:[%s3763 + $0x184] sm:$0x3]
      %v4040 = vld [vmem:[%s3763 + $0x1a0] sm:$0xc]
      %v4041 = vld [vmem:[%s3763 + $0x1a4] sm:$0xf]
      %v4042 = vld [vmem:[%s3763 + $0x1a8] sm:$0x3]
      %v4043 = vld [vmem:[%s3763 + $0x1c4] sm:$0xc]
      %v4044 = vld [vmem:[%s3763 + $0x1c8] sm:$0xf]
      %v4045 = vld [vmem:[%s3763 + $0x1cc] sm:$0x3]
      %v4046 = vld [vmem:[%s3763 + $0x1e8] sm:$0xc]
      %v4047 = vld [vmem:[%s3763 + $0x1ec] sm:$0xf]
      %v4048 = vld [vmem:[%s3763 + $0x1f0] sm:$0x3]
      %v4049 = vld [vmem:[%s3763 + $0x20c] sm:$0xc]
      %v4050 = vld [vmem:[%s3763 + $0x210] sm:$0xf]
      %v4051 = vld [vmem:[%s3763 + $0x214] sm:$0x3]
      %v4052 = vld [vmem:[%s3763 + $0x230] sm:$0xc]
      %v4053 = vld [vmem:[%s3763 + $0x234] sm:$0xf]
      %v4054 = vld [vmem:[%s3763 + $0x238] sm:$0x3]
      %v4103 = vrot.slane %v4007, 6
      %v4104 = vrot.slane %v4103, 4
      %v4105 = vrot.slane %v4008, 6
      %v4106 = vsel %vm3862, %v4104, %v4105
      %v4107 = vrot.slane %v4105, 4
      %v4108 = vrot.slane %v4009, 6
      %v4109 = vsel %vm3862, %v4107, %v4108
      %v4110 = vrot.slane %v4010, 6
      %v4111 = vrot.slane %v4110, 4
      %v4112 = vrot.slane %v4011, 6
      %v4113 = vsel %vm3862, %v4111, %v4112
      %v4114 = vrot.slane %v4112, 4
      %v4115 = vrot.slane %v4012, 6
      %v4116 = vsel %vm3862, %v4114, %v4115
      %v4117 = vrot.slane %v4013, 6
      %v4118 = vrot.slane %v4117, 4
      %v4119 = vrot.slane %v4014, 6
      %v4120 = vsel %vm3862, %v4118, %v4119
      %v4121 = vrot.slane %v4119, 4
      %v4122 = vrot.slane %v4015, 6
      %v4123 = vsel %vm3862, %v4121, %v4122
      %v4124 = vrot.slane %v4016, 6
      %v4125 = vrot.slane %v4124, 4
      %v4126 = vrot.slane %v4017, 6
      %v4127 = vsel %vm3862, %v4125, %v4126
      %v4128 = vrot.slane %v4126, 4
      %v4129 = vrot.slane %v4018, 6
      %v4130 = vsel %vm3862, %v4128, %v4129
      %v4131 = vrot.slane %v4019, 6
      %v4132 = vrot.slane %v4131, 4
      %v4133 = vrot.slane %v4020, 6
      %v4134 = vsel %vm3862, %v4132, %v4133
      %v4135 = vrot.slane %v4133, 4
      %v4136 = vrot.slane %v4021, 6
      %v4137 = vsel %vm3862, %v4135, %v4136
      %v4138 = vrot.slane %v4022, 6
      %v4139 = vrot.slane %v4138, 4
      %v4140 = vrot.slane %v4023, 6
      %v4141 = vsel %vm3862, %v4139, %v4140
      %v4142 = vrot.slane %v4140, 4
      %v4143 = vrot.slane %v4024, 6
      %v4144 = vsel %vm3862, %v4142, %v4143
      %v4145 = vrot.slane %v4025, 6
      %v4146 = vrot.slane %v4145, 4
      %v4147 = vrot.slane %v4026, 6
      %v4148 = vsel %vm3862, %v4146, %v4147
      %v4149 = vrot.slane %v4147, 4
      %v4150 = vrot.slane %v4027, 6
      %v4151 = vsel %vm3862, %v4149, %v4150
      %v4152 = vrot.slane %v4028, 6
      %v4153 = vrot.slane %v4152, 4
      %v4154 = vrot.slane %v4029, 6
      %v4155 = vsel %vm3862, %v4153, %v4154
      %v4156 = vrot.slane %v4154, 4
      %v4157 = vrot.slane %v4030, 6
      %v4158 = vsel %vm3862, %v4156, %v4157
      %v4159 = vrot.slane %v4031, 6
      %v4160 = vrot.slane %v4159, 4
      %v4161 = vrot.slane %v4032, 6
      %v4162 = vsel %vm3862, %v4160, %v4161
      %v4163 = vrot.slane %v4161, 4
      %v4164 = vrot.slane %v4033, 6
      %v4165 = vsel %vm3862, %v4163, %v4164
      %v4166 = vrot.slane %v4034, 6
      %v4167 = vrot.slane %v4166, 4
      %v4168 = vrot.slane %v4035, 6
      %v4169 = vsel %vm3862, %v4167, %v4168
      %v4170 = vrot.slane %v4168, 4
      %v4171 = vrot.slane %v4036, 6
      %v4172 = vsel %vm3862, %v4170, %v4171
      %v4173 = vrot.slane %v4037, 6
      %v4174 = vrot.slane %v4173, 4
      %v4175 = vrot.slane %v4038, 6
      %v4176 = vsel %vm3862, %v4174, %v4175
      %v4177 = vrot.slane %v4175, 4
      %v4178 = vrot.slane %v4039, 6
      %v4179 = vsel %vm3862, %v4177, %v4178
      %v4180 = vrot.slane %v4040, 6
      %v4181 = vrot.slane %v4180, 4
      %v4182 = vrot.slane %v4041, 6
      %v4183 = vsel %vm3862, %v4181, %v4182
      %v4184 = vrot.slane %v4182, 4
      %v4185 = vrot.slane %v4042, 6
      %v4186 = vsel %vm3862, %v4184, %v4185
      %v4187 = vrot.slane %v4043, 6
      %v4188 = vrot.slane %v4187, 4
      %v4189 = vrot.slane %v4044, 6
      %v4190 = vsel %vm3862, %v4188, %v4189
      %v4191 = vrot.slane %v4189, 4
      %v4192 = vrot.slane %v4045, 6
      %v4193 = vsel %vm3862, %v4191, %v4192
      %v4194 = vrot.slane %v4046, 6
      %v4195 = vrot.slane %v4194, 4
      %v4196 = vrot.slane %v4047, 6
      %v4197 = vsel %vm3862, %v4195, %v4196
      %v4198 = vrot.slane %v4196, 4
      %v4199 = vrot.slane %v4048, 6
      %v4200 = vsel %vm3862, %v4198, %v4199
      %v4201 = vrot.slane %v4049, 6
      %v4202 = vrot.slane %v4201, 4
      %v4203 = vrot.slane %v4050, 6
      %v4204 = vsel %vm3862, %v4202, %v4203
      %v4205 = vrot.slane %v4203, 4
      %v4206 = vrot.slane %v4051, 6
      %v4207 = vsel %vm3862, %v4205, %v4206
      %v4208 = vrot.slane %v4052, 6
      %v4209 = vrot.slane %v4208, 4
      %v4210 = vrot.slane %v4053, 6
      %v4211 = vsel %vm3862, %v4209, %v4210
      %v4212 = vrot.slane %v4210, 4
      %v4213 = vrot.slane %v4054, 6
      %v4214 = vsel %vm3862, %v4212, %v4213
      %v4215 = vld [vmem:[%s1043 + $0x8] sm:$0xc]
      %v4216 = vld [vmem:[%s1043 + $0xc] sm:$0xf]
      %v4217 = vld [vmem:[%s1043 + $0x10] sm:$0x3]
      %v4218 = vld [vmem:[%s1043 + $0x2c] sm:$0xc]
      %v4219 = vld [vmem:[%s1043 + $0x30] sm:$0xf]
      %v4220 = vld [vmem:[%s1043 + $0x34] sm:$0x3]
      %v4221 = vld [vmem:[%s1043 + $0x50] sm:$0xc]
      %v4222 = vld [vmem:[%s1043 + $0x54] sm:$0xf]
      %v4223 = vld [vmem:[%s1043 + $0x58] sm:$0x3]
      %v4224 = vld [vmem:[%s1043 + $0x74] sm:$0xc]
      %v4225 = vld [vmem:[%s1043 + $0x78] sm:$0xf]
      %v4226 = vld [vmem:[%s1043 + $0x7c] sm:$0x3]
      %v4227 = vld [vmem:[%s1043 + $0x98] sm:$0xc]
      %v4228 = vld [vmem:[%s1043 + $0x9c] sm:$0xf]
      %v4229 = vld [vmem:[%s1043 + $0xa0] sm:$0x3]
      %v4230 = vld [vmem:[%s1043 + $0xbc] sm:$0xc]
      %v4231 = vld [vmem:[%s1043 + $0xc0] sm:$0xf]
      %v4232 = vld [vmem:[%s1043 + $0xc4] sm:$0x3]
      %v4233 = vld [vmem:[%s1043 + $0xe0] sm:$0xc]
      %v4234 = vld [vmem:[%s1043 + $0xe4] sm:$0xf]
      %v4235 = vld [vmem:[%s1043 + $0xe8] sm:$0x3]
      %v4236 = vld [vmem:[%s1043 + $0x104] sm:$0xc]
      %v4237 = vld [vmem:[%s1043 + $0x108] sm:$0xf]
      %v4238 = vld [vmem:[%s1043 + $0x10c] sm:$0x3]
      %v4239 = vld [vmem:[%s1043 + $0x128] sm:$0xc]
      %v4240 = vld [vmem:[%s1043 + $0x12c] sm:$0xf]
      %v4241 = vld [vmem:[%s1043 + $0x130] sm:$0x3]
      %v4242 = vld [vmem:[%s1043 + $0x14c] sm:$0xc]
      %v4243 = vld [vmem:[%s1043 + $0x150] sm:$0xf]
      %v4244 = vld [vmem:[%s1043 + $0x154] sm:$0x3]
      %v4245 = vld [vmem:[%s1043 + $0x170] sm:$0xc]
      %v4246 = vld [vmem:[%s1043 + $0x174] sm:$0xf]
      %v4247 = vld [vmem:[%s1043 + $0x178] sm:$0x3]
      %v4248 = vld [vmem:[%s1043 + $0x194] sm:$0xc]
      %v4249 = vld [vmem:[%s1043 + $0x198] sm:$0xf]
      %v4250 = vld [vmem:[%s1043 + $0x19c] sm:$0x3]
      %v4251 = vld [vmem:[%s1043 + $0x1b8] sm:$0xc]
      %v4252 = vld [vmem:[%s1043 + $0x1bc] sm:$0xf]
      %v4253 = vld [vmem:[%s1043 + $0x1c0] sm:$0x3]
      %v4254 = vld [vmem:[%s1043 + $0x1dc] sm:$0xc]
      %v4255 = vld [vmem:[%s1043 + $0x1e0] sm:$0xf]
      %v4256 = vld [vmem:[%s1043 + $0x1e4] sm:$0x3]
      %v4257 = vld [vmem:[%s1043 + $0x200] sm:$0xc]
      %v4258 = vld [vmem:[%s1043 + $0x204] sm:$0xf]
      %v4259 = vld [vmem:[%s1043 + $0x208] sm:$0x3]
      %v4260 = vld [vmem:[%s1043 + $0x224] sm:$0xc]
      %v4261 = vld [vmem:[%s1043 + $0x228] sm:$0xf]
      %v4262 = vld [vmem:[%s1043 + $0x22c] sm:$0x3]
      %v4311 = vrot.slane %v4215, 6
      %v4312 = vrot.slane %v4311, 4
      %v4313 = vrot.slane %v4216, 6
      %v4314 = vsel %vm3862, %v4312, %v4313
      %v4315 = vrot.slane %v4313, 4
      %v4316 = vrot.slane %v4217, 6
      %v4317 = vsel %vm3862, %v4315, %v4316
      %v4318 = vrot.slane %v4218, 6
      %v4319 = vrot.slane %v4318, 4
      %v4320 = vrot.slane %v4219, 6
      %v4321 = vsel %vm3862, %v4319, %v4320
      %v4322 = vrot.slane %v4320, 4
      %v4323 = vrot.slane %v4220, 6
      %v4324 = vsel %vm3862, %v4322, %v4323
      %v4325 = vrot.slane %v4221, 6
      %v4326 = vrot.slane %v4325, 4
      %v4327 = vrot.slane %v4222, 6
      %v4328 = vsel %vm3862, %v4326, %v4327
      %v4329 = vrot.slane %v4327, 4
      %v4330 = vrot.slane %v4223, 6
      %v4331 = vsel %vm3862, %v4329, %v4330
      %v4332 = vrot.slane %v4224, 6
      %v4333 = vrot.slane %v4332, 4
      %v4334 = vrot.slane %v4225, 6
      %v4335 = vsel %vm3862, %v4333, %v4334
      %v4336 = vrot.slane %v4334, 4
      %v4337 = vrot.slane %v4226, 6
      %v4338 = vsel %vm3862, %v4336, %v4337
      %v4339 = vrot.slane %v4227, 6
      %v4340 = vrot.slane %v4339, 4
      %v4341 = vrot.slane %v4228, 6
      %v4342 = vsel %vm3862, %v4340, %v4341
      %v4343 = vrot.slane %v4341, 4
      %v4344 = vrot.slane %v4229, 6
      %v4345 = vsel %vm3862, %v4343, %v4344
      %v4346 = vrot.slane %v4230, 6
      %v4347 = vrot.slane %v4346, 4
      %v4348 = vrot.slane %v4231, 6
      %v4349 = vsel %vm3862, %v4347, %v4348
      %v4350 = vrot.slane %v4348, 4
      %v4351 = vrot.slane %v4232, 6
      %v4352 = vsel %vm3862, %v4350, %v4351
      %v4353 = vrot.slane %v4233, 6
      %v4354 = vrot.slane %v4353, 4
      %v4355 = vrot.slane %v4234, 6
      %v4356 = vsel %vm3862, %v4354, %v4355
      %v4357 = vrot.slane %v4355, 4
      %v4358 = vrot.slane %v4235, 6
      %v4359 = vsel %vm3862, %v4357, %v4358
      %v4360 = vrot.slane %v4236, 6
      %v4361 = vrot.slane %v4360, 4
      %v4362 = vrot.slane %v4237, 6
      %v4363 = vsel %vm3862, %v4361, %v4362
      %v4364 = vrot.slane %v4362, 4
      %v4365 = vrot.slane %v4238, 6
      %v4366 = vsel %vm3862, %v4364, %v4365
      %v4367 = vrot.slane %v4239, 6
      %v4368 = vrot.slane %v4367, 4
      %v4369 = vrot.slane %v4240, 6
      %v4370 = vsel %vm3862, %v4368, %v4369
      %v4371 = vrot.slane %v4369, 4
      %v4372 = vrot.slane %v4241, 6
      %v4373 = vsel %vm3862, %v4371, %v4372
      %v4374 = vrot.slane %v4242, 6
      %v4375 = vrot.slane %v4374, 4
      %v4376 = vrot.slane %v4243, 6
      %v4377 = vsel %vm3862, %v4375, %v4376
      %v4378 = vrot.slane %v4376, 4
      %v4379 = vrot.slane %v4244, 6
      %v4380 = vsel %vm3862, %v4378, %v4379
      %v4381 = vrot.slane %v4245, 6
      %v4382 = vrot.slane %v4381, 4
      %v4383 = vrot.slane %v4246, 6
      %v4384 = vsel %vm3862, %v4382, %v4383
      %v4385 = vrot.slane %v4383, 4
      %v4386 = vrot.slane %v4247, 6
      %v4387 = vsel %vm3862, %v4385, %v4386
      %v4388 = vrot.slane %v4248, 6
      %v4389 = vrot.slane %v4388, 4
      %v4390 = vrot.slane %v4249, 6
      %v4391 = vsel %vm3862, %v4389, %v4390
      %v4392 = vrot.slane %v4390, 4
      %v4393 = vrot.slane %v4250, 6
      %v4394 = vsel %vm3862, %v4392, %v4393
      %v4395 = vrot.slane %v4251, 6
      %v4396 = vrot.slane %v4395, 4
      %v4397 = vrot.slane %v4252, 6
      %v4398 = vsel %vm3862, %v4396, %v4397
      %v4399 = vrot.slane %v4397, 4
      %v4400 = vrot.slane %v4253, 6
      %v4401 = vsel %vm3862, %v4399, %v4400
      %v4402 = vrot.slane %v4254, 6
      %v4403 = vrot.slane %v4402, 4
      %v4404 = vrot.slane %v4255, 6
      %v4405 = vsel %vm3862, %v4403, %v4404
      %v4406 = vrot.slane %v4404, 4
      %v4407 = vrot.slane %v4256, 6
      %v4408 = vsel %vm3862, %v4406, %v4407
      %v4409 = vrot.slane %v4257, 6
      %v4410 = vrot.slane %v4409, 4
      %v4411 = vrot.slane %v4258, 6
      %v4412 = vsel %vm3862, %v4410, %v4411
      %v4413 = vrot.slane %v4411, 4
      %v4414 = vrot.slane %v4259, 6
      %v4415 = vsel %vm3862, %v4413, %v4414
      %v4416 = vrot.slane %v4260, 6
      %v4417 = vrot.slane %v4416, 4
      %v4418 = vrot.slane %v4261, 6
      %v4419 = vsel %vm3862, %v4417, %v4418
      %v4420 = vrot.slane %v4418, 4
      %v4421 = vrot.slane %v4262, 6
      %v4422 = vsel %vm3862, %v4420, %v4421
      %v4423 = vld [vmem:[%s1043 + $0x14] sm:$0xc]
      %v4424 = vld [vmem:[%s1043 + $0x18] sm:$0xf]
      %v4425 = vld [vmem:[%s1043 + $0x1c] sm:$0x3]
      %v4426 = vld [vmem:[%s1043 + $0x38] sm:$0xc]
      %v4427 = vld [vmem:[%s1043 + $0x3c] sm:$0xf]
      %v4428 = vld [vmem:[%s1043 + $0x40] sm:$0x3]
      %v4429 = vld [vmem:[%s1043 + $0x5c] sm:$0xc]
      %v4430 = vld [vmem:[%s1043 + $0x60] sm:$0xf]
      %v4431 = vld [vmem:[%s1043 + $0x64] sm:$0x3]
      %v4432 = vld [vmem:[%s1043 + $0x80] sm:$0xc]
      %v4433 = vld [vmem:[%s1043 + $0x84] sm:$0xf]
      %v4434 = vld [vmem:[%s1043 + $0x88] sm:$0x3]
      %v4435 = vld [vmem:[%s1043 + $0xa4] sm:$0xc]
      %v4436 = vld [vmem:[%s1043 + $0xa8] sm:$0xf]
      %v4437 = vld [vmem:[%s1043 + $0xac] sm:$0x3]
      %v4438 = vld [vmem:[%s1043 + $0xc8] sm:$0xc]
      %v4439 = vld [vmem:[%s1043 + $0xcc] sm:$0xf]
      %v4440 = vld [vmem:[%s1043 + $0xd0] sm:$0x3]
      %v4441 = vld [vmem:[%s1043 + $0xec] sm:$0xc]
      %v4442 = vld [vmem:[%s1043 + $0xf0] sm:$0xf]
      %v4443 = vld [vmem:[%s1043 + $0xf4] sm:$0x3]
      %v4444 = vld [vmem:[%s1043 + $0x110] sm:$0xc]
      %v4445 = vld [vmem:[%s1043 + $0x114] sm:$0xf]
      %v4446 = vld [vmem:[%s1043 + $0x118] sm:$0x3]
      %v4447 = vld [vmem:[%s1043 + $0x134] sm:$0xc]
      %v4448 = vld [vmem:[%s1043 + $0x138] sm:$0xf]
      %v4449 = vld [vmem:[%s1043 + $0x13c] sm:$0x3]
      %v4450 = vld [vmem:[%s1043 + $0x158] sm:$0xc]
      %v4451 = vld [vmem:[%s1043 + $0x15c] sm:$0xf]
      %v4452 = vld [vmem:[%s1043 + $0x160] sm:$0x3]
      %v4453 = vld [vmem:[%s1043 + $0x17c] sm:$0xc]
      %v4454 = vld [vmem:[%s1043 + $0x180] sm:$0xf]
      %v4455 = vld [vmem:[%s1043 + $0x184] sm:$0x3]
      %v4456 = vld [vmem:[%s1043 + $0x1a0] sm:$0xc]
      %v4457 = vld [vmem:[%s1043 + $0x1a4] sm:$0xf]
      %v4458 = vld [vmem:[%s1043 + $0x1a8] sm:$0x3]
      %v4459 = vld [vmem:[%s1043 + $0x1c4] sm:$0xc]
      %v4460 = vld [vmem:[%s1043 + $0x1c8] sm:$0xf]
      %v4461 = vld [vmem:[%s1043 + $0x1cc] sm:$0x3]
      %v4462 = vld [vmem:[%s1043 + $0x1e8] sm:$0xc]
      %v4463 = vld [vmem:[%s1043 + $0x1ec] sm:$0xf]
      %v4464 = vld [vmem:[%s1043 + $0x1f0] sm:$0x3]
      %v4465 = vld [vmem:[%s1043 + $0x20c] sm:$0xc]
      %v4466 = vld [vmem:[%s1043 + $0x210] sm:$0xf]
      %v4467 = vld [vmem:[%s1043 + $0x214] sm:$0x3]
      %v4468 = vld [vmem:[%s1043 + $0x230] sm:$0xc]
      %v4469 = vld [vmem:[%s1043 + $0x234] sm:$0xf]
      %v4470 = vld [vmem:[%s1043 + $0x238] sm:$0x3]
      %v4519 = vrot.slane %v4423, 6
      %v4520 = vrot.slane %v4519, 4
      %v4521 = vrot.slane %v4424, 6
      %v4522 = vsel %vm3862, %v4520, %v4521
      %v4523 = vrot.slane %v4521, 4
      %v4524 = vrot.slane %v4425, 6
      %v4525 = vsel %vm3862, %v4523, %v4524
      %v4526 = vrot.slane %v4426, 6
      %v4527 = vrot.slane %v4526, 4
      %v4528 = vrot.slane %v4427, 6
      %v4529 = vsel %vm3862, %v4527, %v4528
      %v4530 = vrot.slane %v4528, 4
      %v4531 = vrot.slane %v4428, 6
      %v4532 = vsel %vm3862, %v4530, %v4531
      %v4533 = vrot.slane %v4429, 6
      %v4534 = vrot.slane %v4533, 4
      %v4535 = vrot.slane %v4430, 6
      %v4536 = vsel %vm3862, %v4534, %v4535
      %v4537 = vrot.slane %v4535, 4
      %v4538 = vrot.slane %v4431, 6
      %v4539 = vsel %vm3862, %v4537, %v4538
      %v4540 = vrot.slane %v4432, 6
      %v4541 = vrot.slane %v4540, 4
      %v4542 = vrot.slane %v4433, 6
      %v4543 = vsel %vm3862, %v4541, %v4542
      %v4544 = vrot.slane %v4542, 4
      %v4545 = vrot.slane %v4434, 6
      %v4546 = vsel %vm3862, %v4544, %v4545
      %v4547 = vrot.slane %v4435, 6
      %v4548 = vrot.slane %v4547, 4
      %v4549 = vrot.slane %v4436, 6
      %v4550 = vsel %vm3862, %v4548, %v4549
      %v4551 = vrot.slane %v4549, 4
      %v4552 = vrot.slane %v4437, 6
      %v4553 = vsel %vm3862, %v4551, %v4552
      %v4554 = vrot.slane %v4438, 6
      %v4555 = vrot.slane %v4554, 4
      %v4556 = vrot.slane %v4439, 6
      %v4557 = vsel %vm3862, %v4555, %v4556
      %v4558 = vrot.slane %v4556, 4
      %v4559 = vrot.slane %v4440, 6
      %v4560 = vsel %vm3862, %v4558, %v4559
      %v4561 = vrot.slane %v4441, 6
      %v4562 = vrot.slane %v4561, 4
      %v4563 = vrot.slane %v4442, 6
      %v4564 = vsel %vm3862, %v4562, %v4563
      %v4565 = vrot.slane %v4563, 4
      %v4566 = vrot.slane %v4443, 6
      %v4567 = vsel %vm3862, %v4565, %v4566
      %v4568 = vrot.slane %v4444, 6
      %v4569 = vrot.slane %v4568, 4
      %v4570 = vrot.slane %v4445, 6
      %v4571 = vsel %vm3862, %v4569, %v4570
      %v4572 = vrot.slane %v4570, 4
      %v4573 = vrot.slane %v4446, 6
      %v4574 = vsel %vm3862, %v4572, %v4573
      %v4575 = vrot.slane %v4447, 6
      %v4576 = vrot.slane %v4575, 4
      %v4577 = vrot.slane %v4448, 6
      %v4578 = vsel %vm3862, %v4576, %v4577
      %v4579 = vrot.slane %v4577, 4
      %v4580 = vrot.slane %v4449, 6
      %v4581 = vsel %vm3862, %v4579, %v4580
      %v4582 = vrot.slane %v4450, 6
      %v4583 = vrot.slane %v4582, 4
      %v4584 = vrot.slane %v4451, 6
      %v4585 = vsel %vm3862, %v4583, %v4584
      %v4586 = vrot.slane %v4584, 4
      %v4587 = vrot.slane %v4452, 6
      %v4588 = vsel %vm3862, %v4586, %v4587
      %v4589 = vrot.slane %v4453, 6
      %v4590 = vrot.slane %v4589, 4
      %v4591 = vrot.slane %v4454, 6
      %v4592 = vsel %vm3862, %v4590, %v4591
      %v4593 = vrot.slane %v4591, 4
      %v4594 = vrot.slane %v4455, 6
      %v4595 = vsel %vm3862, %v4593, %v4594
      %v4596 = vrot.slane %v4456, 6
      %v4597 = vrot.slane %v4596, 4
      %v4598 = vrot.slane %v4457, 6
      %v4599 = vsel %vm3862, %v4597, %v4598
      %v4600 = vrot.slane %v4598, 4
      %v4601 = vrot.slane %v4458, 6
      %v4602 = vsel %vm3862, %v4600, %v4601
      %v4603 = vrot.slane %v4459, 6
      %v4604 = vrot.slane %v4603, 4
      %v4605 = vrot.slane %v4460, 6
      %v4606 = vsel %vm3862, %v4604, %v4605
      %v4607 = vrot.slane %v4605, 4
      %v4608 = vrot.slane %v4461, 6
      %v4609 = vsel %vm3862, %v4607, %v4608
      %v4610 = vrot.slane %v4462, 6
      %v4611 = vrot.slane %v4610, 4
      %v4612 = vrot.slane %v4463, 6
      %v4613 = vsel %vm3862, %v4611, %v4612
      %v4614 = vrot.slane %v4612, 4
      %v4615 = vrot.slane %v4464, 6
      %v4616 = vsel %vm3862, %v4614, %v4615
      %v4617 = vrot.slane %v4465, 6
      %v4618 = vrot.slane %v4617, 4
      %v4619 = vrot.slane %v4466, 6
      %v4620 = vsel %vm3862, %v4618, %v4619
      %v4621 = vrot.slane %v4619, 4
      %v4622 = vrot.slane %v4467, 6
      %v4623 = vsel %vm3862, %v4621, %v4622
      %v4624 = vrot.slane %v4468, 6
      %v4625 = vrot.slane %v4624, 4
      %v4626 = vrot.slane %v4469, 6
      %v4627 = vsel %vm3862, %v4625, %v4626
      %v4628 = vrot.slane %v4626, 4
      %v4629 = vrot.slane %v4470, 6
      %v4630 = vsel %vm3862, %v4628, %v4629
      %s4631 = scalar_lea.vmem [#allocation2], 1584
      %v4632 = vld [vmem:[%s4631 + $0x8] sm:$0xc]
      %v4633 = vld [vmem:[%s4631 + $0xc] sm:$0xf]
      %v4634 = vld [vmem:[%s4631 + $0x10] sm:$0x3]
      %v4635 = vld [vmem:[%s4631 + $0x2c] sm:$0xc]
      %v4636 = vld [vmem:[%s4631 + $0x30] sm:$0xf]
      %v4637 = vld [vmem:[%s4631 + $0x34] sm:$0x3]
      %v4638 = vld [vmem:[%s4631 + $0x50] sm:$0xc]
      %v4639 = vld [vmem:[%s4631 + $0x54] sm:$0xf]
      %v4640 = vld [vmem:[%s4631 + $0x58] sm:$0x3]
      %v4641 = vld [vmem:[%s4631 + $0x74] sm:$0xc]
      %v4642 = vld [vmem:[%s4631 + $0x78] sm:$0xf]
      %v4643 = vld [vmem:[%s4631 + $0x7c] sm:$0x3]
      %v4644 = vld [vmem:[%s4631 + $0x98] sm:$0xc]
      %v4645 = vld [vmem:[%s4631 + $0x9c] sm:$0xf]
      %v4646 = vld [vmem:[%s4631 + $0xa0] sm:$0x3]
      %v4647 = vld [vmem:[%s4631 + $0xbc] sm:$0xc]
      %v4648 = vld [vmem:[%s4631 + $0xc0] sm:$0xf]
      %v4649 = vld [vmem:[%s4631 + $0xc4] sm:$0x3]
      %v4650 = vld [vmem:[%s4631 + $0xe0] sm:$0xc]
      %v4651 = vld [vmem:[%s4631 + $0xe4] sm:$0xf]
      %v4652 = vld [vmem:[%s4631 + $0xe8] sm:$0x3]
      %v4653 = vld [vmem:[%s4631 + $0x104] sm:$0xc]
      %v4654 = vld [vmem:[%s4631 + $0x108] sm:$0xf]
      %v4655 = vld [vmem:[%s4631 + $0x10c] sm:$0x3]
      %v4656 = vld [vmem:[%s4631 + $0x128] sm:$0xc]
      %v4657 = vld [vmem:[%s4631 + $0x12c] sm:$0xf]
      %v4658 = vld [vmem:[%s4631 + $0x130] sm:$0x3]
      %v4659 = vld [vmem:[%s4631 + $0x14c] sm:$0xc]
      %v4660 = vld [vmem:[%s4631 + $0x150] sm:$0xf]
      %v4661 = vld [vmem:[%s4631 + $0x154] sm:$0x3]
      %v4662 = vld [vmem:[%s4631 + $0x170] sm:$0xc]
      %v4663 = vld [vmem:[%s4631 + $0x174] sm:$0xf]
      %v4664 = vld [vmem:[%s4631 + $0x178] sm:$0x3]
      %v4665 = vld [vmem:[%s4631 + $0x194] sm:$0xc]
      %v4666 = vld [vmem:[%s4631 + $0x198] sm:$0xf]
      %v4667 = vld [vmem:[%s4631 + $0x19c] sm:$0x3]
      %v4668 = vld [vmem:[%s4631 + $0x1b8] sm:$0xc]
      %v4669 = vld [vmem:[%s4631 + $0x1bc] sm:$0xf]
      %v4670 = vld [vmem:[%s4631 + $0x1c0] sm:$0x3]
      %v4671 = vld [vmem:[%s4631 + $0x1dc] sm:$0xc]
      %v4672 = vld [vmem:[%s4631 + $0x1e0] sm:$0xf]
      %v4673 = vld [vmem:[%s4631 + $0x1e4] sm:$0x3]
      %v4674 = vld [vmem:[%s4631 + $0x200] sm:$0xc]
      %v4675 = vld [vmem:[%s4631 + $0x204] sm:$0xf]
      %v4676 = vld [vmem:[%s4631 + $0x208] sm:$0x3]
      %v4677 = vld [vmem:[%s4631 + $0x224] sm:$0xc]
      %v4678 = vld [vmem:[%s4631 + $0x228] sm:$0xf]
      %v4679 = vld [vmem:[%s4631 + $0x22c] sm:$0x3]
      %v4728 = vrot.slane %v4632, 6
      %v4729 = vrot.slane %v4728, 4
      %v4730 = vrot.slane %v4633, 6
      %v4731 = vsel %vm3862, %v4729, %v4730
      %v4732 = vrot.slane %v4730, 4
      %v4733 = vrot.slane %v4634, 6
      %v4734 = vsel %vm3862, %v4732, %v4733
      %v4735 = vrot.slane %v4635, 6
      %v4736 = vrot.slane %v4735, 4
      %v4737 = vrot.slane %v4636, 6
      %v4738 = vsel %vm3862, %v4736, %v4737
      %v4739 = vrot.slane %v4737, 4
      %v4740 = vrot.slane %v4637, 6
      %v4741 = vsel %vm3862, %v4739, %v4740
      %v4742 = vrot.slane %v4638, 6
      %v4743 = vrot.slane %v4742, 4
      %v4744 = vrot.slane %v4639, 6
      %v4745 = vsel %vm3862, %v4743, %v4744
      %v4746 = vrot.slane %v4744, 4
      %v4747 = vrot.slane %v4640, 6
      %v4748 = vsel %vm3862, %v4746, %v4747
      %v4749 = vrot.slane %v4641, 6
      %v4750 = vrot.slane %v4749, 4
      %v4751 = vrot.slane %v4642, 6
      %v4752 = vsel %vm3862, %v4750, %v4751
      %v4753 = vrot.slane %v4751, 4
      %v4754 = vrot.slane %v4643, 6
      %v4755 = vsel %vm3862, %v4753, %v4754
      %v4756 = vrot.slane %v4644, 6
      %v4757 = vrot.slane %v4756, 4
      %v4758 = vrot.slane %v4645, 6
      %v4759 = vsel %vm3862, %v4757, %v4758
      %v4760 = vrot.slane %v4758, 4
      %v4761 = vrot.slane %v4646, 6
      %v4762 = vsel %vm3862, %v4760, %v4761
      %v4763 = vrot.slane %v4647, 6
      %v4764 = vrot.slane %v4763, 4
      %v4765 = vrot.slane %v4648, 6
      %v4766 = vsel %vm3862, %v4764, %v4765
      %v4767 = vrot.slane %v4765, 4
      %v4768 = vrot.slane %v4649, 6
      %v4769 = vsel %vm3862, %v4767, %v4768
      %v4770 = vrot.slane %v4650, 6
      %v4771 = vrot.slane %v4770, 4
      %v4772 = vrot.slane %v4651, 6
      %v4773 = vsel %vm3862, %v4771, %v4772
      %v4774 = vrot.slane %v4772, 4
      %v4775 = vrot.slane %v4652, 6
      %v4776 = vsel %vm3862, %v4774, %v4775
      %v4777 = vrot.slane %v4653, 6
      %v4778 = vrot.slane %v4777, 4
      %v4779 = vrot.slane %v4654, 6
      %v4780 = vsel %vm3862, %v4778, %v4779
      %v4781 = vrot.slane %v4779, 4
      %v4782 = vrot.slane %v4655, 6
      %v4783 = vsel %vm3862, %v4781, %v4782
      %v4784 = vrot.slane %v4656, 6
      %v4785 = vrot.slane %v4784, 4
      %v4786 = vrot.slane %v4657, 6
      %v4787 = vsel %vm3862, %v4785, %v4786
      %v4788 = vrot.slane %v4786, 4
      %v4789 = vrot.slane %v4658, 6
      %v4790 = vsel %vm3862, %v4788, %v4789
      %v4791 = vrot.slane %v4659, 6
      %v4792 = vrot.slane %v4791, 4
      %v4793 = vrot.slane %v4660, 6
      %v4794 = vsel %vm3862, %v4792, %v4793
      %v4795 = vrot.slane %v4793, 4
      %v4796 = vrot.slane %v4661, 6
      %v4797 = vsel %vm3862, %v4795, %v4796
      %v4798 = vrot.slane %v4662, 6
      %v4799 = vrot.slane %v4798, 4
      %v4800 = vrot.slane %v4663, 6
      %v4801 = vsel %vm3862, %v4799, %v4800
      %v4802 = vrot.slane %v4800, 4
      %v4803 = vrot.slane %v4664, 6
      %v4804 = vsel %vm3862, %v4802, %v4803
      %v4805 = vrot.slane %v4665, 6
      %v4806 = vrot.slane %v4805, 4
      %v4807 = vrot.slane %v4666, 6
      %v4808 = vsel %vm3862, %v4806, %v4807
      %v4809 = vrot.slane %v4807, 4
      %v4810 = vrot.slane %v4667, 6
      %v4811 = vsel %vm3862, %v4809, %v4810
      %v4812 = vrot.slane %v4668, 6
      %v4813 = vrot.slane %v4812, 4
      %v4814 = vrot.slane %v4669, 6
      %v4815 = vsel %vm3862, %v4813, %v4814
      %v4816 = vrot.slane %v4814, 4
      %v4817 = vrot.slane %v4670, 6
      %v4818 = vsel %vm3862, %v4816, %v4817
      %v4819 = vrot.slane %v4671, 6
      %v4820 = vrot.slane %v4819, 4
      %v4821 = vrot.slane %v4672, 6
      %v4822 = vsel %vm3862, %v4820, %v4821
      %v4823 = vrot.slane %v4821, 4
      %v4824 = vrot.slane %v4673, 6
      %v4825 = vsel %vm3862, %v4823, %v4824
      %v4826 = vrot.slane %v4674, 6
      %v4827 = vrot.slane %v4826, 4
      %v4828 = vrot.slane %v4675, 6
      %v4829 = vsel %vm3862, %v4827, %v4828
      %v4830 = vrot.slane %v4828, 4
      %v4831 = vrot.slane %v4676, 6
      %v4832 = vsel %vm3862, %v4830, %v4831
      %v4833 = vrot.slane %v4677, 6
      %v4834 = vrot.slane %v4833, 4
      %v4835 = vrot.slane %v4678, 6
      %v4836 = vsel %vm3862, %v4834, %v4835
      %v4837 = vrot.slane %v4835, 4
      %v4838 = vrot.slane %v4679, 6
      %v4839 = vsel %vm3862, %v4837, %v4838
      %v4840 = vld [vmem:[%s4631 + $0x10] sm:$0xf]
      %v4841 = vld [vmem:[%s4631 + $0x14] sm:$0xf]
      %v4842 = vld [vmem:[%s4631 + $0x34] sm:$0xf]
      %v4843 = vld [vmem:[%s4631 + $0x38] sm:$0xf]
      %v4844 = vld [vmem:[%s4631 + $0x58] sm:$0xf]
      %v4845 = vld [vmem:[%s4631 + $0x5c] sm:$0xf]
      %v4846 = vld [vmem:[%s4631 + $0x7c] sm:$0xf]
      %v4847 = vld [vmem:[%s4631 + $0x80] sm:$0xf]
      %v4848 = vld [vmem:[%s4631 + $0xa0] sm:$0xf]
      %v4849 = vld [vmem:[%s4631 + $0xa4] sm:$0xf]
      %v4850 = vld [vmem:[%s4631 + $0xc4] sm:$0xf]
      %v4851 = vld [vmem:[%s4631 + $0xc8] sm:$0xf]
      %v4852 = vld [vmem:[%s4631 + $0xe8] sm:$0xf]
      %v4853 = vld [vmem:[%s4631 + $0xec] sm:$0xf]
      %v4854 = vld [vmem:[%s4631 + $0x10c] sm:$0xf]
      %v4855 = vld [vmem:[%s4631 + $0x110] sm:$0xf]
      %v4856 = vld [vmem:[%s4631 + $0x130] sm:$0xf]
      %v4857 = vld [vmem:[%s4631 + $0x134] sm:$0xf]
      %v4858 = vld [vmem:[%s4631 + $0x154] sm:$0xf]
      %v4859 = vld [vmem:[%s4631 + $0x158] sm:$0xf]
      %v4860 = vld [vmem:[%s4631 + $0x178] sm:$0xf]
      %v4861 = vld [vmem:[%s4631 + $0x17c] sm:$0xf]
      %v4862 = vld [vmem:[%s4631 + $0x19c] sm:$0xf]
      %v4863 = vld [vmem:[%s4631 + $0x1a0] sm:$0xf]
      %v4864 = vld [vmem:[%s4631 + $0x1c0] sm:$0xf]
      %v4865 = vld [vmem:[%s4631 + $0x1c4] sm:$0xf]
      %v4866 = vld [vmem:[%s4631 + $0x1e4] sm:$0xf]
      %v4867 = vld [vmem:[%s4631 + $0x1e8] sm:$0xf]
      %v4868 = vld [vmem:[%s4631 + $0x208] sm:$0xf]
      %v4869 = vld [vmem:[%s4631 + $0x20c] sm:$0xf]
      %v4870 = vld [vmem:[%s4631 + $0x22c] sm:$0xf]
      %v4871 = vld [vmem:[%s4631 + $0x230] sm:$0xf]
      %v4872 = vld [vmem:[%s4631 + $0x14] sm:$0xc]
      %v4873 = vld [vmem:[%s4631 + $0x18] sm:$0xf]
      %v4874 = vld [vmem:[%s4631 + $0x1c] sm:$0x3]
      %v4875 = vld [vmem:[%s4631 + $0x38] sm:$0xc]
      %v4876 = vld [vmem:[%s4631 + $0x3c] sm:$0xf]
      %v4877 = vld [vmem:[%s4631 + $0x40] sm:$0x3]
      %v4878 = vld [vmem:[%s4631 + $0x5c] sm:$0xc]
      %v4879 = vld [vmem:[%s4631 + $0x60] sm:$0xf]
      %v4880 = vld [vmem:[%s4631 + $0x64] sm:$0x3]
      %v4881 = vld [vmem:[%s4631 + $0x80] sm:$0xc]
      %v4882 = vld [vmem:[%s4631 + $0x84] sm:$0xf]
      %v4883 = vld [vmem:[%s4631 + $0x88] sm:$0x3]
      %v4884 = vld [vmem:[%s4631 + $0xa4] sm:$0xc]
      %v4885 = vld [vmem:[%s4631 + $0xa8] sm:$0xf]
      %v4886 = vld [vmem:[%s4631 + $0xac] sm:$0x3]
      %v4887 = vld [vmem:[%s4631 + $0xc8] sm:$0xc]
      %v4888 = vld [vmem:[%s4631 + $0xcc] sm:$0xf]
      %v4889 = vld [vmem:[%s4631 + $0xd0] sm:$0x3]
      %v4890 = vld [vmem:[%s4631 + $0xec] sm:$0xc]
      %v4891 = vld [vmem:[%s4631 + $0xf0] sm:$0xf]
      %v4892 = vld [vmem:[%s4631 + $0xf4] sm:$0x3]
      %v4893 = vld [vmem:[%s4631 + $0x110] sm:$0xc]
      %v4894 = vld [vmem:[%s4631 + $0x114] sm:$0xf]
      %v4895 = vld [vmem:[%s4631 + $0x118] sm:$0x3]
      %v4896 = vld [vmem:[%s4631 + $0x134] sm:$0xc]
      %v4897 = vld [vmem:[%s4631 + $0x138] sm:$0xf]
      %v4898 = vld [vmem:[%s4631 + $0x13c] sm:$0x3]
      %v4899 = vld [vmem:[%s4631 + $0x158] sm:$0xc]
      %v4900 = vld [vmem:[%s4631 + $0x15c] sm:$0xf]
      %v4901 = vld [vmem:[%s4631 + $0x160] sm:$0x3]
      %v4902 = vld [vmem:[%s4631 + $0x17c] sm:$0xc]
      %v4903 = vld [vmem:[%s4631 + $0x180] sm:$0xf]
      %v4904 = vld [vmem:[%s4631 + $0x184] sm:$0x3]
      %v4905 = vld [vmem:[%s4631 + $0x1a0] sm:$0xc]
      %v4906 = vld [vmem:[%s4631 + $0x1a4] sm:$0xf]
      %v4907 = vld [vmem:[%s4631 + $0x1a8] sm:$0x3]
      %v4908 = vld [vmem:[%s4631 + $0x1c4] sm:$0xc]
      %v4909 = vld [vmem:[%s4631 + $0x1c8] sm:$0xf]
      %v4910 = vld [vmem:[%s4631 + $0x1cc] sm:$0x3]
      %v4911 = vld [vmem:[%s4631 + $0x1e8] sm:$0xc]
      %v4912 = vld [vmem:[%s4631 + $0x1ec] sm:$0xf]
      %v4913 = vld [vmem:[%s4631 + $0x1f0] sm:$0x3]
      %v4914 = vld [vmem:[%s4631 + $0x20c] sm:$0xc]
      %v4915 = vld [vmem:[%s4631 + $0x210] sm:$0xf]
      %v4916 = vld [vmem:[%s4631 + $0x214] sm:$0x3]
      %v4917 = vld [vmem:[%s4631 + $0x230] sm:$0xc]
      %v4918 = vld [vmem:[%s4631 + $0x234] sm:$0xf]
      %v4919 = vld [vmem:[%s4631 + $0x238] sm:$0x3]
      %v4968 = vrot.slane %v4872, 6
      %v4969 = vrot.slane %v4968, 4
      %v4970 = vrot.slane %v4873, 6
      %v4971 = vsel %vm3862, %v4969, %v4970
      %v4972 = vrot.slane %v4970, 4
      %v4973 = vrot.slane %v4874, 6
      %v4974 = vsel %vm3862, %v4972, %v4973
      %v4975 = vrot.slane %v4875, 6
      %v4976 = vrot.slane %v4975, 4
      %v4977 = vrot.slane %v4876, 6
      %v4978 = vsel %vm3862, %v4976, %v4977
      %v4979 = vrot.slane %v4977, 4
      %v4980 = vrot.slane %v4877, 6
      %v4981 = vsel %vm3862, %v4979, %v4980
      %v4982 = vrot.slane %v4878, 6
      %v4983 = vrot.slane %v4982, 4
      %v4984 = vrot.slane %v4879, 6
      %v4985 = vsel %vm3862, %v4983, %v4984
      %v4986 = vrot.slane %v4984, 4
      %v4987 = vrot.slane %v4880, 6
      %v4988 = vsel %vm3862, %v4986, %v4987
      %v4989 = vrot.slane %v4881, 6
      %v4990 = vrot.slane %v4989, 4
      %v4991 = vrot.slane %v4882, 6
      %v4992 = vsel %vm3862, %v4990, %v4991
      %v4993 = vrot.slane %v4991, 4
      %v4994 = vrot.slane %v4883, 6
      %v4995 = vsel %vm3862, %v4993, %v4994
      %v4996 = vrot.slane %v4884, 6
      %v4997 = vrot.slane %v4996, 4
      %v4998 = vrot.slane %v4885, 6
      %v4999 = vsel %vm3862, %v4997, %v4998
      %v5000 = vrot.slane %v4998, 4
      %v5001 = vrot.slane %v4886, 6
      %v5002 = vsel %vm3862, %v5000, %v5001
      %v5003 = vrot.slane %v4887, 6
      %v5004 = vrot.slane %v5003, 4
      %v5005 = vrot.slane %v4888, 6
      %v5006 = vsel %vm3862, %v5004, %v5005
      %v5007 = vrot.slane %v5005, 4
      %v5008 = vrot.slane %v4889, 6
      %v5009 = vsel %vm3862, %v5007, %v5008
      %v5010 = vrot.slane %v4890, 6
      %v5011 = vrot.slane %v5010, 4
      %v5012 = vrot.slane %v4891, 6
      %v5013 = vsel %vm3862, %v5011, %v5012
      %v5014 = vrot.slane %v5012, 4
      %v5015 = vrot.slane %v4892, 6
      %v5016 = vsel %vm3862, %v5014, %v5015
      %v5017 = vrot.slane %v4893, 6
      %v5018 = vrot.slane %v5017, 4
      %v5019 = vrot.slane %v4894, 6
      %v5020 = vsel %vm3862, %v5018, %v5019
      %v5021 = vrot.slane %v5019, 4
      %v5022 = vrot.slane %v4895, 6
      %v5023 = vsel %vm3862, %v5021, %v5022
      %v5024 = vrot.slane %v4896, 6
      %v5025 = vrot.slane %v5024, 4
      %v5026 = vrot.slane %v4897, 6
      %v5027 = vsel %vm3862, %v5025, %v5026
      %v5028 = vrot.slane %v5026, 4
      %v5029 = vrot.slane %v4898, 6
      %v5030 = vsel %vm3862, %v5028, %v5029
      %v5031 = vrot.slane %v4899, 6
      %v5032 = vrot.slane %v5031, 4
      %v5033 = vrot.slane %v4900, 6
      %v5034 = vsel %vm3862, %v5032, %v5033
      %v5035 = vrot.slane %v5033, 4
      %v5036 = vrot.slane %v4901, 6
      %v5037 = vsel %vm3862, %v5035, %v5036
      %v5038 = vrot.slane %v4902, 6
      %v5039 = vrot.slane %v5038, 4
      %v5040 = vrot.slane %v4903, 6
      %v5041 = vsel %vm3862, %v5039, %v5040
      %v5042 = vrot.slane %v5040, 4
      %v5043 = vrot.slane %v4904, 6
      %v5044 = vsel %vm3862, %v5042, %v5043
      %v5045 = vrot.slane %v4905, 6
      %v5046 = vrot.slane %v5045, 4
      %v5047 = vrot.slane %v4906, 6
      %v5048 = vsel %vm3862, %v5046, %v5047
      %v5049 = vrot.slane %v5047, 4
      %v5050 = vrot.slane %v4907, 6
      %v5051 = vsel %vm3862, %v5049, %v5050
      %v5052 = vrot.slane %v4908, 6
      %v5053 = vrot.slane %v5052, 4
      %v5054 = vrot.slane %v4909, 6
      %v5055 = vsel %vm3862, %v5053, %v5054
      %v5056 = vrot.slane %v5054, 4
      %v5057 = vrot.slane %v4910, 6
      %v5058 = vsel %vm3862, %v5056, %v5057
      %v5059 = vrot.slane %v4911, 6
      %v5060 = vrot.slane %v5059, 4
      %v5061 = vrot.slane %v4912, 6
      %v5062 = vsel %vm3862, %v5060, %v5061
      %v5063 = vrot.slane %v5061, 4
      %v5064 = vrot.slane %v4913, 6
      %v5065 = vsel %vm3862, %v5063, %v5064
      %v5066 = vrot.slane %v4914, 6
      %v5067 = vrot.slane %v5066, 4
      %v5068 = vrot.slane %v4915, 6
      %v5069 = vsel %vm3862, %v5067, %v5068
      %v5070 = vrot.slane %v5068, 4
      %v5071 = vrot.slane %v4916, 6
      %v5072 = vsel %vm3862, %v5070, %v5071
      %v5073 = vrot.slane %v4917, 6
      %v5074 = vrot.slane %v5073, 4
      %v5075 = vrot.slane %v4918, 6
      %v5076 = vsel %vm3862, %v5074, %v5075
      %v5077 = vrot.slane %v5075, 4
      %v5078 = vrot.slane %v4919, 6
      %v5079 = vsel %vm3862, %v5077, %v5078
      %v5080 = vunpack.c.l.b16 %v3866
      %v5081 = vunpack.c.l.b16 %v3869
      %v5082 = vunpack.c.l.b16 %v3873
      %v5083 = vunpack.c.l.b16 %v3876
      %v5084 = vunpack.c.l.b16 %v3880
      %v5085 = vunpack.c.l.b16 %v3883
      %v5086 = vunpack.c.l.b16 %v3887
      %v5087 = vunpack.c.l.b16 %v3890
      %v5088 = vunpack.c.l.b16 %v3894
      %v5089 = vunpack.c.l.b16 %v3897
      %v5090 = vunpack.c.l.b16 %v3901
      %v5091 = vunpack.c.l.b16 %v3904
      %v5092 = vunpack.c.l.b16 %v3908
      %v5093 = vunpack.c.l.b16 %v3911
      %v5094 = vunpack.c.l.b16 %v3915
      %v5095 = vunpack.c.l.b16 %v3918
      %v5096 = vunpack.c.l.b16 %v3922
      %v5097 = vunpack.c.l.b16 %v3925
      %v5098 = vunpack.c.l.b16 %v3929
      %v5099 = vunpack.c.l.b16 %v3932
      %v5100 = vunpack.c.l.b16 %v3936
      %v5101 = vunpack.c.l.b16 %v3939
      %v5102 = vunpack.c.l.b16 %v3943
      %v5103 = vunpack.c.l.b16 %v3946
      %v5104 = vunpack.c.l.b16 %v3950
      %v5105 = vunpack.c.l.b16 %v3953
      %v5106 = vunpack.c.l.b16 %v3957
      %v5107 = vunpack.c.l.b16 %v3960
      %v5108 = vunpack.c.l.b16 %v3964
      %v5109 = vunpack.c.l.b16 %v3967
      %v5110 = vunpack.c.l.b16 %v3971
      %v5111 = vunpack.c.l.b16 %v3974
      %v5112 = vpack.c.b16 %v5081, %v5080
      %v5113 = vpack.c.b16 %v5083, %v5082
      %v5114 = vpack.c.b16 %v5085, %v5084
      %v5115 = vpack.c.b16 %v5087, %v5086
      %v5116 = vpack.c.b16 %v5089, %v5088
      %v5117 = vpack.c.b16 %v5091, %v5090
      %v5118 = vpack.c.b16 %v5093, %v5092
      %v5119 = vpack.c.b16 %v5095, %v5094
      %v5120 = vpack.c.b16 %v5097, %v5096
      %v5121 = vpack.c.b16 %v5099, %v5098
      %v5122 = vpack.c.b16 %v5101, %v5100
      %v5123 = vpack.c.b16 %v5103, %v5102
      %v5124 = vpack.c.b16 %v5105, %v5104
      %v5125 = vpack.c.b16 %v5107, %v5106
      %v5126 = vpack.c.b16 %v5109, %v5108
      %v5127 = vpack.c.b16 %v5111, %v5110
      %v5160 = vunpack.c.l.b16 %v3975
      %v5161 = vunpack.c.l.b16 %v3976
      %v5162 = vunpack.c.l.b16 %v3977
      %v5163 = vunpack.c.l.b16 %v3978
      %v5164 = vunpack.c.l.b16 %v3979
      %v5165 = vunpack.c.l.b16 %v3980
      %v5166 = vunpack.c.l.b16 %v3981
      %v5167 = vunpack.c.l.b16 %v3982
      %v5168 = vunpack.c.l.b16 %v3983
      %v5169 = vunpack.c.l.b16 %v3984
      %v5170 = vunpack.c.l.b16 %v3985
      %v5171 = vunpack.c.l.b16 %v3986
      %v5172 = vunpack.c.l.b16 %v3987
      %v5173 = vunpack.c.l.b16 %v3988
      %v5174 = vunpack.c.l.b16 %v3989
      %v5175 = vunpack.c.l.b16 %v3990
      %v5176 = vunpack.c.l.b16 %v3991
      %v5177 = vunpack.c.l.b16 %v3992
      %v5178 = vunpack.c.l.b16 %v3993
      %v5179 = vunpack.c.l.b16 %v3994
      %v5180 = vunpack.c.l.b16 %v3995
      %v5181 = vunpack.c.l.b16 %v3996
      %v5182 = vunpack.c.l.b16 %v3997
      %v5183 = vunpack.c.l.b16 %v3998
      %v5184 = vunpack.c.l.b16 %v3999
      %v5185 = vunpack.c.l.b16 %v4000
      %v5186 = vunpack.c.l.b16 %v4001
      %v5187 = vunpack.c.l.b16 %v4002
      %v5188 = vunpack.c.l.b16 %v4003
      %v5189 = vunpack.c.l.b16 %v4004
      %v5190 = vunpack.c.l.b16 %v4005
      %v5191 = vunpack.c.l.b16 %v4006
      %v5192 = vpack.c.b16 %v5161, %v5160
      %v5193 = vpack.c.b16 %v5163, %v5162
      %v5194 = vpack.c.b16 %v5165, %v5164
      %v5195 = vpack.c.b16 %v5167, %v5166
      %v5196 = vpack.c.b16 %v5169, %v5168
      %v5197 = vpack.c.b16 %v5171, %v5170
      %v5198 = vpack.c.b16 %v5173, %v5172
      %v5199 = vpack.c.b16 %v5175, %v5174
      %v5200 = vpack.c.b16 %v5177, %v5176
      %v5201 = vpack.c.b16 %v5179, %v5178
      %v5202 = vpack.c.b16 %v5181, %v5180
      %v5203 = vpack.c.b16 %v5183, %v5182
      %v5204 = vpack.c.b16 %v5185, %v5184
      %v5205 = vpack.c.b16 %v5187, %v5186
      %v5206 = vpack.c.b16 %v5189, %v5188
      %v5207 = vpack.c.b16 %v5191, %v5190
      %5208 = vrot.lane.b32.xlu0 %v5192, 4
      %v5209 = vpop.permute.xlu0 %5208
      %5210 = vrot.lane.b32.xlu0 %v5193, 4
      %v5211 = vpop.permute.xlu0 %5210
      %5212 = vrot.lane.b32.xlu0 %v5194, 4
      %v5213 = vpop.permute.xlu0 %5212
      %5214 = vrot.lane.b32.xlu0 %v5195, 4
      %v5215 = vpop.permute.xlu0 %5214
      %5216 = vrot.lane.b32.xlu0 %v5196, 4
      %v5217 = vpop.permute.xlu0 %5216
      %5218 = vrot.lane.b32.xlu0 %v5197, 4
      %v5219 = vpop.permute.xlu0 %5218
      %5220 = vrot.lane.b32.xlu0 %v5198, 4
      %v5221 = vpop.permute.xlu0 %5220
      %5222 = vrot.lane.b32.xlu0 %v5199, 4
      %v5223 = vpop.permute.xlu0 %5222
      %5224 = vrot.lane.b32.xlu0 %v5200, 4
      %v5225 = vpop.permute.xlu0 %5224
      %5226 = vrot.lane.b32.xlu0 %v5201, 4
      %v5227 = vpop.permute.xlu0 %5226
      %5228 = vrot.lane.b32.xlu0 %v5202, 4
      %v5229 = vpop.permute.xlu0 %5228
      %5230 = vrot.lane.b32.xlu0 %v5203, 4
      %v5231 = vpop.permute.xlu0 %5230
      %5232 = vrot.lane.b32.xlu0 %v5204, 4
      %v5233 = vpop.permute.xlu0 %5232
      %5234 = vrot.lane.b32.xlu0 %v5205, 4
      %v5235 = vpop.permute.xlu0 %5234
      %5236 = vrot.lane.b32.xlu0 %v5206, 4
      %v5237 = vpop.permute.xlu0 %5236
      %5238 = vrot.lane.b32.xlu0 %v5207, 4
      %v5239 = vpop.permute.xlu0 %5238
      %v5240 = vunpack.c.l.b16 %v4106
      %v5241 = vunpack.c.l.b16 %v4109
      %v5242 = vunpack.c.l.b16 %v4113
      %v5243 = vunpack.c.l.b16 %v4116
      %v5244 = vunpack.c.l.b16 %v4120
      %v5245 = vunpack.c.l.b16 %v4123
      %v5246 = vunpack.c.l.b16 %v4127
      %v5247 = vunpack.c.l.b16 %v4130
      %v5248 = vunpack.c.l.b16 %v4134
      %v5249 = vunpack.c.l.b16 %v4137
      %v5250 = vunpack.c.l.b16 %v4141
      %v5251 = vunpack.c.l.b16 %v4144
      %v5252 = vunpack.c.l.b16 %v4148
      %v5253 = vunpack.c.l.b16 %v4151
      %v5254 = vunpack.c.l.b16 %v4155
      %v5255 = vunpack.c.l.b16 %v4158
      %v5256 = vunpack.c.l.b16 %v4162
      %v5257 = vunpack.c.l.b16 %v4165
      %v5258 = vunpack.c.l.b16 %v4169
      %v5259 = vunpack.c.l.b16 %v4172
      %v5260 = vunpack.c.l.b16 %v4176
      %v5261 = vunpack.c.l.b16 %v4179
      %v5262 = vunpack.c.l.b16 %v4183
      %v5263 = vunpack.c.l.b16 %v4186
      %v5264 = vunpack.c.l.b16 %v4190
      %v5265 = vunpack.c.l.b16 %v4193
      %v5266 = vunpack.c.l.b16 %v4197
      %v5267 = vunpack.c.l.b16 %v4200
      %v5268 = vunpack.c.l.b16 %v4204
      %v5269 = vunpack.c.l.b16 %v4207
      %v5270 = vunpack.c.l.b16 %v4211
      %v5271 = vunpack.c.l.b16 %v4214
      %v5272 = vpack.c.b16 %v5241, %v5240
      %v5273 = vpack.c.b16 %v5243, %v5242
      %v5274 = vpack.c.b16 %v5245, %v5244
      %v5275 = vpack.c.b16 %v5247, %v5246
      %v5276 = vpack.c.b16 %v5249, %v5248
      %v5277 = vpack.c.b16 %v5251, %v5250
      %v5278 = vpack.c.b16 %v5253, %v5252
      %v5279 = vpack.c.b16 %v5255, %v5254
      %v5280 = vpack.c.b16 %v5257, %v5256
      %v5281 = vpack.c.b16 %v5259, %v5258
      %v5282 = vpack.c.b16 %v5261, %v5260
      %v5283 = vpack.c.b16 %v5263, %v5262
      %v5284 = vpack.c.b16 %v5265, %v5264
      %v5285 = vpack.c.b16 %v5267, %v5266
      %v5286 = vpack.c.b16 %v5269, %v5268
      %v5287 = vpack.c.b16 %v5271, %v5270
      %5288 = vrot.lane.b32.xlu0 %v5272, 8
      %v5289 = vpop.permute.xlu0 %5288
      %5290 = vrot.lane.b32.xlu0 %v5273, 8
      %v5291 = vpop.permute.xlu0 %5290
      %5292 = vrot.lane.b32.xlu0 %v5274, 8
      %v5293 = vpop.permute.xlu0 %5292
      %5294 = vrot.lane.b32.xlu0 %v5275, 8
      %v5295 = vpop.permute.xlu0 %5294
      %5296 = vrot.lane.b32.xlu0 %v5276, 8
      %v5297 = vpop.permute.xlu0 %5296
      %5298 = vrot.lane.b32.xlu0 %v5277, 8
      %v5299 = vpop.permute.xlu0 %5298
      %5300 = vrot.lane.b32.xlu0 %v5278, 8
      %v5301 = vpop.permute.xlu0 %5300
      %5302 = vrot.lane.b32.xlu0 %v5279, 8
      %v5303 = vpop.permute.xlu0 %5302
      %5304 = vrot.lane.b32.xlu0 %v5280, 8
      %v5305 = vpop.permute.xlu0 %5304
      %5306 = vrot.lane.b32.xlu0 %v5281, 8
      %v5307 = vpop.permute.xlu0 %5306
      %5308 = vrot.lane.b32.xlu0 %v5282, 8
      %v5309 = vpop.permute.xlu0 %5308
      %5310 = vrot.lane.b32.xlu0 %v5283, 8
      %v5311 = vpop.permute.xlu0 %5310
      %5312 = vrot.lane.b32.xlu0 %v5284, 8
      %v5313 = vpop.permute.xlu0 %5312
      %5314 = vrot.lane.b32.xlu0 %v5285, 8
      %v5315 = vpop.permute.xlu0 %5314
      %5316 = vrot.lane.b32.xlu0 %v5286, 8
      %v5317 = vpop.permute.xlu0 %5316
      %5318 = vrot.lane.b32.xlu0 %v5287, 8
      %v5319 = vpop.permute.xlu0 %5318
      %v5320 = vunpack.c.l.b16 %v4314
      %v5321 = vunpack.c.l.b16 %v4317
      %v5322 = vunpack.c.l.b16 %v4321
      %v5323 = vunpack.c.l.b16 %v4324
      %v5324 = vunpack.c.l.b16 %v4328
      %v5325 = vunpack.c.l.b16 %v4331
      %v5326 = vunpack.c.l.b16 %v4335
      %v5327 = vunpack.c.l.b16 %v4338
      %v5328 = vunpack.c.l.b16 %v4342
      %v5329 = vunpack.c.l.b16 %v4345
      %v5330 = vunpack.c.l.b16 %v4349
      %v5331 = vunpack.c.l.b16 %v4352
      %v5332 = vunpack.c.l.b16 %v4356
      %v5333 = vunpack.c.l.b16 %v4359
      %v5334 = vunpack.c.l.b16 %v4363
      %v5335 = vunpack.c.l.b16 %v4366
      %v5336 = vunpack.c.l.b16 %v4370
      %v5337 = vunpack.c.l.b16 %v4373
      %v5338 = vunpack.c.l.b16 %v4377
      %v5339 = vunpack.c.l.b16 %v4380
      %v5340 = vunpack.c.l.b16 %v4384
      %v5341 = vunpack.c.l.b16 %v4387
      %v5342 = vunpack.c.l.b16 %v4391
      %v5343 = vunpack.c.l.b16 %v4394
      %v5344 = vunpack.c.l.b16 %v4398
      %v5345 = vunpack.c.l.b16 %v4401
      %v5346 = vunpack.c.l.b16 %v4405
      %v5347 = vunpack.c.l.b16 %v4408
      %v5348 = vunpack.c.l.b16 %v4412
      %v5349 = vunpack.c.l.b16 %v4415
      %v5350 = vunpack.c.l.b16 %v4419
      %v5351 = vunpack.c.l.b16 %v4422
      %v5352 = vpack.c.b16 %v5321, %v5320
      %v5353 = vpack.c.b16 %v5323, %v5322
      %v5354 = vpack.c.b16 %v5325, %v5324
      %v5355 = vpack.c.b16 %v5327, %v5326
      %v5356 = vpack.c.b16 %v5329, %v5328
      %v5357 = vpack.c.b16 %v5331, %v5330
      %v5358 = vpack.c.b16 %v5333, %v5332
      %v5359 = vpack.c.b16 %v5335, %v5334
      %v5360 = vpack.c.b16 %v5337, %v5336
      %v5361 = vpack.c.b16 %v5339, %v5338
      %v5362 = vpack.c.b16 %v5341, %v5340
      %v5363 = vpack.c.b16 %v5343, %v5342
      %v5364 = vpack.c.b16 %v5345, %v5344
      %v5365 = vpack.c.b16 %v5347, %v5346
      %v5366 = vpack.c.b16 %v5349, %v5348
      %v5367 = vpack.c.b16 %v5351, %v5350
      %5368 = vrot.lane.b32.xlu0 %v5352, 12
      %v5369 = vpop.permute.xlu0 %5368
      %5370 = vrot.lane.b32.xlu0 %v5353, 12
      %v5371 = vpop.permute.xlu0 %5370
      %5372 = vrot.lane.b32.xlu0 %v5354, 12
      %v5373 = vpop.permute.xlu0 %5372
      %5374 = vrot.lane.b32.xlu0 %v5355, 12
      %v5375 = vpop.permute.xlu0 %5374
      %5376 = vrot.lane.b32.xlu0 %v5356, 12
      %v5377 = vpop.permute.xlu0 %5376
      %5378 = vrot.lane.b32.xlu0 %v5357, 12
      %v5379 = vpop.permute.xlu0 %5378
      %5380 = vrot.lane.b32.xlu0 %v5358, 12
      %v5381 = vpop.permute.xlu0 %5380
      %5382 = vrot.lane.b32.xlu0 %v5359, 12
      %v5383 = vpop.permute.xlu0 %5382
      %5384 = vrot.lane.b32.xlu0 %v5360, 12
      %v5385 = vpop.permute.xlu0 %5384
      %5386 = vrot.lane.b32.xlu0 %v5361, 12
      %v5387 = vpop.permute.xlu0 %5386
      %5388 = vrot.lane.b32.xlu0 %v5362, 12
      %v5389 = vpop.permute.xlu0 %5388
      %5390 = vrot.lane.b32.xlu0 %v5363, 12
      %v5391 = vpop.permute.xlu0 %5390
      %5392 = vrot.lane.b32.xlu0 %v5364, 12
      %v5393 = vpop.permute.xlu0 %5392
      %5394 = vrot.lane.b32.xlu0 %v5365, 12
      %v5395 = vpop.permute.xlu0 %5394
      %5396 = vrot.lane.b32.xlu0 %v5366, 12
      %v5397 = vpop.permute.xlu0 %5396
      %5398 = vrot.lane.b32.xlu0 %v5367, 12
      %v5399 = vpop.permute.xlu0 %5398
      %v5400 = vunpack.c.l.b16 %v4522
      %v5401 = vunpack.c.l.b16 %v4525
      %v5402 = vunpack.c.l.b16 %v4529
      %v5403 = vunpack.c.l.b16 %v4532
      %v5404 = vunpack.c.l.b16 %v4536
      %v5405 = vunpack.c.l.b16 %v4539
      %v5406 = vunpack.c.l.b16 %v4543
      %v5407 = vunpack.c.l.b16 %v4546
      %v5408 = vunpack.c.l.b16 %v4550
      %v5409 = vunpack.c.l.b16 %v4553
      %v5410 = vunpack.c.l.b16 %v4557
      %v5411 = vunpack.c.l.b16 %v4560
      %v5412 = vunpack.c.l.b16 %v4564
      %v5413 = vunpack.c.l.b16 %v4567
      %v5414 = vunpack.c.l.b16 %v4571
      %v5415 = vunpack.c.l.b16 %v4574
      %v5416 = vunpack.c.l.b16 %v4578
      %v5417 = vunpack.c.l.b16 %v4581
      %v5418 = vunpack.c.l.b16 %v4585
      %v5419 = vunpack.c.l.b16 %v4588
      %v5420 = vunpack.c.l.b16 %v4592
      %v5421 = vunpack.c.l.b16 %v4595
      %v5422 = vunpack.c.l.b16 %v4599
      %v5423 = vunpack.c.l.b16 %v4602
      %v5424 = vunpack.c.l.b16 %v4606
      %v5425 = vunpack.c.l.b16 %v4609
      %v5426 = vunpack.c.l.b16 %v4613
      %v5427 = vunpack.c.l.b16 %v4616
      %v5428 = vunpack.c.l.b16 %v4620
      %v5429 = vunpack.c.l.b16 %v4623
      %v5430 = vunpack.c.l.b16 %v4627
      %v5431 = vunpack.c.l.b16 %v4630
      %v5432 = vpack.c.b16 %v5401, %v5400
      %v5433 = vpack.c.b16 %v5403, %v5402
      %v5434 = vpack.c.b16 %v5405, %v5404
      %v5435 = vpack.c.b16 %v5407, %v5406
      %v5436 = vpack.c.b16 %v5409, %v5408
      %v5437 = vpack.c.b16 %v5411, %v5410
      %v5438 = vpack.c.b16 %v5413, %v5412
      %v5439 = vpack.c.b16 %v5415, %v5414
      %v5440 = vpack.c.b16 %v5417, %v5416
      %v5441 = vpack.c.b16 %v5419, %v5418
      %v5442 = vpack.c.b16 %v5421, %v5420
      %v5443 = vpack.c.b16 %v5423, %v5422
      %v5444 = vpack.c.b16 %v5425, %v5424
      %v5445 = vpack.c.b16 %v5427, %v5426
      %v5446 = vpack.c.b16 %v5429, %v5428
      %v5447 = vpack.c.b16 %v5431, %v5430
      %5448 = vrot.lane.b32.xlu0 %v5432, 20
      %v5449 = vpop.permute.xlu0 %5448
      %5450 = vrot.lane.b32.xlu0 %v5433, 20
      %v5451 = vpop.permute.xlu0 %5450
      %5452 = vrot.lane.b32.xlu0 %v5434, 20
      %v5453 = vpop.permute.xlu0 %5452
      %5454 = vrot.lane.b32.xlu0 %v5435, 20
      %v5455 = vpop.permute.xlu0 %5454
      %5456 = vrot.lane.b32.xlu0 %v5436, 20
      %v5457 = vpop.permute.xlu0 %5456
      %5458 = vrot.lane.b32.xlu0 %v5437, 20
      %v5459 = vpop.permute.xlu0 %5458
      %5460 = vrot.lane.b32.xlu0 %v5438, 20
      %v5461 = vpop.permute.xlu0 %5460
      %5462 = vrot.lane.b32.xlu0 %v5439, 20
      %v5463 = vpop.permute.xlu0 %5462
      %5464 = vrot.lane.b32.xlu0 %v5440, 20
      %v5465 = vpop.permute.xlu0 %5464
      %5466 = vrot.lane.b32.xlu0 %v5441, 20
      %v5467 = vpop.permute.xlu0 %5466
      %5468 = vrot.lane.b32.xlu0 %v5442, 20
      %v5469 = vpop.permute.xlu0 %5468
      %5470 = vrot.lane.b32.xlu0 %v5443, 20
      %v5471 = vpop.permute.xlu0 %5470
      %5472 = vrot.lane.b32.xlu0 %v5444, 20
      %v5473 = vpop.permute.xlu0 %5472
      %5474 = vrot.lane.b32.xlu0 %v5445, 20
      %v5475 = vpop.permute.xlu0 %5474
      %5476 = vrot.lane.b32.xlu0 %v5446, 20
      %v5477 = vpop.permute.xlu0 %5476
      %5478 = vrot.lane.b32.xlu0 %v5447, 20
      %v5479 = vpop.permute.xlu0 %5478
      %v5480 = vunpack.c.l.b16 %v4731
      %v5481 = vunpack.c.l.b16 %v4734
      %v5482 = vunpack.c.l.b16 %v4738
      %v5483 = vunpack.c.l.b16 %v4741
      %v5484 = vunpack.c.l.b16 %v4745
      %v5485 = vunpack.c.l.b16 %v4748
      %v5486 = vunpack.c.l.b16 %v4752
      %v5487 = vunpack.c.l.b16 %v4755
      %v5488 = vunpack.c.l.b16 %v4759
      %v5489 = vunpack.c.l.b16 %v4762
      %v5490 = vunpack.c.l.b16 %v4766
      %v5491 = vunpack.c.l.b16 %v4769
      %v5492 = vunpack.c.l.b16 %v4773
      %v5493 = vunpack.c.l.b16 %v4776
      %v5494 = vunpack.c.l.b16 %v4780
      %v5495 = vunpack.c.l.b16 %v4783
      %v5496 = vunpack.c.l.b16 %v4787
      %v5497 = vunpack.c.l.b16 %v4790
      %v5498 = vunpack.c.l.b16 %v4794
      %v5499 = vunpack.c.l.b16 %v4797
      %v5500 = vunpack.c.l.b16 %v4801
      %v5501 = vunpack.c.l.b16 %v4804
      %v5502 = vunpack.c.l.b16 %v4808
      %v5503 = vunpack.c.l.b16 %v4811
      %v5504 = vunpack.c.l.b16 %v4815
      %v5505 = vunpack.c.l.b16 %v4818
      %v5506 = vunpack.c.l.b16 %v4822
      %v5507 = vunpack.c.l.b16 %v4825
      %v5508 = vunpack.c.l.b16 %v4829
      %v5509 = vunpack.c.l.b16 %v4832
      %v5510 = vunpack.c.l.b16 %v4836
      %v5511 = vunpack.c.l.b16 %v4839
      %v5512 = vpack.c.b16 %v5481, %v5480
      %v5513 = vpack.c.b16 %v5483, %v5482
      %v5514 = vpack.c.b16 %v5485, %v5484
      %v5515 = vpack.c.b16 %v5487, %v5486
      %v5516 = vpack.c.b16 %v5489, %v5488
      %v5517 = vpack.c.b16 %v5491, %v5490
      %v5518 = vpack.c.b16 %v5493, %v5492
      %v5519 = vpack.c.b16 %v5495, %v5494
      %v5520 = vpack.c.b16 %v5497, %v5496
      %v5521 = vpack.c.b16 %v5499, %v5498
      %v5522 = vpack.c.b16 %v5501, %v5500
      %v5523 = vpack.c.b16 %v5503, %v5502
      %v5524 = vpack.c.b16 %v5505, %v5504
      %v5525 = vpack.c.b16 %v5507, %v5506
      %v5526 = vpack.c.b16 %v5509, %v5508
      %v5527 = vpack.c.b16 %v5511, %v5510
      %5528 = vrot.lane.b32.xlu0 %v5512, 24
      %v5529 = vpop.permute.xlu0 %5528
      %5530 = vrot.lane.b32.xlu0 %v5513, 24
      %v5531 = vpop.permute.xlu0 %5530
      %5532 = vrot.lane.b32.xlu0 %v5514, 24
      %v5533 = vpop.permute.xlu0 %5532
      %5534 = vrot.lane.b32.xlu0 %v5515, 24
      %v5535 = vpop.permute.xlu0 %5534
      %5536 = vrot.lane.b32.xlu0 %v5516, 24
      %v5537 = vpop.permute.xlu0 %5536
      %5538 = vrot.lane.b32.xlu0 %v5517, 24
      %v5539 = vpop.permute.xlu0 %5538
      %5540 = vrot.lane.b32.xlu0 %v5518, 24
      %v5541 = vpop.permute.xlu0 %5540
      %5542 = vrot.lane.b32.xlu0 %v5519, 24
      %v5543 = vpop.permute.xlu0 %5542
      %5544 = vrot.lane.b32.xlu0 %v5520, 24
      %v5545 = vpop.permute.xlu0 %5544
      %5546 = vrot.lane.b32.xlu0 %v5521, 24
      %v5547 = vpop.permute.xlu0 %5546
      %5548 = vrot.lane.b32.xlu0 %v5522, 24
      %v5549 = vpop.permute.xlu0 %5548
      %5550 = vrot.lane.b32.xlu0 %v5523, 24
      %v5551 = vpop.permute.xlu0 %5550
      %5552 = vrot.lane.b32.xlu0 %v5524, 24
      %v5553 = vpop.permute.xlu0 %5552
      %5554 = vrot.lane.b32.xlu0 %v5525, 24
      %v5555 = vpop.permute.xlu0 %5554
      %5556 = vrot.lane.b32.xlu0 %v5526, 24
      %v5557 = vpop.permute.xlu0 %5556
      %5558 = vrot.lane.b32.xlu0 %v5527, 24
      %v5559 = vpop.permute.xlu0 %5558
      %v5592 = vunpack.c.l.b16 %v4840
      %v5593 = vunpack.c.l.b16 %v4841
      %v5594 = vunpack.c.l.b16 %v4842
      %v5595 = vunpack.c.l.b16 %v4843
      %v5596 = vunpack.c.l.b16 %v4844
      %v5597 = vunpack.c.l.b16 %v4845
      %v5598 = vunpack.c.l.b16 %v4846
      %v5599 = vunpack.c.l.b16 %v4847
      %v5600 = vunpack.c.l.b16 %v4848
      %v5601 = vunpack.c.l.b16 %v4849
      %v5602 = vunpack.c.l.b16 %v4850
      %v5603 = vunpack.c.l.b16 %v4851
      %v5604 = vunpack.c.l.b16 %v4852
      %v5605 = vunpack.c.l.b16 %v4853
      %v5606 = vunpack.c.l.b16 %v4854
      %v5607 = vunpack.c.l.b16 %v4855
      %v5608 = vunpack.c.l.b16 %v4856
      %v5609 = vunpack.c.l.b16 %v4857
      %v5610 = vunpack.c.l.b16 %v4858
      %v5611 = vunpack.c.l.b16 %v4859
      %v5612 = vunpack.c.l.b16 %v4860
      %v5613 = vunpack.c.l.b16 %v4861
      %v5614 = vunpack.c.l.b16 %v4862
      %v5615 = vunpack.c.l.b16 %v4863
      %v5616 = vunpack.c.l.b16 %v4864
      %v5617 = vunpack.c.l.b16 %v4865
      %v5618 = vunpack.c.l.b16 %v4866
      %v5619 = vunpack.c.l.b16 %v4867
      %v5620 = vunpack.c.l.b16 %v4868
      %v5621 = vunpack.c.l.b16 %v4869
      %v5622 = vunpack.c.l.b16 %v4870
      %v5623 = vunpack.c.l.b16 %v4871
      %v5624 = vpack.c.b16 %v5593, %v5592
      %v5625 = vpack.c.b16 %v5595, %v5594
      %v5626 = vpack.c.b16 %v5597, %v5596
      %v5627 = vpack.c.b16 %v5599, %v5598
      %v5628 = vpack.c.b16 %v5601, %v5600
      %v5629 = vpack.c.b16 %v5603, %v5602
      %v5630 = vpack.c.b16 %v5605, %v5604
      %v5631 = vpack.c.b16 %v5607, %v5606
      %v5632 = vpack.c.b16 %v5609, %v5608
      %v5633 = vpack.c.b16 %v5611, %v5610
      %v5634 = vpack.c.b16 %v5613, %v5612
      %v5635 = vpack.c.b16 %v5615, %v5614
      %v5636 = vpack.c.b16 %v5617, %v5616
      %v5637 = vpack.c.b16 %v5619, %v5618
      %v5638 = vpack.c.b16 %v5621, %v5620
      %v5639 = vpack.c.b16 %v5623, %v5622
      %5640 = vrot.lane.b32.xlu0 %v5624, 28
      %v5641 = vpop.permute.xlu0 %5640
      %5642 = vrot.lane.b32.xlu0 %v5625, 28
      %v5643 = vpop.permute.xlu0 %5642
      %5644 = vrot.lane.b32.xlu0 %v5626, 28
      %v5645 = vpop.permute.xlu0 %5644
      %5646 = vrot.lane.b32.xlu0 %v5627, 28
      %v5647 = vpop.permute.xlu0 %5646
      %5648 = vrot.lane.b32.xlu0 %v5628, 28
      %v5649 = vpop.permute.xlu0 %5648
      %5650 = vrot.lane.b32.xlu0 %v5629, 28
      %v5651 = vpop.permute.xlu0 %5650
      %5652 = vrot.lane.b32.xlu0 %v5630, 28
      %v5653 = vpop.permute.xlu0 %5652
      %5654 = vrot.lane.b32.xlu0 %v5631, 28
      %v5655 = vpop.permute.xlu0 %5654
      %5656 = vrot.lane.b32.xlu0 %v5632, 28
      %v5657 = vpop.permute.xlu0 %5656
      %5658 = vrot.lane.b32.xlu0 %v5633, 28
      %v5659 = vpop.permute.xlu0 %5658
      %5660 = vrot.lane.b32.xlu0 %v5634, 28
      %v5661 = vpop.permute.xlu0 %5660
      %5662 = vrot.lane.b32.xlu0 %v5635, 28
      %v5663 = vpop.permute.xlu0 %5662
      %5664 = vrot.lane.b32.xlu0 %v5636, 28
      %v5665 = vpop.permute.xlu0 %5664
      %5666 = vrot.lane.b32.xlu0 %v5637, 28
      %v5667 = vpop.permute.xlu0 %5666
      %5668 = vrot.lane.b32.xlu0 %v5638, 28
      %v5669 = vpop.permute.xlu0 %5668
      %5670 = vrot.lane.b32.xlu0 %v5639, 28
      %v5671 = vpop.permute.xlu0 %5670
      %v5672 = vunpack.c.l.b16 %v4971
      %v5673 = vunpack.c.l.b16 %v4974
      %v5674 = vunpack.c.l.b16 %v4978
      %v5675 = vunpack.c.l.b16 %v4981
      %v5676 = vunpack.c.l.b16 %v4985
      %v5677 = vunpack.c.l.b16 %v4988
      %v5678 = vunpack.c.l.b16 %v4992
      %v5679 = vunpack.c.l.b16 %v4995
      %v5680 = vunpack.c.l.b16 %v4999
      %v5681 = vunpack.c.l.b16 %v5002
      %v5682 = vunpack.c.l.b16 %v5006
      %v5683 = vunpack.c.l.b16 %v5009
      %v5684 = vunpack.c.l.b16 %v5013
      %v5685 = vunpack.c.l.b16 %v5016
      %v5686 = vunpack.c.l.b16 %v5020
      %v5687 = vunpack.c.l.b16 %v5023
      %v5688 = vunpack.c.l.b16 %v5027
      %v5689 = vunpack.c.l.b16 %v5030
      %v5690 = vunpack.c.l.b16 %v5034
      %v5691 = vunpack.c.l.b16 %v5037
      %v5692 = vunpack.c.l.b16 %v5041
      %v5693 = vunpack.c.l.b16 %v5044
      %v5694 = vunpack.c.l.b16 %v5048
      %v5695 = vunpack.c.l.b16 %v5051
      %v5696 = vunpack.c.l.b16 %v5055
      %v5697 = vunpack.c.l.b16 %v5058
      %v5698 = vunpack.c.l.b16 %v5062
      %v5699 = vunpack.c.l.b16 %v5065
      %v5700 = vunpack.c.l.b16 %v5069
      %v5701 = vunpack.c.l.b16 %v5072
      %v5702 = vunpack.c.l.b16 %v5076
      %v5703 = vunpack.c.l.b16 %v5079
      %v5704 = vpack.c.b16 %v5673, %v5672
      %v5705 = vpack.c.b16 %v5675, %v5674
      %v5706 = vpack.c.b16 %v5677, %v5676
      %v5707 = vpack.c.b16 %v5679, %v5678
      %v5708 = vpack.c.b16 %v5681, %v5680
      %v5709 = vpack.c.b16 %v5683, %v5682
      %v5710 = vpack.c.b16 %v5685, %v5684
      %v5711 = vpack.c.b16 %v5687, %v5686
      %v5712 = vpack.c.b16 %v5689, %v5688
      %v5713 = vpack.c.b16 %v5691, %v5690
      %v5714 = vpack.c.b16 %v5693, %v5692
      %v5715 = vpack.c.b16 %v5695, %v5694
      %v5716 = vpack.c.b16 %v5697, %v5696
      %v5717 = vpack.c.b16 %v5699, %v5698
      %v5718 = vpack.c.b16 %v5701, %v5700
      %v5719 = vpack.c.b16 %v5703, %v5702
      %5720 = vrot.lane.b32.xlu0 %v5704, 32
      %v5721 = vpop.permute.xlu0 %5720
      %5722 = vrot.lane.b32.xlu0 %v5705, 32
      %v5723 = vpop.permute.xlu0 %5722
      %5724 = vrot.lane.b32.xlu0 %v5706, 32
      %v5725 = vpop.permute.xlu0 %5724
      %5726 = vrot.lane.b32.xlu0 %v5707, 32
      %v5727 = vpop.permute.xlu0 %5726
      %5728 = vrot.lane.b32.xlu0 %v5708, 32
      %v5729 = vpop.permute.xlu0 %5728
      %5730 = vrot.lane.b32.xlu0 %v5709, 32
      %v5731 = vpop.permute.xlu0 %5730
      %5732 = vrot.lane.b32.xlu0 %v5710, 32
      %v5733 = vpop.permute.xlu0 %5732
      %5734 = vrot.lane.b32.xlu0 %v5711, 32
      %v5735 = vpop.permute.xlu0 %5734
      %5736 = vrot.lane.b32.xlu0 %v5712, 32
      %v5737 = vpop.permute.xlu0 %5736
      %5738 = vrot.lane.b32.xlu0 %v5713, 32
      %v5739 = vpop.permute.xlu0 %5738
      %5740 = vrot.lane.b32.xlu0 %v5714, 32
      %v5741 = vpop.permute.xlu0 %5740
      %5742 = vrot.lane.b32.xlu0 %v5715, 32
      %v5743 = vpop.permute.xlu0 %5742
      %5744 = vrot.lane.b32.xlu0 %v5716, 32
      %v5745 = vpop.permute.xlu0 %5744
      %5746 = vrot.lane.b32.xlu0 %v5717, 32
      %v5747 = vpop.permute.xlu0 %5746
      %5748 = vrot.lane.b32.xlu0 %v5718, 32
      %v5749 = vpop.permute.xlu0 %5748
      %5750 = vrot.lane.b32.xlu0 %v5719, 32
      %v5751 = vpop.permute.xlu0 %5750
      %v5754 = vsel %vm1157, %v5112, %v5209
      %v5757 = vsel %vm1157, %v5113, %v5211
      %v5760 = vsel %vm1157, %v5114, %v5213
      %v5763 = vsel %vm1157, %v5115, %v5215
      %v5766 = vsel %vm1157, %v5116, %v5217
      %v5769 = vsel %vm1157, %v5117, %v5219
      %v5772 = vsel %vm1157, %v5118, %v5221
      %v5775 = vsel %vm1157, %v5119, %v5223
      %v5778 = vsel %vm1157, %v5120, %v5225
      %v5781 = vsel %vm1157, %v5121, %v5227
      %v5784 = vsel %vm1157, %v5122, %v5229
      %v5787 = vsel %vm1157, %v5123, %v5231
      %v5790 = vsel %vm1157, %v5124, %v5233
      %v5793 = vsel %vm1157, %v5125, %v5235
      %v5796 = vsel %vm1157, %v5126, %v5237
      %v5799 = vsel %vm1157, %v5127, %v5239
      %v5801 = vsel %vm3315, %v5754, %v5289
      %v5803 = vsel %vm3315, %v5757, %v5291
      %v5805 = vsel %vm3315, %v5760, %v5293
      %v5807 = vsel %vm3315, %v5763, %v5295
      %v5809 = vsel %vm3315, %v5766, %v5297
      %v5811 = vsel %vm3315, %v5769, %v5299
      %v5813 = vsel %vm3315, %v5772, %v5301
      %v5815 = vsel %vm3315, %v5775, %v5303
      %v5817 = vsel %vm3315, %v5778, %v5305
      %v5819 = vsel %vm3315, %v5781, %v5307
      %v5821 = vsel %vm3315, %v5784, %v5309
      %v5823 = vsel %vm3315, %v5787, %v5311
      %v5825 = vsel %vm3315, %v5790, %v5313
      %v5827 = vsel %vm3315, %v5793, %v5315
      %v5829 = vsel %vm3315, %v5796, %v5317
      %v5831 = vsel %vm3315, %v5799, %v5319
      %v5833 = vsel %vm3348, %v5801, %v5369
      %v5835 = vsel %vm3348, %v5803, %v5371
      %v5837 = vsel %vm3348, %v5805, %v5373
      %v5839 = vsel %vm3348, %v5807, %v5375
      %v5841 = vsel %vm3348, %v5809, %v5377
      %v5843 = vsel %vm3348, %v5811, %v5379
      %v5845 = vsel %vm3348, %v5813, %v5381
      %v5847 = vsel %vm3348, %v5815, %v5383
      %v5849 = vsel %vm3348, %v5817, %v5385
      %v5851 = vsel %vm3348, %v5819, %v5387
      %v5853 = vsel %vm3348, %v5821, %v5389
      %v5855 = vsel %vm3348, %v5823, %v5391
      %v5857 = vsel %vm3348, %v5825, %v5393
      %v5859 = vsel %vm3348, %v5827, %v5395
      %v5861 = vsel %vm3348, %v5829, %v5397
      %v5863 = vsel %vm3348, %v5831, %v5399
      %v5864 = vsel %vm3381, %v5833, %v2916
      %v5865 = vsel %vm3381, %v5835, %v2918
      %v5866 = vsel %vm3381, %v5837, %v2920
      %v5867 = vsel %vm3381, %v5839, %v2922
      %v5868 = vsel %vm3381, %v5841, %v2924
      %v5869 = vsel %vm3381, %v5843, %v2926
      %v5870 = vsel %vm3381, %v5845, %v2928
      %v5871 = vsel %vm3381, %v5847, %v2930
      %v5872 = vsel %vm3381, %v5849, %v2932
      %v5873 = vsel %vm3381, %v5851, %v2934
      %v5874 = vsel %vm3381, %v5853, %v2936
      %v5875 = vsel %vm3381, %v5855, %v2938
      %v5876 = vsel %vm3381, %v5857, %v2940
      %v5877 = vsel %vm3381, %v5859, %v2942
      %v5878 = vsel %vm3381, %v5861, %v2944
      %v5879 = vsel %vm3381, %v5863, %v2946
      %v5881 = vsel %vm3414, %v5864, %v5449
      %v5883 = vsel %vm3414, %v5865, %v5451
      %v5885 = vsel %vm3414, %v5866, %v5453
      %v5887 = vsel %vm3414, %v5867, %v5455
      %v5889 = vsel %vm3414, %v5868, %v5457
      %v5891 = vsel %vm3414, %v5869, %v5459
      %v5893 = vsel %vm3414, %v5870, %v5461
      %v5895 = vsel %vm3414, %v5871, %v5463
      %v5897 = vsel %vm3414, %v5872, %v5465
      %v5899 = vsel %vm3414, %v5873, %v5467
      %v5901 = vsel %vm3414, %v5874, %v5469
      %v5903 = vsel %vm3414, %v5875, %v5471
      %v5905 = vsel %vm3414, %v5876, %v5473
      %v5907 = vsel %vm3414, %v5877, %v5475
      %v5909 = vsel %vm3414, %v5878, %v5477
      %v5911 = vsel %vm3414, %v5879, %v5479
      %v5913 = vsel %vm3447, %v5881, %v5529
      %v5915 = vsel %vm3447, %v5883, %v5531
      %v5917 = vsel %vm3447, %v5885, %v5533
      %v5919 = vsel %vm3447, %v5887, %v5535
      %v5921 = vsel %vm3447, %v5889, %v5537
      %v5923 = vsel %vm3447, %v5891, %v5539
      %v5925 = vsel %vm3447, %v5893, %v5541
      %v5927 = vsel %vm3447, %v5895, %v5543
      %v5929 = vsel %vm3447, %v5897, %v5545
      %v5931 = vsel %vm3447, %v5899, %v5547
      %v5933 = vsel %vm3447, %v5901, %v5549
      %v5935 = vsel %vm3447, %v5903, %v5551
      %v5937 = vsel %vm3447, %v5905, %v5553
      %v5939 = vsel %vm3447, %v5907, %v5555
      %v5941 = vsel %vm3447, %v5909, %v5557
      %v5943 = vsel %vm3447, %v5911, %v5559
      %v5945 = vsel %vm3480, %v5913, %v5641
      %v5947 = vsel %vm3480, %v5915, %v5643
      %v5949 = vsel %vm3480, %v5917, %v5645
      %v5951 = vsel %vm3480, %v5919, %v5647
      %v5953 = vsel %vm3480, %v5921, %v5649
      %v5955 = vsel %vm3480, %v5923, %v5651
      %v5957 = vsel %vm3480, %v5925, %v5653
      %v5959 = vsel %vm3480, %v5927, %v5655
      %v5961 = vsel %vm3480, %v5929, %v5657
      %v5963 = vsel %vm3480, %v5931, %v5659
      %v5965 = vsel %vm3480, %v5933, %v5661
      %v5967 = vsel %vm3480, %v5935, %v5663
      %v5969 = vsel %vm3480, %v5937, %v5665
      %v5971 = vsel %vm3480, %v5939, %v5667
      %v5973 = vsel %vm3480, %v5941, %v5669
      %v5975 = vsel %vm3480, %v5943, %v5671
      %v5977 = vsel %vm3513, %v5945, %v5721
      %v5979 = vsel %vm3513, %v5947, %v5723
      %v5981 = vsel %vm3513, %v5949, %v5725
      %v5983 = vsel %vm3513, %v5951, %v5727
      %v5985 = vsel %vm3513, %v5953, %v5729
      %v5987 = vsel %vm3513, %v5955, %v5731
      %v5989 = vsel %vm3513, %v5957, %v5733
      %v5991 = vsel %vm3513, %v5959, %v5735
      %v5993 = vsel %vm3513, %v5961, %v5737
      %v5995 = vsel %vm3513, %v5963, %v5739
      %v5997 = vsel %vm3513, %v5965, %v5741
      %v5999 = vsel %vm3513, %v5967, %v5743
      %v6001 = vsel %vm3513, %v5969, %v5745
      %v6003 = vsel %vm3513, %v5971, %v5747
      %v6005 = vsel %vm3513, %v5973, %v5749
      %v6007 = vsel %vm3513, %v5975, %v5751
      %s6008 = scalar_lea.vmem %s2, 20
      %v6009 = vld [vmem:[%s6008] sm:$0xf]
      %v6010 = vld [vmem:[%s6008 + $0x4] sm:$0xf]
      %v6011 = vld [vmem:[%s6008 + $0x8] sm:$0xf]
      %v6012 = vld [vmem:[%s6008 + $0xc] sm:$0xf]
      %v6013 = vld [vmem:[%s6008 + $0x10] sm:$0x3]
      %v6019 = vunpack.c.l.b16 %v6009
      %v6020 = vunpack.c.l.b16 %v6010
      %v6021 = vunpack.c.l.b16 %v6011
      %v6022 = vunpack.c.l.b16 %v6012
      %v6023 = vunpack.c.l.b16 %v6013
      %v6024 = vpack.c.b16 %v6020, %v6019
      %v6025 = vpack.c.b16 %v6022, %v6021
      %v6026 = vpack.c.b16 %v6023, %v6023
      %v6029 = vsel %vm3566, %v5977, 0
      %v6031 = vsel %vm3566, %v5979, 0
      %v6033 = vsel %vm3566, %v5981, 0
      %v6035 = vsel %vm3566, %v5983, 0
      %v6037 = vsel %vm3566, %v5985, 0
      %v6039 = vsel %vm3566, %v5987, 0
      %v6041 = vsel %vm3566, %v5989, 0
      %v6043 = vsel %vm3566, %v5991, 0
      %v6045 = vsel %vm3566, %v5993, 0
      %v6047 = vsel %vm3566, %v5995, 0
      %v6049 = vsel %vm3566, %v5997, 0
      %v6051 = vsel %vm3566, %v5999, 0
      %v6053 = vsel %vm3566, %v6001, 0
      %v6055 = vsel %vm3566, %v6003, 0
      %v6057 = vsel %vm3566, %v6005, 0
      %v6059 = vsel %vm3566, %v6007, 0
      %v6062 = vsel %vm1206, %v6026, 0
      %6064 = vmatprep.subr.bf16.mxu0 0
      %6065 = vmatpush1.bf16.msra.mxu0 %v6024
      %6066 = vmatprep.subr.bf16.mxu0 0
      %6067 = vmatpush1.bf16.msra.mxu0 %v6025
      %6068 = vmatprep.subr.bf16.mxu0 0
      %6069 = vmatpush1.bf16.msra.mxu0 %v6062
      %6070 = vmatprep.subr.bf16.mxu0 0
      %6071 = vmatpush1.bf16.msra.mxu0 0
      %6072 = vmatprep.subr.bf16.mxu0 0
      %6073 = vmatpush1.bf16.msra.mxu0 0
      %6074 = vmatprep.subr.bf16.mxu0 0
      %6075 = vmatpush1.bf16.msra.mxu0 0
      %6076 = vmatprep.subr.bf16.mxu0 0
      %6077 = vmatpush1.bf16.msra.mxu0 0
      %6078 = vmatprep.subr.bf16.mxu0 0
      %6079 = vmatpush1.bf16.msra.mxu0 0
      %6080 = vmatprep.subr.bf16.mxu0 0
      %6081 = vmatpush1.bf16.msra.mxu0 0
      %6082 = vmatprep.subr.bf16.mxu0 0
      %6083 = vmatpush1.bf16.msra.mxu0 0
      %6084 = vmatprep.subr.bf16.mxu0 0
      %6085 = vmatpush1.bf16.msra.mxu0 0
      %6086 = vmatprep.subr.bf16.mxu0 0
      %6087 = vmatpush1.bf16.msra.mxu0 0
      %6088 = vmatprep.subr.bf16.mxu0 0
      %6089 = vmatpush1.bf16.msra.mxu0 0
      %6090 = vmatprep.subr.bf16.mxu0 0
      %6091 = vmatpush1.bf16.msra.mxu0 0
      %6092 = vmatprep.subr.bf16.mxu0 0
      %6093 = vmatpush1.bf16.msra.mxu0 0
      %6094 = vmatprep.subr.bf16.mxu0 0
      %6095 = vmatpush1.bf16.msra.mxu0 0
      %6096 = vmatprep.mubr.bf16.mxu0 0
      %6097 = vmatmul.mubr.bf16.gmra.mrb[0].mxu0 %v6029
      %v6098 = vpop.f32.mrb[0].mxu0
      %v6099 = vadd.f32 0.0, %v6098
      %v6100 = vpop.f32.mrb[0].mxu0
      %v6101 = vpop.f32.mrb[0].mxu0
      %v6102 = vadd.f32 0.0, %v6101
      %v6103 = vpop.f32.mrb[0].mxu0
      %6104 = vmatprep.mubr.bf16.mxu0 0
      %6105 = vmatmul.mubr.bf16.gmra.mrb[0].mxu0 %v6031
      %v6106 = vpop.f32.mrb[0].mxu0
      %v6107 = vadd.f32 0.0, %v6106
      %v6108 = vpop.f32.mrb[0].mxu0
      %v6109 = vpop.f32.mrb[0].mxu0
      %v6110 = vadd.f32 0.0, %v6109
      %v6111 = vpop.f32.mrb[0].mxu0
      %6112 = vmatprep.mubr.bf16.mxu0 0
      %6113 = vmatmul.mubr.bf16.gmra.mrb[0].mxu0 %v6033
      %v6114 = vpop.f32.mrb[0].mxu0
      %v6115 = vadd.f32 0.0, %v6114
      %v6116 = vpop.f32.mrb[0].mxu0
      %v6117 = vpop.f32.mrb[0].mxu0
      %v6118 = vadd.f32 0.0, %v6117
      %v6119 = vpop.f32.mrb[0].mxu0
      %6120 = vmatprep.mubr.bf16.mxu0 0
      %6121 = vmatmul.mubr.bf16.gmra.mrb[0].mxu0 %v6035
      %v6122 = vpop.f32.mrb[0].mxu0
      %v6123 = vadd.f32 0.0, %v6122
      %v6124 = vpop.f32.mrb[0].mxu0
      %v6125 = vpop.f32.mrb[0].mxu0
      %v6126 = vadd.f32 0.0, %v6125
      %v6127 = vpop.f32.mrb[0].mxu0
      %6128 = vmatprep.mubr.bf16.mxu0 0
      %6129 = vmatmul.mubr.bf16.gmra.mrb[0].mxu0 %v6037
      %v6130 = vpop.f32.mrb[0].mxu0
      %v6131 = vadd.f32 0.0, %v6130
      %v6132 = vpop.f32.mrb[0].mxu0
      %v6133 = vpop.f32.mrb[0].mxu0
      %v6134 = vadd.f32 0.0, %v6133
      %v6135 = vpop.f32.mrb[0].mxu0
      %6136 = vmatprep.mubr.bf16.mxu0 0
      %6137 = vmatmul.mubr.bf16.gmra.mrb[0].mxu0 %v6039
      %v6138 = vpop.f32.mrb[0].mxu0
      %v6139 = vadd.f32 0.0, %v6138
      %v6140 = vpop.f32.mrb[0].mxu0
      %v6141 = vpop.f32.mrb[0].mxu0
      %v6142 = vadd.f32 0.0, %v6141
      %v6143 = vpop.f32.mrb[0].mxu0
      %6144 = vmatprep.mubr.bf16.mxu0 0
      %6145 = vmatmul.mubr.bf16.gmra.mrb[0].mxu0 %v6041
      %v6146 = vpop.f32.mrb[0].mxu0
      %v6147 = vadd.f32 0.0, %v6146
      %v6148 = vpop.f32.mrb[0].mxu0
      %v6149 = vpop.f32.mrb[0].mxu0
      %v6150 = vadd.f32 0.0, %v6149
      %v6151 = vpop.f32.mrb[0].mxu0
      %6152 = vmatprep.mubr.bf16.mxu0 0
      %6153 = vmatmul.mubr.bf16.gmra.mrb[0].mxu0 %v6043
      %v6154 = vpop.f32.mrb[0].mxu0
      %v6155 = vadd.f32 0.0, %v6154
      %v6156 = vpop.f32.mrb[0].mxu0
      %v6157 = vpop.f32.mrb[0].mxu0
      %v6158 = vadd.f32 0.0, %v6157
      %v6159 = vpop.f32.mrb[0].mxu0
      %6160 = vmatprep.mubr.bf16.mxu0 0
      %6161 = vmatmul.mubr.bf16.gmra.mrb[0].mxu0 %v6045
      %v6162 = vpop.f32.mrb[0].mxu0
      %v6163 = vadd.f32 0.0, %v6162
      %v6164 = vpop.f32.mrb[0].mxu0
      %v6165 = vpop.f32.mrb[0].mxu0
      %v6166 = vadd.f32 0.0, %v6165
      %v6167 = vpop.f32.mrb[0].mxu0
      %6168 = vmatprep.mubr.bf16.mxu0 0
      %6169 = vmatmul.mubr.bf16.gmra.mrb[0].mxu0 %v6047
      %v6170 = vpop.f32.mrb[0].mxu0
      %v6171 = vadd.f32 0.0, %v6170
      %v6172 = vpop.f32.mrb[0].mxu0
      %v6173 = vpop.f32.mrb[0].mxu0
      %v6174 = vadd.f32 0.0, %v6173
      %v6175 = vpop.f32.mrb[0].mxu0
      %6176 = vmatprep.mubr.bf16.mxu0 0
      %6177 = vmatmul.mubr.bf16.gmra.mrb[0].mxu0 %v6049
      %v6178 = vpop.f32.mrb[0].mxu0
      %v6179 = vadd.f32 0.0, %v6178
      %v6180 = vpop.f32.mrb[0].mxu0
      %v6181 = vpop.f32.mrb[0].mxu0
      %v6182 = vadd.f32 0.0, %v6181
      %v6183 = vpop.f32.mrb[0].mxu0
      %6184 = vmatprep.mubr.bf16.mxu0 0
      %6185 = vmatmul.mubr.bf16.gmra.mrb[0].mxu0 %v6051
      %v6186 = vpop.f32.mrb[0].mxu0
      %v6187 = vadd.f32 0.0, %v6186
      %v6188 = vpop.f32.mrb[0].mxu0
      %v6189 = vpop.f32.mrb[0].mxu0
      %v6190 = vadd.f32 0.0, %v6189
      %v6191 = vpop.f32.mrb[0].mxu0
      %6192 = vmatprep.mubr.bf16.mxu0 0
      %6193 = vmatmul.mubr.bf16.gmra.mrb[0].mxu0 %v6053
      %v6194 = vpop.f32.mrb[0].mxu0
      %v6195 = vadd.f32 0.0, %v6194
      %v6196 = vpop.f32.mrb[0].mxu0
      %v6197 = vpop.f32.mrb[0].mxu0
      %v6198 = vadd.f32 0.0, %v6197
      %v6199 = vpop.f32.mrb[0].mxu0
      %6200 = vmatprep.mubr.bf16.mxu0 0
      %6201 = vmatmul.mubr.bf16.gmra.mrb[0].mxu0 %v6055
      %v6202 = vpop.f32.mrb[0].mxu0
      %v6203 = vadd.f32 0.0, %v6202
      %v6204 = vpop.f32.mrb[0].mxu0
      %v6205 = vpop.f32.mrb[0].mxu0
      %v6206 = vadd.f32 0.0, %v6205
      %v6207 = vpop.f32.mrb[0].mxu0
      %6208 = vmatprep.mubr.bf16.mxu0 0
      %6209 = vmatmul.mubr.bf16.gmra.mrb[0].mxu0 %v6057
      %v6210 = vpop.f32.mrb[0].mxu0
      %v6211 = vadd.f32 0.0, %v6210
      %v6212 = vpop.f32.mrb[0].mxu0
      %v6213 = vpop.f32.mrb[0].mxu0
      %v6214 = vadd.f32 0.0, %v6213
      %v6215 = vpop.f32.mrb[0].mxu0
      %6216 = vmatprep.mubr.bf16.mxu0 0
      %6217 = vmatmul.mubr.bf16.gmra.mrb[0].mxu0 %v6059
      %v6218 = vpop.f32.mrb[0].mxu0
      %v6219 = vadd.f32 0.0, %v6218
      %v6220 = vpop.f32.mrb[0].mxu0
      %v6221 = vpop.f32.mrb[0].mxu0
      %v6222 = vadd.f32 0.0, %v6221
      %v6223 = vpop.f32.mrb[0].mxu0
      %6224 = vdwg.mxu0
      %s6225 = scalar_lea.vmem [#allocation2], 504
      %v6226 = vld [vmem:[%s6225 + $0x4] sm:$0x8]
      %v6227 = vld [vmem:[%s6225 + $0x8] sm:$0xf]
      %v6228 = vld [vmem:[%s6225 + $0xc] sm:$0x7]
      %v6229 = vld [vmem:[%s6225 + $0x28] sm:$0x8]
      %v6230 = vld [vmem:[%s6225 + $0x2c] sm:$0xf]
      %v6231 = vld [vmem:[%s6225 + $0x30] sm:$0x7]
      %v6232 = vld [vmem:[%s6225 + $0x4c] sm:$0x8]
      %v6233 = vld [vmem:[%s6225 + $0x50] sm:$0xf]
      %v6234 = vld [vmem:[%s6225 + $0x54] sm:$0x7]
      %v6235 = vld [vmem:[%s6225 + $0x70] sm:$0x8]
      %v6236 = vld [vmem:[%s6225 + $0x74] sm:$0xf]
      %v6237 = vld [vmem:[%s6225 + $0x78] sm:$0x7]
      %v6238 = vld [vmem:[%s6225 + $0x94] sm:$0x8]
      %v6239 = vld [vmem:[%s6225 + $0x98] sm:$0xf]
      %v6240 = vld [vmem:[%s6225 + $0x9c] sm:$0x7]
      %v6241 = vld [vmem:[%s6225 + $0xb8] sm:$0x8]
      %v6242 = vld [vmem:[%s6225 + $0xbc] sm:$0xf]
      %v6243 = vld [vmem:[%s6225 + $0xc0] sm:$0x7]
      %v6244 = vld [vmem:[%s6225 + $0xdc] sm:$0x8]
      %v6245 = vld [vmem:[%s6225 + $0xe0] sm:$0xf]
      %v6246 = vld [vmem:[%s6225 + $0xe4] sm:$0x7]
      %v6247 = vld [vmem:[%s6225 + $0x100] sm:$0x8]
      %v6248 = vld [vmem:[%s6225 + $0x104] sm:$0xf]
      %v6249 = vld [vmem:[%s6225 + $0x108] sm:$0x7]
      %v6250 = vld [vmem:[%s6225 + $0x124] sm:$0x8]
      %v6251 = vld [vmem:[%s6225 + $0x128] sm:$0xf]
      %v6252 = vld [vmem:[%s6225 + $0x12c] sm:$0x7]
      %v6253 = vld [vmem:[%s6225 + $0x148] sm:$0x8]
      %v6254 = vld [vmem:[%s6225 + $0x14c] sm:$0xf]
      %v6255 = vld [vmem:[%s6225 + $0x150] sm:$0x7]
      %v6256 = vld [vmem:[%s6225 + $0x16c] sm:$0x8]
      %v6257 = vld [vmem:[%s6225 + $0x170] sm:$0xf]
      %v6258 = vld [vmem:[%s6225 + $0x174] sm:$0x7]
      %v6259 = vld [vmem:[%s6225 + $0x190] sm:$0x8]
      %v6260 = vld [vmem:[%s6225 + $0x194] sm:$0xf]
      %v6261 = vld [vmem:[%s6225 + $0x198] sm:$0x7]
      %v6262 = vld [vmem:[%s6225 + $0x1b4] sm:$0x8]
      %v6263 = vld [vmem:[%s6225 + $0x1b8] sm:$0xf]
      %v6264 = vld [vmem:[%s6225 + $0x1bc] sm:$0x7]
      %v6265 = vld [vmem:[%s6225 + $0x1d8] sm:$0x8]
      %v6266 = vld [vmem:[%s6225 + $0x1dc] sm:$0xf]
      %v6267 = vld [vmem:[%s6225 + $0x1e0] sm:$0x7]
      %v6268 = vld [vmem:[%s6225 + $0x1fc] sm:$0x8]
      %v6269 = vld [vmem:[%s6225 + $0x200] sm:$0xf]
      %v6270 = vld [vmem:[%s6225 + $0x204] sm:$0x7]
      %v6271 = vld [vmem:[%s6225 + $0x220] sm:$0x8]
      %v6272 = vld [vmem:[%s6225 + $0x224] sm:$0xf]
      %v6273 = vld [vmem:[%s6225 + $0x228] sm:$0x7]
      %v6322 = vrot.slane %v6226, 7
      %v6323 = vrot.slane %v6322, 4
      %v6324 = vrot.slane %v6227, 7
      %v6325 = vsel %vm1681, %v6323, %v6324
      %v6326 = vrot.slane %v6324, 4
      %v6327 = vrot.slane %v6228, 7
      %v6328 = vsel %vm1681, %v6326, %v6327
      %v6329 = vrot.slane %v6229, 7
      %v6330 = vrot.slane %v6329, 4
      %v6331 = vrot.slane %v6230, 7
      %v6332 = vsel %vm1681, %v6330, %v6331
      %v6333 = vrot.slane %v6331, 4
      %v6334 = vrot.slane %v6231, 7
      %v6335 = vsel %vm1681, %v6333, %v6334
      %v6336 = vrot.slane %v6232, 7
      %v6337 = vrot.slane %v6336, 4
      %v6338 = vrot.slane %v6233, 7
      %v6339 = vsel %vm1681, %v6337, %v6338
      %v6340 = vrot.slane %v6338, 4
      %v6341 = vrot.slane %v6234, 7
      %v6342 = vsel %vm1681, %v6340, %v6341
      %v6343 = vrot.slane %v6235, 7
      %v6344 = vrot.slane %v6343, 4
      %v6345 = vrot.slane %v6236, 7
      %v6346 = vsel %vm1681, %v6344, %v6345
      %v6347 = vrot.slane %v6345, 4
      %v6348 = vrot.slane %v6237, 7
      %v6349 = vsel %vm1681, %v6347, %v6348
      %v6350 = vrot.slane %v6238, 7
      %v6351 = vrot.slane %v6350, 4
      %v6352 = vrot.slane %v6239, 7
      %v6353 = vsel %vm1681, %v6351, %v6352
      %v6354 = vrot.slane %v6352, 4
      %v6355 = vrot.slane %v6240, 7
      %v6356 = vsel %vm1681, %v6354, %v6355
      %v6357 = vrot.slane %v6241, 7
      %v6358 = vrot.slane %v6357, 4
      %v6359 = vrot.slane %v6242, 7
      %v6360 = vsel %vm1681, %v6358, %v6359
      %v6361 = vrot.slane %v6359, 4
      %v6362 = vrot.slane %v6243, 7
      %v6363 = vsel %vm1681, %v6361, %v6362
      %v6364 = vrot.slane %v6244, 7
      %v6365 = vrot.slane %v6364, 4
      %v6366 = vrot.slane %v6245, 7
      %v6367 = vsel %vm1681, %v6365, %v6366
      %v6368 = vrot.slane %v6366, 4
      %v6369 = vrot.slane %v6246, 7
      %v6370 = vsel %vm1681, %v6368, %v6369
      %v6371 = vrot.slane %v6247, 7
      %v6372 = vrot.slane %v6371, 4
      %v6373 = vrot.slane %v6248, 7
      %v6374 = vsel %vm1681, %v6372, %v6373
      %v6375 = vrot.slane %v6373, 4
      %v6376 = vrot.slane %v6249, 7
      %v6377 = vsel %vm1681, %v6375, %v6376
      %v6378 = vrot.slane %v6250, 7
      %v6379 = vrot.slane %v6378, 4
      %v6380 = vrot.slane %v6251, 7
      %v6381 = vsel %vm1681, %v6379, %v6380
      %v6382 = vrot.slane %v6380, 4
      %v6383 = vrot.slane %v6252, 7
      %v6384 = vsel %vm1681, %v6382, %v6383
      %v6385 = vrot.slane %v6253, 7
      %v6386 = vrot.slane %v6385, 4
      %v6387 = vrot.slane %v6254, 7
      %v6388 = vsel %vm1681, %v6386, %v6387
      %v6389 = vrot.slane %v6387, 4
      %v6390 = vrot.slane %v6255, 7
      %v6391 = vsel %vm1681, %v6389, %v6390
      %v6392 = vrot.slane %v6256, 7
      %v6393 = vrot.slane %v6392, 4
      %v6394 = vrot.slane %v6257, 7
      %v6395 = vsel %vm1681, %v6393, %v6394
      %v6396 = vrot.slane %v6394, 4
      %v6397 = vrot.slane %v6258, 7
      %v6398 = vsel %vm1681, %v6396, %v6397
      %v6399 = vrot.slane %v6259, 7
      %v6400 = vrot.slane %v6399, 4
      %v6401 = vrot.slane %v6260, 7
      %v6402 = vsel %vm1681, %v6400, %v6401
      %v6403 = vrot.slane %v6401, 4
      %v6404 = vrot.slane %v6261, 7
      %v6405 = vsel %vm1681, %v6403, %v6404
      %v6406 = vrot.slane %v6262, 7
      %v6407 = vrot.slane %v6406, 4
      %v6408 = vrot.slane %v6263, 7
      %v6409 = vsel %vm1681, %v6407, %v6408
      %v6410 = vrot.slane %v6408, 4
      %v6411 = vrot.slane %v6264, 7
      %v6412 = vsel %vm1681, %v6410, %v6411
      %v6413 = vrot.slane %v6265, 7
      %v6414 = vrot.slane %v6413, 4
      %v6415 = vrot.slane %v6266, 7
      %v6416 = vsel %vm1681, %v6414, %v6415
      %v6417 = vrot.slane %v6415, 4
      %v6418 = vrot.slane %v6267, 7
      %v6419 = vsel %vm1681, %v6417, %v6418
      %v6420 = vrot.slane %v6268, 7
      %v6421 = vrot.slane %v6420, 4
      %v6422 = vrot.slane %v6269, 7
      %v6423 = vsel %vm1681, %v6421, %v6422
      %v6424 = vrot.slane %v6422, 4
      %v6425 = vrot.slane %v6270, 7
      %v6426 = vsel %vm1681, %v6424, %v6425
      %v6427 = vrot.slane %v6271, 7
      %v6428 = vrot.slane %v6427, 4
      %v6429 = vrot.slane %v6272, 7
      %v6430 = vsel %vm1681, %v6428, %v6429
      %v6431 = vrot.slane %v6429, 4
      %v6432 = vrot.slane %v6273, 7
      %v6433 = vsel %vm1681, %v6431, %v6432
      %v6434 = vld [vmem:[%s6225 + $0x10] sm:$0xf]
      %v6435 = vld [vmem:[%s6225 + $0x14] sm:$0xf]
      %v6436 = vld [vmem:[%s6225 + $0x34] sm:$0xf]
      %v6437 = vld [vmem:[%s6225 + $0x38] sm:$0xf]
      %v6438 = vld [vmem:[%s6225 + $0x58] sm:$0xf]
      %v6439 = vld [vmem:[%s6225 + $0x5c] sm:$0xf]
      %v6440 = vld [vmem:[%s6225 + $0x7c] sm:$0xf]
      %v6441 = vld [vmem:[%s6225 + $0x80] sm:$0xf]
      %v6442 = vld [vmem:[%s6225 + $0xa0] sm:$0xf]
      %v6443 = vld [vmem:[%s6225 + $0xa4] sm:$0xf]
      %v6444 = vld [vmem:[%s6225 + $0xc4] sm:$0xf]
      %v6445 = vld [vmem:[%s6225 + $0xc8] sm:$0xf]
      %v6446 = vld [vmem:[%s6225 + $0xe8] sm:$0xf]
      %v6447 = vld [vmem:[%s6225 + $0xec] sm:$0xf]
      %v6448 = vld [vmem:[%s6225 + $0x10c] sm:$0xf]
      %v6449 = vld [vmem:[%s6225 + $0x110] sm:$0xf]
      %v6450 = vld [vmem:[%s6225 + $0x130] sm:$0xf]
      %v6451 = vld [vmem:[%s6225 + $0x134] sm:$0xf]
      %v6452 = vld [vmem:[%s6225 + $0x154] sm:$0xf]
      %v6453 = vld [vmem:[%s6225 + $0x158] sm:$0xf]
      %v6454 = vld [vmem:[%s6225 + $0x178] sm:$0xf]
      %v6455 = vld [vmem:[%s6225 + $0x17c] sm:$0xf]
      %v6456 = vld [vmem:[%s6225 + $0x19c] sm:$0xf]
      %v6457 = vld [vmem:[%s6225 + $0x1a0] sm:$0xf]
      %v6458 = vld [vmem:[%s6225 + $0x1c0] sm:$0xf]
      %v6459 = vld [vmem:[%s6225 + $0x1c4] sm:$0xf]
      %v6460 = vld [vmem:[%s6225 + $0x1e4] sm:$0xf]
      %v6461 = vld [vmem:[%s6225 + $0x1e8] sm:$0xf]
      %v6462 = vld [vmem:[%s6225 + $0x208] sm:$0xf]
      %v6463 = vld [vmem:[%s6225 + $0x20c] sm:$0xf]
      %v6464 = vld [vmem:[%s6225 + $0x22c] sm:$0xf]
      %v6465 = vld [vmem:[%s6225 + $0x230] sm:$0xf]
      %v6466 = vld [vmem:[%s6225 + $0x18] sm:$0xe]
      %v6467 = vld [vmem:[%s6225 + $0x1c] sm:$0xf]
      %v6468 = vld [vmem:[%s6225 + $0x20] sm:$0x1]
      %v6469 = vld [vmem:[%s6225 + $0x3c] sm:$0xe]
      %v6470 = vld [vmem:[%s6225 + $0x40] sm:$0xf]
      %v6471 = vld [vmem:[%s6225 + $0x44] sm:$0x1]
      %v6472 = vld [vmem:[%s6225 + $0x60] sm:$0xe]
      %v6473 = vld [vmem:[%s6225 + $0x64] sm:$0xf]
      %v6474 = vld [vmem:[%s6225 + $0x68] sm:$0x1]
      %v6475 = vld [vmem:[%s6225 + $0x84] sm:$0xe]
      %v6476 = vld [vmem:[%s6225 + $0x88] sm:$0xf]
      %v6477 = vld [vmem:[%s6225 + $0x8c] sm:$0x1]
      %v6478 = vld [vmem:[%s6225 + $0xa8] sm:$0xe]
      %v6479 = vld [vmem:[%s6225 + $0xac] sm:$0xf]
      %v6480 = vld [vmem:[%s6225 + $0xb0] sm:$0x1]
      %v6481 = vld [vmem:[%s6225 + $0xcc] sm:$0xe]
      %v6482 = vld [vmem:[%s6225 + $0xd0] sm:$0xf]
      %v6483 = vld [vmem:[%s6225 + $0xd4] sm:$0x1]
      %v6484 = vld [vmem:[%s6225 + $0xf0] sm:$0xe]
      %v6485 = vld [vmem:[%s6225 + $0xf4] sm:$0xf]
      %v6486 = vld [vmem:[%s6225 + $0xf8] sm:$0x1]
      %v6487 = vld [vmem:[%s6225 + $0x114] sm:$0xe]
      %v6488 = vld [vmem:[%s6225 + $0x118] sm:$0xf]
      %v6489 = vld [vmem:[%s6225 + $0x11c] sm:$0x1]
      %v6490 = vld [vmem:[%s6225 + $0x138] sm:$0xe]
      %v6491 = vld [vmem:[%s6225 + $0x13c] sm:$0xf]
      %v6492 = vld [vmem:[%s6225 + $0x140] sm:$0x1]
      %v6493 = vld [vmem:[%s6225 + $0x15c] sm:$0xe]
      %v6494 = vld [vmem:[%s6225 + $0x160] sm:$0xf]
      %v6495 = vld [vmem:[%s6225 + $0x164] sm:$0x1]
      %v6496 = vld [vmem:[%s6225 + $0x180] sm:$0xe]
      %v6497 = vld [vmem:[%s6225 + $0x184] sm:$0xf]
      %v6498 = vld [vmem:[%s6225 + $0x188] sm:$0x1]
      %v6499 = vld [vmem:[%s6225 + $0x1a4] sm:$0xe]
      %v6500 = vld [vmem:[%s6225 + $0x1a8] sm:$0xf]
      %v6501 = vld [vmem:[%s6225 + $0x1ac] sm:$0x1]
      %v6502 = vld [vmem:[%s6225 + $0x1c8] sm:$0xe]
      %v6503 = vld [vmem:[%s6225 + $0x1cc] sm:$0xf]
      %v6504 = vld [vmem:[%s6225 + $0x1d0] sm:$0x1]
      %v6505 = vld [vmem:[%s6225 + $0x1ec] sm:$0xe]
      %v6506 = vld [vmem:[%s6225 + $0x1f0] sm:$0xf]
      %v6507 = vld [vmem:[%s6225 + $0x1f4] sm:$0x1]
      %v6508 = vld [vmem:[%s6225 + $0x210] sm:$0xe]
      %v6509 = vld [vmem:[%s6225 + $0x214] sm:$0xf]
      %v6510 = vld [vmem:[%s6225 + $0x218] sm:$0x1]
      %v6511 = vld [vmem:[%s6225 + $0x234] sm:$0xe]
      %v6512 = vld [vmem:[%s6225 + $0x238] sm:$0xf]
      %v6513 = vld [vmem:[%s6225 + $0x23c] sm:$0x1]
      %v6562 = vrot.slane %v6466, 5
      %v6563 = vrot.slane %v6562, 4
      %v6564 = vrot.slane %v6467, 5
      %v6565 = vsel %vm1470, %v6563, %v6564
      %v6566 = vrot.slane %v6564, 4
      %v6567 = vrot.slane %v6468, 5
      %v6568 = vsel %vm1470, %v6566, %v6567
      %v6569 = vrot.slane %v6469, 5
      %v6570 = vrot.slane %v6569, 4
      %v6571 = vrot.slane %v6470, 5
      %v6572 = vsel %vm1470, %v6570, %v6571
      %v6573 = vrot.slane %v6571, 4
      %v6574 = vrot.slane %v6471, 5
      %v6575 = vsel %vm1470, %v6573, %v6574
      %v6576 = vrot.slane %v6472, 5
      %v6577 = vrot.slane %v6576, 4
      %v6578 = vrot.slane %v6473, 5
      %v6579 = vsel %vm1470, %v6577, %v6578
      %v6580 = vrot.slane %v6578, 4
      %v6581 = vrot.slane %v6474, 5
      %v6582 = vsel %vm1470, %v6580, %v6581
      %v6583 = vrot.slane %v6475, 5
      %v6584 = vrot.slane %v6583, 4
      %v6585 = vrot.slane %v6476, 5
      %v6586 = vsel %vm1470, %v6584, %v6585
      %v6587 = vrot.slane %v6585, 4
      %v6588 = vrot.slane %v6477, 5
      %v6589 = vsel %vm1470, %v6587, %v6588
      %v6590 = vrot.slane %v6478, 5
      %v6591 = vrot.slane %v6590, 4
      %v6592 = vrot.slane %v6479, 5
      %v6593 = vsel %vm1470, %v6591, %v6592
      %v6594 = vrot.slane %v6592, 4
      %v6595 = vrot.slane %v6480, 5
      %v6596 = vsel %vm1470, %v6594, %v6595
      %v6597 = vrot.slane %v6481, 5
      %v6598 = vrot.slane %v6597, 4
      %v6599 = vrot.slane %v6482, 5
      %v6600 = vsel %vm1470, %v6598, %v6599
      %v6601 = vrot.slane %v6599, 4
      %v6602 = vrot.slane %v6483, 5
      %v6603 = vsel %vm1470, %v6601, %v6602
      %v6604 = vrot.slane %v6484, 5
      %v6605 = vrot.slane %v6604, 4
      %v6606 = vrot.slane %v6485, 5
      %v6607 = vsel %vm1470, %v6605, %v6606
      %v6608 = vrot.slane %v6606, 4
      %v6609 = vrot.slane %v6486, 5
      %v6610 = vsel %vm1470, %v6608, %v6609
      %v6611 = vrot.slane %v6487, 5
      %v6612 = vrot.slane %v6611, 4
      %v6613 = vrot.slane %v6488, 5
      %v6614 = vsel %vm1470, %v6612, %v6613
      %v6615 = vrot.slane %v6613, 4
      %v6616 = vrot.slane %v6489, 5
      %v6617 = vsel %vm1470, %v6615, %v6616
      %v6618 = vrot.slane %v6490, 5
      %v6619 = vrot.slane %v6618, 4
      %v6620 = vrot.slane %v6491, 5
      %v6621 = vsel %vm1470, %v6619, %v6620
      %v6622 = vrot.slane %v6620, 4
      %v6623 = vrot.slane %v6492, 5
      %v6624 = vsel %vm1470, %v6622, %v6623
      %v6625 = vrot.slane %v6493, 5
      %v6626 = vrot.slane %v6625, 4
      %v6627 = vrot.slane %v6494, 5
      %v6628 = vsel %vm1470, %v6626, %v6627
      %v6629 = vrot.slane %v6627, 4
      %v6630 = vrot.slane %v6495, 5
      %v6631 = vsel %vm1470, %v6629, %v6630
      %v6632 = vrot.slane %v6496, 5
      %v6633 = vrot.slane %v6632, 4
      %v6634 = vrot.slane %v6497, 5
      %v6635 = vsel %vm1470, %v6633, %v6634
      %v6636 = vrot.slane %v6634, 4
      %v6637 = vrot.slane %v6498, 5
      %v6638 = vsel %vm1470, %v6636, %v6637
      %v6639 = vrot.slane %v6499, 5
      %v6640 = vrot.slane %v6639, 4
      %v6641 = vrot.slane %v6500, 5
      %v6642 = vsel %vm1470, %v6640, %v6641
      %v6643 = vrot.slane %v6641, 4
      %v6644 = vrot.slane %v6501, 5
      %v6645 = vsel %vm1470, %v6643, %v6644
      %v6646 = vrot.slane %v6502, 5
      %v6647 = vrot.slane %v6646, 4
      %v6648 = vrot.slane %v6503, 5
      %v6649 = vsel %vm1470, %v6647, %v6648
      %v6650 = vrot.slane %v6648, 4
      %v6651 = vrot.slane %v6504, 5
      %v6652 = vsel %vm1470, %v6650, %v6651
      %v6653 = vrot.slane %v6505, 5
      %v6654 = vrot.slane %v6653, 4
      %v6655 = vrot.slane %v6506, 5
      %v6656 = vsel %vm1470, %v6654, %v6655
      %v6657 = vrot.slane %v6655, 4
      %v6658 = vrot.slane %v6507, 5
      %v6659 = vsel %vm1470, %v6657, %v6658
      %v6660 = vrot.slane %v6508, 5
      %v6661 = vrot.slane %v6660, 4
      %v6662 = vrot.slane %v6509, 5
      %v6663 = vsel %vm1470, %v6661, %v6662
      %v6664 = vrot.slane %v6662, 4
      %v6665 = vrot.slane %v6510, 5
      %v6666 = vsel %vm1470, %v6664, %v6665
      %v6667 = vrot.slane %v6511, 5
      %v6668 = vrot.slane %v6667, 4
      %v6669 = vrot.slane %v6512, 5
      %v6670 = vsel %vm1470, %v6668, %v6669
      %v6671 = vrot.slane %v6669, 4
      %v6672 = vrot.slane %v6513, 5
      %v6673 = vsel %vm1470, %v6671, %v6672
      %v6674 = vld [vmem:[%s1043 + $0x4] sm:$0x8]
      %v6675 = vld [vmem:[%s1043 + $0x8] sm:$0xf]
      %v6676 = vld [vmem:[%s1043 + $0xc] sm:$0x7]
      %v6677 = vld [vmem:[%s1043 + $0x28] sm:$0x8]
      %v6678 = vld [vmem:[%s1043 + $0x2c] sm:$0xf]
      %v6679 = vld [vmem:[%s1043 + $0x30] sm:$0x7]
      %v6680 = vld [vmem:[%s1043 + $0x4c] sm:$0x8]
      %v6681 = vld [vmem:[%s1043 + $0x50] sm:$0xf]
      %v6682 = vld [vmem:[%s1043 + $0x54] sm:$0x7]
      %v6683 = vld [vmem:[%s1043 + $0x70] sm:$0x8]
      %v6684 = vld [vmem:[%s1043 + $0x74] sm:$0xf]
      %v6685 = vld [vmem:[%s1043 + $0x78] sm:$0x7]
      %v6686 = vld [vmem:[%s1043 + $0x94] sm:$0x8]
      %v6687 = vld [vmem:[%s1043 + $0x98] sm:$0xf]
      %v6688 = vld [vmem:[%s1043 + $0x9c] sm:$0x7]
      %v6689 = vld [vmem:[%s1043 + $0xb8] sm:$0x8]
      %v6690 = vld [vmem:[%s1043 + $0xbc] sm:$0xf]
      %v6691 = vld [vmem:[%s1043 + $0xc0] sm:$0x7]
      %v6692 = vld [vmem:[%s1043 + $0xdc] sm:$0x8]
      %v6693 = vld [vmem:[%s1043 + $0xe0] sm:$0xf]
      %v6694 = vld [vmem:[%s1043 + $0xe4] sm:$0x7]
      %v6695 = vld [vmem:[%s1043 + $0x100] sm:$0x8]
      %v6696 = vld [vmem:[%s1043 + $0x104] sm:$0xf]
      %v6697 = vld [vmem:[%s1043 + $0x108] sm:$0x7]
      %v6698 = vld [vmem:[%s1043 + $0x124] sm:$0x8]
      %v6699 = vld [vmem:[%s1043 + $0x128] sm:$0xf]
      %v6700 = vld [vmem:[%s1043 + $0x12c] sm:$0x7]
      %v6701 = vld [vmem:[%s1043 + $0x148] sm:$0x8]
      %v6702 = vld [vmem:[%s1043 + $0x14c] sm:$0xf]
      %v6703 = vld [vmem:[%s1043 + $0x150] sm:$0x7]
      %v6704 = vld [vmem:[%s1043 + $0x16c] sm:$0x8]
      %v6705 = vld [vmem:[%s1043 + $0x170] sm:$0xf]
      %v6706 = vld [vmem:[%s1043 + $0x174] sm:$0x7]
      %v6707 = vld [vmem:[%s1043 + $0x190] sm:$0x8]
      %v6708 = vld [vmem:[%s1043 + $0x194] sm:$0xf]
      %v6709 = vld [vmem:[%s1043 + $0x198] sm:$0x7]
      %v6710 = vld [vmem:[%s1043 + $0x1b4] sm:$0x8]
      %v6711 = vld [vmem:[%s1043 + $0x1b8] sm:$0xf]
      %v6712 = vld [vmem:[%s1043 + $0x1bc] sm:$0x7]
      %v6713 = vld [vmem:[%s1043 + $0x1d8] sm:$0x8]
      %v6714 = vld [vmem:[%s1043 + $0x1dc] sm:$0xf]
      %v6715 = vld [vmem:[%s1043 + $0x1e0] sm:$0x7]
      %v6716 = vld [vmem:[%s1043 + $0x1fc] sm:$0x8]
      %v6717 = vld [vmem:[%s1043 + $0x200] sm:$0xf]
      %v6718 = vld [vmem:[%s1043 + $0x204] sm:$0x7]
      %v6719 = vld [vmem:[%s1043 + $0x220] sm:$0x8]
      %v6720 = vld [vmem:[%s1043 + $0x224] sm:$0xf]
      %v6721 = vld [vmem:[%s1043 + $0x228] sm:$0x7]
      %v6770 = vrot.slane %v6674, 7
      %v6771 = vrot.slane %v6770, 4
      %v6772 = vrot.slane %v6675, 7
      %v6773 = vsel %vm1681, %v6771, %v6772
      %v6774 = vrot.slane %v6772, 4
      %v6775 = vrot.slane %v6676, 7
      %v6776 = vsel %vm1681, %v6774, %v6775
      %v6777 = vrot.slane %v6677, 7
      %v6778 = vrot.slane %v6777, 4
      %v6779 = vrot.slane %v6678, 7
      %v6780 = vsel %vm1681, %v6778, %v6779
      %v6781 = vrot.slane %v6779, 4
      %v6782 = vrot.slane %v6679, 7
      %v6783 = vsel %vm1681, %v6781, %v6782
      %v6784 = vrot.slane %v6680, 7
      %v6785 = vrot.slane %v6784, 4
      %v6786 = vrot.slane %v6681, 7
      %v6787 = vsel %vm1681, %v6785, %v6786
      %v6788 = vrot.slane %v6786, 4
      %v6789 = vrot.slane %v6682, 7
      %v6790 = vsel %vm1681, %v6788, %v6789
      %v6791 = vrot.slane %v6683, 7
      %v6792 = vrot.slane %v6791, 4
      %v6793 = vrot.slane %v6684, 7
      %v6794 = vsel %vm1681, %v6792, %v6793
      %v6795 = vrot.slane %v6793, 4
      %v6796 = vrot.slane %v6685, 7
      %v6797 = vsel %vm1681, %v6795, %v6796
      %v6798 = vrot.slane %v6686, 7
      %v6799 = vrot.slane %v6798, 4
      %v6800 = vrot.slane %v6687, 7
      %v6801 = vsel %vm1681, %v6799, %v6800
      %v6802 = vrot.slane %v6800, 4
      %v6803 = vrot.slane %v6688, 7
      %v6804 = vsel %vm1681, %v6802, %v6803
      %v6805 = vrot.slane %v6689, 7
      %v6806 = vrot.slane %v6805, 4
      %v6807 = vrot.slane %v6690, 7
      %v6808 = vsel %vm1681, %v6806, %v6807
      %v6809 = vrot.slane %v6807, 4
      %v6810 = vrot.slane %v6691, 7
      %v6811 = vsel %vm1681, %v6809, %v6810
      %v6812 = vrot.slane %v6692, 7
      %v6813 = vrot.slane %v6812, 4
      %v6814 = vrot.slane %v6693, 7
      %v6815 = vsel %vm1681, %v6813, %v6814
      %v6816 = vrot.slane %v6814, 4
      %v6817 = vrot.slane %v6694, 7
      %v6818 = vsel %vm1681, %v6816, %v6817
      %v6819 = vrot.slane %v6695, 7
      %v6820 = vrot.slane %v6819, 4
      %v6821 = vrot.slane %v6696, 7
      %v6822 = vsel %vm1681, %v6820, %v6821
      %v6823 = vrot.slane %v6821, 4
      %v6824 = vrot.slane %v6697, 7
      %v6825 = vsel %vm1681, %v6823, %v6824
      %v6826 = vrot.slane %v6698, 7
      %v6827 = vrot.slane %v6826, 4
      %v6828 = vrot.slane %v6699, 7
      %v6829 = vsel %vm1681, %v6827, %v6828
      %v6830 = vrot.slane %v6828, 4
      %v6831 = vrot.slane %v6700, 7
      %v6832 = vsel %vm1681, %v6830, %v6831
      %v6833 = vrot.slane %v6701, 7
      %v6834 = vrot.slane %v6833, 4
      %v6835 = vrot.slane %v6702, 7
      %v6836 = vsel %vm1681, %v6834, %v6835
      %v6837 = vrot.slane %v6835, 4
      %v6838 = vrot.slane %v6703, 7
      %v6839 = vsel %vm1681, %v6837, %v6838
      %v6840 = vrot.slane %v6704, 7
      %v6841 = vrot.slane %v6840, 4
      %v6842 = vrot.slane %v6705, 7
      %v6843 = vsel %vm1681, %v6841, %v6842
      %v6844 = vrot.slane %v6842, 4
      %v6845 = vrot.slane %v6706, 7
      %v6846 = vsel %vm1681, %v6844, %v6845
      %v6847 = vrot.slane %v6707, 7
      %v6848 = vrot.slane %v6847, 4
      %v6849 = vrot.slane %v6708, 7
      %v6850 = vsel %vm1681, %v6848, %v6849
      %v6851 = vrot.slane %v6849, 4
      %v6852 = vrot.slane %v6709, 7
      %v6853 = vsel %vm1681, %v6851, %v6852
      %v6854 = vrot.slane %v6710, 7
      %v6855 = vrot.slane %v6854, 4
      %v6856 = vrot.slane %v6711, 7
      %v6857 = vsel %vm1681, %v6855, %v6856
      %v6858 = vrot.slane %v6856, 4
      %v6859 = vrot.slane %v6712, 7
      %v6860 = vsel %vm1681, %v6858, %v6859
      %v6861 = vrot.slane %v6713, 7
      %v6862 = vrot.slane %v6861, 4
      %v6863 = vrot.slane %v6714, 7
      %v6864 = vsel %vm1681, %v6862, %v6863
      %v6865 = vrot.slane %v6863, 4
      %v6866 = vrot.slane %v6715, 7
      %v6867 = vsel %vm1681, %v6865, %v6866
      %v6868 = vrot.slane %v6716, 7
      %v6869 = vrot.slane %v6868, 4
      %v6870 = vrot.slane %v6717, 7
      %v6871 = vsel %vm1681, %v6869, %v6870
      %v6872 = vrot.slane %v6870, 4
      %v6873 = vrot.slane %v6718, 7
      %v6874 = vsel %vm1681, %v6872, %v6873
      %v6875 = vrot.slane %v6719, 7
      %v6876 = vrot.slane %v6875, 4
      %v6877 = vrot.slane %v6720, 7
      %v6878 = vsel %vm1681, %v6876, %v6877
      %v6879 = vrot.slane %v6877, 4
      %v6880 = vrot.slane %v6721, 7
      %v6881 = vsel %vm1681, %v6879, %v6880
      %v6882 = vld [vmem:[%s1043 + $0x18] sm:$0xe]
      %v6883 = vld [vmem:[%s1043 + $0x1c] sm:$0xf]
      %v6884 = vld [vmem:[%s1043 + $0x20] sm:$0x1]
      %v6885 = vld [vmem:[%s1043 + $0x3c] sm:$0xe]
      %v6886 = vld [vmem:[%s1043 + $0x40] sm:$0xf]
      %v6887 = vld [vmem:[%s1043 + $0x44] sm:$0x1]
      %v6888 = vld [vmem:[%s1043 + $0x60] sm:$0xe]
      %v6889 = vld [vmem:[%s1043 + $0x64] sm:$0xf]
      %v6890 = vld [vmem:[%s1043 + $0x68] sm:$0x1]
      %v6891 = vld [vmem:[%s1043 + $0x84] sm:$0xe]
      %v6892 = vld [vmem:[%s1043 + $0x88] sm:$0xf]
      %v6893 = vld [vmem:[%s1043 + $0x8c] sm:$0x1]
      %v6894 = vld [vmem:[%s1043 + $0xa8] sm:$0xe]
      %v6895 = vld [vmem:[%s1043 + $0xac] sm:$0xf]
      %v6896 = vld [vmem:[%s1043 + $0xb0] sm:$0x1]
      %v6897 = vld [vmem:[%s1043 + $0xcc] sm:$0xe]
      %v6898 = vld [vmem:[%s1043 + $0xd0] sm:$0xf]
      %v6899 = vld [vmem:[%s1043 + $0xd4] sm:$0x1]
      %v6900 = vld [vmem:[%s1043 + $0xf0] sm:$0xe]
      %v6901 = vld [vmem:[%s1043 + $0xf4] sm:$0xf]
      %v6902 = vld [vmem:[%s1043 + $0xf8] sm:$0x1]
      %v6903 = vld [vmem:[%s1043 + $0x114] sm:$0xe]
      %v6904 = vld [vmem:[%s1043 + $0x118] sm:$0xf]
      %v6905 = vld [vmem:[%s1043 + $0x11c] sm:$0x1]
      %v6906 = vld [vmem:[%s1043 + $0x138] sm:$0xe]
      %v6907 = vld [vmem:[%s1043 + $0x13c] sm:$0xf]
      %v6908 = vld [vmem:[%s1043 + $0x140] sm:$0x1]
      %v6909 = vld [vmem:[%s1043 + $0x15c] sm:$0xe]
      %v6910 = vld [vmem:[%s1043 + $0x160] sm:$0xf]
      %v6911 = vld [vmem:[%s1043 + $0x164] sm:$0x1]
      %v6912 = vld [vmem:[%s1043 + $0x180] sm:$0xe]
      %v6913 = vld [vmem:[%s1043 + $0x184] sm:$0xf]
      %v6914 = vld [vmem:[%s1043 + $0x188] sm:$0x1]
      %v6915 = vld [vmem:[%s1043 + $0x1a4] sm:$0xe]
      %v6916 = vld [vmem:[%s1043 + $0x1a8] sm:$0xf]
      %v6917 = vld [vmem:[%s1043 + $0x1ac] sm:$0x1]
      %v6918 = vld [vmem:[%s1043 + $0x1c8] sm:$0xe]
      %v6919 = vld [vmem:[%s1043 + $0x1cc] sm:$0xf]
      %v6920 = vld [vmem:[%s1043 + $0x1d0] sm:$0x1]
      %v6921 = vld [vmem:[%s1043 + $0x1ec] sm:$0xe]
      %v6922 = vld [vmem:[%s1043 + $0x1f0] sm:$0xf]
      %v6923 = vld [vmem:[%s1043 + $0x1f4] sm:$0x1]
      %v6924 = vld [vmem:[%s1043 + $0x210] sm:$0xe]
      %v6925 = vld [vmem:[%s1043 + $0x214] sm:$0xf]
      %v6926 = vld [vmem:[%s1043 + $0x218] sm:$0x1]
      %v6927 = vld [vmem:[%s1043 + $0x234] sm:$0xe]
      %v6928 = vld [vmem:[%s1043 + $0x238] sm:$0xf]
      %v6929 = vld [vmem:[%s1043 + $0x23c] sm:$0x1]
      %v6978 = vrot.slane %v6882, 5
      %v6979 = vrot.slane %v6978, 4
      %v6980 = vrot.slane %v6883, 5
      %v6981 = vsel %vm1470, %v6979, %v6980
      %v6982 = vrot.slane %v6980, 4
      %v6983 = vrot.slane %v6884, 5
      %v6984 = vsel %vm1470, %v6982, %v6983
      %v6985 = vrot.slane %v6885, 5
      %v6986 = vrot.slane %v6985, 4
      %v6987 = vrot.slane %v6886, 5
      %v6988 = vsel %vm1470, %v6986, %v6987
      %v6989 = vrot.slane %v6987, 4
      %v6990 = vrot.slane %v6887, 5
      %v6991 = vsel %vm1470, %v6989, %v6990
      %v6992 = vrot.slane %v6888, 5
      %v6993 = vrot.slane %v6992, 4
      %v6994 = vrot.slane %v6889, 5
      %v6995 = vsel %vm1470, %v6993, %v6994
      %v6996 = vrot.slane %v6994, 4
      %v6997 = vrot.slane %v6890, 5
      %v6998 = vsel %vm1470, %v6996, %v6997
      %v6999 = vrot.slane %v6891, 5
      %v7000 = vrot.slane %v6999, 4
      %v7001 = vrot.slane %v6892, 5
      %v7002 = vsel %vm1470, %v7000, %v7001
      %v7003 = vrot.slane %v7001, 4
      %v7004 = vrot.slane %v6893, 5
      %v7005 = vsel %vm1470, %v7003, %v7004
      %v7006 = vrot.slane %v6894, 5
      %v7007 = vrot.slane %v7006, 4
      %v7008 = vrot.slane %v6895, 5
      %v7009 = vsel %vm1470, %v7007, %v7008
      %v7010 = vrot.slane %v7008, 4
      %v7011 = vrot.slane %v6896, 5
      %v7012 = vsel %vm1470, %v7010, %v7011
      %v7013 = vrot.slane %v6897, 5
      %v7014 = vrot.slane %v7013, 4
      %v7015 = vrot.slane %v6898, 5
      %v7016 = vsel %vm1470, %v7014, %v7015
      %v7017 = vrot.slane %v7015, 4
      %v7018 = vrot.slane %v6899, 5
      %v7019 = vsel %vm1470, %v7017, %v7018
      %v7020 = vrot.slane %v6900, 5
      %v7021 = vrot.slane %v7020, 4
      %v7022 = vrot.slane %v6901, 5
      %v7023 = vsel %vm1470, %v7021, %v7022
      %v7024 = vrot.slane %v7022, 4
      %v7025 = vrot.slane %v6902, 5
      %v7026 = vsel %vm1470, %v7024, %v7025
      %v7027 = vrot.slane %v6903, 5
      %v7028 = vrot.slane %v7027, 4
      %v7029 = vrot.slane %v6904, 5
      %v7030 = vsel %vm1470, %v7028, %v7029
      %v7031 = vrot.slane %v7029, 4
      %v7032 = vrot.slane %v6905, 5
      %v7033 = vsel %vm1470, %v7031, %v7032
      %v7034 = vrot.slane %v6906, 5
      %v7035 = vrot.slane %v7034, 4
      %v7036 = vrot.slane %v6907, 5
      %v7037 = vsel %vm1470, %v7035, %v7036
      %v7038 = vrot.slane %v7036, 4
      %v7039 = vrot.slane %v6908, 5
      %v7040 = vsel %vm1470, %v7038, %v7039
      %v7041 = vrot.slane %v6909, 5
      %v7042 = vrot.slane %v7041, 4
      %v7043 = vrot.slane %v6910, 5
      %v7044 = vsel %vm1470, %v7042, %v7043
      %v7045 = vrot.slane %v7043, 4
      %v7046 = vrot.slane %v6911, 5
      %v7047 = vsel %vm1470, %v7045, %v7046
      %v7048 = vrot.slane %v6912, 5
      %v7049 = vrot.slane %v7048, 4
      %v7050 = vrot.slane %v6913, 5
      %v7051 = vsel %vm1470, %v7049, %v7050
      %v7052 = vrot.slane %v7050, 4
      %v7053 = vrot.slane %v6914, 5
      %v7054 = vsel %vm1470, %v7052, %v7053
      %v7055 = vrot.slane %v6915, 5
      %v7056 = vrot.slane %v7055, 4
      %v7057 = vrot.slane %v6916, 5
      %v7058 = vsel %vm1470, %v7056, %v7057
      %v7059 = vrot.slane %v7057, 4
      %v7060 = vrot.slane %v6917, 5
      %v7061 = vsel %vm1470, %v7059, %v7060
      %v7062 = vrot.slane %v6918, 5
      %v7063 = vrot.slane %v7062, 4
      %v7064 = vrot.slane %v6919, 5
      %v7065 = vsel %vm1470, %v7063, %v7064
      %v7066 = vrot.slane %v7064, 4
      %v7067 = vrot.slane %v6920, 5
      %v7068 = vsel %vm1470, %v7066, %v7067
      %v7069 = vrot.slane %v6921, 5
      %v7070 = vrot.slane %v7069, 4
      %v7071 = vrot.slane %v6922, 5
      %v7072 = vsel %vm1470, %v7070, %v7071
      %v7073 = vrot.slane %v7071, 4
      %v7074 = vrot.slane %v6923, 5
      %v7075 = vsel %vm1470, %v7073, %v7074
      %v7076 = vrot.slane %v6924, 5
      %v7077 = vrot.slane %v7076, 4
      %v7078 = vrot.slane %v6925, 5
      %v7079 = vsel %vm1470, %v7077, %v7078
      %v7080 = vrot.slane %v7078, 4
      %v7081 = vrot.slane %v6926, 5
      %v7082 = vsel %vm1470, %v7080, %v7081
      %v7083 = vrot.slane %v6927, 5
      %v7084 = vrot.slane %v7083, 4
      %v7085 = vrot.slane %v6928, 5
      %v7086 = vsel %vm1470, %v7084, %v7085
      %v7087 = vrot.slane %v7085, 4
      %v7088 = vrot.slane %v6929, 5
      %v7089 = vsel %vm1470, %v7087, %v7088
      %s7090 = scalar_lea.vmem [#allocation2], 1800
      %v7091 = vld [vmem:[%s7090 + $0x4] sm:$0x8]
      %v7092 = vld [vmem:[%s7090 + $0x8] sm:$0xf]
      %v7093 = vld [vmem:[%s7090 + $0xc] sm:$0x7]
      %v7094 = vld [vmem:[%s7090 + $0x28] sm:$0x8]
      %v7095 = vld [vmem:[%s7090 + $0x2c] sm:$0xf]
      %v7096 = vld [vmem:[%s7090 + $0x30] sm:$0x7]
      %v7097 = vld [vmem:[%s7090 + $0x4c] sm:$0x8]
      %v7098 = vld [vmem:[%s7090 + $0x50] sm:$0xf]
      %v7099 = vld [vmem:[%s7090 + $0x54] sm:$0x7]
      %v7100 = vld [vmem:[%s7090 + $0x70] sm:$0x8]
      %v7101 = vld [vmem:[%s7090 + $0x74] sm:$0xf]
      %v7102 = vld [vmem:[%s7090 + $0x78] sm:$0x7]
      %v7103 = vld [vmem:[%s7090 + $0x94] sm:$0x8]
      %v7104 = vld [vmem:[%s7090 + $0x98] sm:$0xf]
      %v7105 = vld [vmem:[%s7090 + $0x9c] sm:$0x7]
      %v7106 = vld [vmem:[%s7090 + $0xb8] sm:$0x8]
      %v7107 = vld [vmem:[%s7090 + $0xbc] sm:$0xf]
      %v7108 = vld [vmem:[%s7090 + $0xc0] sm:$0x7]
      %v7109 = vld [vmem:[%s7090 + $0xdc] sm:$0x8]
      %v7110 = vld [vmem:[%s7090 + $0xe0] sm:$0xf]
      %v7111 = vld [vmem:[%s7090 + $0xe4] sm:$0x7]
      %v7112 = vld [vmem:[%s7090 + $0x100] sm:$0x8]
      %v7113 = vld [vmem:[%s7090 + $0x104] sm:$0xf]
      %v7114 = vld [vmem:[%s7090 + $0x108] sm:$0x7]
      %v7115 = vld [vmem:[%s7090 + $0x124] sm:$0x8]
      %v7116 = vld [vmem:[%s7090 + $0x128] sm:$0xf]
      %v7117 = vld [vmem:[%s7090 + $0x12c] sm:$0x7]
      %v7118 = vld [vmem:[%s7090 + $0x148] sm:$0x8]
      %v7119 = vld [vmem:[%s7090 + $0x14c] sm:$0xf]
      %v7120 = vld [vmem:[%s7090 + $0x150] sm:$0x7]
      %v7121 = vld [vmem:[%s7090 + $0x16c] sm:$0x8]
      %v7122 = vld [vmem:[%s7090 + $0x170] sm:$0xf]
      %v7123 = vld [vmem:[%s7090 + $0x174] sm:$0x7]
      %v7124 = vld [vmem:[%s7090 + $0x190] sm:$0x8]
      %v7125 = vld [vmem:[%s7090 + $0x194] sm:$0xf]
      %v7126 = vld [vmem:[%s7090 + $0x198] sm:$0x7]
      %v7127 = vld [vmem:[%s7090 + $0x1b4] sm:$0x8]
      %v7128 = vld [vmem:[%s7090 + $0x1b8] sm:$0xf]
      %v7129 = vld [vmem:[%s7090 + $0x1bc] sm:$0x7]
      %v7130 = vld [vmem:[%s7090 + $0x1d8] sm:$0x8]
      %v7131 = vld [vmem:[%s7090 + $0x1dc] sm:$0xf]
      %v7132 = vld [vmem:[%s7090 + $0x1e0] sm:$0x7]
      %v7133 = vld [vmem:[%s7090 + $0x1fc] sm:$0x8]
      %v7134 = vld [vmem:[%s7090 + $0x200] sm:$0xf]
      %v7135 = vld [vmem:[%s7090 + $0x204] sm:$0x7]
      %v7136 = vld [vmem:[%s7090 + $0x220] sm:$0x8]
      %v7137 = vld [vmem:[%s7090 + $0x224] sm:$0xf]
      %v7138 = vld [vmem:[%s7090 + $0x228] sm:$0x7]
      %v7187 = vrot.slane %v7091, 7
      %v7188 = vrot.slane %v7187, 4
      %v7189 = vrot.slane %v7092, 7
      %v7190 = vsel %vm1681, %v7188, %v7189
      %v7191 = vrot.slane %v7189, 4
      %v7192 = vrot.slane %v7093, 7
      %v7193 = vsel %vm1681, %v7191, %v7192
      %v7194 = vrot.slane %v7094, 7
      %v7195 = vrot.slane %v7194, 4
      %v7196 = vrot.slane %v7095, 7
      %v7197 = vsel %vm1681, %v7195, %v7196
      %v7198 = vrot.slane %v7196, 4
      %v7199 = vrot.slane %v7096, 7
      %v7200 = vsel %vm1681, %v7198, %v7199
      %v7201 = vrot.slane %v7097, 7
      %v7202 = vrot.slane %v7201, 4
      %v7203 = vrot.slane %v7098, 7
      %v7204 = vsel %vm1681, %v7202, %v7203
      %v7205 = vrot.slane %v7203, 4
      %v7206 = vrot.slane %v7099, 7
      %v7207 = vsel %vm1681, %v7205, %v7206
      %v7208 = vrot.slane %v7100, 7
      %v7209 = vrot.slane %v7208, 4
      %v7210 = vrot.slane %v7101, 7
      %v7211 = vsel %vm1681, %v7209, %v7210
      %v7212 = vrot.slane %v7210, 4
      %v7213 = vrot.slane %v7102, 7
      %v7214 = vsel %vm1681, %v7212, %v7213
      %v7215 = vrot.slane %v7103, 7
      %v7216 = vrot.slane %v7215, 4
      %v7217 = vrot.slane %v7104, 7
      %v7218 = vsel %vm1681, %v7216, %v7217
      %v7219 = vrot.slane %v7217, 4
      %v7220 = vrot.slane %v7105, 7
      %v7221 = vsel %vm1681, %v7219, %v7220
      %v7222 = vrot.slane %v7106, 7
      %v7223 = vrot.slane %v7222, 4
      %v7224 = vrot.slane %v7107, 7
      %v7225 = vsel %vm1681, %v7223, %v7224
      %v7226 = vrot.slane %v7224, 4
      %v7227 = vrot.slane %v7108, 7
      %v7228 = vsel %vm1681, %v7226, %v7227
      %v7229 = vrot.slane %v7109, 7
      %v7230 = vrot.slane %v7229, 4
      %v7231 = vrot.slane %v7110, 7
      %v7232 = vsel %vm1681, %v7230, %v7231
      %v7233 = vrot.slane %v7231, 4
      %v7234 = vrot.slane %v7111, 7
      %v7235 = vsel %vm1681, %v7233, %v7234
      %v7236 = vrot.slane %v7112, 7
      %v7237 = vrot.slane %v7236, 4
      %v7238 = vrot.slane %v7113, 7
      %v7239 = vsel %vm1681, %v7237, %v7238
      %v7240 = vrot.slane %v7238, 4
      %v7241 = vrot.slane %v7114, 7
      %v7242 = vsel %vm1681, %v7240, %v7241
      %v7243 = vrot.slane %v7115, 7
      %v7244 = vrot.slane %v7243, 4
      %v7245 = vrot.slane %v7116, 7
      %v7246 = vsel %vm1681, %v7244, %v7245
      %v7247 = vrot.slane %v7245, 4
      %v7248 = vrot.slane %v7117, 7
      %v7249 = vsel %vm1681, %v7247, %v7248
      %v7250 = vrot.slane %v7118, 7
      %v7251 = vrot.slane %v7250, 4
      %v7252 = vrot.slane %v7119, 7
      %v7253 = vsel %vm1681, %v7251, %v7252
      %v7254 = vrot.slane %v7252, 4
      %v7255 = vrot.slane %v7120, 7
      %v7256 = vsel %vm1681, %v7254, %v7255
      %v7257 = vrot.slane %v7121, 7
      %v7258 = vrot.slane %v7257, 4
      %v7259 = vrot.slane %v7122, 7
      %v7260 = vsel %vm1681, %v7258, %v7259
      %v7261 = vrot.slane %v7259, 4
      %v7262 = vrot.slane %v7123, 7
      %v7263 = vsel %vm1681, %v7261, %v7262
      %v7264 = vrot.slane %v7124, 7
      %v7265 = vrot.slane %v7264, 4
      %v7266 = vrot.slane %v7125, 7
      %v7267 = vsel %vm1681, %v7265, %v7266
      %v7268 = vrot.slane %v7266, 4
      %v7269 = vrot.slane %v7126, 7
      %v7270 = vsel %vm1681, %v7268, %v7269
      %v7271 = vrot.slane %v7127, 7
      %v7272 = vrot.slane %v7271, 4
      %v7273 = vrot.slane %v7128, 7
      %v7274 = vsel %vm1681, %v7272, %v7273
      %v7275 = vrot.slane %v7273, 4
      %v7276 = vrot.slane %v7129, 7
      %v7277 = vsel %vm1681, %v7275, %v7276
      %v7278 = vrot.slane %v7130, 7
      %v7279 = vrot.slane %v7278, 4
      %v7280 = vrot.slane %v7131, 7
      %v7281 = vsel %vm1681, %v7279, %v7280
      %v7282 = vrot.slane %v7280, 4
      %v7283 = vrot.slane %v7132, 7
      %v7284 = vsel %vm1681, %v7282, %v7283
      %v7285 = vrot.slane %v7133, 7
      %v7286 = vrot.slane %v7285, 4
      %v7287 = vrot.slane %v7134, 7
      %v7288 = vsel %vm1681, %v7286, %v7287
      %v7289 = vrot.slane %v7287, 4
      %v7290 = vrot.slane %v7135, 7
      %v7291 = vsel %vm1681, %v7289, %v7290
      %v7292 = vrot.slane %v7136, 7
      %v7293 = vrot.slane %v7292, 4
      %v7294 = vrot.slane %v7137, 7
      %v7295 = vsel %vm1681, %v7293, %v7294
      %v7296 = vrot.slane %v7294, 4
      %v7297 = vrot.slane %v7138, 7
      %v7298 = vsel %vm1681, %v7296, %v7297
      %v7299 = vld [vmem:[%s7090 + $0x10] sm:$0xf]
      %v7300 = vld [vmem:[%s7090 + $0x14] sm:$0xf]
      %v7301 = vld [vmem:[%s7090 + $0x34] sm:$0xf]
      %v7302 = vld [vmem:[%s7090 + $0x38] sm:$0xf]
      %v7303 = vld [vmem:[%s7090 + $0x58] sm:$0xf]
      %v7304 = vld [vmem:[%s7090 + $0x5c] sm:$0xf]
      %v7305 = vld [vmem:[%s7090 + $0x7c] sm:$0xf]
      %v7306 = vld [vmem:[%s7090 + $0x80] sm:$0xf]
      %v7307 = vld [vmem:[%s7090 + $0xa0] sm:$0xf]
      %v7308 = vld [vmem:[%s7090 + $0xa4] sm:$0xf]
      %v7309 = vld [vmem:[%s7090 + $0xc4] sm:$0xf]
      %v7310 = vld [vmem:[%s7090 + $0xc8] sm:$0xf]
      %v7311 = vld [vmem:[%s7090 + $0xe8] sm:$0xf]
      %v7312 = vld [vmem:[%s7090 + $0xec] sm:$0xf]
      %v7313 = vld [vmem:[%s7090 + $0x10c] sm:$0xf]
      %v7314 = vld [vmem:[%s7090 + $0x110] sm:$0xf]
      %v7315 = vld [vmem:[%s7090 + $0x130] sm:$0xf]
      %v7316 = vld [vmem:[%s7090 + $0x134] sm:$0xf]
      %v7317 = vld [vmem:[%s7090 + $0x154] sm:$0xf]
      %v7318 = vld [vmem:[%s7090 + $0x158] sm:$0xf]
      %v7319 = vld [vmem:[%s7090 + $0x178] sm:$0xf]
      %v7320 = vld [vmem:[%s7090 + $0x17c] sm:$0xf]
      %v7321 = vld [vmem:[%s7090 + $0x19c] sm:$0xf]
      %v7322 = vld [vmem:[%s7090 + $0x1a0] sm:$0xf]
      %v7323 = vld [vmem:[%s7090 + $0x1c0] sm:$0xf]
      %v7324 = vld [vmem:[%s7090 + $0x1c4] sm:$0xf]
      %v7325 = vld [vmem:[%s7090 + $0x1e4] sm:$0xf]
      %v7326 = vld [vmem:[%s7090 + $0x1e8] sm:$0xf]
      %v7327 = vld [vmem:[%s7090 + $0x208] sm:$0xf]
      %v7328 = vld [vmem:[%s7090 + $0x20c] sm:$0xf]
      %v7329 = vld [vmem:[%s7090 + $0x22c] sm:$0xf]
      %v7330 = vld [vmem:[%s7090 + $0x230] sm:$0xf]
      %v7331 = vld [vmem:[%s7090 + $0x18] sm:$0xe]
      %v7332 = vld [vmem:[%s7090 + $0x1c] sm:$0xf]
      %v7333 = vld [vmem:[%s7090 + $0x20] sm:$0x1]
      %v7334 = vld [vmem:[%s7090 + $0x3c] sm:$0xe]
      %v7335 = vld [vmem:[%s7090 + $0x40] sm:$0xf]
      %v7336 = vld [vmem:[%s7090 + $0x44] sm:$0x1]
      %v7337 = vld [vmem:[%s7090 + $0x60] sm:$0xe]
      %v7338 = vld [vmem:[%s7090 + $0x64] sm:$0xf]
      %v7339 = vld [vmem:[%s7090 + $0x68] sm:$0x1]
      %v7340 = vld [vmem:[%s7090 + $0x84] sm:$0xe]
      %v7341 = vld [vmem:[%s7090 + $0x88] sm:$0xf]
      %v7342 = vld [vmem:[%s7090 + $0x8c] sm:$0x1]
      %v7343 = vld [vmem:[%s7090 + $0xa8] sm:$0xe]
      %v7344 = vld [vmem:[%s7090 + $0xac] sm:$0xf]
      %v7345 = vld [vmem:[%s7090 + $0xb0] sm:$0x1]
      %v7346 = vld [vmem:[%s7090 + $0xcc] sm:$0xe]
      %v7347 = vld [vmem:[%s7090 + $0xd0] sm:$0xf]
      %v7348 = vld [vmem:[%s7090 + $0xd4] sm:$0x1]
      %v7349 = vld [vmem:[%s7090 + $0xf0] sm:$0xe]
      %v7350 = vld [vmem:[%s7090 + $0xf4] sm:$0xf]
      %v7351 = vld [vmem:[%s7090 + $0xf8] sm:$0x1]
      %v7352 = vld [vmem:[%s7090 + $0x114] sm:$0xe]
      %v7353 = vld [vmem:[%s7090 + $0x118] sm:$0xf]
      %v7354 = vld [vmem:[%s7090 + $0x11c] sm:$0x1]
      %v7355 = vld [vmem:[%s7090 + $0x138] sm:$0xe]
      %v7356 = vld [vmem:[%s7090 + $0x13c] sm:$0xf]
      %v7357 = vld [vmem:[%s7090 + $0x140] sm:$0x1]
      %v7358 = vld [vmem:[%s7090 + $0x15c] sm:$0xe]
      %v7359 = vld [vmem:[%s7090 + $0x160] sm:$0xf]
      %v7360 = vld [vmem:[%s7090 + $0x164] sm:$0x1]
      %v7361 = vld [vmem:[%s7090 + $0x180] sm:$0xe]
      %v7362 = vld [vmem:[%s7090 + $0x184] sm:$0xf]
      %v7363 = vld [vmem:[%s7090 + $0x188] sm:$0x1]
      %v7364 = vld [vmem:[%s7090 + $0x1a4] sm:$0xe]
      %v7365 = vld [vmem:[%s7090 + $0x1a8] sm:$0xf]
      %v7366 = vld [vmem:[%s7090 + $0x1ac] sm:$0x1]
      %v7367 = vld [vmem:[%s7090 + $0x1c8] sm:$0xe]
      %v7368 = vld [vmem:[%s7090 + $0x1cc] sm:$0xf]
      %v7369 = vld [vmem:[%s7090 + $0x1d0] sm:$0x1]
      %v7370 = vld [vmem:[%s7090 + $0x1ec] sm:$0xe]
      %v7371 = vld [vmem:[%s7090 + $0x1f0] sm:$0xf]
      %v7372 = vld [vmem:[%s7090 + $0x1f4] sm:$0x1]
      %v7373 = vld [vmem:[%s7090 + $0x210] sm:$0xe]
      %v7374 = vld [vmem:[%s7090 + $0x214] sm:$0xf]
      %v7375 = vld [vmem:[%s7090 + $0x218] sm:$0x1]
      %v7376 = vld [vmem:[%s7090 + $0x234] sm:$0xe]
      %v7377 = vld [vmem:[%s7090 + $0x238] sm:$0xf]
      %v7378 = vld [vmem:[%s7090 + $0x23c] sm:$0x1]
      %v7427 = vrot.slane %v7331, 5
      %v7428 = vrot.slane %v7427, 4
      %v7429 = vrot.slane %v7332, 5
      %v7430 = vsel %vm1470, %v7428, %v7429
      %v7431 = vrot.slane %v7429, 4
      %v7432 = vrot.slane %v7333, 5
      %v7433 = vsel %vm1470, %v7431, %v7432
      %v7434 = vrot.slane %v7334, 5
      %v7435 = vrot.slane %v7434, 4
      %v7436 = vrot.slane %v7335, 5
      %v7437 = vsel %vm1470, %v7435, %v7436
      %v7438 = vrot.slane %v7436, 4
      %v7439 = vrot.slane %v7336, 5
      %v7440 = vsel %vm1470, %v7438, %v7439
      %v7441 = vrot.slane %v7337, 5
      %v7442 = vrot.slane %v7441, 4
      %v7443 = vrot.slane %v7338, 5
      %v7444 = vsel %vm1470, %v7442, %v7443
      %v7445 = vrot.slane %v7443, 4
      %v7446 = vrot.slane %v7339, 5
      %v7447 = vsel %vm1470, %v7445, %v7446
      %v7448 = vrot.slane %v7340, 5
      %v7449 = vrot.slane %v7448, 4
      %v7450 = vrot.slane %v7341, 5
      %v7451 = vsel %vm1470, %v7449, %v7450
      %v7452 = vrot.slane %v7450, 4
      %v7453 = vrot.slane %v7342, 5
      %v7454 = vsel %vm1470, %v7452, %v7453
      %v7455 = vrot.slane %v7343, 5
      %v7456 = vrot.slane %v7455, 4
      %v7457 = vrot.slane %v7344, 5
      %v7458 = vsel %vm1470, %v7456, %v7457
      %v7459 = vrot.slane %v7457, 4
      %v7460 = vrot.slane %v7345, 5
      %v7461 = vsel %vm1470, %v7459, %v7460
      %v7462 = vrot.slane %v7346, 5
      %v7463 = vrot.slane %v7462, 4
      %v7464 = vrot.slane %v7347, 5
      %v7465 = vsel %vm1470, %v7463, %v7464
      %v7466 = vrot.slane %v7464, 4
      %v7467 = vrot.slane %v7348, 5
      %v7468 = vsel %vm1470, %v7466, %v7467
      %v7469 = vrot.slane %v7349, 5
      %v7470 = vrot.slane %v7469, 4
      %v7471 = vrot.slane %v7350, 5
      %v7472 = vsel %vm1470, %v7470, %v7471
      %v7473 = vrot.slane %v7471, 4
      %v7474 = vrot.slane %v7351, 5
      %v7475 = vsel %vm1470, %v7473, %v7474
      %v7476 = vrot.slane %v7352, 5
      %v7477 = vrot.slane %v7476, 4
      %v7478 = vrot.slane %v7353, 5
      %v7479 = vsel %vm1470, %v7477, %v7478
      %v7480 = vrot.slane %v7478, 4
      %v7481 = vrot.slane %v7354, 5
      %v7482 = vsel %vm1470, %v7480, %v7481
      %v7483 = vrot.slane %v7355, 5
      %v7484 = vrot.slane %v7483, 4
      %v7485 = vrot.slane %v7356, 5
      %v7486 = vsel %vm1470, %v7484, %v7485
      %v7487 = vrot.slane %v7485, 4
      %v7488 = vrot.slane %v7357, 5
      %v7489 = vsel %vm1470, %v7487, %v7488
      %v7490 = vrot.slane %v7358, 5
      %v7491 = vrot.slane %v7490, 4
      %v7492 = vrot.slane %v7359, 5
      %v7493 = vsel %vm1470, %v7491, %v7492
      %v7494 = vrot.slane %v7492, 4
      %v7495 = vrot.slane %v7360, 5
      %v7496 = vsel %vm1470, %v7494, %v7495
      %v7497 = vrot.slane %v7361, 5
      %v7498 = vrot.slane %v7497, 4
      %v7499 = vrot.slane %v7362, 5
      %v7500 = vsel %vm1470, %v7498, %v7499
      %v7501 = vrot.slane %v7499, 4
      %v7502 = vrot.slane %v7363, 5
      %v7503 = vsel %vm1470, %v7501, %v7502
      %v7504 = vrot.slane %v7364, 5
      %v7505 = vrot.slane %v7504, 4
      %v7506 = vrot.slane %v7365, 5
      %v7507 = vsel %vm1470, %v7505, %v7506
      %v7508 = vrot.slane %v7506, 4
      %v7509 = vrot.slane %v7366, 5
      %v7510 = vsel %vm1470, %v7508, %v7509
      %v7511 = vrot.slane %v7367, 5
      %v7512 = vrot.slane %v7511, 4
      %v7513 = vrot.slane %v7368, 5
      %v7514 = vsel %vm1470, %v7512, %v7513
      %v7515 = vrot.slane %v7513, 4
      %v7516 = vrot.slane %v7369, 5
      %v7517 = vsel %vm1470, %v7515, %v7516
      %v7518 = vrot.slane %v7370, 5
      %v7519 = vrot.slane %v7518, 4
      %v7520 = vrot.slane %v7371, 5
      %v7521 = vsel %vm1470, %v7519, %v7520
      %v7522 = vrot.slane %v7520, 4
      %v7523 = vrot.slane %v7372, 5
      %v7524 = vsel %vm1470, %v7522, %v7523
      %v7525 = vrot.slane %v7373, 5
      %v7526 = vrot.slane %v7525, 4
      %v7527 = vrot.slane %v7374, 5
      %v7528 = vsel %vm1470, %v7526, %v7527
      %v7529 = vrot.slane %v7527, 4
      %v7530 = vrot.slane %v7375, 5
      %v7531 = vsel %vm1470, %v7529, %v7530
      %v7532 = vrot.slane %v7376, 5
      %v7533 = vrot.slane %v7532, 4
      %v7534 = vrot.slane %v7377, 5
      %v7535 = vsel %vm1470, %v7533, %v7534
      %v7536 = vrot.slane %v7534, 4
      %v7537 = vrot.slane %v7378, 5
      %v7538 = vsel %vm1470, %v7536, %v7537
      %v7539 = vunpack.c.l.b16 %v6325
      %v7540 = vunpack.c.l.b16 %v6328
      %v7541 = vunpack.c.l.b16 %v6332
      %v7542 = vunpack.c.l.b16 %v6335
      %v7543 = vunpack.c.l.b16 %v6339
      %v7544 = vunpack.c.l.b16 %v6342
      %v7545 = vunpack.c.l.b16 %v6346
      %v7546 = vunpack.c.l.b16 %v6349
      %v7547 = vunpack.c.l.b16 %v6353
      %v7548 = vunpack.c.l.b16 %v6356
      %v7549 = vunpack.c.l.b16 %v6360
      %v7550 = vunpack.c.l.b16 %v6363
      %v7551 = vunpack.c.l.b16 %v6367
      %v7552 = vunpack.c.l.b16 %v6370
      %v7553 = vunpack.c.l.b16 %v6374
      %v7554 = vunpack.c.l.b16 %v6377
      %v7555 = vunpack.c.l.b16 %v6381
      %v7556 = vunpack.c.l.b16 %v6384
      %v7557 = vunpack.c.l.b16 %v6388
      %v7558 = vunpack.c.l.b16 %v6391
      %v7559 = vunpack.c.l.b16 %v6395
      %v7560 = vunpack.c.l.b16 %v6398
      %v7561 = vunpack.c.l.b16 %v6402
      %v7562 = vunpack.c.l.b16 %v6405
      %v7563 = vunpack.c.l.b16 %v6409
      %v7564 = vunpack.c.l.b16 %v6412
      %v7565 = vunpack.c.l.b16 %v6416
      %v7566 = vunpack.c.l.b16 %v6419
      %v7567 = vunpack.c.l.b16 %v6423
      %v7568 = vunpack.c.l.b16 %v6426
      %v7569 = vunpack.c.l.b16 %v6430
      %v7570 = vunpack.c.l.b16 %v6433
      %v7571 = vpack.c.b16 %v7540, %v7539
      %v7572 = vpack.c.b16 %v7542, %v7541
      %v7573 = vpack.c.b16 %v7544, %v7543
      %v7574 = vpack.c.b16 %v7546, %v7545
      %v7575 = vpack.c.b16 %v7548, %v7547
      %v7576 = vpack.c.b16 %v7550, %v7549
      %v7577 = vpack.c.b16 %v7552, %v7551
      %v7578 = vpack.c.b16 %v7554, %v7553
      %v7579 = vpack.c.b16 %v7556, %v7555
      %v7580 = vpack.c.b16 %v7558, %v7557
      %v7581 = vpack.c.b16 %v7560, %v7559
      %v7582 = vpack.c.b16 %v7562, %v7561
      %v7583 = vpack.c.b16 %v7564, %v7563
      %v7584 = vpack.c.b16 %v7566, %v7565
      %v7585 = vpack.c.b16 %v7568, %v7567
      %v7586 = vpack.c.b16 %v7570, %v7569
      %v7619 = vunpack.c.l.b16 %v6434
      %v7620 = vunpack.c.l.b16 %v6435
      %v7621 = vunpack.c.l.b16 %v6436
      %v7622 = vunpack.c.l.b16 %v6437
      %v7623 = vunpack.c.l.b16 %v6438
      %v7624 = vunpack.c.l.b16 %v6439
      %v7625 = vunpack.c.l.b16 %v6440
      %v7626 = vunpack.c.l.b16 %v6441
      %v7627 = vunpack.c.l.b16 %v6442
      %v7628 = vunpack.c.l.b16 %v6443
      %v7629 = vunpack.c.l.b16 %v6444
      %v7630 = vunpack.c.l.b16 %v6445
      %v7631 = vunpack.c.l.b16 %v6446
      %v7632 = vunpack.c.l.b16 %v6447
      %v7633 = vunpack.c.l.b16 %v6448
      %v7634 = vunpack.c.l.b16 %v6449
      %v7635 = vunpack.c.l.b16 %v6450
      %v7636 = vunpack.c.l.b16 %v6451
      %v7637 = vunpack.c.l.b16 %v6452
      %v7638 = vunpack.c.l.b16 %v6453
      %v7639 = vunpack.c.l.b16 %v6454
      %v7640 = vunpack.c.l.b16 %v6455
      %v7641 = vunpack.c.l.b16 %v6456
      %v7642 = vunpack.c.l.b16 %v6457
      %v7643 = vunpack.c.l.b16 %v6458
      %v7644 = vunpack.c.l.b16 %v6459
      %v7645 = vunpack.c.l.b16 %v6460
      %v7646 = vunpack.c.l.b16 %v6461
      %v7647 = vunpack.c.l.b16 %v6462
      %v7648 = vunpack.c.l.b16 %v6463
      %v7649 = vunpack.c.l.b16 %v6464
      %v7650 = vunpack.c.l.b16 %v6465
      %v7651 = vpack.c.b16 %v7620, %v7619
      %v7652 = vpack.c.b16 %v7622, %v7621
      %v7653 = vpack.c.b16 %v7624, %v7623
      %v7654 = vpack.c.b16 %v7626, %v7625
      %v7655 = vpack.c.b16 %v7628, %v7627
      %v7656 = vpack.c.b16 %v7630, %v7629
      %v7657 = vpack.c.b16 %v7632, %v7631
      %v7658 = vpack.c.b16 %v7634, %v7633
      %v7659 = vpack.c.b16 %v7636, %v7635
      %v7660 = vpack.c.b16 %v7638, %v7637
      %v7661 = vpack.c.b16 %v7640, %v7639
      %v7662 = vpack.c.b16 %v7642, %v7641
      %v7663 = vpack.c.b16 %v7644, %v7643
      %v7664 = vpack.c.b16 %v7646, %v7645
      %v7665 = vpack.c.b16 %v7648, %v7647
      %v7666 = vpack.c.b16 %v7650, %v7649
      %7667 = vrot.lane.b32.xlu0 %v7651, 4
      %v7668 = vpop.permute.xlu0 %7667
      %7669 = vrot.lane.b32.xlu0 %v7652, 4
      %v7670 = vpop.permute.xlu0 %7669
      %7671 = vrot.lane.b32.xlu0 %v7653, 4
      %v7672 = vpop.permute.xlu0 %7671
      %7673 = vrot.lane.b32.xlu0 %v7654, 4
      %v7674 = vpop.permute.xlu0 %7673
      %7675 = vrot.lane.b32.xlu0 %v7655, 4
      %v7676 = vpop.permute.xlu0 %7675
      %7677 = vrot.lane.b32.xlu0 %v7656, 4
      %v7678 = vpop.permute.xlu0 %7677
      %7679 = vrot.lane.b32.xlu0 %v7657, 4
      %v7680 = vpop.permute.xlu0 %7679
      %7681 = vrot.lane.b32.xlu0 %v7658, 4
      %v7682 = vpop.permute.xlu0 %7681
      %7683 = vrot.lane.b32.xlu0 %v7659, 4
      %v7684 = vpop.permute.xlu0 %7683
      %7685 = vrot.lane.b32.xlu0 %v7660, 4
      %v7686 = vpop.permute.xlu0 %7685
      %7687 = vrot.lane.b32.xlu0 %v7661, 4
      %v7688 = vpop.permute.xlu0 %7687
      %7689 = vrot.lane.b32.xlu0 %v7662, 4
      %v7690 = vpop.permute.xlu0 %7689
      %7691 = vrot.lane.b32.xlu0 %v7663, 4
      %v7692 = vpop.permute.xlu0 %7691
      %7693 = vrot.lane.b32.xlu0 %v7664, 4
      %v7694 = vpop.permute.xlu0 %7693
      %7695 = vrot.lane.b32.xlu0 %v7665, 4
      %v7696 = vpop.permute.xlu0 %7695
      %7697 = vrot.lane.b32.xlu0 %v7666, 4
      %v7698 = vpop.permute.xlu0 %7697
      %v7699 = vunpack.c.l.b16 %v6565
      %v7700 = vunpack.c.l.b16 %v6568
      %v7701 = vunpack.c.l.b16 %v6572
      %v7702 = vunpack.c.l.b16 %v6575
      %v7703 = vunpack.c.l.b16 %v6579
      %v7704 = vunpack.c.l.b16 %v6582
      %v7705 = vunpack.c.l.b16 %v6586
      %v7706 = vunpack.c.l.b16 %v6589
      %v7707 = vunpack.c.l.b16 %v6593
      %v7708 = vunpack.c.l.b16 %v6596
      %v7709 = vunpack.c.l.b16 %v6600
      %v7710 = vunpack.c.l.b16 %v6603
      %v7711 = vunpack.c.l.b16 %v6607
      %v7712 = vunpack.c.l.b16 %v6610
      %v7713 = vunpack.c.l.b16 %v6614
      %v7714 = vunpack.c.l.b16 %v6617
      %v7715 = vunpack.c.l.b16 %v6621
      %v7716 = vunpack.c.l.b16 %v6624
      %v7717 = vunpack.c.l.b16 %v6628
      %v7718 = vunpack.c.l.b16 %v6631
      %v7719 = vunpack.c.l.b16 %v6635
      %v7720 = vunpack.c.l.b16 %v6638
      %v7721 = vunpack.c.l.b16 %v6642
      %v7722 = vunpack.c.l.b16 %v6645
      %v7723 = vunpack.c.l.b16 %v6649
      %v7724 = vunpack.c.l.b16 %v6652
      %v7725 = vunpack.c.l.b16 %v6656
      %v7726 = vunpack.c.l.b16 %v6659
      %v7727 = vunpack.c.l.b16 %v6663
      %v7728 = vunpack.c.l.b16 %v6666
      %v7729 = vunpack.c.l.b16 %v6670
      %v7730 = vunpack.c.l.b16 %v6673
      %v7731 = vpack.c.b16 %v7700, %v7699
      %v7732 = vpack.c.b16 %v7702, %v7701
      %v7733 = vpack.c.b16 %v7704, %v7703
      %v7734 = vpack.c.b16 %v7706, %v7705
      %v7735 = vpack.c.b16 %v7708, %v7707
      %v7736 = vpack.c.b16 %v7710, %v7709
      %v7737 = vpack.c.b16 %v7712, %v7711
      %v7738 = vpack.c.b16 %v7714, %v7713
      %v7739 = vpack.c.b16 %v7716, %v7715
      %v7740 = vpack.c.b16 %v7718, %v7717
      %v7741 = vpack.c.b16 %v7720, %v7719
      %v7742 = vpack.c.b16 %v7722, %v7721
      %v7743 = vpack.c.b16 %v7724, %v7723
      %v7744 = vpack.c.b16 %v7726, %v7725
      %v7745 = vpack.c.b16 %v7728, %v7727
      %v7746 = vpack.c.b16 %v7730, %v7729
      %7747 = vrot.lane.b32.xlu0 %v7731, 8
      %v7748 = vpop.permute.xlu0 %7747
      %7749 = vrot.lane.b32.xlu0 %v7732, 8
      %v7750 = vpop.permute.xlu0 %7749
      %7751 = vrot.lane.b32.xlu0 %v7733, 8
      %v7752 = vpop.permute.xlu0 %7751
      %7753 = vrot.lane.b32.xlu0 %v7734, 8
      %v7754 = vpop.permute.xlu0 %7753
      %7755 = vrot.lane.b32.xlu0 %v7735, 8
      %v7756 = vpop.permute.xlu0 %7755
      %7757 = vrot.lane.b32.xlu0 %v7736, 8
      %v7758 = vpop.permute.xlu0 %7757
      %7759 = vrot.lane.b32.xlu0 %v7737, 8
      %v7760 = vpop.permute.xlu0 %7759
      %7761 = vrot.lane.b32.xlu0 %v7738, 8
      %v7762 = vpop.permute.xlu0 %7761
      %7763 = vrot.lane.b32.xlu0 %v7739, 8
      %v7764 = vpop.permute.xlu0 %7763
      %7765 = vrot.lane.b32.xlu0 %v7740, 8
      %v7766 = vpop.permute.xlu0 %7765
      %7767 = vrot.lane.b32.xlu0 %v7741, 8
      %v7768 = vpop.permute.xlu0 %7767
      %7769 = vrot.lane.b32.xlu0 %v7742, 8
      %v7770 = vpop.permute.xlu0 %7769
      %7771 = vrot.lane.b32.xlu0 %v7743, 8
      %v7772 = vpop.permute.xlu0 %7771
      %7773 = vrot.lane.b32.xlu0 %v7744, 8
      %v7774 = vpop.permute.xlu0 %7773
      %7775 = vrot.lane.b32.xlu0 %v7745, 8
      %v7776 = vpop.permute.xlu0 %7775
      %7777 = vrot.lane.b32.xlu0 %v7746, 8
      %v7778 = vpop.permute.xlu0 %7777
      %v7779 = vunpack.c.l.b16 %v6773
      %v7780 = vunpack.c.l.b16 %v6776
      %v7781 = vunpack.c.l.b16 %v6780
      %v7782 = vunpack.c.l.b16 %v6783
      %v7783 = vunpack.c.l.b16 %v6787
      %v7784 = vunpack.c.l.b16 %v6790
      %v7785 = vunpack.c.l.b16 %v6794
      %v7786 = vunpack.c.l.b16 %v6797
      %v7787 = vunpack.c.l.b16 %v6801
      %v7788 = vunpack.c.l.b16 %v6804
      %v7789 = vunpack.c.l.b16 %v6808
      %v7790 = vunpack.c.l.b16 %v6811
      %v7791 = vunpack.c.l.b16 %v6815
      %v7792 = vunpack.c.l.b16 %v6818
      %v7793 = vunpack.c.l.b16 %v6822
      %v7794 = vunpack.c.l.b16 %v6825
      %v7795 = vunpack.c.l.b16 %v6829
      %v7796 = vunpack.c.l.b16 %v6832
      %v7797 = vunpack.c.l.b16 %v6836
      %v7798 = vunpack.c.l.b16 %v6839
      %v7799 = vunpack.c.l.b16 %v6843
      %v7800 = vunpack.c.l.b16 %v6846
      %v7801 = vunpack.c.l.b16 %v6850
      %v7802 = vunpack.c.l.b16 %v6853
      %v7803 = vunpack.c.l.b16 %v6857
      %v7804 = vunpack.c.l.b16 %v6860
      %v7805 = vunpack.c.l.b16 %v6864
      %v7806 = vunpack.c.l.b16 %v6867
      %v7807 = vunpack.c.l.b16 %v6871
      %v7808 = vunpack.c.l.b16 %v6874
      %v7809 = vunpack.c.l.b16 %v6878
      %v7810 = vunpack.c.l.b16 %v6881
      %v7811 = vpack.c.b16 %v7780, %v7779
      %v7812 = vpack.c.b16 %v7782, %v7781
      %v7813 = vpack.c.b16 %v7784, %v7783
      %v7814 = vpack.c.b16 %v7786, %v7785
      %v7815 = vpack.c.b16 %v7788, %v7787
      %v7816 = vpack.c.b16 %v7790, %v7789
      %v7817 = vpack.c.b16 %v7792, %v7791
      %v7818 = vpack.c.b16 %v7794, %v7793
      %v7819 = vpack.c.b16 %v7796, %v7795
      %v7820 = vpack.c.b16 %v7798, %v7797
      %v7821 = vpack.c.b16 %v7800, %v7799
      %v7822 = vpack.c.b16 %v7802, %v7801
      %v7823 = vpack.c.b16 %v7804, %v7803
      %v7824 = vpack.c.b16 %v7806, %v7805
      %v7825 = vpack.c.b16 %v7808, %v7807
      %v7826 = vpack.c.b16 %v7810, %v7809
      %7827 = vrot.lane.b32.xlu0 %v7811, 12
      %v7828 = vpop.permute.xlu0 %7827
      %7829 = vrot.lane.b32.xlu0 %v7812, 12
      %v7830 = vpop.permute.xlu0 %7829
      %7831 = vrot.lane.b32.xlu0 %v7813, 12
      %v7832 = vpop.permute.xlu0 %7831
      %7833 = vrot.lane.b32.xlu0 %v7814, 12
      %v7834 = vpop.permute.xlu0 %7833
      %7835 = vrot.lane.b32.xlu0 %v7815, 12
      %v7836 = vpop.permute.xlu0 %7835
      %7837 = vrot.lane.b32.xlu0 %v7816, 12
      %v7838 = vpop.permute.xlu0 %7837
      %7839 = vrot.lane.b32.xlu0 %v7817, 12
      %v7840 = vpop.permute.xlu0 %7839
      %7841 = vrot.lane.b32.xlu0 %v7818, 12
      %v7842 = vpop.permute.xlu0 %7841
      %7843 = vrot.lane.b32.xlu0 %v7819, 12
      %v7844 = vpop.permute.xlu0 %7843
      %7845 = vrot.lane.b32.xlu0 %v7820, 12
      %v7846 = vpop.permute.xlu0 %7845
      %7847 = vrot.lane.b32.xlu0 %v7821, 12
      %v7848 = vpop.permute.xlu0 %7847
      %7849 = vrot.lane.b32.xlu0 %v7822, 12
      %v7850 = vpop.permute.xlu0 %7849
      %7851 = vrot.lane.b32.xlu0 %v7823, 12
      %v7852 = vpop.permute.xlu0 %7851
      %7853 = vrot.lane.b32.xlu0 %v7824, 12
      %v7854 = vpop.permute.xlu0 %7853
      %7855 = vrot.lane.b32.xlu0 %v7825, 12
      %v7856 = vpop.permute.xlu0 %7855
      %7857 = vrot.lane.b32.xlu0 %v7826, 12
      %v7858 = vpop.permute.xlu0 %7857
      %v7859 = vunpack.c.l.b16 %v6981
      %v7860 = vunpack.c.l.b16 %v6984
      %v7861 = vunpack.c.l.b16 %v6988
      %v7862 = vunpack.c.l.b16 %v6991
      %v7863 = vunpack.c.l.b16 %v6995
      %v7864 = vunpack.c.l.b16 %v6998
      %v7865 = vunpack.c.l.b16 %v7002
      %v7866 = vunpack.c.l.b16 %v7005
      %v7867 = vunpack.c.l.b16 %v7009
      %v7868 = vunpack.c.l.b16 %v7012
      %v7869 = vunpack.c.l.b16 %v7016
      %v7870 = vunpack.c.l.b16 %v7019
      %v7871 = vunpack.c.l.b16 %v7023
      %v7872 = vunpack.c.l.b16 %v7026
      %v7873 = vunpack.c.l.b16 %v7030
      %v7874 = vunpack.c.l.b16 %v7033
      %v7875 = vunpack.c.l.b16 %v7037
      %v7876 = vunpack.c.l.b16 %v7040
      %v7877 = vunpack.c.l.b16 %v7044
      %v7878 = vunpack.c.l.b16 %v7047
      %v7879 = vunpack.c.l.b16 %v7051
      %v7880 = vunpack.c.l.b16 %v7054
      %v7881 = vunpack.c.l.b16 %v7058
      %v7882 = vunpack.c.l.b16 %v7061
      %v7883 = vunpack.c.l.b16 %v7065
      %v7884 = vunpack.c.l.b16 %v7068
      %v7885 = vunpack.c.l.b16 %v7072
      %v7886 = vunpack.c.l.b16 %v7075
      %v7887 = vunpack.c.l.b16 %v7079
      %v7888 = vunpack.c.l.b16 %v7082
      %v7889 = vunpack.c.l.b16 %v7086
      %v7890 = vunpack.c.l.b16 %v7089
      %v7891 = vpack.c.b16 %v7860, %v7859
      %v7892 = vpack.c.b16 %v7862, %v7861
      %v7893 = vpack.c.b16 %v7864, %v7863
      %v7894 = vpack.c.b16 %v7866, %v7865
      %v7895 = vpack.c.b16 %v7868, %v7867
      %v7896 = vpack.c.b16 %v7870, %v7869
      %v7897 = vpack.c.b16 %v7872, %v7871
      %v7898 = vpack.c.b16 %v7874, %v7873
      %v7899 = vpack.c.b16 %v7876, %v7875
      %v7900 = vpack.c.b16 %v7878, %v7877
      %v7901 = vpack.c.b16 %v7880, %v7879
      %v7902 = vpack.c.b16 %v7882, %v7881
      %v7903 = vpack.c.b16 %v7884, %v7883
      %v7904 = vpack.c.b16 %v7886, %v7885
      %v7905 = vpack.c.b16 %v7888, %v7887
      %v7906 = vpack.c.b16 %v7890, %v7889
      %7907 = vrot.lane.b32.xlu0 %v7891, 20
      %v7908 = vpop.permute.xlu0 %7907
      %7909 = vrot.lane.b32.xlu0 %v7892, 20
      %v7910 = vpop.permute.xlu0 %7909
      %7911 = vrot.lane.b32.xlu0 %v7893, 20
      %v7912 = vpop.permute.xlu0 %7911
      %7913 = vrot.lane.b32.xlu0 %v7894, 20
      %v7914 = vpop.permute.xlu0 %7913
      %7915 = vrot.lane.b32.xlu0 %v7895, 20
      %v7916 = vpop.permute.xlu0 %7915
      %7917 = vrot.lane.b32.xlu0 %v7896, 20
      %v7918 = vpop.permute.xlu0 %7917
      %7919 = vrot.lane.b32.xlu0 %v7897, 20
      %v7920 = vpop.permute.xlu0 %7919
      %7921 = vrot.lane.b32.xlu0 %v7898, 20
      %v7922 = vpop.permute.xlu0 %7921
      %7923 = vrot.lane.b32.xlu0 %v7899, 20
      %v7924 = vpop.permute.xlu0 %7923
      %7925 = vrot.lane.b32.xlu0 %v7900, 20
      %v7926 = vpop.permute.xlu0 %7925
      %7927 = vrot.lane.b32.xlu0 %v7901, 20
      %v7928 = vpop.permute.xlu0 %7927
      %7929 = vrot.lane.b32.xlu0 %v7902, 20
      %v7930 = vpop.permute.xlu0 %7929
      %7931 = vrot.lane.b32.xlu0 %v7903, 20
      %v7932 = vpop.permute.xlu0 %7931
      %7933 = vrot.lane.b32.xlu0 %v7904, 20
      %v7934 = vpop.permute.xlu0 %7933
      %7935 = vrot.lane.b32.xlu0 %v7905, 20
      %v7936 = vpop.permute.xlu0 %7935
      %7937 = vrot.lane.b32.xlu0 %v7906, 20
      %v7938 = vpop.permute.xlu0 %7937
      %v7939 = vunpack.c.l.b16 %v7190
      %v7940 = vunpack.c.l.b16 %v7193
      %v7941 = vunpack.c.l.b16 %v7197
      %v7942 = vunpack.c.l.b16 %v7200
      %v7943 = vunpack.c.l.b16 %v7204
      %v7944 = vunpack.c.l.b16 %v7207
      %v7945 = vunpack.c.l.b16 %v7211
      %v7946 = vunpack.c.l.b16 %v7214
      %v7947 = vunpack.c.l.b16 %v7218
      %v7948 = vunpack.c.l.b16 %v7221
      %v7949 = vunpack.c.l.b16 %v7225
      %v7950 = vunpack.c.l.b16 %v7228
      %v7951 = vunpack.c.l.b16 %v7232
      %v7952 = vunpack.c.l.b16 %v7235
      %v7953 = vunpack.c.l.b16 %v7239
      %v7954 = vunpack.c.l.b16 %v7242
      %v7955 = vunpack.c.l.b16 %v7246
      %v7956 = vunpack.c.l.b16 %v7249
      %v7957 = vunpack.c.l.b16 %v7253
      %v7958 = vunpack.c.l.b16 %v7256
      %v7959 = vunpack.c.l.b16 %v7260
      %v7960 = vunpack.c.l.b16 %v7263
      %v7961 = vunpack.c.l.b16 %v7267
      %v7962 = vunpack.c.l.b16 %v7270
      %v7963 = vunpack.c.l.b16 %v7274
      %v7964 = vunpack.c.l.b16 %v7277
      %v7965 = vunpack.c.l.b16 %v7281
      %v7966 = vunpack.c.l.b16 %v7284
      %v7967 = vunpack.c.l.b16 %v7288
      %v7968 = vunpack.c.l.b16 %v7291
      %v7969 = vunpack.c.l.b16 %v7295
      %v7970 = vunpack.c.l.b16 %v7298
      %v7971 = vpack.c.b16 %v7940, %v7939
      %v7972 = vpack.c.b16 %v7942, %v7941
      %v7973 = vpack.c.b16 %v7944, %v7943
      %v7974 = vpack.c.b16 %v7946, %v7945
      %v7975 = vpack.c.b16 %v7948, %v7947
      %v7976 = vpack.c.b16 %v7950, %v7949
      %v7977 = vpack.c.b16 %v7952, %v7951
      %v7978 = vpack.c.b16 %v7954, %v7953
      %v7979 = vpack.c.b16 %v7956, %v7955
      %v7980 = vpack.c.b16 %v7958, %v7957
      %v7981 = vpack.c.b16 %v7960, %v7959
      %v7982 = vpack.c.b16 %v7962, %v7961
      %v7983 = vpack.c.b16 %v7964, %v7963
      %v7984 = vpack.c.b16 %v7966, %v7965
      %v7985 = vpack.c.b16 %v7968, %v7967
      %v7986 = vpack.c.b16 %v7970, %v7969
      %7987 = vrot.lane.b32.xlu0 %v7971, 24
      %v7988 = vpop.permute.xlu0 %7987
      %7989 = vrot.lane.b32.xlu0 %v7972, 24
      %v7990 = vpop.permute.xlu0 %7989
      %7991 = vrot.lane.b32.xlu0 %v7973, 24
      %v7992 = vpop.permute.xlu0 %7991
      %7993 = vrot.lane.b32.xlu0 %v7974, 24
      %v7994 = vpop.permute.xlu0 %7993
      %7995 = vrot.lane.b32.xlu0 %v7975, 24
      %v7996 = vpop.permute.xlu0 %7995
      %7997 = vrot.lane.b32.xlu0 %v7976, 24
      %v7998 = vpop.permute.xlu0 %7997
      %7999 = vrot.lane.b32.xlu0 %v7977, 24
      %v8000 = vpop.permute.xlu0 %7999
      %8001 = vrot.lane.b32.xlu0 %v7978, 24
      %v8002 = vpop.permute.xlu0 %8001
      %8003 = vrot.lane.b32.xlu0 %v7979, 24
      %v8004 = vpop.permute.xlu0 %8003
      %8005 = vrot.lane.b32.xlu0 %v7980, 24
      %v8006 = vpop.permute.xlu0 %8005
      %8007 = vrot.lane.b32.xlu0 %v7981, 24
      %v8008 = vpop.permute.xlu0 %8007
      %8009 = vrot.lane.b32.xlu0 %v7982, 24
      %v8010 = vpop.permute.xlu0 %8009
      %8011 = vrot.lane.b32.xlu0 %v7983, 24
      %v8012 = vpop.permute.xlu0 %8011
      %8013 = vrot.lane.b32.xlu0 %v7984, 24
      %v8014 = vpop.permute.xlu0 %8013
      %8015 = vrot.lane.b32.xlu0 %v7985, 24
      %v8016 = vpop.permute.xlu0 %8015
      %8017 = vrot.lane.b32.xlu0 %v7986, 24
      %v8018 = vpop.permute.xlu0 %8017
      %v8051 = vunpack.c.l.b16 %v7299
      %v8052 = vunpack.c.l.b16 %v7300
      %v8053 = vunpack.c.l.b16 %v7301
      %v8054 = vunpack.c.l.b16 %v7302
      %v8055 = vunpack.c.l.b16 %v7303
      %v8056 = vunpack.c.l.b16 %v7304
      %v8057 = vunpack.c.l.b16 %v7305
      %v8058 = vunpack.c.l.b16 %v7306
      %v8059 = vunpack.c.l.b16 %v7307
      %v8060 = vunpack.c.l.b16 %v7308
      %v8061 = vunpack.c.l.b16 %v7309
      %v8062 = vunpack.c.l.b16 %v7310
      %v8063 = vunpack.c.l.b16 %v7311
      %v8064 = vunpack.c.l.b16 %v7312
      %v8065 = vunpack.c.l.b16 %v7313
      %v8066 = vunpack.c.l.b16 %v7314
      %v8067 = vunpack.c.l.b16 %v7315
      %v8068 = vunpack.c.l.b16 %v7316
      %v8069 = vunpack.c.l.b16 %v7317
      %v8070 = vunpack.c.l.b16 %v7318
      %v8071 = vunpack.c.l.b16 %v7319
      %v8072 = vunpack.c.l.b16 %v7320
      %v8073 = vunpack.c.l.b16 %v7321
      %v8074 = vunpack.c.l.b16 %v7322
      %v8075 = vunpack.c.l.b16 %v7323
      %v8076 = vunpack.c.l.b16 %v7324
      %v8077 = vunpack.c.l.b16 %v7325
      %v8078 = vunpack.c.l.b16 %v7326
      %v8079 = vunpack.c.l.b16 %v7327
      %v8080 = vunpack.c.l.b16 %v7328
      %v8081 = vunpack.c.l.b16 %v7329
      %v8082 = vunpack.c.l.b16 %v7330
      %v8083 = vpack.c.b16 %v8052, %v8051
      %v8084 = vpack.c.b16 %v8054, %v8053
      %v8085 = vpack.c.b16 %v8056, %v8055
      %v8086 = vpack.c.b16 %v8058, %v8057
      %v8087 = vpack.c.b16 %v8060, %v8059
      %v8088 = vpack.c.b16 %v8062, %v8061
      %v8089 = vpack.c.b16 %v8064, %v8063
      %v8090 = vpack.c.b16 %v8066, %v8065
      %v8091 = vpack.c.b16 %v8068, %v8067
      %v8092 = vpack.c.b16 %v8070, %v8069
      %v8093 = vpack.c.b16 %v8072, %v8071
      %v8094 = vpack.c.b16 %v8074, %v8073
      %v8095 = vpack.c.b16 %v8076, %v8075
      %v8096 = vpack.c.b16 %v8078, %v8077
      %v8097 = vpack.c.b16 %v8080, %v8079
      %v8098 = vpack.c.b16 %v8082, %v8081
      %8099 = vrot.lane.b32.xlu0 %v8083, 28
      %v8100 = vpop.permute.xlu0 %8099
      %8101 = vrot.lane.b32.xlu0 %v8084, 28
      %v8102 = vpop.permute.xlu0 %8101
      %8103 = vrot.lane.b32.xlu0 %v8085, 28
      %v8104 = vpop.permute.xlu0 %8103
      %8105 = vrot.lane.b32.xlu0 %v8086, 28
      %v8106 = vpop.permute.xlu0 %8105
      %8107 = vrot.lane.b32.xlu0 %v8087, 28
      %v8108 = vpop.permute.xlu0 %8107
      %8109 = vrot.lane.b32.xlu0 %v8088, 28
      %v8110 = vpop.permute.xlu0 %8109
      %8111 = vrot.lane.b32.xlu0 %v8089, 28
      %v8112 = vpop.permute.xlu0 %8111
      %8113 = vrot.lane.b32.xlu0 %v8090, 28
      %v8114 = vpop.permute.xlu0 %8113
      %8115 = vrot.lane.b32.xlu0 %v8091, 28
      %v8116 = vpop.permute.xlu0 %8115
      %8117 = vrot.lane.b32.xlu0 %v8092, 28
      %v8118 = vpop.permute.xlu0 %8117
      %8119 = vrot.lane.b32.xlu0 %v8093, 28
      %v8120 = vpop.permute.xlu0 %8119
      %8121 = vrot.lane.b32.xlu0 %v8094, 28
      %v8122 = vpop.permute.xlu0 %8121
      %8123 = vrot.lane.b32.xlu0 %v8095, 28
      %v8124 = vpop.permute.xlu0 %8123
      %8125 = vrot.lane.b32.xlu0 %v8096, 28
      %v8126 = vpop.permute.xlu0 %8125
      %8127 = vrot.lane.b32.xlu0 %v8097, 28
      %v8128 = vpop.permute.xlu0 %8127
      %8129 = vrot.lane.b32.xlu0 %v8098, 28
      %v8130 = vpop.permute.xlu0 %8129
      %v8131 = vunpack.c.l.b16 %v7430
      %v8132 = vunpack.c.l.b16 %v7433
      %v8133 = vunpack.c.l.b16 %v7437
      %v8134 = vunpack.c.l.b16 %v7440
      %v8135 = vunpack.c.l.b16 %v7444
      %v8136 = vunpack.c.l.b16 %v7447
      %v8137 = vunpack.c.l.b16 %v7451
      %v8138 = vunpack.c.l.b16 %v7454
      %v8139 = vunpack.c.l.b16 %v7458
      %v8140 = vunpack.c.l.b16 %v7461
      %v8141 = vunpack.c.l.b16 %v7465
      %v8142 = vunpack.c.l.b16 %v7468
      %v8143 = vunpack.c.l.b16 %v7472
      %v8144 = vunpack.c.l.b16 %v7475
      %v8145 = vunpack.c.l.b16 %v7479
      %v8146 = vunpack.c.l.b16 %v7482
      %v8147 = vunpack.c.l.b16 %v7486
      %v8148 = vunpack.c.l.b16 %v7489
      %v8149 = vunpack.c.l.b16 %v7493
      %v8150 = vunpack.c.l.b16 %v7496
      %v8151 = vunpack.c.l.b16 %v7500
      %v8152 = vunpack.c.l.b16 %v7503
      %v8153 = vunpack.c.l.b16 %v7507
      %v8154 = vunpack.c.l.b16 %v7510
      %v8155 = vunpack.c.l.b16 %v7514
      %v8156 = vunpack.c.l.b16 %v7517
      %v8157 = vunpack.c.l.b16 %v7521
      %v8158 = vunpack.c.l.b16 %v7524
      %v8159 = vunpack.c.l.b16 %v7528
      %v8160 = vunpack.c.l.b16 %v7531
      %v8161 = vunpack.c.l.b16 %v7535
      %v8162 = vunpack.c.l.b16 %v7538
      %v8163 = vpack.c.b16 %v8132, %v8131
      %v8164 = vpack.c.b16 %v8134, %v8133
      %v8165 = vpack.c.b16 %v8136, %v8135
      %v8166 = vpack.c.b16 %v8138, %v8137
      %v8167 = vpack.c.b16 %v8140, %v8139
      %v8168 = vpack.c.b16 %v8142, %v8141
      %v8169 = vpack.c.b16 %v8144, %v8143
      %v8170 = vpack.c.b16 %v8146, %v8145
      %v8171 = vpack.c.b16 %v8148, %v8147
      %v8172 = vpack.c.b16 %v8150, %v8149
      %v8173 = vpack.c.b16 %v8152, %v8151
      %v8174 = vpack.c.b16 %v8154, %v8153
      %v8175 = vpack.c.b16 %v8156, %v8155
      %v8176 = vpack.c.b16 %v8158, %v8157
      %v8177 = vpack.c.b16 %v8160, %v8159
      %v8178 = vpack.c.b16 %v8162, %v8161
      %8179 = vrot.lane.b32.xlu0 %v8163, 32
      %v8180 = vpop.permute.xlu0 %8179
      %8181 = vrot.lane.b32.xlu0 %v8164, 32
      %v8182 = vpop.permute.xlu0 %8181
      %8183 = vrot.lane.b32.xlu0 %v8165, 32
      %v8184 = vpop.permute.xlu0 %8183
      %8185 = vrot.lane.b32.xlu0 %v8166, 32
      %v8186 = vpop.permute.xlu0 %8185
      %8187 = vrot.lane.b32.xlu0 %v8167, 32
      %v8188 = vpop.permute.xlu0 %8187
      %8189 = vrot.lane.b32.xlu0 %v8168, 32
      %v8190 = vpop.permute.xlu0 %8189
      %8191 = vrot.lane.b32.xlu0 %v8169, 32
      %v8192 = vpop.permute.xlu0 %8191
      %8193 = vrot.lane.b32.xlu0 %v8170, 32
      %v8194 = vpop.permute.xlu0 %8193
      %8195 = vrot.lane.b32.xlu0 %v8171, 32
      %v8196 = vpop.permute.xlu0 %8195
      %8197 = vrot.lane.b32.xlu0 %v8172, 32
      %v8198 = vpop.permute.xlu0 %8197
      %8199 = vrot.lane.b32.xlu0 %v8173, 32
      %v8200 = vpop.permute.xlu0 %8199
      %8201 = vrot.lane.b32.xlu0 %v8174, 32
      %v8202 = vpop.permute.xlu0 %8201
      %8203 = vrot.lane.b32.xlu0 %v8175, 32
      %v8204 = vpop.permute.xlu0 %8203
      %8205 = vrot.lane.b32.xlu0 %v8176, 32
      %v8206 = vpop.permute.xlu0 %8205
      %8207 = vrot.lane.b32.xlu0 %v8177, 32
      %v8208 = vpop.permute.xlu0 %8207
      %8209 = vrot.lane.b32.xlu0 %v8178, 32
      %v8210 = vpop.permute.xlu0 %8209
      %v8213 = vsel %vm1157, %v7571, %v7668
      %v8216 = vsel %vm1157, %v7572, %v7670
      %v8219 = vsel %vm1157, %v7573, %v7672
      %v8222 = vsel %vm1157, %v7574, %v7674
      %v8225 = vsel %vm1157, %v7575, %v7676
      %v8228 = vsel %vm1157, %v7576, %v7678
      %v8231 = vsel %vm1157, %v7577, %v7680
      %v8234 = vsel %vm1157, %v7578, %v7682
      %v8237 = vsel %vm1157, %v7579, %v7684
      %v8240 = vsel %vm1157, %v7580, %v7686
      %v8243 = vsel %vm1157, %v7581, %v7688
      %v8246 = vsel %vm1157, %v7582, %v7690
      %v8249 = vsel %vm1157, %v7583, %v7692
      %v8252 = vsel %vm1157, %v7584, %v7694
      %v8255 = vsel %vm1157, %v7585, %v7696
      %v8258 = vsel %vm1157, %v7586, %v7698
      %v8260 = vsel %vm3315, %v8213, %v7748
      %v8262 = vsel %vm3315, %v8216, %v7750
      %v8264 = vsel %vm3315, %v8219, %v7752
      %v8266 = vsel %vm3315, %v8222, %v7754
      %v8268 = vsel %vm3315, %v8225, %v7756
      %v8270 = vsel %vm3315, %v8228, %v7758
      %v8272 = vsel %vm3315, %v8231, %v7760
      %v8274 = vsel %vm3315, %v8234, %v7762
      %v8276 = vsel %vm3315, %v8237, %v7764
      %v8278 = vsel %vm3315, %v8240, %v7766
      %v8280 = vsel %vm3315, %v8243, %v7768
      %v8282 = vsel %vm3315, %v8246, %v7770
      %v8284 = vsel %vm3315, %v8249, %v7772
      %v8286 = vsel %vm3315, %v8252, %v7774
      %v8288 = vsel %vm3315, %v8255, %v7776
      %v8290 = vsel %vm3315, %v8258, %v7778
      %v8292 = vsel %vm3348, %v8260, %v7828
      %v8294 = vsel %vm3348, %v8262, %v7830
      %v8296 = vsel %vm3348, %v8264, %v7832
      %v8298 = vsel %vm3348, %v8266, %v7834
      %v8300 = vsel %vm3348, %v8268, %v7836
      %v8302 = vsel %vm3348, %v8270, %v7838
      %v8304 = vsel %vm3348, %v8272, %v7840
      %v8306 = vsel %vm3348, %v8274, %v7842
      %v8308 = vsel %vm3348, %v8276, %v7844
      %v8310 = vsel %vm3348, %v8278, %v7846
      %v8312 = vsel %vm3348, %v8280, %v7848
      %v8314 = vsel %vm3348, %v8282, %v7850
      %v8316 = vsel %vm3348, %v8284, %v7852
      %v8318 = vsel %vm3348, %v8286, %v7854
      %v8320 = vsel %vm3348, %v8288, %v7856
      %v8322 = vsel %vm3348, %v8290, %v7858
      %v8323 = vsel %vm3381, %v8292, %v2916
      %v8324 = vsel %vm3381, %v8294, %v2918
      %v8325 = vsel %vm3381, %v8296, %v2920
      %v8326 = vsel %vm3381, %v8298, %v2922
      %v8327 = vsel %vm3381, %v8300, %v2924
      %v8328 = vsel %vm3381, %v8302, %v2926
      %v8329 = vsel %vm3381, %v8304, %v2928
      %v8330 = vsel %vm3381, %v8306, %v2930
      %v8331 = vsel %vm3381, %v8308, %v2932
      %v8332 = vsel %vm3381, %v8310, %v2934
      %v8333 = vsel %vm3381, %v8312, %v2936
      %v8334 = vsel %vm3381, %v8314, %v2938
      %v8335 = vsel %vm3381, %v8316, %v2940
      %v8336 = vsel %vm3381, %v8318, %v2942
      %v8337 = vsel %vm3381, %v8320, %v2944
      %v8338 = vsel %vm3381, %v8322, %v2946
      %v8340 = vsel %vm3414, %v8323, %v7908
      %v8342 = vsel %vm3414, %v8324, %v7910
      %v8344 = vsel %vm3414, %v8325, %v7912
      %v8346 = vsel %vm3414, %v8326, %v7914
      %v8348 = vsel %vm3414, %v8327, %v7916
      %v8350 = vsel %vm3414, %v8328, %v7918
      %v8352 = vsel %vm3414, %v8329, %v7920
      %v8354 = vsel %vm3414, %v8330, %v7922
      %v8356 = vsel %vm3414, %v8331, %v7924
      %v8358 = vsel %vm3414, %v8332, %v7926
      %v8360 = vsel %vm3414, %v8333, %v7928
      %v8362 = vsel %vm3414, %v8334, %v7930
      %v8364 = vsel %vm3414, %v8335, %v7932
      %v8366 = vsel %vm3414, %v8336, %v7934
      %v8368 = vsel %vm3414, %v8337, %v7936
      %v8370 = vsel %vm3414, %v8338, %v7938
      %v8372 = vsel %vm3447, %v8340, %v7988
      %v8374 = vsel %vm3447, %v8342, %v7990
      %v8376 = vsel %vm3447, %v8344, %v7992
      %v8378 = vsel %vm3447, %v8346, %v7994
      %v8380 = vsel %vm3447, %v8348, %v7996
      %v8382 = vsel %vm3447, %v8350, %v7998
      %v8384 = vsel %vm3447, %v8352, %v8000
      %v8386 = vsel %vm3447, %v8354, %v8002
      %v8388 = vsel %vm3447, %v8356, %v8004
      %v8390 = vsel %vm3447, %v8358, %v8006
      %v8392 = vsel %vm3447, %v8360, %v8008
      %v8394 = vsel %vm3447, %v8362, %v8010
      %v8396 = vsel %vm3447, %v8364, %v8012
      %v8398 = vsel %vm3447, %v8366, %v8014
      %v8400 = vsel %vm3447, %v8368, %v8016
      %v8402 = vsel %vm3447, %v8370, %v8018
      %v8404 = vsel %vm3480, %v8372, %v8100
      %v8406 = vsel %vm3480, %v8374, %v8102
      %v8408 = vsel %vm3480, %v8376, %v8104
      %v8410 = vsel %vm3480, %v8378, %v8106
      %v8412 = vsel %vm3480, %v8380, %v8108
      %v8414 = vsel %vm3480, %v8382, %v8110
      %v8416 = vsel %vm3480, %v8384, %v8112
      %v8418 = vsel %vm3480, %v8386, %v8114
      %v8420 = vsel %vm3480, %v8388, %v8116
      %v8422 = vsel %vm3480, %v8390, %v8118
      %v8424 = vsel %vm3480, %v8392, %v8120
      %v8426 = vsel %vm3480, %v8394, %v8122
      %v8428 = vsel %vm3480, %v8396, %v8124
      %v8430 = vsel %vm3480, %v8398, %v8126
      %v8432 = vsel %vm3480, %v8400, %v8128
      %v8434 = vsel %vm3480, %v8402, %v8130
      %v8436 = vsel %vm3513, %v8404, %v8180
      %v8438 = vsel %vm3513, %v8406, %v8182
      %v8440 = vsel %vm3513, %v8408, %v8184
      %v8442 = vsel %vm3513, %v8410, %v8186
      %v8444 = vsel %vm3513, %v8412, %v8188
      %v8446 = vsel %vm3513, %v8414, %v8190
      %v8448 = vsel %vm3513, %v8416, %v8192
      %v8450 = vsel %vm3513, %v8418, %v8194
      %v8452 = vsel %vm3513, %v8420, %v8196
      %v8454 = vsel %vm3513, %v8422, %v8198
      %v8456 = vsel %vm3513, %v8424, %v8200
      %v8458 = vsel %vm3513, %v8426, %v8202
      %v8460 = vsel %vm3513, %v8428, %v8204
      %v8462 = vsel %vm3513, %v8430, %v8206
      %v8464 = vsel %vm3513, %v8432, %v8208
      %v8466 = vsel %vm3513, %v8434, %v8210
      %s8467 = scalar_lea.vmem %s2, 40
      %v8468 = vld [vmem:[%s8467] sm:$0xf]
      %v8469 = vld [vmem:[%s8467 + $0x4] sm:$0xf]
      %v8470 = vld [vmem:[%s8467 + $0x8] sm:$0xf]
      %v8471 = vld [vmem:[%s8467 + $0xc] sm:$0xf]
      %v8472 = vld [vmem:[%s8467 + $0x10] sm:$0x3]
      %v8478 = vunpack.c.l.b16 %v8468
      %v8479 = vunpack.c.l.b16 %v8469
      %v8480 = vunpack.c.l.b16 %v8470
      %v8481 = vunpack.c.l.b16 %v8471
      %v8482 = vunpack.c.l.b16 %v8472
      %v8483 = vpack.c.b16 %v8479, %v8478
      %v8484 = vpack.c.b16 %v8481, %v8480
      %v8485 = vpack.c.b16 %v8482, %v8482
      %v8488 = vsel %vm3566, %v8436, 0
      %v8490 = vsel %vm3566, %v8438, 0
      %v8492 = vsel %vm3566, %v8440, 0
      %v8494 = vsel %vm3566, %v8442, 0
      %v8496 = vsel %vm3566, %v8444, 0
      %v8498 = vsel %vm3566, %v8446, 0
      %v8500 = vsel %vm3566, %v8448, 0
      %v8502 = vsel %vm3566, %v8450, 0
      %v8504 = vsel %vm3566, %v8452, 0
      %v8506 = vsel %vm3566, %v8454, 0
      %v8508 = vsel %vm3566, %v8456, 0
      %v8510 = vsel %vm3566, %v8458, 0
      %v8512 = vsel %vm3566, %v8460, 0
      %v8514 = vsel %vm3566, %v8462, 0
      %v8516 = vsel %vm3566, %v8464, 0
      %v8518 = vsel %vm3566, %v8466, 0
      %v8521 = vsel %vm1206, %v8485, 0
      %8523 = vmatprep.subr.bf16.mxu0 0
      %8524 = vmatpush1.bf16.msra.mxu0 %v8483
      %8525 = vmatprep.subr.bf16.mxu0 0
      %8526 = vmatpush1.bf16.msra.mxu0 %v8484
      %8527 = vmatprep.subr.bf16.mxu0 0
      %8528 = vmatpush1.bf16.msra.mxu0 %v8521
      %8529 = vmatprep.subr.bf16.mxu0 0
      %8530 = vmatpush1.bf16.msra.mxu0 0
      %8531 = vmatprep.subr.bf16.mxu0 0
      %8532 = vmatpush1.bf16.msra.mxu0 0
      %8533 = vmatprep.subr.bf16.mxu0 0
      %8534 = vmatpush1.bf16.msra.mxu0 0
      %8535 = vmatprep.subr.bf16.mxu0 0
      %8536 = vmatpush1.bf16.msra.mxu0 0
      %8537 = vmatprep.subr.bf16.mxu0 0
      %8538 = vmatpush1.bf16.msra.mxu0 0
      %8539 = vmatprep.subr.bf16.mxu0 0
      %8540 = vmatpush1.bf16.msra.mxu0 0
      %8541 = vmatprep.subr.bf16.mxu0 0
      %8542 = vmatpush1.bf16.msra.mxu0 0
      %8543 = vmatprep.subr.bf16.mxu0 0
      %8544 = vmatpush1.bf16.msra.mxu0 0
      %8545 = vmatprep.subr.bf16.mxu0 0
      %8546 = vmatpush1.bf16.msra.mxu0 0
      %8547 = vmatprep.subr.bf16.mxu0 0
      %8548 = vmatpush1.bf16.msra.mxu0 0
      %8549 = vmatprep.subr.bf16.mxu0 0
      %8550 = vmatpush1.bf16.msra.mxu0 0
      %8551 = vmatprep.subr.bf16.mxu0 0
      %8552 = vmatpush1.bf16.msra.mxu0 0
      %8553 = vmatprep.subr.bf16.mxu0 0
      %8554 = vmatpush1.bf16.msra.mxu0 0
      %8555 = vmatprep.mubr.bf16.mxu0 0
      %8556 = vmatmul.mubr.bf16.gmra.mrb[0].mxu0 %v8488
      %v8557 = vpop.f32.mrb[0].mxu0
      %v8558 = vadd.f32 0.0, %v8557
      %v8559 = vpop.f32.mrb[0].mxu0
      %v8560 = vpop.f32.mrb[0].mxu0
      %v8561 = vadd.f32 0.0, %v8560
      %v8562 = vpop.f32.mrb[0].mxu0
      %8563 = vmatprep.mubr.bf16.mxu0 0
      %8564 = vmatmul.mubr.bf16.gmra.mrb[0].mxu0 %v8490
      %v8565 = vpop.f32.mrb[0].mxu0
      %v8566 = vadd.f32 0.0, %v8565
      %v8567 = vpop.f32.mrb[0].mxu0
      %v8568 = vpop.f32.mrb[0].mxu0
      %v8569 = vadd.f32 0.0, %v8568
      %v8570 = vpop.f32.mrb[0].mxu0
      %8571 = vmatprep.mubr.bf16.mxu0 0
      %8572 = vmatmul.mubr.bf16.gmra.mrb[0].mxu0 %v8492
      %v8573 = vpop.f32.mrb[0].mxu0
      %v8574 = vadd.f32 0.0, %v8573
      %v8575 = vpop.f32.mrb[0].mxu0
      %v8576 = vpop.f32.mrb[0].mxu0
      %v8577 = vadd.f32 0.0, %v8576
      %v8578 = vpop.f32.mrb[0].mxu0
      %8579 = vmatprep.mubr.bf16.mxu0 0
      %8580 = vmatmul.mubr.bf16.gmra.mrb[0].mxu0 %v8494
      %v8581 = vpop.f32.mrb[0].mxu0
      %v8582 = vadd.f32 0.0, %v8581
      %v8583 = vpop.f32.mrb[0].mxu0
      %v8584 = vpop.f32.mrb[0].mxu0
      %v8585 = vadd.f32 0.0, %v8584
      %v8586 = vpop.f32.mrb[0].mxu0
      %8587 = vmatprep.mubr.bf16.mxu0 0
      %8588 = vmatmul.mubr.bf16.gmra.mrb[0].mxu0 %v8496
      %v8589 = vpop.f32.mrb[0].mxu0
      %v8590 = vadd.f32 0.0, %v8589
      %v8591 = vpop.f32.mrb[0].mxu0
      %v8592 = vpop.f32.mrb[0].mxu0
      %v8593 = vadd.f32 0.0, %v8592
      %v8594 = vpop.f32.mrb[0].mxu0
      %8595 = vmatprep.mubr.bf16.mxu0 0
      %8596 = vmatmul.mubr.bf16.gmra.mrb[0].mxu0 %v8498
      %v8597 = vpop.f32.mrb[0].mxu0
      %v8598 = vadd.f32 0.0, %v8597
      %v8599 = vpop.f32.mrb[0].mxu0
      %v8600 = vpop.f32.mrb[0].mxu0
      %v8601 = vadd.f32 0.0, %v8600
      %v8602 = vpop.f32.mrb[0].mxu0
      %8603 = vmatprep.mubr.bf16.mxu0 0
      %8604 = vmatmul.mubr.bf16.gmra.mrb[0].mxu0 %v8500
      %v8605 = vpop.f32.mrb[0].mxu0
      %v8606 = vadd.f32 0.0, %v8605
      %v8607 = vpop.f32.mrb[0].mxu0
      %v8608 = vpop.f32.mrb[0].mxu0
      %v8609 = vadd.f32 0.0, %v8608
      %v8610 = vpop.f32.mrb[0].mxu0
      %8611 = vmatprep.mubr.bf16.mxu0 0
      %8612 = vmatmul.mubr.bf16.gmra.mrb[0].mxu0 %v8502
      %v8613 = vpop.f32.mrb[0].mxu0
      %v8614 = vadd.f32 0.0, %v8613
      %v8615 = vpop.f32.mrb[0].mxu0
      %v8616 = vpop.f32.mrb[0].mxu0
      %v8617 = vadd.f32 0.0, %v8616
      %v8618 = vpop.f32.mrb[0].mxu0
      %8619 = vmatprep.mubr.bf16.mxu0 0
      %8620 = vmatmul.mubr.bf16.gmra.mrb[0].mxu0 %v8504
      %v8621 = vpop.f32.mrb[0].mxu0
      %v8622 = vadd.f32 0.0, %v8621
      %v8623 = vpop.f32.mrb[0].mxu0
      %v8624 = vpop.f32.mrb[0].mxu0
      %v8625 = vadd.f32 0.0, %v8624
      %v8626 = vpop.f32.mrb[0].mxu0
      %8627 = vmatprep.mubr.bf16.mxu0 0
      %8628 = vmatmul.mubr.bf16.gmra.mrb[0].mxu0 %v8506
      %v8629 = vpop.f32.mrb[0].mxu0
      %v8630 = vadd.f32 0.0, %v8629
      %v8631 = vpop.f32.mrb[0].mxu0
      %v8632 = vpop.f32.mrb[0].mxu0
      %v8633 = vadd.f32 0.0, %v8632
      %v8634 = vpop.f32.mrb[0].mxu0
      %8635 = vmatprep.mubr.bf16.mxu0 0
      %8636 = vmatmul.mubr.bf16.gmra.mrb[0].mxu0 %v8508
      %v8637 = vpop.f32.mrb[0].mxu0
      %v8638 = vadd.f32 0.0, %v8637
      %v8639 = vpop.f32.mrb[0].mxu0
      %v8640 = vpop.f32.mrb[0].mxu0
      %v8641 = vadd.f32 0.0, %v8640
      %v8642 = vpop.f32.mrb[0].mxu0
      %8643 = vmatprep.mubr.bf16.mxu0 0
      %8644 = vmatmul.mubr.bf16.gmra.mrb[0].mxu0 %v8510
      %v8645 = vpop.f32.mrb[0].mxu0
      %v8646 = vadd.f32 0.0, %v8645
      %v8647 = vpop.f32.mrb[0].mxu0
      %v8648 = vpop.f32.mrb[0].mxu0
      %v8649 = vadd.f32 0.0, %v8648
      %v8650 = vpop.f32.mrb[0].mxu0
      %8651 = vmatprep.mubr.bf16.mxu0 0
      %8652 = vmatmul.mubr.bf16.gmra.mrb[0].mxu0 %v8512
      %v8653 = vpop.f32.mrb[0].mxu0
      %v8654 = vadd.f32 0.0, %v8653
      %v8655 = vpop.f32.mrb[0].mxu0
      %v8656 = vpop.f32.mrb[0].mxu0
      %v8657 = vadd.f32 0.0, %v8656
      %v8658 = vpop.f32.mrb[0].mxu0
      %8659 = vmatprep.mubr.bf16.mxu0 0
      %8660 = vmatmul.mubr.bf16.gmra.mrb[0].mxu0 %v8514
      %v8661 = vpop.f32.mrb[0].mxu0
      %v8662 = vadd.f32 0.0, %v8661
      %v8663 = vpop.f32.mrb[0].mxu0
      %v8664 = vpop.f32.mrb[0].mxu0
      %v8665 = vadd.f32 0.0, %v8664
      %v8666 = vpop.f32.mrb[0].mxu0
      %8667 = vmatprep.mubr.bf16.mxu0 0
      %8668 = vmatmul.mubr.bf16.gmra.mrb[0].mxu0 %v8516
      %v8669 = vpop.f32.mrb[0].mxu0
      %v8670 = vadd.f32 0.0, %v8669
      %v8671 = vpop.f32.mrb[0].mxu0
      %v8672 = vpop.f32.mrb[0].mxu0
      %v8673 = vadd.f32 0.0, %v8672
      %v8674 = vpop.f32.mrb[0].mxu0
      %8675 = vmatprep.mubr.bf16.mxu0 0
      %8676 = vmatmul.mubr.bf16.gmra.mrb[0].mxu0 %v8518
      %v8677 = vpop.f32.mrb[0].mxu0
      %v8678 = vadd.f32 0.0, %v8677
      %v8679 = vpop.f32.mrb[0].mxu0
      %v8680 = vpop.f32.mrb[0].mxu0
      %v8681 = vadd.f32 0.0, %v8680
      %v8682 = vpop.f32.mrb[0].mxu0
      %8683 = vdwg.mxu0
      %8716 = vrot.lane.b32.xlu0 %v3637, 8
      %v8717 = vpop.permute.xlu0 %8716
      %8718 = vrot.lane.b32.xlu0 %v3640, 8
      %v8719 = vpop.permute.xlu0 %8718
      %8720 = vrot.lane.b32.xlu0 %v3645, 8
      %v8721 = vpop.permute.xlu0 %8720
      %8722 = vrot.lane.b32.xlu0 %v3648, 8
      %v8723 = vpop.permute.xlu0 %8722
      %8724 = vrot.lane.b32.xlu0 %v3653, 8
      %v8725 = vpop.permute.xlu0 %8724
      %8726 = vrot.lane.b32.xlu0 %v3656, 8
      %v8727 = vpop.permute.xlu0 %8726
      %8728 = vrot.lane.b32.xlu0 %v3661, 8
      %v8729 = vpop.permute.xlu0 %8728
      %8730 = vrot.lane.b32.xlu0 %v3664, 8
      %v8731 = vpop.permute.xlu0 %8730
      %8732 = vrot.lane.b32.xlu0 %v3669, 8
      %v8733 = vpop.permute.xlu0 %8732
      %8734 = vrot.lane.b32.xlu0 %v3672, 8
      %v8735 = vpop.permute.xlu0 %8734
      %8736 = vrot.lane.b32.xlu0 %v3677, 8
      %v8737 = vpop.permute.xlu0 %8736
      %8738 = vrot.lane.b32.xlu0 %v3680, 8
      %v8739 = vpop.permute.xlu0 %8738
      %8740 = vrot.lane.b32.xlu0 %v3685, 8
      %v8741 = vpop.permute.xlu0 %8740
      %8742 = vrot.lane.b32.xlu0 %v3688, 8
      %v8743 = vpop.permute.xlu0 %8742
      %8744 = vrot.lane.b32.xlu0 %v3693, 8
      %v8745 = vpop.permute.xlu0 %8744
      %8746 = vrot.lane.b32.xlu0 %v3696, 8
      %v8747 = vpop.permute.xlu0 %8746
      %8748 = vrot.lane.b32.xlu0 %v3701, 8
      %v8749 = vpop.permute.xlu0 %8748
      %8750 = vrot.lane.b32.xlu0 %v3704, 8
      %v8751 = vpop.permute.xlu0 %8750
      %8752 = vrot.lane.b32.xlu0 %v3709, 8
      %v8753 = vpop.permute.xlu0 %8752
      %8754 = vrot.lane.b32.xlu0 %v3712, 8
      %v8755 = vpop.permute.xlu0 %8754
      %8756 = vrot.lane.b32.xlu0 %v3717, 8
      %v8757 = vpop.permute.xlu0 %8756
      %8758 = vrot.lane.b32.xlu0 %v3720, 8
      %v8759 = vpop.permute.xlu0 %8758
      %8760 = vrot.lane.b32.xlu0 %v3725, 8
      %v8761 = vpop.permute.xlu0 %8760
      %8762 = vrot.lane.b32.xlu0 %v3728, 8
      %v8763 = vpop.permute.xlu0 %8762
      %8764 = vrot.lane.b32.xlu0 %v3733, 8
      %v8765 = vpop.permute.xlu0 %8764
      %8766 = vrot.lane.b32.xlu0 %v3736, 8
      %v8767 = vpop.permute.xlu0 %8766
      %8768 = vrot.lane.b32.xlu0 %v3741, 8
      %v8769 = vpop.permute.xlu0 %8768
      %8770 = vrot.lane.b32.xlu0 %v3744, 8
      %v8771 = vpop.permute.xlu0 %8770
      %8772 = vrot.lane.b32.xlu0 %v3749, 8
      %v8773 = vpop.permute.xlu0 %8772
      %8774 = vrot.lane.b32.xlu0 %v3752, 8
      %v8775 = vpop.permute.xlu0 %8774
      %8776 = vrot.lane.b32.xlu0 %v3757, 8
      %v8777 = vpop.permute.xlu0 %8776
      %8778 = vrot.lane.b32.xlu0 %v3760, 8
      %v8779 = vpop.permute.xlu0 %8778
      %8844 = vrot.lane.b32.xlu0 %v6099, 16
      %v8845 = vpop.permute.xlu0 %8844
      %8846 = vrot.lane.b32.xlu0 %v6102, 16
      %v8847 = vpop.permute.xlu0 %8846
      %8848 = vrot.lane.b32.xlu0 %v6107, 16
      %v8849 = vpop.permute.xlu0 %8848
      %8850 = vrot.lane.b32.xlu0 %v6110, 16
      %v8851 = vpop.permute.xlu0 %8850
      %8852 = vrot.lane.b32.xlu0 %v6115, 16
      %v8853 = vpop.permute.xlu0 %8852
      %8854 = vrot.lane.b32.xlu0 %v6118, 16
      %v8855 = vpop.permute.xlu0 %8854
      %8856 = vrot.lane.b32.xlu0 %v6123, 16
      %v8857 = vpop.permute.xlu0 %8856
      %8858 = vrot.lane.b32.xlu0 %v6126, 16
      %v8859 = vpop.permute.xlu0 %8858
      %8860 = vrot.lane.b32.xlu0 %v6131, 16
      %v8861 = vpop.permute.xlu0 %8860
      %8862 = vrot.lane.b32.xlu0 %v6134, 16
      %v8863 = vpop.permute.xlu0 %8862
      %8864 = vrot.lane.b32.xlu0 %v6139, 16
      %v8865 = vpop.permute.xlu0 %8864
      %8866 = vrot.lane.b32.xlu0 %v6142, 16
      %v8867 = vpop.permute.xlu0 %8866
      %8868 = vrot.lane.b32.xlu0 %v6147, 16
      %v8869 = vpop.permute.xlu0 %8868
      %8870 = vrot.lane.b32.xlu0 %v6150, 16
      %v8871 = vpop.permute.xlu0 %8870
      %8872 = vrot.lane.b32.xlu0 %v6155, 16
      %v8873 = vpop.permute.xlu0 %8872
      %8874 = vrot.lane.b32.xlu0 %v6158, 16
      %v8875 = vpop.permute.xlu0 %8874
      %8876 = vrot.lane.b32.xlu0 %v6163, 16
      %v8877 = vpop.permute.xlu0 %8876
      %8878 = vrot.lane.b32.xlu0 %v6166, 16
      %v8879 = vpop.permute.xlu0 %8878
      %8880 = vrot.lane.b32.xlu0 %v6171, 16
      %v8881 = vpop.permute.xlu0 %8880
      %8882 = vrot.lane.b32.xlu0 %v6174, 16
      %v8883 = vpop.permute.xlu0 %8882
      %8884 = vrot.lane.b32.xlu0 %v6179, 16
      %v8885 = vpop.permute.xlu0 %8884
      %8886 = vrot.lane.b32.xlu0 %v6182, 16
      %v8887 = vpop.permute.xlu0 %8886
      %8888 = vrot.lane.b32.xlu0 %v6187, 16
      %v8889 = vpop.permute.xlu0 %8888
      %8890 = vrot.lane.b32.xlu0 %v6190, 16
      %v8891 = vpop.permute.xlu0 %8890
      %8892 = vrot.lane.b32.xlu0 %v6195, 16
      %v8893 = vpop.permute.xlu0 %8892
      %8894 = vrot.lane.b32.xlu0 %v6198, 16
      %v8895 = vpop.permute.xlu0 %8894
      %8896 = vrot.lane.b32.xlu0 %v6203, 16
      %v8897 = vpop.permute.xlu0 %8896
      %8898 = vrot.lane.b32.xlu0 %v6206, 16
      %v8899 = vpop.permute.xlu0 %8898
      %8900 = vrot.lane.b32.xlu0 %v6211, 16
      %v8901 = vpop.permute.xlu0 %8900
      %8902 = vrot.lane.b32.xlu0 %v6214, 16
      %v8903 = vpop.permute.xlu0 %8902
      %8904 = vrot.lane.b32.xlu0 %v6219, 16
      %v8905 = vpop.permute.xlu0 %8904
      %8906 = vrot.lane.b32.xlu0 %v6222, 16
      %v8907 = vpop.permute.xlu0 %8906
      %8972 = vrot.lane.b32.xlu0 %v8558, 24
      %v8973 = vpop.permute.xlu0 %8972
      %8974 = vrot.lane.b32.xlu0 %v8561, 24
      %v8975 = vpop.permute.xlu0 %8974
      %8976 = vrot.lane.b32.xlu0 %v8566, 24
      %v8977 = vpop.permute.xlu0 %8976
      %8978 = vrot.lane.b32.xlu0 %v8569, 24
      %v8979 = vpop.permute.xlu0 %8978
      %8980 = vrot.lane.b32.xlu0 %v8574, 24
      %v8981 = vpop.permute.xlu0 %8980
      %8982 = vrot.lane.b32.xlu0 %v8577, 24
      %v8983 = vpop.permute.xlu0 %8982
      %8984 = vrot.lane.b32.xlu0 %v8582, 24
      %v8985 = vpop.permute.xlu0 %8984
      %8986 = vrot.lane.b32.xlu0 %v8585, 24
      %v8987 = vpop.permute.xlu0 %8986
      %8988 = vrot.lane.b32.xlu0 %v8590, 24
      %v8989 = vpop.permute.xlu0 %8988
      %8990 = vrot.lane.b32.xlu0 %v8593, 24
      %v8991 = vpop.permute.xlu0 %8990
      %8992 = vrot.lane.b32.xlu0 %v8598, 24
      %v8993 = vpop.permute.xlu0 %8992
      %8994 = vrot.lane.b32.xlu0 %v8601, 24
      %v8995 = vpop.permute.xlu0 %8994
      %8996 = vrot.lane.b32.xlu0 %v8606, 24
      %v8997 = vpop.permute.xlu0 %8996
      %8998 = vrot.lane.b32.xlu0 %v8609, 24
      %v8999 = vpop.permute.xlu0 %8998
      %9000 = vrot.lane.b32.xlu0 %v8614, 24
      %v9001 = vpop.permute.xlu0 %9000
      %9002 = vrot.lane.b32.xlu0 %v8617, 24
      %v9003 = vpop.permute.xlu0 %9002
      %9004 = vrot.lane.b32.xlu0 %v8622, 24
      %v9005 = vpop.permute.xlu0 %9004
      %9006 = vrot.lane.b32.xlu0 %v8625, 24
      %v9007 = vpop.permute.xlu0 %9006
      %9008 = vrot.lane.b32.xlu0 %v8630, 24
      %v9009 = vpop.permute.xlu0 %9008
      %9010 = vrot.lane.b32.xlu0 %v8633, 24
      %v9011 = vpop.permute.xlu0 %9010
      %9012 = vrot.lane.b32.xlu0 %v8638, 24
      %v9013 = vpop.permute.xlu0 %9012
      %9014 = vrot.lane.b32.xlu0 %v8641, 24
      %v9015 = vpop.permute.xlu0 %9014
      %9016 = vrot.lane.b32.xlu0 %v8646, 24
      %v9017 = vpop.permute.xlu0 %9016
      %9018 = vrot.lane.b32.xlu0 %v8649, 24
      %v9019 = vpop.permute.xlu0 %9018
      %9020 = vrot.lane.b32.xlu0 %v8654, 24
      %v9021 = vpop.permute.xlu0 %9020
      %9022 = vrot.lane.b32.xlu0 %v8657, 24
      %v9023 = vpop.permute.xlu0 %9022
      %9024 = vrot.lane.b32.xlu0 %v8662, 24
      %v9025 = vpop.permute.xlu0 %9024
      %9026 = vrot.lane.b32.xlu0 %v8665, 24
      %v9027 = vpop.permute.xlu0 %9026
      %9028 = vrot.lane.b32.xlu0 %v8670, 24
      %v9029 = vpop.permute.xlu0 %9028
      %9030 = vrot.lane.b32.xlu0 %v8673, 24
      %v9031 = vpop.permute.xlu0 %9030
      %9032 = vrot.lane.b32.xlu0 %v8678, 24
      %v9033 = vpop.permute.xlu0 %9032
      %9034 = vrot.lane.b32.xlu0 %v8681, 24
      %v9035 = vpop.permute.xlu0 %9034
      %v9068 = vsel %vm3315, %v1245, %v8717
      %v9069 = vsel %vm3315, %v1248, %v8719
      %v9070 = vsel %vm3315, %v1253, %v8721
      %v9071 = vsel %vm3315, %v1256, %v8723
      %v9072 = vsel %vm3315, %v1261, %v8725
      %v9073 = vsel %vm3315, %v1264, %v8727
      %v9074 = vsel %vm3315, %v1269, %v8729
      %v9075 = vsel %vm3315, %v1272, %v8731
      %v9076 = vsel %vm3315, %v1277, %v8733
      %v9077 = vsel %vm3315, %v1280, %v8735
      %v9078 = vsel %vm3315, %v1285, %v8737
      %v9079 = vsel %vm3315, %v1288, %v8739
      %v9080 = vsel %vm3315, %v1293, %v8741
      %v9081 = vsel %vm3315, %v1296, %v8743
      %v9082 = vsel %vm3315, %v1301, %v8745
      %v9083 = vsel %vm3315, %v1304, %v8747
      %v9084 = vsel %vm3315, %v1309, %v8749
      %v9085 = vsel %vm3315, %v1312, %v8751
      %v9086 = vsel %vm3315, %v1317, %v8753
      %v9087 = vsel %vm3315, %v1320, %v8755
      %v9088 = vsel %vm3315, %v1325, %v8757
      %v9089 = vsel %vm3315, %v1328, %v8759
      %v9090 = vsel %vm3315, %v1333, %v8761
      %v9091 = vsel %vm3315, %v1336, %v8763
      %v9092 = vsel %vm3315, %v1341, %v8765
      %v9093 = vsel %vm3315, %v1344, %v8767
      %v9094 = vsel %vm3315, %v1349, %v8769
      %v9095 = vsel %vm3315, %v1352, %v8771
      %v9096 = vsel %vm3315, %v1357, %v8773
      %v9097 = vsel %vm3315, %v1360, %v8775
      %v9098 = vsel %vm3315, %v1365, %v8777
      %v9099 = vsel %vm3315, %v1368, %v8779
      %v9100 = vsel %vm3381, %v9068, %v8845
      %v9101 = vsel %vm3381, %v9069, %v8847
      %v9102 = vsel %vm3381, %v9070, %v8849
      %v9103 = vsel %vm3381, %v9071, %v8851
      %v9104 = vsel %vm3381, %v9072, %v8853
      %v9105 = vsel %vm3381, %v9073, %v8855
      %v9106 = vsel %vm3381, %v9074, %v8857
      %v9107 = vsel %vm3381, %v9075, %v8859
      %v9108 = vsel %vm3381, %v9076, %v8861
      %v9109 = vsel %vm3381, %v9077, %v8863
      %v9110 = vsel %vm3381, %v9078, %v8865
      %v9111 = vsel %vm3381, %v9079, %v8867
      %v9112 = vsel %vm3381, %v9080, %v8869
      %v9113 = vsel %vm3381, %v9081, %v8871
      %v9114 = vsel %vm3381, %v9082, %v8873
      %v9115 = vsel %vm3381, %v9083, %v8875
      %v9116 = vsel %vm3381, %v9084, %v8877
      %v9117 = vsel %vm3381, %v9085, %v8879
      %v9118 = vsel %vm3381, %v9086, %v8881
      %v9119 = vsel %vm3381, %v9087, %v8883
      %v9120 = vsel %vm3381, %v9088, %v8885
      %v9121 = vsel %vm3381, %v9089, %v8887
      %v9122 = vsel %vm3381, %v9090, %v8889
      %v9123 = vsel %vm3381, %v9091, %v8891
      %v9124 = vsel %vm3381, %v9092, %v8893
      %v9125 = vsel %vm3381, %v9093, %v8895
      %v9126 = vsel %vm3381, %v9094, %v8897
      %v9127 = vsel %vm3381, %v9095, %v8899
      %v9128 = vsel %vm3381, %v9096, %v8901
      %v9129 = vsel %vm3381, %v9097, %v8903
      %v9130 = vsel %vm3381, %v9098, %v8905
      %v9131 = vsel %vm3381, %v9099, %v8907
      %v9132 = vsel %vm3447, %v9100, %v8973
      %v9133 = vsel %vm3447, %v9101, %v8975
      %v9134 = vsel %vm3447, %v9102, %v8977
      %v9135 = vsel %vm3447, %v9103, %v8979
      %v9136 = vsel %vm3447, %v9104, %v8981
      %v9137 = vsel %vm3447, %v9105, %v8983
      %v9138 = vsel %vm3447, %v9106, %v8985
      %v9139 = vsel %vm3447, %v9107, %v8987
      %v9140 = vsel %vm3447, %v9108, %v8989
      %v9141 = vsel %vm3447, %v9109, %v8991
      %v9142 = vsel %vm3447, %v9110, %v8993
      %v9143 = vsel %vm3447, %v9111, %v8995
      %v9144 = vsel %vm3447, %v9112, %v8997
      %v9145 = vsel %vm3447, %v9113, %v8999
      %v9146 = vsel %vm3447, %v9114, %v9001
      %v9147 = vsel %vm3447, %v9115, %v9003
      %v9148 = vsel %vm3447, %v9116, %v9005
      %v9149 = vsel %vm3447, %v9117, %v9007
      %v9150 = vsel %vm3447, %v9118, %v9009
      %v9151 = vsel %vm3447, %v9119, %v9011
      %v9152 = vsel %vm3447, %v9120, %v9013
      %v9153 = vsel %vm3447, %v9121, %v9015
      %v9154 = vsel %vm3447, %v9122, %v9017
      %v9155 = vsel %vm3447, %v9123, %v9019
      %v9156 = vsel %vm3447, %v9124, %v9021
      %v9157 = vsel %vm3447, %v9125, %v9023
      %v9158 = vsel %vm3447, %v9126, %v9025
      %v9159 = vsel %vm3447, %v9127, %v9027
      %v9160 = vsel %vm3447, %v9128, %v9029
      %v9161 = vsel %vm3447, %v9129, %v9031
      %v9162 = vsel %vm3447, %v9130, %v9033
      %v9163 = vsel %vm3447, %v9131, %v9035
      %v9164 = vld [vmem:[%s6] sm:$0x1]
      %v9166 = vlaneseq
      %v9167 = vshrl.u32 %v9166, 7
      %v9168 = vsub.s32 0, %v9167
      %v9169 = vrot.slane %v9164, %v9168
      %v9171 = vmul.f32 %v9132, %v9169
      %v9172 = vmul.f32 %v9133, %v9169
      %v9173 = vmul.f32 %v9134, %v9169
      %v9174 = vmul.f32 %v9135, %v9169
      %v9175 = vmul.f32 %v9136, %v9169
      %v9176 = vmul.f32 %v9137, %v9169
      %v9177 = vmul.f32 %v9138, %v9169
      %v9178 = vmul.f32 %v9139, %v9169
      %v9179 = vmul.f32 %v9140, %v9169
      %v9180 = vmul.f32 %v9141, %v9169
      %v9181 = vmul.f32 %v9142, %v9169
      %v9182 = vmul.f32 %v9143, %v9169
      %v9183 = vmul.f32 %v9144, %v9169
      %v9184 = vmul.f32 %v9145, %v9169
      %v9185 = vmul.f32 %v9146, %v9169
      %v9186 = vmul.f32 %v9147, %v9169
      %v9187 = vmul.f32 %v9148, %v9169
      %v9188 = vmul.f32 %v9149, %v9169
      %v9189 = vmul.f32 %v9150, %v9169
      %v9190 = vmul.f32 %v9151, %v9169
      %v9191 = vmul.f32 %v9152, %v9169
      %v9192 = vmul.f32 %v9153, %v9169
      %v9193 = vmul.f32 %v9154, %v9169
      %v9194 = vmul.f32 %v9155, %v9169
      %v9195 = vmul.f32 %v9156, %v9169
      %v9196 = vmul.f32 %v9157, %v9169
      %v9197 = vmul.f32 %v9158, %v9169
      %v9198 = vmul.f32 %v9159, %v9169
      %v9199 = vmul.f32 %v9160, %v9169
      %v9200 = vmul.f32 %v9161, %v9169
      %v9201 = vmul.f32 %v9162, %v9169
      %v9202 = vmul.f32 %v9163, %v9169
      %v9203 = vld [vmem:[%s7] sm:$0x1]
      %v9205 = vlaneseq
      %v9206 = vshrl.u32 %v9205, 7
      %v9207 = vsub.s32 0, %v9206
      %v9208 = vrot.slane %v9203, %v9207
      %v9210 = vadd.f32 %v9171, %v9208
      %v9211 = vadd.f32 %v9172, %v9208
      %v9212 = vadd.f32 %v9173, %v9208
      %v9213 = vadd.f32 %v9174, %v9208
      %v9214 = vadd.f32 %v9175, %v9208
      %v9215 = vadd.f32 %v9176, %v9208
      %v9216 = vadd.f32 %v9177, %v9208
      %v9217 = vadd.f32 %v9178, %v9208
      %v9218 = vadd.f32 %v9179, %v9208
      %v9219 = vadd.f32 %v9180, %v9208
      %v9220 = vadd.f32 %v9181, %v9208
      %v9221 = vadd.f32 %v9182, %v9208
      %v9222 = vadd.f32 %v9183, %v9208
      %v9223 = vadd.f32 %v9184, %v9208
      %v9224 = vadd.f32 %v9185, %v9208
      %v9225 = vadd.f32 %v9186, %v9208
      %v9226 = vadd.f32 %v9187, %v9208
      %v9227 = vadd.f32 %v9188, %v9208
      %v9228 = vadd.f32 %v9189, %v9208
      %v9229 = vadd.f32 %v9190, %v9208
      %v9230 = vadd.f32 %v9191, %v9208
      %v9231 = vadd.f32 %v9192, %v9208
      %v9232 = vadd.f32 %v9193, %v9208
      %v9233 = vadd.f32 %v9194, %v9208
      %v9234 = vadd.f32 %v9195, %v9208
      %v9235 = vadd.f32 %v9196, %v9208
      %v9236 = vadd.f32 %v9197, %v9208
      %v9237 = vadd.f32 %v9198, %v9208
      %v9238 = vadd.f32 %v9199, %v9208
      %v9239 = vadd.f32 %v9200, %v9208
      %v9240 = vadd.f32 %v9201, %v9208
      %v9241 = vadd.f32 %v9202, %v9208
      %v9242 = vmax.f32 %v9210, 0.0
      %v9243 = vmax.f32 %v9211, 0.0
      %v9244 = vmax.f32 %v9212, 0.0
      %v9245 = vmax.f32 %v9213, 0.0
      %v9246 = vmax.f32 %v9214, 0.0
      %v9247 = vmax.f32 %v9215, 0.0
      %v9248 = vmax.f32 %v9216, 0.0
      %v9249 = vmax.f32 %v9217, 0.0
      %v9250 = vmax.f32 %v9218, 0.0
      %v9251 = vmax.f32 %v9219, 0.0
      %v9252 = vmax.f32 %v9220, 0.0
      %v9253 = vmax.f32 %v9221, 0.0
      %v9254 = vmax.f32 %v9222, 0.0
      %v9255 = vmax.f32 %v9223, 0.0
      %v9256 = vmax.f32 %v9224, 0.0
      %v9257 = vmax.f32 %v9225, 0.0
      %v9258 = vmax.f32 %v9226, 0.0
      %v9259 = vmax.f32 %v9227, 0.0
      %v9260 = vmax.f32 %v9228, 0.0
      %v9261 = vmax.f32 %v9229, 0.0
      %v9262 = vmax.f32 %v9230, 0.0
      %v9263 = vmax.f32 %v9231, 0.0
      %v9264 = vmax.f32 %v9232, 0.0
      %v9265 = vmax.f32 %v9233, 0.0
      %v9266 = vmax.f32 %v9234, 0.0
      %v9267 = vmax.f32 %v9235, 0.0
      %v9268 = vmax.f32 %v9236, 0.0
      %v9269 = vmax.f32 %v9237, 0.0
      %v9270 = vmax.f32 %v9238, 0.0
      %v9271 = vmax.f32 %v9239, 0.0
      %v9272 = vmax.f32 %v9240, 0.0
      %v9273 = vmax.f32 %v9241, 0.0
      %v9274 = vpack.c.bf16 %v9243, %v9242
      %v9275 = vpack.c.bf16 %v9245, %v9244
      %v9276 = vpack.c.bf16 %v9247, %v9246
      %v9277 = vpack.c.bf16 %v9249, %v9248
      %v9278 = vpack.c.bf16 %v9251, %v9250
      %v9279 = vpack.c.bf16 %v9253, %v9252
      %v9280 = vpack.c.bf16 %v9255, %v9254
      %v9281 = vpack.c.bf16 %v9257, %v9256
      %v9282 = vpack.c.bf16 %v9259, %v9258
      %v9283 = vpack.c.bf16 %v9261, %v9260
      %v9284 = vpack.c.bf16 %v9263, %v9262
      %v9285 = vpack.c.bf16 %v9265, %v9264
      %v9286 = vpack.c.bf16 %v9267, %v9266
      %v9287 = vpack.c.bf16 %v9269, %v9268
      %v9288 = vpack.c.bf16 %v9271, %v9270
      %v9289 = vpack.c.bf16 %v9273, %v9272
      %v9290 = vld [vmem:[%s4] sm:$0xf]
      %v9291 = vld [vmem:[%s4 + $0x4] sm:$0xf]
      %v9292 = vld [vmem:[%s4 + $0x8] sm:$0xf]
      %v9293 = vld [vmem:[%s4 + $0xc] sm:$0xf]
      %v9294 = vunpack.c.l.bf16 %v415
      %v9295 = vunpack.c.l.bf16 %v416
      %v9296 = vunpack.c.l.bf16 %v417
      %v9297 = vunpack.c.l.bf16 %v418
      %v9298 = vunpack.c.l.bf16 %v419
      %v9299 = vunpack.c.l.bf16 %v420
      %v9300 = vunpack.c.l.bf16 %v421
      %v9301 = vunpack.c.l.bf16 %v422
      %v9302 = vunpack.c.l.bf16 %v423
      %v9303 = vunpack.c.l.bf16 %v424
      %v9304 = vunpack.c.l.bf16 %v425
      %v9305 = vunpack.c.l.bf16 %v426
      %v9306 = vunpack.c.l.bf16 %v427
      %v9307 = vunpack.c.l.bf16 %v428
      %v9308 = vunpack.c.l.bf16 %v429
      %v9309 = vunpack.c.l.bf16 %v430
      %v9310 = vunpack.c.l.bf16 %v431
      %v9311 = vunpack.c.l.bf16 %v432
      %v9312 = vunpack.c.l.bf16 %v433
      %v9313 = vunpack.c.l.bf16 %v434
      %v9314 = vunpack.c.l.bf16 %v435
      %v9315 = vunpack.c.l.bf16 %v436
      %v9316 = vunpack.c.l.bf16 %v437
      %v9317 = vunpack.c.l.bf16 %v438
      %v9318 = vunpack.c.l.bf16 %v439
      %v9319 = vunpack.c.l.bf16 %v440
      %v9320 = vunpack.c.l.bf16 %v441
      %v9321 = vunpack.c.l.bf16 %v442
      %v9322 = vunpack.c.l.bf16 %v443
      %v9323 = vunpack.c.l.bf16 %v444
      %v9324 = vunpack.c.l.bf16 %v445
      %v9325 = vunpack.c.l.bf16 %v446
      %v9326 = vsel %vm1157, %v9294, 0.0
      %v9327 = vsel %vm1157, %v9295, 0.0
      %v9328 = vadd.f32 %v9326, %v9327
      %v9329 = vsel %vm1157, %v9296, 0.0
      %v9330 = vadd.f32 %v9328, %v9329
      %v9331 = vsel %vm1157, %v9297, 0.0
      %v9332 = vadd.f32 %v9330, %v9331
      %v9333 = vsel %vm1157, %v9298, 0.0
      %v9334 = vadd.f32 %v9332, %v9333
      %v9335 = vsel %vm1157, %v9299, 0.0
      %v9336 = vadd.f32 %v9334, %v9335
      %v9337 = vsel %vm1157, %v9300, 0.0
      %v9338 = vadd.f32 %v9336, %v9337
      %v9339 = vsel %vm1157, %v9301, 0.0
      %v9340 = vadd.f32 %v9338, %v9339
      %v9341 = vsel %vm1157, %v9302, 0.0
      %v9342 = vadd.f32 %v9340, %v9341
      %v9343 = vsel %vm1157, %v9303, 0.0
      %v9344 = vadd.f32 %v9342, %v9343
      %v9345 = vsel %vm1157, %v9304, 0.0
      %v9346 = vadd.f32 %v9344, %v9345
      %v9347 = vsel %vm1157, %v9305, 0.0
      %v9348 = vadd.f32 %v9346, %v9347
      %v9349 = vsel %vm1157, %v9306, 0.0
      %v9350 = vadd.f32 %v9348, %v9349
      %v9351 = vsel %vm1157, %v9307, 0.0
      %v9352 = vadd.f32 %v9350, %v9351
      %v9353 = vsel %vm1157, %v9308, 0.0
      %v9354 = vadd.f32 %v9352, %v9353
      %v9355 = vsel %vm1157, %v9309, 0.0
      %v9356 = vadd.f32 %v9354, %v9355
      %v9357 = vsel %vm1157, %v9310, 0.0
      %v9358 = vadd.f32 %v9356, %v9357
      %v9359 = vsel %vm1157, %v9311, 0.0
      %v9360 = vadd.f32 %v9358, %v9359
      %v9361 = vsel %vm1157, %v9312, 0.0
      %v9362 = vadd.f32 %v9360, %v9361
      %v9363 = vsel %vm1157, %v9313, 0.0
      %v9364 = vadd.f32 %v9362, %v9363
      %v9365 = vsel %vm1157, %v9314, 0.0
      %v9366 = vadd.f32 %v9364, %v9365
      %v9367 = vsel %vm1157, %v9315, 0.0
      %v9368 = vadd.f32 %v9366, %v9367
      %v9369 = vsel %vm1157, %v9316, 0.0
      %v9370 = vadd.f32 %v9368, %v9369
      %v9371 = vsel %vm1157, %v9317, 0.0
      %v9372 = vadd.f32 %v9370, %v9371
      %v9373 = vsel %vm1157, %v9318, 0.0
      %v9374 = vadd.f32 %v9372, %v9373
      %v9375 = vsel %vm1157, %v9319, 0.0
      %v9376 = vadd.f32 %v9374, %v9375
      %v9377 = vsel %vm1157, %v9320, 0.0
      %v9378 = vadd.f32 %v9376, %v9377
      %v9379 = vsel %vm1157, %v9321, 0.0
      %v9380 = vadd.f32 %v9378, %v9379
      %v9381 = vsel %vm1157, %v9322, 0.0
      %v9382 = vadd.f32 %v9380, %v9381
      %v9383 = vsel %vm1157, %v9323, 0.0
      %v9384 = vadd.f32 %v9382, %v9383
      %v9385 = vsel %vm1157, %v9324, 0.0
      %v9386 = vadd.f32 %v9384, %v9385
      %v9387 = vsel %vm1157, %v9325, 0.0
      %v9388 = vadd.f32 %v9386, %v9387
      %v9389 = vrot.slane %v9388, 4
      %v9390 = vadd.f32 %v9388, %v9389
      %v9391 = vrot.slane %v9390, 2
      %v9392 = vadd.f32 %v9390, %v9391
      %v9393 = vrot.slane %v9392, 1
      %v9394 = vadd.f32 %v9392, %v9393
      %v9395 = vrcp.pop 256.0
      %v9396 = vmul.f32 %v9394, %v9395
      %v9397 = vpack.c.bf16 %v9396, %v9396
      %v9398 = vld [vmem:[%s3] sm:$0x3]
      %v9400 = vsel %vm1157, %v9397, 0
      %v9403 = vsel %vm1206, %v9398, 0
      %9405 = vmatprep.subr.bf16.mxu0 0
      %9406 = vmatpush1.bf16.msra.mxu0 %v9403
      %9407 = vmatprep.subr.bf16.mxu0 0
      %9408 = vmatpush1.bf16.msra.mxu0 0
      %9409 = vmatprep.subr.bf16.mxu0 0
      %9410 = vmatpush1.bf16.msra.mxu0 0
      %9411 = vmatprep.subr.bf16.mxu0 0
      %9412 = vmatpush1.bf16.msra.mxu0 0
      %9413 = vmatprep.subr.bf16.mxu0 0
      %9414 = vmatpush1.bf16.msra.mxu0 0
      %9415 = vmatprep.subr.bf16.mxu0 0
      %9416 = vmatpush1.bf16.msra.mxu0 0
      %9417 = vmatprep.subr.bf16.mxu0 0
      %9418 = vmatpush1.bf16.msra.mxu0 0
      %9419 = vmatprep.subr.bf16.mxu0 0
      %9420 = vmatpush1.bf16.msra.mxu0 0
      %9421 = vmatprep.subr.bf16.mxu0 0
      %9422 = vmatpush1.bf16.msra.mxu0 0
      %9423 = vmatprep.subr.bf16.mxu0 0
      %9424 = vmatpush1.bf16.msra.mxu0 0
      %9425 = vmatprep.subr.bf16.mxu0 0
      %9426 = vmatpush1.bf16.msra.mxu0 0
      %9427 = vmatprep.subr.bf16.mxu0 0
      %9428 = vmatpush1.bf16.msra.mxu0 0
      %9429 = vmatprep.subr.bf16.mxu0 0
      %9430 = vmatpush1.bf16.msra.mxu0 0
      %9431 = vmatprep.subr.bf16.mxu0 0
      %9432 = vmatpush1.bf16.msra.mxu0 0
      %9433 = vmatprep.subr.bf16.mxu0 0
      %9434 = vmatpush1.bf16.msra.mxu0 0
      %9435 = vmatprep.subr.bf16.mxu0 0
      %9436 = vmatpush1.bf16.msra.mxu0 0
      %9437 = vmatprep.mubr.bf16.mxu0 0
      %9438 = vmatmul.mubr.bf16.gmra.mrb[0].mxu0 %v9400
      %v9439 = vpop.f32.mrb[0].mxu0
      %v9440 = vadd.f32 0.0, %v9439
      %v9441 = vpop.f32.mrb[0].mxu0
      %v9442 = vpop.f32.mrb[0].mxu0
      %v9443 = vpop.f32.mrb[0].mxu0
      %9444 = vdwg.mxu0
      %v9445 = vld [vmem:[%s8] sm:$0x1]
      %v9446 = vmul.f32 %v9440, %v9445
      %v9447 = vld [vmem:[%s9] sm:$0x1]
      %v9448 = vadd.f32 %v9446, %v9447
      %v9449 = vmax.f32 %v9448, 0.0
      %v9450 = vpack.c.bf16 %v9449, %v9449
      %v9451 = vld [vmem:[%s5] sm:$0xf]
      %v9453 = vsel %vm3315, %v9450, 0
      %vm9455 = vcmask 1043456
      %v9457 = vsel %vm9455, %v9451, 0
      %9459 = vmatprep.subr.bf16.mxu0 0
      %9460 = vmatpush1.bf16.msra.mxu0 %v9457
      %9461 = vmatprep.subr.bf16.mxu0 0
      %9462 = vmatpush1.bf16.msra.mxu0 0
      %9463 = vmatprep.subr.bf16.mxu0 0
      %9464 = vmatpush1.bf16.msra.mxu0 0
      %9465 = vmatprep.subr.bf16.mxu0 0
      %9466 = vmatpush1.bf16.msra.mxu0 0
      %9467 = vmatprep.subr.bf16.mxu0 0
      %9468 = vmatpush1.bf16.msra.mxu0 0
      %9469 = vmatprep.subr.bf16.mxu0 0
      %9470 = vmatpush1.bf16.msra.mxu0 0
      %9471 = vmatprep.subr.bf16.mxu0 0
      %9472 = vmatpush1.bf16.msra.mxu0 0
      %9473 = vmatprep.subr.bf16.mxu0 0
      %9474 = vmatpush1.bf16.msra.mxu0 0
      %9475 = vmatprep.subr.bf16.mxu0 0
      %9476 = vmatpush1.bf16.msra.mxu0 0
      %9477 = vmatprep.subr.bf16.mxu0 0
      %9478 = vmatpush1.bf16.msra.mxu0 0
      %9479 = vmatprep.subr.bf16.mxu0 0
      %9480 = vmatpush1.bf16.msra.mxu0 0
      %9481 = vmatprep.subr.bf16.mxu0 0
      %9482 = vmatpush1.bf16.msra.mxu0 0
      %9483 = vmatprep.subr.bf16.mxu0 0
      %9484 = vmatpush1.bf16.msra.mxu0 0
      %9485 = vmatprep.subr.bf16.mxu0 0
      %9486 = vmatpush1.bf16.msra.mxu0 0
      %9487 = vmatprep.subr.bf16.mxu0 0
      %9488 = vmatpush1.bf16.msra.mxu0 0
      %9489 = vmatprep.subr.bf16.mxu0 0
      %9490 = vmatpush1.bf16.msra.mxu0 0
      %9491 = vmatprep.mubr.bf16.mxu0 0
      %9492 = vmatmul.mubr.bf16.gmra.mrb[0].mxu0 %v9453
      %v9493 = vpop.f32.mrb[0].mxu0
      %v9494 = vadd.f32 0.0, %v9493
      %v9495 = vpop.f32.mrb[0].mxu0
      %v9496 = vpop.f32.mrb[0].mxu0
      %v9497 = vpop.f32.mrb[0].mxu0
      %9498 = vdwg.mxu0
      %v9499 = vlaneseq
      %v9500 = vshrl.u32 %v9499, 7
      %v9501 = vsub.s32 0, %v9500
      %v9502 = vrot.slane %v9494, %v9501
      %v9507 = vunpack.c.l.b16 %v9290
      %v9508 = vunpack.c.l.b16 %v9291
      %v9509 = vunpack.c.l.b16 %v9292
      %v9510 = vunpack.c.l.b16 %v9293
      %v9511 = vpack.c.b16 %v9508, %v9507
      %v9512 = vpack.c.b16 %v9510, %v9509
      %v9516 = vsel %vm3513, %v9274, 0
      %v9519 = vsel %vm3513, %v9275, 0
      %v9522 = vsel %vm3513, %v9276, 0
      %v9525 = vsel %vm3513, %v9277, 0
      %v9528 = vsel %vm3513, %v9278, 0
      %v9531 = vsel %vm3513, %v9279, 0
      %v9534 = vsel %vm3513, %v9280, 0
      %v9537 = vsel %vm3513, %v9281, 0
      %v9540 = vsel %vm3513, %v9282, 0
      %v9543 = vsel %vm3513, %v9283, 0
      %v9546 = vsel %vm3513, %v9284, 0
      %v9549 = vsel %vm3513, %v9285, 0
      %v9552 = vsel %vm3513, %v9286, 0
      %v9555 = vsel %vm3513, %v9287, 0
      %v9558 = vsel %vm3513, %v9288, 0
      %v9561 = vsel %vm3513, %v9289, 0
      %9563 = vmatprep.subr.bf16.mxu0 0
      %9564 = vmatpush1.bf16.msra.mxu0 %v9511
      %9565 = vmatprep.subr.bf16.mxu0 0
      %9566 = vmatpush1.bf16.msra.mxu0 %v9512
      %9567 = vmatprep.subr.bf16.mxu0 0
      %9568 = vmatpush1.bf16.msra.mxu0 0
      %9569 = vmatprep.subr.bf16.mxu0 0
      %9570 = vmatpush1.bf16.msra.mxu0 0
      %9571 = vmatprep.subr.bf16.mxu0 0
      %9572 = vmatpush1.bf16.msra.mxu0 0
      %9573 = vmatprep.subr.bf16.mxu0 0
      %9574 = vmatpush1.bf16.msra.mxu0 0
      %9575 = vmatprep.subr.bf16.mxu0 0
      %9576 = vmatpush1.bf16.msra.mxu0 0
      %9577 = vmatprep.subr.bf16.mxu0 0
      %9578 = vmatpush1.bf16.msra.mxu0 0
      %9579 = vmatprep.subr.bf16.mxu0 0
      %9580 = vmatpush1.bf16.msra.mxu0 0
      %9581 = vmatprep.subr.bf16.mxu0 0
      %9582 = vmatpush1.bf16.msra.mxu0 0
      %9583 = vmatprep.subr.bf16.mxu0 0
      %9584 = vmatpush1.bf16.msra.mxu0 0
      %9585 = vmatprep.subr.bf16.mxu0 0
      %9586 = vmatpush1.bf16.msra.mxu0 0
      %9587 = vmatprep.subr.bf16.mxu0 0
      %9588 = vmatpush1.bf16.msra.mxu0 0
      %9589 = vmatprep.subr.bf16.mxu0 0
      %9590 = vmatpush1.bf16.msra.mxu0 0
      %9591 = vmatprep.subr.bf16.mxu0 0
      %9592 = vmatpush1.bf16.msra.mxu0 0
      %9593 = vmatprep.subr.bf16.mxu0 0
      %9594 = vmatpush1.bf16.msra.mxu0 0
      %9595 = vmatprep.mubr.bf16.mxu0 0
      %9596 = vmatmul.mubr.bf16.gmra.mrb[0].mxu0 %v9516
      %v9597 = vpop.f32.mrb[0].mxu0
      %v9598 = vadd.f32 %v9502, %v9597
      %v9599 = vpop.f32.mrb[0].mxu0
      %v9600 = vpop.f32.mrb[0].mxu0
      %v9601 = vadd.f32 %v9502, %v9600
      %v9602 = vpop.f32.mrb[0].mxu0
      %9603 = vmatprep.mubr.bf16.mxu0 0
      %9604 = vmatmul.mubr.bf16.gmra.mrb[0].mxu0 %v9519
      %v9605 = vpop.f32.mrb[0].mxu0
      %v9606 = vadd.f32 %v9502, %v9605
      %v9607 = vpop.f32.mrb[0].mxu0
      %v9608 = vpop.f32.mrb[0].mxu0
      %v9609 = vadd.f32 %v9502, %v9608
      %v9610 = vpop.f32.mrb[0].mxu0
      %9611 = vmatprep.mubr.bf16.mxu0 0
      %9612 = vmatmul.mubr.bf16.gmra.mrb[0].mxu0 %v9522
      %v9613 = vpop.f32.mrb[0].mxu0
      %v9614 = vadd.f32 %v9502, %v9613
      %v9615 = vpop.f32.mrb[0].mxu0
      %v9616 = vpop.f32.mrb[0].mxu0
      %v9617 = vadd.f32 %v9502, %v9616
      %v9618 = vpop.f32.mrb[0].mxu0
      %9619 = vmatprep.mubr.bf16.mxu0 0
      %9620 = vmatmul.mubr.bf16.gmra.mrb[0].mxu0 %v9525
      %v9621 = vpop.f32.mrb[0].mxu0
      %v9622 = vadd.f32 %v9502, %v9621
      %v9623 = vpop.f32.mrb[0].mxu0
      %v9624 = vpop.f32.mrb[0].mxu0
      %v9625 = vadd.f32 %v9502, %v9624
      %v9626 = vpop.f32.mrb[0].mxu0
      %9627 = vmatprep.mubr.bf16.mxu0 0
      %9628 = vmatmul.mubr.bf16.gmra.mrb[0].mxu0 %v9528
      %v9629 = vpop.f32.mrb[0].mxu0
      %v9630 = vadd.f32 %v9502, %v9629
      %v9631 = vpop.f32.mrb[0].mxu0
      %v9632 = vpop.f32.mrb[0].mxu0
      %v9633 = vadd.f32 %v9502, %v9632
      %v9634 = vpop.f32.mrb[0].mxu0
      %9635 = vmatprep.mubr.bf16.mxu0 0
      %9636 = vmatmul.mubr.bf16.gmra.mrb[0].mxu0 %v9531
      %v9637 = vpop.f32.mrb[0].mxu0
      %v9638 = vadd.f32 %v9502, %v9637
      %v9639 = vpop.f32.mrb[0].mxu0
      %v9640 = vpop.f32.mrb[0].mxu0
      %v9641 = vadd.f32 %v9502, %v9640
      %v9642 = vpop.f32.mrb[0].mxu0
      %9643 = vmatprep.mubr.bf16.mxu0 0
      %9644 = vmatmul.mubr.bf16.gmra.mrb[0].mxu0 %v9534
      %v9645 = vpop.f32.mrb[0].mxu0
      %v9646 = vadd.f32 %v9502, %v9645
      %v9647 = vpop.f32.mrb[0].mxu0
      %v9648 = vpop.f32.mrb[0].mxu0
      %v9649 = vadd.f32 %v9502, %v9648
      %v9650 = vpop.f32.mrb[0].mxu0
      %9651 = vmatprep.mubr.bf16.mxu0 0
      %9652 = vmatmul.mubr.bf16.gmra.mrb[0].mxu0 %v9537
      %v9653 = vpop.f32.mrb[0].mxu0
      %v9654 = vadd.f32 %v9502, %v9653
      %v9655 = vpop.f32.mrb[0].mxu0
      %v9656 = vpop.f32.mrb[0].mxu0
      %v9657 = vadd.f32 %v9502, %v9656
      %v9658 = vpop.f32.mrb[0].mxu0
      %9659 = vmatprep.mubr.bf16.mxu0 0
      %9660 = vmatmul.mubr.bf16.gmra.mrb[0].mxu0 %v9540
      %v9661 = vpop.f32.mrb[0].mxu0
      %v9662 = vadd.f32 %v9502, %v9661
      %v9663 = vpop.f32.mrb[0].mxu0
      %v9664 = vpop.f32.mrb[0].mxu0
      %v9665 = vadd.f32 %v9502, %v9664
      %v9666 = vpop.f32.mrb[0].mxu0
      %9667 = vmatprep.mubr.bf16.mxu0 0
      %9668 = vmatmul.mubr.bf16.gmra.mrb[0].mxu0 %v9543
      %v9669 = vpop.f32.mrb[0].mxu0
      %v9670 = vadd.f32 %v9502, %v9669
      %v9671 = vpop.f32.mrb[0].mxu0
      %v9672 = vpop.f32.mrb[0].mxu0
      %v9673 = vadd.f32 %v9502, %v9672
      %v9674 = vpop.f32.mrb[0].mxu0
      %9675 = vmatprep.mubr.bf16.mxu0 0
      %9676 = vmatmul.mubr.bf16.gmra.mrb[0].mxu0 %v9546
      %v9677 = vpop.f32.mrb[0].mxu0
      %v9678 = vadd.f32 %v9502, %v9677
      %v9679 = vpop.f32.mrb[0].mxu0
      %v9680 = vpop.f32.mrb[0].mxu0
      %v9681 = vadd.f32 %v9502, %v9680
      %v9682 = vpop.f32.mrb[0].mxu0
      %9683 = vmatprep.mubr.bf16.mxu0 0
      %9684 = vmatmul.mubr.bf16.gmra.mrb[0].mxu0 %v9549
      %v9685 = vpop.f32.mrb[0].mxu0
      %v9686 = vadd.f32 %v9502, %v9685
      %v9687 = vpop.f32.mrb[0].mxu0
      %v9688 = vpop.f32.mrb[0].mxu0
      %v9689 = vadd.f32 %v9502, %v9688
      %v9690 = vpop.f32.mrb[0].mxu0
      %9691 = vmatprep.mubr.bf16.mxu0 0
      %9692 = vmatmul.mubr.bf16.gmra.mrb[0].mxu0 %v9552
      %v9693 = vpop.f32.mrb[0].mxu0
      %v9694 = vadd.f32 %v9502, %v9693
      %v9695 = vpop.f32.mrb[0].mxu0
      %v9696 = vpop.f32.mrb[0].mxu0
      %v9697 = vadd.f32 %v9502, %v9696
      %v9698 = vpop.f32.mrb[0].mxu0
      %9699 = vmatprep.mubr.bf16.mxu0 0
      %9700 = vmatmul.mubr.bf16.gmra.mrb[0].mxu0 %v9555
      %v9701 = vpop.f32.mrb[0].mxu0
      %v9702 = vadd.f32 %v9502, %v9701
      %v9703 = vpop.f32.mrb[0].mxu0
      %v9704 = vpop.f32.mrb[0].mxu0
      %v9705 = vadd.f32 %v9502, %v9704
      %v9706 = vpop.f32.mrb[0].mxu0
      %9707 = vmatprep.mubr.bf16.mxu0 0
      %9708 = vmatmul.mubr.bf16.gmra.mrb[0].mxu0 %v9558
      %v9709 = vpop.f32.mrb[0].mxu0
      %v9710 = vadd.f32 %v9502, %v9709
      %v9711 = vpop.f32.mrb[0].mxu0
      %v9712 = vpop.f32.mrb[0].mxu0
      %v9713 = vadd.f32 %v9502, %v9712
      %v9714 = vpop.f32.mrb[0].mxu0
      %9715 = vmatprep.mubr.bf16.mxu0 0
      %9716 = vmatmul.mubr.bf16.gmra.mrb[0].mxu0 %v9561
      %v9717 = vpop.f32.mrb[0].mxu0
      %v9718 = vadd.f32 %v9502, %v9717
      %v9719 = vpop.f32.mrb[0].mxu0
      %v9720 = vpop.f32.mrb[0].mxu0
      %v9721 = vadd.f32 %v9502, %v9720
      %v9722 = vpop.f32.mrb[0].mxu0
      %9723 = vdwg.mxu0
      %v9724 = vld [vmem:[%s10] sm:$0x1]
      %v9726 = vlaneseq
      %v9727 = vshrl.u32 %v9726, 7
      %v9728 = vsub.s32 0, %v9727
      %v9729 = vrot.slane %v9724, %v9728
      %v9731 = vmul.f32 %v9598, %v9729
      %v9732 = vmul.f32 %v9601, %v9729
      %v9733 = vmul.f32 %v9606, %v9729
      %v9734 = vmul.f32 %v9609, %v9729
      %v9735 = vmul.f32 %v9614, %v9729
      %v9736 = vmul.f32 %v9617, %v9729
      %v9737 = vmul.f32 %v9622, %v9729
      %v9738 = vmul.f32 %v9625, %v9729
      %v9739 = vmul.f32 %v9630, %v9729
      %v9740 = vmul.f32 %v9633, %v9729
      %v9741 = vmul.f32 %v9638, %v9729
      %v9742 = vmul.f32 %v9641, %v9729
      %v9743 = vmul.f32 %v9646, %v9729
      %v9744 = vmul.f32 %v9649, %v9729
      %v9745 = vmul.f32 %v9654, %v9729
      %v9746 = vmul.f32 %v9657, %v9729
      %v9747 = vmul.f32 %v9662, %v9729
      %v9748 = vmul.f32 %v9665, %v9729
      %v9749 = vmul.f32 %v9670, %v9729
      %v9750 = vmul.f32 %v9673, %v9729
      %v9751 = vmul.f32 %v9678, %v9729
      %v9752 = vmul.f32 %v9681, %v9729
      %v9753 = vmul.f32 %v9686, %v9729
      %v9754 = vmul.f32 %v9689, %v9729
      %v9755 = vmul.f32 %v9694, %v9729
      %v9756 = vmul.f32 %v9697, %v9729
      %v9757 = vmul.f32 %v9702, %v9729
      %v9758 = vmul.f32 %v9705, %v9729
      %v9759 = vmul.f32 %v9710, %v9729
      %v9760 = vmul.f32 %v9713, %v9729
      %v9761 = vmul.f32 %v9718, %v9729
      %v9762 = vmul.f32 %v9721, %v9729
      %v9763 = vld [vmem:[%s11] sm:$0x1]
      %v9765 = vlaneseq
      %v9766 = vshrl.u32 %v9765, 7
      %v9767 = vsub.s32 0, %v9766
      %v9768 = vrot.slane %v9763, %v9767
      %v9770 = vadd.f32 %v9731, %v9768
      %v9771 = vadd.f32 %v9732, %v9768
      %v9772 = vadd.f32 %v9733, %v9768
      %v9773 = vadd.f32 %v9734, %v9768
      %v9774 = vadd.f32 %v9735, %v9768
      %v9775 = vadd.f32 %v9736, %v9768
      %v9776 = vadd.f32 %v9737, %v9768
      %v9777 = vadd.f32 %v9738, %v9768
      %v9778 = vadd.f32 %v9739, %v9768
      %v9779 = vadd.f32 %v9740, %v9768
      %v9780 = vadd.f32 %v9741, %v9768
      %v9781 = vadd.f32 %v9742, %v9768
      %v9782 = vadd.f32 %v9743, %v9768
      %v9783 = vadd.f32 %v9744, %v9768
      %v9784 = vadd.f32 %v9745, %v9768
      %v9785 = vadd.f32 %v9746, %v9768
      %v9786 = vadd.f32 %v9747, %v9768
      %v9787 = vadd.f32 %v9748, %v9768
      %v9788 = vadd.f32 %v9749, %v9768
      %v9789 = vadd.f32 %v9750, %v9768
      %v9790 = vadd.f32 %v9751, %v9768
      %v9791 = vadd.f32 %v9752, %v9768
      %v9792 = vadd.f32 %v9753, %v9768
      %v9793 = vadd.f32 %v9754, %v9768
      %v9794 = vadd.f32 %v9755, %v9768
      %v9795 = vadd.f32 %v9756, %v9768
      %v9796 = vadd.f32 %v9757, %v9768
      %v9797 = vadd.f32 %v9758, %v9768
      %v9798 = vadd.f32 %v9759, %v9768
      %v9799 = vadd.f32 %v9760, %v9768
      %v9800 = vadd.f32 %v9761, %v9768
      %v9801 = vadd.f32 %v9762, %v9768
      %v9802 = vmax.f32 %v9770, 0.0
      %v9803 = vmax.f32 %v9771, 0.0
      %v9804 = vmax.f32 %v9772, 0.0
      %v9805 = vmax.f32 %v9773, 0.0
      %v9806 = vmax.f32 %v9774, 0.0
      %v9807 = vmax.f32 %v9775, 0.0
      %v9808 = vmax.f32 %v9776, 0.0
      %v9809 = vmax.f32 %v9777, 0.0
      %v9810 = vmax.f32 %v9778, 0.0
      %v9811 = vmax.f32 %v9779, 0.0
      %v9812 = vmax.f32 %v9780, 0.0
      %v9813 = vmax.f32 %v9781, 0.0
      %v9814 = vmax.f32 %v9782, 0.0
      %v9815 = vmax.f32 %v9783, 0.0
      %v9816 = vmax.f32 %v9784, 0.0
      %v9817 = vmax.f32 %v9785, 0.0
      %v9818 = vmax.f32 %v9786, 0.0
      %v9819 = vmax.f32 %v9787, 0.0
      %v9820 = vmax.f32 %v9788, 0.0
      %v9821 = vmax.f32 %v9789, 0.0
      %v9822 = vmax.f32 %v9790, 0.0
      %v9823 = vmax.f32 %v9791, 0.0
      %v9824 = vmax.f32 %v9792, 0.0
      %v9825 = vmax.f32 %v9793, 0.0
      %v9826 = vmax.f32 %v9794, 0.0
      %v9827 = vmax.f32 %v9795, 0.0
      %v9828 = vmax.f32 %v9796, 0.0
      %v9829 = vmax.f32 %v9797, 0.0
      %v9830 = vmax.f32 %v9798, 0.0
      %v9831 = vmax.f32 %v9799, 0.0
      %v9832 = vmax.f32 %v9800, 0.0
      %v9833 = vmax.f32 %v9801, 0.0
      %v9834 = vpack.c.bf16 %v9803, %v9802
      %v9835 = vpack.c.bf16 %v9805, %v9804
      %v9836 = vpack.c.bf16 %v9807, %v9806
      %v9837 = vpack.c.bf16 %v9809, %v9808
      %v9838 = vpack.c.bf16 %v9811, %v9810
      %v9839 = vpack.c.bf16 %v9813, %v9812
      %v9840 = vpack.c.bf16 %v9815, %v9814
      %v9841 = vpack.c.bf16 %v9817, %v9816
      %v9842 = vpack.c.bf16 %v9819, %v9818
      %v9843 = vpack.c.bf16 %v9821, %v9820
      %v9844 = vpack.c.bf16 %v9823, %v9822
      %v9845 = vpack.c.bf16 %v9825, %v9824
      %v9846 = vpack.c.bf16 %v9827, %v9826
      %v9847 = vpack.c.bf16 %v9829, %v9828
      %v9848 = vpack.c.bf16 %v9831, %v9830
      %v9849 = vpack.c.bf16 %v9833, %v9832
      %v9866 = vunpack.c.l.b16 %v9834
      %v9867 = vunpack.c.h.b16 %v9834
      %v9868 = vunpack.c.l.b16 %v9835
      %v9869 = vunpack.c.h.b16 %v9835
      %v9870 = vunpack.c.l.b16 %v9836
      %v9871 = vunpack.c.h.b16 %v9836
      %v9872 = vunpack.c.l.b16 %v9837
      %v9873 = vunpack.c.h.b16 %v9837
      %v9874 = vunpack.c.l.b16 %v9838
      %v9875 = vunpack.c.h.b16 %v9838
      %v9876 = vunpack.c.l.b16 %v9839
      %v9877 = vunpack.c.h.b16 %v9839
      %v9878 = vunpack.c.l.b16 %v9840
      %v9879 = vunpack.c.h.b16 %v9840
      %v9880 = vunpack.c.l.b16 %v9841
      %v9881 = vunpack.c.h.b16 %v9841
      %v9882 = vunpack.c.l.b16 %v9842
      %v9883 = vunpack.c.h.b16 %v9842
      %v9884 = vunpack.c.l.b16 %v9843
      %v9885 = vunpack.c.h.b16 %v9843
      %v9886 = vunpack.c.l.b16 %v9844
      %v9887 = vunpack.c.h.b16 %v9844
      %v9888 = vunpack.c.l.b16 %v9845
      %v9889 = vunpack.c.h.b16 %v9845
      %v9890 = vunpack.c.l.b16 %v9846
      %v9891 = vunpack.c.h.b16 %v9846
      %v9892 = vunpack.c.l.b16 %v9847
      %v9893 = vunpack.c.h.b16 %v9847
      %v9894 = vunpack.c.l.b16 %v9848
      %v9895 = vunpack.c.h.b16 %v9848
      %v9896 = vunpack.c.l.b16 %v9849
      %v9897 = vunpack.c.h.b16 %v9849
      %v9898 = vpack.c.b16 %v9866, %v9866
      %v9899 = vpack.c.b16 %v9867, %v9867
      %v9900 = vpack.c.b16 %v9868, %v9868
      %v9901 = vpack.c.b16 %v9869, %v9869
      %v9902 = vpack.c.b16 %v9870, %v9870
      %v9903 = vpack.c.b16 %v9871, %v9871
      %v9904 = vpack.c.b16 %v9872, %v9872
      %v9905 = vpack.c.b16 %v9873, %v9873
      %v9906 = vpack.c.b16 %v9874, %v9874
      %v9907 = vpack.c.b16 %v9875, %v9875
      %v9908 = vpack.c.b16 %v9876, %v9876
      %v9909 = vpack.c.b16 %v9877, %v9877
      %v9910 = vpack.c.b16 %v9878, %v9878
      %v9911 = vpack.c.b16 %v9879, %v9879
      %v9912 = vpack.c.b16 %v9880, %v9880
      %v9913 = vpack.c.b16 %v9881, %v9881
      %v9914 = vpack.c.b16 %v9882, %v9882
      %v9915 = vpack.c.b16 %v9883, %v9883
      %v9916 = vpack.c.b16 %v9884, %v9884
      %v9917 = vpack.c.b16 %v9885, %v9885
      %v9918 = vpack.c.b16 %v9886, %v9886
      %v9919 = vpack.c.b16 %v9887, %v9887
      %v9920 = vpack.c.b16 %v9888, %v9888
      %v9921 = vpack.c.b16 %v9889, %v9889
      %v9922 = vpack.c.b16 %v9890, %v9890
      %v9923 = vpack.c.b16 %v9891, %v9891
      %v9924 = vpack.c.b16 %v9892, %v9892
      %v9925 = vpack.c.b16 %v9893, %v9893
      %v9926 = vpack.c.b16 %v9894, %v9894
      %v9927 = vpack.c.b16 %v9895, %v9895
      %v9928 = vpack.c.b16 %v9896, %v9896
      %v9929 = vpack.c.b16 %v9897, %v9897
      %9962 = vst [vmem:[%s413] sm:$0xf] %v9898
      %9963 = vst [vmem:[%s413 + $0x4] sm:$0xf] %v9899
      %9964 = vst [vmem:[%s413 + $0x8] sm:$0xf] %v9900
      %9965 = vst [vmem:[%s413 + $0xc] sm:$0xf] %v9901
      %9966 = vst [vmem:[%s413 + $0x10] sm:$0xf] %v9902
      %9967 = vst [vmem:[%s413 + $0x14] sm:$0xf] %v9903
      %9968 = vst [vmem:[%s413 + $0x18] sm:$0xf] %v9904
      %9969 = vst [vmem:[%s413 + $0x1c] sm:$0xf] %v9905
      %9970 = vst [vmem:[%s413 + $0x20] sm:$0xf] %v9906
      %9971 = vst [vmem:[%s413 + $0x24] sm:$0xf] %v9907
      %9972 = vst [vmem:[%s413 + $0x28] sm:$0xf] %v9908
      %9973 = vst [vmem:[%s413 + $0x2c] sm:$0xf] %v9909
      %9974 = vst [vmem:[%s413 + $0x30] sm:$0xf] %v9910
      %9975 = vst [vmem:[%s413 + $0x34] sm:$0xf] %v9911
      %9976 = vst [vmem:[%s413 + $0x38] sm:$0xf] %v9912
      %9977 = vst [vmem:[%s413 + $0x3c] sm:$0xf] %v9913
      %9978 = vst [vmem:[%s413 + $0x40] sm:$0xf] %v9914
      %9979 = vst [vmem:[%s413 + $0x44] sm:$0xf] %v9915
      %9980 = vst [vmem:[%s413 + $0x48] sm:$0xf] %v9916
      %9981 = vst [vmem:[%s413 + $0x4c] sm:$0xf] %v9917
      %9982 = vst [vmem:[%s413 + $0x50] sm:$0xf] %v9918
      %9983 = vst [vmem:[%s413 + $0x54] sm:$0xf] %v9919
      %9984 = vst [vmem:[%s413 + $0x58] sm:$0xf] %v9920
      %9985 = vst [vmem:[%s413 + $0x5c] sm:$0xf] %v9921
      %9986 = vst [vmem:[%s413 + $0x60] sm:$0xf] %v9922
      %9987 = vst [vmem:[%s413 + $0x64] sm:$0xf] %v9923
      %9988 = vst [vmem:[%s413 + $0x68] sm:$0xf] %v9924
      %9989 = vst [vmem:[%s413 + $0x6c] sm:$0xf] %v9925
      %9990 = vst [vmem:[%s413 + $0x70] sm:$0xf] %v9926
      %9991 = vst [vmem:[%s413 + $0x74] sm:$0xf] %v9927
      %9992 = vst [vmem:[%s413 + $0x78] sm:$0xf] %v9928
      %9993 = vst [vmem:[%s413 + $0x7c] sm:$0xf] %v9929
      %p9994 = scmp.lt.s32.totalorder %s23, 1
      %s9995 = scalar_select %p9994, %s23, 1
      %s9996 = smul.addr %s9995, 32
      %s9997 = smul.addr %s9996, 4
      %s9998 = scalar_lea.vmem %s12, %s9997
      // Predicated region
      $region69: #{aspp_forward.1} parent=67 // pred_check
        %p9999 = pneg %p298
      $region70: #{aspp_forward.1} parent=67 // pred_check_branch
        %10001 = sbr.rel (%p9999) target = $region72
      $region71: #{aspp_forward.1} parent=67 // pred_region
        _
      $region72: #{aspp_forward.1} parent=67 // pred_fallthru
        _
    $region68: #{aspp_forward.1} parent=5 // pred_fallthru
      _
    %p10002 = scmp.le.s32.totalorder 2, %s18
    // Predicated region
    $region73: #{aspp_forward.1} parent=5 // pred_check
      %p10003 = pneg %p10002
    $region74: #{aspp_forward.1} parent=5 // pred_check_branch
      %10005 = sbr.rel (%p10003) target = $region76
    $region75: #{aspp_forward.1} parent=5 // pred_region
      %s10006 = ssub.s32 %s18, 2
      // Predicated region
      $region77: #{aspp_forward.1} parent=75 // pred_check
        %p10007 = pneg %p304
      $region78: #{aspp_forward.1} parent=75 // pred_check_branch
        %10009 = sbr.rel (%p10007) target = $region80
      $region79: #{aspp_forward.1} parent=75 // pred_region
        %p10010 = scmp.lt.s32.totalorder %s24, 1
        %s10011 = scalar_select %p10010, %s24, 1
        %s10012 = smul.addr %s10011, 32
        %s10013 = smul.addr %s10012, 4
        %s10014 = scalar_lea.vmem %s12, %s10013
      $region80: #{aspp_forward.1} parent=75 // pred_fallthru
        _
    $region76: #{aspp_forward.1} parent=5 // pred_fallthru
      _
  $region6: #{aspp_forward.1} parent=0 // loop_footer
    %s22 = sadd.s32 1, %s18
  $region7: #{aspp_forward.1} parent=0 // loop_footer_branch
    %17 = sbr.rel target = $region3
  $region8: #{aspp_forward.1} parent=0 // loop_exit
    _

</llo_original>
